<compile_context>
chip_gen: v6e
topology: v6e:2x2x1
jax: 0.10.0
libtpu: 0.0.40
codegen_flags: <defaults>
</compile_context>

<pallas_src>
import functools

import jax
import jax.numpy as jnp
from jax.experimental import pallas as pl
from jax.experimental.pallas import tpu as pltpu


# ----------------------------------------------------------------------------
# Tiled GEMM + bias [+ ReLU]   (bf16 MXU, f32 accumulation)
# ----------------------------------------------------------------------------
def _gemm_bias_act_kernel(x_ref, w_ref, b_ref, o_ref, acc_ref, *, relu):
    @pl.when(pl.program_id(2) == 0)
    def _():
        acc_ref[...] = jnp.zeros_like(acc_ref)

    acc_ref[...] += jnp.dot(x_ref[...], w_ref[...],
                            preferred_element_type=jnp.float32)

    @pl.when(pl.program_id(2) == pl.num_programs(2) - 1)
    def _():
        y = acc_ref[...] + b_ref[...]          # f32 epilogue
        if relu:
            y = jnp.maximum(y, 0.0)
        o_ref[...] = y.astype(o_ref.dtype)


def _pick_tile(dim, target):
    """Return (tile, padded_dim).

    Largest 128-multiple tile <= target that divides dim; if the whole dim fits
    the target, use it directly.  If nothing divides, fall back to a 128-aligned
    tile and zero-pad dim up to a multiple of it (never request a full-dimension
    mega-block)."""
    if dim <= target:
        return dim, dim
    t = (target // 128) * 128
    while t >= 128:
        if dim % t == 0:
            return t, dim
        t -= 128
    t = max((target // 128) * 128, 128)
    padded = ((dim + t - 1) // t) * t
    return t, padded


def gemm_bias_act(x, w, b, *, relu=False, out_dtype=jnp.float32,
                  bm=256, bn=256, bk=8192):
    """(M, K) @ (K, N) + b [+ ReLU] as a tiled, double-buffered Pallas GEMM.

    Large K tiles keep the (weight-streaming) GEMM HBM-bound rather than
    grid-overhead-bound; bn=256 splits N=512 into 2 parallel tiles so v7x's
    two TensorCores each stream half of the weights."""
    M, K = x.shape
    K2, N = w.shape
    assert K == K2, (K, K2)

    x = x.astype(jnp.bfloat16)
    w = w.astype(jnp.bfloat16)
    b = b.astype(jnp.float32)

    tm, Mp = _pick_tile(M, bm)
    tn, Np = _pick_tile(N, bn)
    tk, Kp = _pick_tile(K, bk)

    if Mp != M:
        x = jnp.pad(x, ((0, Mp - M), (0, 0)))
    if Kp != K:
        x = jnp.pad(x, ((0, 0), (0, Kp - K)))
        w = jnp.pad(w, ((0, Kp - K), (0, 0)))
    if Np != N:
        w = jnp.pad(w, ((0, 0), (0, Np - N)))
        b = jnp.pad(b, ((0, Np - N),))
    b2 = b.reshape(1, Np)

    grid = (Mp // tm, Np // tn, Kp // tk)

    out = pl.pallas_call(
        functools.partial(_gemm_bias_act_kernel, relu=relu),
        out_shape=jax.ShapeDtypeStruct((Mp, Np), out_dtype),
        grid=grid,
        in_specs=[
            pl.BlockSpec((tm, tk), lambda i, j, k: (i, k)),
            pl.BlockSpec((tk, tn), lambda i, j, k: (k, j)),
            pl.BlockSpec((1, tn), lambda i, j, k: (0, j)),
        ],
        out_specs=pl.BlockSpec((tm, tn), lambda i, j, k: (i, j)),
        scratch_shapes=[pltpu.VMEM((tm, tn), jnp.float32)],
        compiler_params=pltpu.CompilerParams(
            dimension_semantics=("parallel", "parallel", "arbitrary")),
    )(x, w, b2)

    if Mp != M or Np != N:
        out = out[:M, :N]
    return out


# ----------------------------------------------------------------------------
# Fused Conv2d(3x3, stride 1, pad 1) + bias + ReLU + MaxPool2d(2, 2)
#   - strip-tiled over output rows, kx taps folded into the contraction
# ----------------------------------------------------------------------------
def _conv3x3_relu_pool_kernel(xs_ref, w_ref, b_ref, o_ref, acc_ref, *, RS, W, Cout):
    # xs_ref : (1, RS+2, W, K)  bf16   row strip with 1-row halo, kx folded (K = 3*Cin)
    # w_ref  : (3, K, Cout)     bf16   one K-deep weight block per ky tap
    # b_ref  : (1, Cout)        f32
    # o_ref  : (1, RS//2, (W//2)*Cout) bf16   lane-dense pooled strip
    # acc_ref: (RS*W, Cout)     f32    VMEM scratch accumulator
    K = xs_ref.shape[-1]
    x = xs_ref[0]                                         # (RS+2, W, K)

    for ky in range(3):                                   # 3 MXU matmuls, K = 3*Cin
        patch = x[ky:ky + RS].reshape(RS * W, K)
        contrib = jnp.dot(patch, w_ref[ky],
                          preferred_element_type=jnp.float32)
        if ky == 0:
            acc_ref[...] = contrib
        else:
            acc_ref[...] += contrib

    y = jnp.maximum(acc_ref[...] + b_ref[...], 0.0)       # bias + ReLU in f32

    # 2x2 / stride-2 max-pool via pairwise maxima on the strip.
    H2, W2 = RS // 2, W // 2
    y = y.reshape(H2, 2, W, Cout)
    y = jnp.maximum(y[:, 0], y[:, 1])                     # pool over row pairs
    y = y.reshape(H2, W2, 2, Cout)
    y = jnp.maximum(y[:, :, 0], y[:, :, 1])               # pool over column pairs
    o_ref[0] = y.reshape(H2, W2 * Cout).astype(o_ref.dtype)   # lane-dense writeback


def _pick_rows(H, target=16):
    """Largest strip height RS <= target with RS % 16 == 0 and H % RS == 0
    (so the pooled strip height is a sublane multiple); falls back to one
    whole-image strip."""
    cap = min(H, target)
    rs = cap - (cap % 16)
    while rs >= 16:
        if H % rs == 0:
            return rs
        rs -= 16
    return H


def conv3x3_relu_pool(x, w, b, *, rows_target=16):
    """Fused Conv2d(3x3, stride 1, pad 1) + bias + ReLU + MaxPool2d(2, 2).

    x: (B, H, W, Cin) NHWC.  w: (3, 3*Cin, Cout) bf16 (kx folded into K).
    Returns (B, H//2, W//2, Cout) bf16."""
    B, H, W, Cin = x.shape
    Cout = w.shape[-1]
    assert H % 2 == 0 and W % 2 == 0, "H and W must be even for 2x2 pooling"

    RS = _pick_rows(H, rows_target)
    S = H // RS
    H2, W2 = H // 2, W // 2
    K = 3 * Cin

    x = x.astype(jnp.bfloat16)
    xp = jnp.pad(x, ((0, 0), (1, 1), (1, 1), (0, 0)))            # 1-pixel halo pad
    # Fold the kx taps into the channel (contraction) axis: (B, H+2, W, 3*Cin).
    xk = jnp.concatenate(
        [xp[:, :, 0:W], xp[:, :, 1:W + 1], xp[:, :, 2:W + 2]], axis=-1)
    # Overlapping row strips (1-row halo each side): (B*S, RS+2, W, K).
    xs = jnp.stack([xk[:, s * RS: s * RS + RS + 2] for s in range(S)], axis=1)
    xs = xs.reshape(B * S, RS + 2, W, K)

    b2 = b.reshape(1, Cout).astype(jnp.float32)

    out = pl.pallas_call(
        functools.partial(_conv3x3_relu_pool_kernel, RS=RS, W=W, Cout=Cout),
        out_shape=jax.ShapeDtypeStruct((B, H2, W2 * Cout), jnp.bfloat16),
        grid=(B, S),
        in_specs=[
            pl.BlockSpec((1, RS + 2, W, K),
                         lambda bb, ss, S=S: (bb * S + ss, 0, 0, 0)),
            pl.BlockSpec((3, K, Cout), lambda bb, ss: (0, 0, 0)),
            pl.BlockSpec((1, Cout), lambda bb, ss: (0, 0)),
        ],
        out_specs=pl.BlockSpec((1, RS // 2, W2 * Cout),
                               lambda bb, ss: (bb, ss, 0)),
        scratch_shapes=[pltpu.VMEM((RS * W, Cout), jnp.float32)],
        compiler_params=pltpu.CompilerParams(
            dimension_semantics=("parallel", "parallel")),
    )(xs, w, b2)

    return out.reshape(B, H2, W2, Cout)      # free: same HBM bytes, row-major


# ----------------------------------------------------------------------------
# Fused tail: lin2 + question/answer projections + final fc (split weights)
# ----------------------------------------------------------------------------
def _tail_kernel(xv_ref, q_ref, a_ref,
                 w2_ref, b2_ref, wq_ref, bq_ref, wa_ref, ba_ref,
                 wfi_ref, wfq_ref, wfa_ref, bf_ref, o_ref):
    img_f = jnp.dot(xv_ref[...], w2_ref[...],
                    preferred_element_type=jnp.float32) + b2_ref[...]
    q_f = jnp.dot(q_ref[...], wq_ref[...],
                  preferred_element_type=jnp.float32) + bq_ref[...]
    a_f = jnp.dot(a_ref[...], wa_ref[...],
                  preferred_element_type=jnp.float32) + ba_ref[...]
    # fc(concat(img, q, a)) == img @ fc_w[:128] + q @ fc_w[128:256] + a @ fc_w[256:] + b
    out = (jnp.dot(img_f.astype(jnp.bfloat16), wfi_ref[...],
                   preferred_element_type=jnp.float32)
           + jnp.dot(q_f.astype(jnp.bfloat16), wfq_ref[...],
                     preferred_element_type=jnp.float32)
           + jnp.dot(a_f.astype(jnp.bfloat16), wfa_ref[...],
                     preferred_element_type=jnp.float32)
           + bf_ref[...])
    o_ref[...] = out.astype(o_ref.dtype)


def fused_tail(xv, q_emb, a_emb, p):
    B = xv.shape[0]
    nc = p["fc_b"].shape[0]
    args = (
        xv, q_emb, a_emb,
        p["lin2_w"], p["lin2_b"].reshape(1, -1).astype(jnp.float32),
        p["q_w"], p["q_b"].reshape(1, -1).astype(jnp.float32),
        p["a_w"], p["a_b"].reshape(1, -1).astype(jnp.float32),
        p["fc_w_img"], p["fc_w_q"], p["fc_w_a"],
        p["fc_b"].reshape(1, -1).astype(jnp.float32),
    )

    def full_spec(arr):
        shp = arr.shape
        return pl.BlockSpec(shp, lambda i, _s=shp: (0,) * len(_s))

    return pl.pallas_call(
        _tail_kernel,
        out_shape=jax.ShapeDtypeStruct((B, nc), jnp.float32),
        grid=(1,),
        in_specs=[full_spec(a) for a in args],
        out_specs=pl.BlockSpec((B, nc), lambda i: (0, 0)),
        compiler_params=pltpu.CompilerParams(dimension_semantics=("arbitrary",)),
    )(*args)


# ----------------------------------------------------------------------------
# Parameters (deterministic synthetic init; shapes follow ITM_Model.__init__)
# ----------------------------------------------------------------------------
def init_params(key, H, W, num_classes=2):
    ks = jax.random.split(key, 14)
    H4, W4 = H // 4, W // 4

    conv1_w = jax.random.normal(ks[0], (3, 3, 3, 64), jnp.float32) * 0.05
    conv1_b = jax.random.normal(ks[1], (64,), jnp.float32) * 0.05
    conv2_w = jax.random.normal(ks[2], (3, 3, 64, 128), jnp.float32) * 0.02
    conv2_b = jax.random.normal(ks[3], (128,), jnp.float32) * 0.02

    flat = 128 * H4 * W4          # == 128*56*56 at the reference 224x224 input

    def lin(kw, kb, fi, fo, s=0.02):
        return (jax.random.normal(kw, (fi, fo), jnp.float32) * s,
                jax.random.normal(kb, (fo,), jnp.float32) * s)

    lin1_w, lin1_b = lin(ks[4], ks[5], flat, 512)   # rows in NCHW-flatten (torch) order
    lin2_w, lin2_b = lin(ks[6], ks[7], 512, 128)
    q_w, q_b = lin(ks[8], ks[9], 768, 128)          # question_embedding_layer
    a_w, a_b = lin(ks[10], ks[11], 768, 128)        # answer_embedding_layer
    fc_w, fc_b = lin(ks[12], ks[13], 128 + 128 + 128, num_classes)

    # ---- one-time kernel-layout transforms (free at runtime) ----
    # Conv weights: (ky, kx, Cin, Cout) -> (3, 3*Cin, Cout), kx folded into K.
    conv1_w = conv1_w.reshape(3, 3 * 3, 64).astype(jnp.bfloat16)
    conv2_w = conv2_w.reshape(3, 3 * 64, 128).astype(jnp.bfloat16)

    # lin1: permute rows from NCHW-flatten to NHWC-flatten order so the runtime
    # transpose before Flatten is eliminated (exactly matches nn.Flatten order).
    h = jnp.arange(H4)[:, None, None]
    w_ = jnp.arange(W4)[None, :, None]
    c = jnp.arange(128)[None, None, :]
    nchw_rows = (c * (H4 * W4) + h * W4 + w_).reshape(-1)
    lin1_w = lin1_w[nchw_rows].astype(jnp.bfloat16)
    # TODO(synk): int8 (v5e/v6e) / fp8-e4m3 (v7x) weight-only quantization of lin1_w
    # would halve the dominant HBM weight stream; kept bf16 here for fidelity.

    return dict(
        conv1_w=conv1_w, conv1_b=conv1_b,
        conv2_w=conv2_w, conv2_b=conv2_b,
        lin1_w=lin1_w, lin1_b=lin1_b,
        lin2_w=lin2_w.astype(jnp.bfloat16), lin2_b=lin2_b,
        q_w=q_w.astype(jnp.bfloat16), q_b=q_b,
        a_w=a_w.astype(jnp.bfloat16), a_b=a_b,
        fc_w_img=fc_w[:128].astype(jnp.bfloat16),
        fc_w_q=fc_w[128:256].astype(jnp.bfloat16),
        fc_w_a=fc_w[256:].astype(jnp.bfloat16),
        fc_b=fc_b,
    )


# ----------------------------------------------------------------------------
# ITM_Model.forward (CustomCNN branch)
# ----------------------------------------------------------------------------
def itm_model_forward(params, img_nchw, question_embedding, answer_embedding):
    # NCHW (PyTorch) -> NHWC (kernel layout); cast to bf16 for the MXU.
    x = jnp.transpose(img_nchw, (0, 2, 3, 1)).astype(jnp.bfloat16)
    B = x.shape[0]

    # conv1 + ReLU + pool (fused, strip-tiled)
    x = conv3x3_relu_pool(x, params["conv1_w"], params["conv1_b"])   # (B, H/2, W/2, 64)
    # conv2 + ReLU + pool (fused, strip-tiled)
    x = conv3x3_relu_pool(x, params["conv2_w"], params["conv2_b"])   # (B, H/4, W/4, 128)

    # Flatten directly in NHWC order; lin1_w rows were pre-permuted to match.
    x = x.reshape(B, -1)

    # Linear(flat, 512) + ReLU  — tiled, K-streaming GEMM (the dominant layer).
    x = gemm_bias_act(x, params["lin1_w"], params["lin1_b"],
                      relu=True, out_dtype=jnp.bfloat16)

    # lin2 + question/answer projections + final fc, fused into one kernel.
    return fused_tail(x,
                      question_embedding.astype(jnp.bfloat16),
                      answer_embedding.astype(jnp.bfloat16),
                      params)


if __name__ == "__main__":
    # TODO(synk): 'CNN' (resnet18) and 'ViT' (vit_b_32) branches depend on
    # external torchvision backbones and are not reproduced; only the fully
    # specified 'CustomCNN' branch is implemented here.
    B, C, H, W = 2, 3, 16, 16
    key = jax.random.PRNGKey(0)
    k_img, k_q, k_a, k_p = jax.random.split(key, 4)

    img = jax.random.normal(k_img, (B, C, H, W), jnp.float32)        # NCHW
    question_embedding = jax.random.normal(k_q, (B, 768), jnp.float32)
    answer_embedding = jax.random.normal(k_a, (B, 768), jnp.float32)

    params = init_params(k_p, H, W, num_classes=2)

    fwd = jax.jit(itm_model_forward)
    out = jax.block_until_ready(fwd(params, img, question_embedding, answer_embedding))
    assert out.shape == (B, 2), out.shape
    print("KERNEL_OK")
</pallas_src>

<mosaic_0001>
module attributes {stable_mosaic.version = 11 : i64} {
  func.func @_conv3x3_relu_pool_kernel(%arg0: i32, %arg1: i32, %arg2: memref<1x18x16x9xbf16, #tpu.memory_space<vmem>>, %arg3: memref<3x9x64xbf16, #tpu.memory_space<vmem>>, %arg4: memref<1x64xf32, #tpu.memory_space<vmem>>, %arg5: memref<1x8x512xbf16, #tpu.memory_space<vmem>>, %arg6: memref<256x64xf32, #tpu.memory_space<vmem>>) attributes {dimension_semantics = [#tpu.dimension_semantics<parallel>, #tpu.dimension_semantics<parallel>], iteration_bounds = array<i64: 2, 1>, scalar_prefetch = 0 : i64, scratch_operands = 1 : i64, tpu.core_type = #tpu.core_type<tc>, window_params = [{transform_indices = @transform_0, window_bounds = array<i64: 1, 18, 16, 9>}, {pipeline_mode = #tpu.pipeline_mode<synchronous>, transform_indices = @transform_1, window_bounds = array<i64: 3, 9, 64>}, {pipeline_mode = #tpu.pipeline_mode<synchronous>, transform_indices = @transform_2, window_bounds = array<i64: 1, 64>}, {transform_indices = @transform_3, window_bounds = array<i64: 1, 8, 512>}]} {
    %c0 = arith.constant 0 : index
    %c0_0 = arith.constant 0 : index
    %c0_1 = arith.constant 0 : index
    %c0_2 = arith.constant 0 : index
    %0 = vector.load %arg2[%c0, %c0_0, %c0_1, %c0_2] : memref<1x18x16x9xbf16, #tpu.memory_space<vmem>>, vector<1x18x16x9xbf16>
    %1 = vector.shape_cast %0 : vector<1x18x16x9xbf16> to vector<18x16x9xbf16>
    %2 = vector.extract_strided_slice %1 {offsets = [0, 0, 0], sizes = [16, 16, 9], strides = [1, 1, 1]} : vector<18x16x9xbf16> to vector<16x16x9xbf16>
    %3 = vector.shape_cast %2 : vector<16x16x9xbf16> to vector<256x9xbf16>
    %c0_3 = arith.constant 0 : index
    %c0_4 = arith.constant 0 : index
    %c0_5 = arith.constant 0 : index
    %4 = vector.load %arg3[%c0_3, %c0_4, %c0_5] : memref<3x9x64xbf16, #tpu.memory_space<vmem>>, vector<1x9x64xbf16>
    %5 = vector.shape_cast %4 : vector<1x9x64xbf16> to vector<9x64xbf16>
    %cst = arith.constant dense<0.000000e+00> : vector<256x64xf32>
    %6 = tpu.matmul %3, %5, %cst {dimension_numbers = #tpu.dot_dimension_numbers<[1], [0], [0], [1], [0, 0, 1, 1], [], []>} : vector<256x9xbf16>, vector<9x64xbf16>, vector<256x64xf32> -> vector<256x64xf32>
    %c0_6 = arith.constant 0 : index
    %c0_7 = arith.constant 0 : index
    %7 = vector.load %arg6[%c0_6, %c0_7] : memref<256x64xf32, #tpu.memory_space<vmem>>, vector<256x64xf32>
    tpu.vector_store %arg6[%c0_6, %c0_7], %6 {strides = array<i32>} : memref<256x64xf32, #tpu.memory_space<vmem>>, vector<256x64xf32>,
    %8 = vector.extract_strided_slice %1 {offsets = [1, 0, 0], sizes = [16, 16, 9], strides = [1, 1, 1]} : vector<18x16x9xbf16> to vector<16x16x9xbf16>
    %9 = vector.shape_cast %8 : vector<16x16x9xbf16> to vector<256x9xbf16>
    %c1 = arith.constant 1 : index
    %c0_8 = arith.constant 0 : index
    %c0_9 = arith.constant 0 : index
    %10 = vector.load %arg3[%c1, %c0_8, %c0_9] : memref<3x9x64xbf16, #tpu.memory_space<vmem>>, vector<1x9x64xbf16>
    %11 = vector.shape_cast %10 : vector<1x9x64xbf16> to vector<9x64xbf16>
    %cst_10 = arith.constant dense<0.000000e+00> : vector<256x64xf32>
    %12 = tpu.matmul %9, %11, %cst_10 {dimension_numbers = #tpu.dot_dimension_numbers<[1], [0], [0], [1], [0, 0, 1, 1], [], []>} : vector<256x9xbf16>, vector<9x64xbf16>, vector<256x64xf32> -> vector<256x64xf32>
    %c0_11 = arith.constant 0 : index
    %c0_12 = arith.constant 0 : index
    %13 = vector.load %arg6[%c0_11, %c0_12] : memref<256x64xf32, #tpu.memory_space<vmem>>, vector<256x64xf32>
    %14 = arith.addf %13, %12 : vector<256x64xf32>
    %c0_13 = arith.constant 0 : index
    %c0_14 = arith.constant 0 : index
    %15 = vector.load %arg6[%c0_13, %c0_14] : memref<256x64xf32, #tpu.memory_space<vmem>>, vector<256x64xf32>
    tpu.vector_store %arg6[%c0_13, %c0_14], %14 {strides = array<i32>} : memref<256x64xf32, #tpu.memory_space<vmem>>, vector<256x64xf32>,
    %16 = vector.extract_strided_slice %1 {offsets = [2, 0, 0], sizes = [16, 16, 9], strides = [1, 1, 1]} : vector<18x16x9xbf16> to vector<16x16x9xbf16>
    %17 = vector.shape_cast %16 : vector<16x16x9xbf16> to vector<256x9xbf16>
    %c2 = arith.constant 2 : index
    %c0_15 = arith.constant 0 : index
    %c0_16 = arith.constant 0 : index
    %18 = vector.load %arg3[%c2, %c0_15, %c0_16] : memref<3x9x64xbf16, #tpu.memory_space<vmem>>, vector<1x9x64xbf16>
    %19 = vector.shape_cast %18 : vector<1x9x64xbf16> to vector<9x64xbf16>
    %cst_17 = arith.constant dense<0.000000e+00> : vector<256x64xf32>
    %20 = tpu.matmul %17, %19, %cst_17 {dimension_numbers = #tpu.dot_dimension_numbers<[1], [0], [0], [1], [0, 0, 1, 1], [], []>} : vector<256x9xbf16>, vector<9x64xbf16>, vector<256x64xf32> -> vector<256x64xf32>
    %c0_18 = arith.constant 0 : index
    %c0_19 = arith.constant 0 : index
    %21 = vector.load %arg6[%c0_18, %c0_19] : memref<256x64xf32, #tpu.memory_space<vmem>>, vector<256x64xf32>
    %22 = arith.addf %21, %20 : vector<256x64xf32>
    %c0_20 = arith.constant 0 : index
    %c0_21 = arith.constant 0 : index
    %23 = vector.load %arg6[%c0_20, %c0_21] : memref<256x64xf32, #tpu.memory_space<vmem>>, vector<256x64xf32>
    tpu.vector_store %arg6[%c0_20, %c0_21], %22 {strides = array<i32>} : memref<256x64xf32, #tpu.memory_space<vmem>>, vector<256x64xf32>,
    %c0_22 = arith.constant 0 : index
    %c0_23 = arith.constant 0 : index
    %24 = vector.load %arg6[%c0_22, %c0_23] : memref<256x64xf32, #tpu.memory_space<vmem>>, vector<256x64xf32>
    %c0_24 = arith.constant 0 : index
    %c0_25 = arith.constant 0 : index
    %25 = vector.load %arg4[%c0_24, %c0_25] : memref<1x64xf32, #tpu.memory_space<vmem>>, vector<1x64xf32>
    %26 = vector.broadcast %25 : vector<1x64xf32> to vector<256x64xf32>
    %27 = arith.addf %24, %26 : vector<256x64xf32>
    %cst_26 = arith.constant 0.000000e+00 : f32
    %28 = vector.broadcast %cst_26 : f32 to vector<256x64xf32>
    %29 = arith.maximumf %27, %28 : vector<256x64xf32>
    %30 = vector.shape_cast %29 : vector<256x64xf32> to vector<8x2x16x64xf32>
    %31 = vector.extract_strided_slice %30 {offsets = [0, 0, 0, 0], sizes = [8, 1, 16, 64], strides = [1, 1, 1, 1]} : vector<8x2x16x64xf32> to vector<8x1x16x64xf32>
    %32 = vector.shape_cast %31 : vector<8x1x16x64xf32> to vector<8x16x64xf32>
    %33 = vector.extract_strided_slice %30 {offsets = [0, 1, 0, 0], sizes = [8, 1, 16, 64], strides = [1, 1, 1, 1]} : vector<8x2x16x64xf32> to vector<8x1x16x64xf32>
    %34 = vector.shape_cast %33 : vector<8x1x16x64xf32> to vector<8x16x64xf32>
    %35 = arith.maximumf %32, %34 : vector<8x16x64xf32>
    %36 = vector.shape_cast %35 : vector<8x16x64xf32> to vector<8x8x2x64xf32>
    %37 = vector.extract_strided_slice %36 {offsets = [0, 0, 0, 0], sizes = [8, 8, 1, 64], strides = [1, 1, 1, 1]} : vector<8x8x2x64xf32> to vector<8x8x1x64xf32>
    %38 = vector.shape_cast %37 : vector<8x8x1x64xf32> to vector<8x8x64xf32>
    %39 = vector.extract_strided_slice %36 {offsets = [0, 0, 1, 0], sizes = [8, 8, 1, 64], strides = [1, 1, 1, 1]} : vector<8x8x2x64xf32> to vector<8x8x1x64xf32>
    %40 = vector.shape_cast %39 : vector<8x8x1x64xf32> to vector<8x8x64xf32>
    %41 = arith.maximumf %38, %40 : vector<8x8x64xf32>
    %42 = vector.shape_cast %41 : vector<8x8x64xf32> to vector<8x512xf32>
    %43 = arith.truncf %42 : vector<8x512xf32> to vector<8x512xbf16>
    %c0_27 = arith.constant 0 : index
    %c0_28 = arith.constant 0 : index
    %c0_29 = arith.constant 0 : index
    %44 = vector.load %arg5[%c0_27, %c0_28, %c0_29] : memref<1x8x512xbf16, #tpu.memory_space<vmem>>, vector<1x8x512xbf16>
    %45 = vector.shape_cast %44 : vector<1x8x512xbf16> to vector<8x512xbf16>
    %46 = vector.shape_cast %43 : vector<8x512xbf16> to vector<1x8x512xbf16>
    tpu.vector_store %arg5[%c0_27, %c0_28, %c0_29], %46 {strides = array<i32>} : memref<1x8x512xbf16, #tpu.memory_space<vmem>>, vector<1x8x512xbf16>,
    return
  }
  func.func @transform_0(%arg0: i32, %arg1: i32) -> (i32, i32, i32, i32) {
    %c1_i32 = arith.constant 1 : i32
    %0 = arith.muli %arg0, %c1_i32 : i32
    %1 = arith.addi %0, %arg1 : i32
    %c0_i32 = arith.constant 0 : i32
    %c0_i32_0 = arith.constant 0 : i32
    %c0_i32_1 = arith.constant 0 : i32
    %c0_i32_2 = arith.constant 0 : i32
    return %1, %c0_i32, %c0_i32_0, %c0_i32_1 : i32, i32, i32, i32
  }
  func.func @transform_1(%arg0: i32, %arg1: i32) -> (i32, i32, i32) {
    %c0_i32 = arith.constant 0 : i32
    %c0_i32_0 = arith.constant 0 : i32
    %c0_i32_1 = arith.constant 0 : i32
    %c0_i32_2 = arith.constant 0 : i32
    return %c0_i32, %c0_i32_0, %c0_i32_1 : i32, i32, i32
  }
  func.func @transform_2(%arg0: i32, %arg1: i32) -> (i32, i32) {
    %c0_i32 = arith.constant 0 : i32
    %c0_i32_0 = arith.constant 0 : i32
    %c0_i32_1 = arith.constant 0 : i32
    return %c0_i32, %c0_i32_0 : i32, i32
  }
  func.func @transform_3(%arg0: i32, %arg1: i32) -> (i32, i32, i32) {
    %c0_i32 = arith.constant 0 : i32
    %c0_i32_0 = arith.constant 0 : i32
    return %arg0, %arg1, %c0_i32 : i32, i32, i32
  }
}

module attributes {stable_mosaic.version = 11 : i64} {
  func.func @_gemm_bias_act_kernel(%arg0: i32, %arg1: i32, %arg2: i32, %arg3: memref<2x2048xbf16, #tpu.memory_space<vmem>>, %arg4: memref<2048x256xbf16, #tpu.memory_space<vmem>>, %arg5: memref<1x256xf32, #tpu.memory_space<vmem>>, %arg6: memref<2x256xbf16, #tpu.memory_space<vmem>>, %arg7: memref<2x256xf32, #tpu.memory_space<vmem>>) attributes {dimension_semantics = [#tpu.dimension_semantics<parallel>, #tpu.dimension_semantics<parallel>, #tpu.dimension_semantics<arbitrary>], iteration_bounds = array<i64: 1, 2, 1>, scalar_prefetch = 0 : i64, scratch_operands = 1 : i64, tpu.core_type = #tpu.core_type<tc>, window_params = [{transform_indices = @transform_0, window_bounds = array<i64: 2, 2048>}, {transform_indices = @transform_1, window_bounds = array<i64: 2048, 256>}, {transform_indices = @transform_2, window_bounds = array<i64: 1, 256>}, {transform_indices = @transform_3, window_bounds = array<i64: 2, 256>}]} {
    %c0_i32 = arith.constant 0 : i32
    %0 = arith.cmpi eq, %arg2, %c0_i32 : i32
    %1 = arith.extui %0 : i1 to i32
    %c0_i32_0 = arith.constant 0 : i32
    %2 = arith.cmpi ne, %1, %c0_i32_0 : i32
    scf.if %2 {
      %cst_10 = arith.constant 0.000000e+00 : f32
      %12 = vector.broadcast %cst_10 : f32 to vector<2x256xf32>
      %c0_11 = arith.constant 0 : index
      %c0_12 = arith.constant 0 : index
      %13 = vector.load %arg7[%c0_11, %c0_12] : memref<2x256xf32, #tpu.memory_space<vmem>>, vector<2x256xf32>
      tpu.vector_store %arg7[%c0_11, %c0_12], %12 {strides = array<i32>} : memref<2x256xf32, #tpu.memory_space<vmem>>, vector<2x256xf32>,
    } else {
    }
    %c0 = arith.constant 0 : index
    %c0_1 = arith.constant 0 : index
    %3 = vector.load %arg7[%c0, %c0_1] : memref<2x256xf32, #tpu.memory_space<vmem>>, vector<2x256xf32>
    %c0_2 = arith.constant 0 : index
    %c0_3 = arith.constant 0 : index
    %4 = vector.load %arg3[%c0_2, %c0_3] : memref<2x2048xbf16, #tpu.memory_space<vmem>>, vector<2x2048xbf16>
    %c0_4 = arith.constant 0 : index
    %c0_5 = arith.constant 0 : index
    %5 = vector.load %arg4[%c0_4, %c0_5] : memref<2048x256xbf16, #tpu.memory_space<vmem>>, vector<2048x256xbf16>
    %cst = arith.constant dense<0.000000e+00> : vector<2x256xf32>
    %6 = tpu.matmul %4, %5, %cst {dimension_numbers = #tpu.dot_dimension_numbers<[1], [0], [0], [1], [0, 0, 1, 1], [], []>} : vector<2x2048xbf16>, vector<2048x256xbf16>, vector<2x256xf32> -> vector<2x256xf32>
    %7 = arith.addf %3, %6 : vector<2x256xf32>
    %c0_6 = arith.constant 0 : index
    %c0_7 = arith.constant 0 : index
    %8 = vector.load %arg7[%c0_6, %c0_7] : memref<2x256xf32, #tpu.memory_space<vmem>>, vector<2x256xf32>
    tpu.vector_store %arg7[%c0_6, %c0_7], %7 {strides = array<i32>} : memref<2x256xf32, #tpu.memory_space<vmem>>, vector<2x256xf32>,
    %c0_i32_8 = arith.constant 0 : i32
    %9 = arith.cmpi eq, %arg2, %c0_i32_8 : i32
    %10 = arith.extui %9 : i1 to i32
    %c0_i32_9 = arith.constant 0 : i32
    %11 = arith.cmpi ne, %10, %c0_i32_9 : i32
    scf.if %11 {
      %c0_10 = arith.constant 0 : index
      %c0_11 = arith.constant 0 : index
      %12 = vector.load %arg7[%c0_10, %c0_11] : memref<2x256xf32, #tpu.memory_space<vmem>>, vector<2x256xf32>
      %c0_12 = arith.constant 0 : index
      %c0_13 = arith.constant 0 : index
      %13 = vector.load %arg5[%c0_12, %c0_13] : memref<1x256xf32, #tpu.memory_space<vmem>>, vector<1x256xf32>
      %14 = vector.broadcast %13 : vector<1x256xf32> to vector<2x256xf32>
      %15 = arith.addf %12, %14 : vector<2x256xf32>
      %cst_14 = arith.constant 0.000000e+00 : f32
      %16 = vector.broadcast %cst_14 : f32 to vector<2x256xf32>
      %17 = arith.maximumf %15, %16 : vector<2x256xf32>
      %18 = arith.truncf %17 : vector<2x256xf32> to vector<2x256xbf16>
      %c0_15 = arith.constant 0 : index
      %c0_16 = arith.constant 0 : index
      %19 = vector.load %arg6[%c0_15, %c0_16] : memref<2x256xbf16, #tpu.memory_space<vmem>>, vector<2x256xbf16>
      tpu.vector_store %arg6[%c0_15, %c0_16], %18 {strides = array<i32>} : memref<2x256xbf16, #tpu.memory_space<vmem>>, vector<2x256xbf16>,
    } else {
    }
    return
  }
  func.func @transform_0(%arg0: i32, %arg1: i32, %arg2: i32) -> (i32, i32) {
    %c0_i32 = arith.constant 0 : i32
    return %arg0, %arg2 : i32, i32
  }
  func.func @transform_1(%arg0: i32, %arg1: i32, %arg2: i32) -> (i32, i32) {
    %c0_i32 = arith.constant 0 : i32
    return %arg2, %arg1 : i32, i32
  }
  func.func @transform_2(%arg0: i32, %arg1: i32, %arg2: i32) -> (i32, i32) {
    %c0_i32 = arith.constant 0 : i32
    %c0_i32_0 = arith.constant 0 : i32
    return %c0_i32, %arg1 : i32, i32
  }
  func.func @transform_3(%arg0: i32, %arg1: i32, %arg2: i32) -> (i32, i32) {
    %c0_i32 = arith.constant 0 : i32
    return %arg0, %arg1 : i32, i32
  }
}

module attributes {stable_mosaic.version = 11 : i64} {
  func.func @_conv3x3_relu_pool_kernel(%arg0: i32, %arg1: i32, %arg2: memref<1x10x8x192xbf16, #tpu.memory_space<vmem>>, %arg3: memref<3x192x128xbf16, #tpu.memory_space<vmem>>, %arg4: memref<1x128xf32, #tpu.memory_space<vmem>>, %arg5: memref<1x4x512xbf16, #tpu.memory_space<vmem>>, %arg6: memref<64x128xf32, #tpu.memory_space<vmem>>) attributes {dimension_semantics = [#tpu.dimension_semantics<parallel>, #tpu.dimension_semantics<parallel>], iteration_bounds = array<i64: 2, 1>, scalar_prefetch = 0 : i64, scratch_operands = 1 : i64, tpu.core_type = #tpu.core_type<tc>, window_params = [{transform_indices = @transform_0, window_bounds = array<i64: 1, 10, 8, 192>}, {pipeline_mode = #tpu.pipeline_mode<synchronous>, transform_indices = @transform_1, window_bounds = array<i64: 3, 192, 128>}, {pipeline_mode = #tpu.pipeline_mode<synchronous>, transform_indices = @transform_2, window_bounds = array<i64: 1, 128>}, {transform_indices = @transform_3, window_bounds = array<i64: 1, 4, 512>}]} {
    %c0 = arith.constant 0 : index
    %c0_0 = arith.constant 0 : index
    %c0_1 = arith.constant 0 : index
    %c0_2 = arith.constant 0 : index
    %0 = vector.load %arg2[%c0, %c0_0, %c0_1, %c0_2] : memref<1x10x8x192xbf16, #tpu.memory_space<vmem>>, vector<1x10x8x192xbf16>
    %1 = vector.shape_cast %0 : vector<1x10x8x192xbf16> to vector<10x8x192xbf16>
    %2 = vector.extract_strided_slice %1 {offsets = [0, 0, 0], sizes = [8, 8, 192], strides = [1, 1, 1]} : vector<10x8x192xbf16> to vector<8x8x192xbf16>
    %3 = vector.shape_cast %2 : vector<8x8x192xbf16> to vector<64x192xbf16>
    %c0_3 = arith.constant 0 : index
    %c0_4 = arith.constant 0 : index
    %c0_5 = arith.constant 0 : index
    %4 = vector.load %arg3[%c0_3, %c0_4, %c0_5] : memref<3x192x128xbf16, #tpu.memory_space<vmem>>, vector<1x192x128xbf16>
    %5 = vector.shape_cast %4 : vector<1x192x128xbf16> to vector<192x128xbf16>
    %cst = arith.constant dense<0.000000e+00> : vector<64x128xf32>
    %6 = tpu.matmul %3, %5, %cst {dimension_numbers = #tpu.dot_dimension_numbers<[1], [0], [0], [1], [0, 0, 1, 1], [], []>} : vector<64x192xbf16>, vector<192x128xbf16>, vector<64x128xf32> -> vector<64x128xf32>
    %c0_6 = arith.constant 0 : index
    %c0_7 = arith.constant 0 : index
    %7 = vector.load %arg6[%c0_6, %c0_7] : memref<64x128xf32, #tpu.memory_space<vmem>>, vector<64x128xf32>
    tpu.vector_store %arg6[%c0_6, %c0_7], %6 {strides = array<i32>} : memref<64x128xf32, #tpu.memory_space<vmem>>, vector<64x128xf32>,
    %8 = vector.extract_strided_slice %1 {offsets = [1, 0, 0], sizes = [8, 8, 192], strides = [1, 1, 1]} : vector<10x8x192xbf16> to vector<8x8x192xbf16>
    %9 = vector.shape_cast %8 : vector<8x8x192xbf16> to vector<64x192xbf16>
    %c1 = arith.constant 1 : index
    %c0_8 = arith.constant 0 : index
    %c0_9 = arith.constant 0 : index
    %10 = vector.load %arg3[%c1, %c0_8, %c0_9] : memref<3x192x128xbf16, #tpu.memory_space<vmem>>, vector<1x192x128xbf16>
    %11 = vector.shape_cast %10 : vector<1x192x128xbf16> to vector<192x128xbf16>
    %cst_10 = arith.constant dense<0.000000e+00> : vector<64x128xf32>
    %12 = tpu.matmul %9, %11, %cst_10 {dimension_numbers = #tpu.dot_dimension_numbers<[1], [0], [0], [1], [0, 0, 1, 1], [], []>} : vector<64x192xbf16>, vector<192x128xbf16>, vector<64x128xf32> -> vector<64x128xf32>
    %c0_11 = arith.constant 0 : index
    %c0_12 = arith.constant 0 : index
    %13 = vector.load %arg6[%c0_11, %c0_12] : memref<64x128xf32, #tpu.memory_space<vmem>>, vector<64x128xf32>
    %14 = arith.addf %13, %12 : vector<64x128xf32>
    %c0_13 = arith.constant 0 : index
    %c0_14 = arith.constant 0 : index
    %15 = vector.load %arg6[%c0_13, %c0_14] : memref<64x128xf32, #tpu.memory_space<vmem>>, vector<64x128xf32>
    tpu.vector_store %arg6[%c0_13, %c0_14], %14 {strides = array<i32>} : memref<64x128xf32, #tpu.memory_space<vmem>>, vector<64x128xf32>,
    %16 = vector.extract_strided_slice %1 {offsets = [2, 0, 0], sizes = [8, 8, 192], strides = [1, 1, 1]} : vector<10x8x192xbf16> to vector<8x8x192xbf16>
    %17 = vector.shape_cast %16 : vector<8x8x192xbf16> to vector<64x192xbf16>
    %c2 = arith.constant 2 : index
    %c0_15 = arith.constant 0 : index
    %c0_16 = arith.constant 0 : index
    %18 = vector.load %arg3[%c2, %c0_15, %c0_16] : memref<3x192x128xbf16, #tpu.memory_space<vmem>>, vector<1x192x128xbf16>
    %19 = vector.shape_cast %18 : vector<1x192x128xbf16> to vector<192x128xbf16>
    %cst_17 = arith.constant dense<0.000000e+00> : vector<64x128xf32>
    %20 = tpu.matmul %17, %19, %cst_17 {dimension_numbers = #tpu.dot_dimension_numbers<[1], [0], [0], [1], [0, 0, 1, 1], [], []>} : vector<64x192xbf16>, vector<192x128xbf16>, vector<64x128xf32> -> vector<64x128xf32>
    %c0_18 = arith.constant 0 : index
    %c0_19 = arith.constant 0 : index
    %21 = vector.load %arg6[%c0_18, %c0_19] : memref<64x128xf32, #tpu.memory_space<vmem>>, vector<64x128xf32>
    %22 = arith.addf %21, %20 : vector<64x128xf32>
    %c0_20 = arith.constant 0 : index
    %c0_21 = arith.constant 0 : index
    %23 = vector.load %arg6[%c0_20, %c0_21] : memref<64x128xf32, #tpu.memory_space<vmem>>, vector<64x128xf32>
    tpu.vector_store %arg6[%c0_20, %c0_21], %22 {strides = array<i32>} : memref<64x128xf32, #tpu.memory_space<vmem>>, vector<64x128xf32>,
    %c0_22 = arith.constant 0 : index
    %c0_23 = arith.constant 0 : index
    %24 = vector.load %arg6[%c0_22, %c0_23] : memref<64x128xf32, #tpu.memory_space<vmem>>, vector<64x128xf32>
    %c0_24 = arith.constant 0 : index
    %c0_25 = arith.constant 0 : index
    %25 = vector.load %arg4[%c0_24, %c0_25] : memref<1x128xf32, #tpu.memory_space<vmem>>, vector<1x128xf32>
    %26 = vector.broadcast %25 : vector<1x128xf32> to vector<64x128xf32>
    %27 = arith.addf %24, %26 : vector<64x128xf32>
    %cst_26 = arith.constant 0.000000e+00 : f32
    %28 = vector.broadcast %cst_26 : f32 to vector<64x128xf32>
    %29 = arith.maximumf %27, %28 : vector<64x128xf32>
    %30 = vector.shape_cast %29 : vector<64x128xf32> to vector<4x2x8x128xf32>
    %31 = vector.extract_strided_slice %30 {offsets = [0, 0, 0, 0], sizes = [4, 1, 8, 128], strides = [1, 1, 1, 1]} : vector<4x2x8x128xf32> to vector<4x1x8x128xf32>
    %32 = vector.shape_cast %31 : vector<4x1x8x128xf32> to vector<4x8x128xf32>
    %33 = vector.extract_strided_slice %30 {offsets = [0, 1, 0, 0], sizes = [4, 1, 8, 128], strides = [1, 1, 1, 1]} : vector<4x2x8x128xf32> to vector<4x1x8x128xf32>
    %34 = vector.shape_cast %33 : vector<4x1x8x128xf32> to vector<4x8x128xf32>
    %35 = arith.maximumf %32, %34 : vector<4x8x128xf32>
    %36 = vector.shape_cast %35 : vector<4x8x128xf32> to vector<4x4x2x128xf32>
    %37 = vector.extract_strided_slice %36 {offsets = [0, 0, 0, 0], sizes = [4, 4, 1, 128], strides = [1, 1, 1, 1]} : vector<4x4x2x128xf32> to vector<4x4x1x128xf32>
    %38 = vector.shape_cast %37 : vector<4x4x1x128xf32> to vector<4x4x128xf32>
    %39 = vector.extract_strided_slice %36 {offsets = [0, 0, 1, 0], sizes = [4, 4, 1, 128], strides = [1, 1, 1, 1]} : vector<4x4x2x128xf32> to vector<4x4x1x128xf32>
    %40 = vector.shape_cast %39 : vector<4x4x1x128xf32> to vector<4x4x128xf32>
    %41 = arith.maximumf %38, %40 : vector<4x4x128xf32>
    %42 = vector.shape_cast %41 : vector<4x4x128xf32> to vector<4x512xf32>
    %43 = arith.truncf %42 : vector<4x512xf32> to vector<4x512xbf16>
    %c0_27 = arith.constant 0 : index
    %c0_28 = arith.constant 0 : index
    %c0_29 = arith.constant 0 : index
    %44 = vector.load %arg5[%c0_27, %c0_28, %c0_29] : memref<1x4x512xbf16, #tpu.memory_space<vmem>>, vector<1x4x512xbf16>
    %45 = vector.shape_cast %44 : vector<1x4x512xbf16> to vector<4x512xbf16>
    %46 = vector.shape_cast %43 : vector<4x512xbf16> to vector<1x4x512xbf16>
    tpu.vector_store %arg5[%c0_27, %c0_28, %c0_29], %46 {strides = array<i32>} : memref<1x4x512xbf16, #tpu.memory_space<vmem>>, vector<1x4x512xbf16>,
    return
  }
  func.func @transform_0(%arg0: i32, %arg1: i32) -> (i32, i32, i32, i32) {
    %c1_i32 = arith.constant 1 : i32
    %0 = arith.muli %arg0, %c1_i32 : i32
    %1 = arith.addi %0, %arg1 : i32
    %c0_i32 = arith.constant 0 : i32
    %c0_i32_0 = arith.constant 0 : i32
    %c0_i32_1 = arith.constant 0 : i32
    %c0_i32_2 = arith.constant 0 : i32
    return %1, %c0_i32, %c0_i32_0, %c0_i32_1 : i32, i32, i32, i32
  }
  func.func @transform_1(%arg0: i32, %arg1: i32) -> (i32, i32, i32) {
    %c0_i32 = arith.constant 0 : i32
    %c0_i32_0 = arith.constant 0 : i32
    %c0_i32_1 = arith.constant 0 : i32
    %c0_i32_2 = arith.constant 0 : i32
    return %c0_i32, %c0_i32_0, %c0_i32_1 : i32, i32, i32
  }
  func.func @transform_2(%arg0: i32, %arg1: i32) -> (i32, i32) {
    %c0_i32 = arith.constant 0 : i32
    %c0_i32_0 = arith.constant 0 : i32
    %c0_i32_1 = arith.constant 0 : i32
    return %c0_i32, %c0_i32_0 : i32, i32
  }
  func.func @transform_3(%arg0: i32, %arg1: i32) -> (i32, i32, i32) {
    %c0_i32 = arith.constant 0 : i32
    %c0_i32_0 = arith.constant 0 : i32
    return %arg0, %arg1, %c0_i32 : i32, i32, i32
  }
}

module attributes {stable_mosaic.version = 11 : i64} {
  func.func @_tail_kernel(%arg0: i32, %arg1: memref<2x512xbf16, #tpu.memory_space<vmem>>, %arg2: memref<2x768xbf16, #tpu.memory_space<vmem>>, %arg3: memref<2x768xbf16, #tpu.memory_space<vmem>>, %arg4: memref<512x128xbf16, #tpu.memory_space<vmem>>, %arg5: memref<1x128xf32, #tpu.memory_space<vmem>>, %arg6: memref<768x128xbf16, #tpu.memory_space<vmem>>, %arg7: memref<1x128xf32, #tpu.memory_space<vmem>>, %arg8: memref<768x128xbf16, #tpu.memory_space<vmem>>, %arg9: memref<1x128xf32, #tpu.memory_space<vmem>>, %arg10: memref<128x2xbf16, #tpu.memory_space<vmem>>, %arg11: memref<128x2xbf16, #tpu.memory_space<vmem>>, %arg12: memref<128x2xbf16, #tpu.memory_space<vmem>>, %arg13: memref<1x2xf32, #tpu.memory_space<vmem>>, %arg14: memref<2x2xf32, #tpu.memory_space<vmem>>) attributes {dimension_semantics = [#tpu.dimension_semantics<arbitrary>], iteration_bounds = array<i64: 1>, scalar_prefetch = 0 : i64, scratch_operands = 0 : i64, tpu.core_type = #tpu.core_type<tc>, window_params = [{pipeline_mode = #tpu.pipeline_mode<synchronous>, transform_indices = @transform_0, window_bounds = array<i64: 2, 512>}, {pipeline_mode = #tpu.pipeline_mode<synchronous>, transform_indices = @transform_1, window_bounds = array<i64: 2, 768>}, {pipeline_mode = #tpu.pipeline_mode<synchronous>, transform_indices = @transform_2, window_bounds = array<i64: 2, 768>}, {pipeline_mode = #tpu.pipeline_mode<synchronous>, transform_indices = @transform_3, window_bounds = array<i64: 512, 128>}, {pipeline_mode = #tpu.pipeline_mode<synchronous>, transform_indices = @transform_4, window_bounds = array<i64: 1, 128>}, {pipeline_mode = #tpu.pipeline_mode<synchronous>, transform_indices = @transform_5, window_bounds = array<i64: 768, 128>}, {pipeline_mode = #tpu.pipeline_mode<synchronous>, transform_indices = @transform_6, window_bounds = array<i64: 1, 128>}, {pipeline_mode = #tpu.pipeline_mode<synchronous>, transform_indices = @transform_7, window_bounds = array<i64: 768, 128>}, {pipeline_mode = #tpu.pipeline_mode<synchronous>, transform_indices = @transform_8, window_bounds = array<i64: 1, 128>}, {pipeline_mode = #tpu.pipeline_mode<synchronous>, transform_indices = @transform_9, window_bounds = array<i64: 128, 2>}, {pipeline_mode = #tpu.pipeline_mode<synchronous>, transform_indices = @transform_10, window_bounds = array<i64: 128, 2>}, {pipeline_mode = #tpu.pipeline_mode<synchronous>, transform_indices = @transform_11, window_bounds = array<i64: 128, 2>}, {pipeline_mode = #tpu.pipeline_mode<synchronous>, transform_indices = @transform_12, window_bounds = array<i64: 1, 2>}, {pipeline_mode = #tpu.pipeline_mode<synchronous>, transform_indices = @transform_13, window_bounds = array<i64: 2, 2>}]} {
    %c0 = arith.constant 0 : index
    %c0_0 = arith.constant 0 : index
    %0 = vector.load %arg1[%c0, %c0_0] : memref<2x512xbf16, #tpu.memory_space<vmem>>, vector<2x512xbf16>
    %c0_1 = arith.constant 0 : index
    %c0_2 = arith.constant 0 : index
    %1 = vector.load %arg4[%c0_1, %c0_2] : memref<512x128xbf16, #tpu.memory_space<vmem>>, vector<512x128xbf16>
    %cst = arith.constant dense<0.000000e+00> : vector<2x128xf32>
    %2 = tpu.matmul %0, %1, %cst {dimension_numbers = #tpu.dot_dimension_numbers<[1], [0], [0], [1], [0, 0, 1, 1], [], []>} : vector<2x512xbf16>, vector<512x128xbf16>, vector<2x128xf32> -> vector<2x128xf32>
    %c0_3 = arith.constant 0 : index
    %c0_4 = arith.constant 0 : index
    %3 = vector.load %arg5[%c0_3, %c0_4] : memref<1x128xf32, #tpu.memory_space<vmem>>, vector<1x128xf32>
    %4 = vector.broadcast %3 : vector<1x128xf32> to vector<2x128xf32>
    %5 = arith.addf %2, %4 : vector<2x128xf32>
    %c0_5 = arith.constant 0 : index
    %c0_6 = arith.constant 0 : index
    %6 = vector.load %arg2[%c0_5, %c0_6] : memref<2x768xbf16, #tpu.memory_space<vmem>>, vector<2x768xbf16>
    %c0_7 = arith.constant 0 : index
    %c0_8 = arith.constant 0 : index
    %7 = vector.load %arg6[%c0_7, %c0_8] : memref<768x128xbf16, #tpu.memory_space<vmem>>, vector<768x128xbf16>
    %cst_9 = arith.constant dense<0.000000e+00> : vector<2x128xf32>
    %8 = tpu.matmul %6, %7, %cst_9 {dimension_numbers = #tpu.dot_dimension_numbers<[1], [0], [0], [1], [0, 0, 1, 1], [], []>} : vector<2x768xbf16>, vector<768x128xbf16>, vector<2x128xf32> -> vector<2x128xf32>
    %c0_10 = arith.constant 0 : index
    %c0_11 = arith.constant 0 : index
    %9 = vector.load %arg7[%c0_10, %c0_11] : memref<1x128xf32, #tpu.memory_space<vmem>>, vector<1x128xf32>
    %10 = vector.broadcast %9 : vector<1x128xf32> to vector<2x128xf32>
    %11 = arith.addf %8, %10 : vector<2x128xf32>
    %c0_12 = arith.constant 0 : index
    %c0_13 = arith.constant 0 : index
    %12 = vector.load %arg3[%c0_12, %c0_13] : memref<2x768xbf16, #tpu.memory_space<vmem>>, vector<2x768xbf16>
    %c0_14 = arith.constant 0 : index
    %c0_15 = arith.constant 0 : index
    %13 = vector.load %arg8[%c0_14, %c0_15] : memref<768x128xbf16, #tpu.memory_space<vmem>>, vector<768x128xbf16>
    %cst_16 = arith.constant dense<0.000000e+00> : vector<2x128xf32>
    %14 = tpu.matmul %12, %13, %cst_16 {dimension_numbers = #tpu.dot_dimension_numbers<[1], [0], [0], [1], [0, 0, 1, 1], [], []>} : vector<2x768xbf16>, vector<768x128xbf16>, vector<2x128xf32> -> vector<2x128xf32>
    %c0_17 = arith.constant 0 : index
    %c0_18 = arith.constant 0 : index
    %15 = vector.load %arg9[%c0_17, %c0_18] : memref<1x128xf32, #tpu.memory_space<vmem>>, vector<1x128xf32>
    %16 = vector.broadcast %15 : vector<1x128xf32> to vector<2x128xf32>
    %17 = arith.addf %14, %16 : vector<2x128xf32>
    %18 = arith.truncf %5 : vector<2x128xf32> to vector<2x128xbf16>
    %c0_19 = arith.constant 0 : index
    %c0_20 = arith.constant 0 : index
    %19 = vector.load %arg10[%c0_19, %c0_20] : memref<128x2xbf16, #tpu.memory_space<vmem>>, vector<128x2xbf16>
    %cst_21 = arith.constant dense<0.000000e+00> : vector<2x2xf32>
    %20 = tpu.matmul %18, %19, %cst_21 {dimension_numbers = #tpu.dot_dimension_numbers<[1], [0], [0], [1], [0, 0, 1, 1], [], []>} : vector<2x128xbf16>, vector<128x2xbf16>, vector<2x2xf32> -> vector<2x2xf32>
    %21 = arith.truncf %11 : vector<2x128xf32> to vector<2x128xbf16>
    %c0_22 = arith.constant 0 : index
    %c0_23 = arith.constant 0 : index
    %22 = vector.load %arg11[%c0_22, %c0_23] : memref<128x2xbf16, #tpu.memory_space<vmem>>, vector<128x2xbf16>
    %cst_24 = arith.constant dense<0.000000e+00> : vector<2x2xf32>
    %23 = tpu.matmul %21, %22, %cst_24 {dimension_numbers = #tpu.dot_dimension_numbers<[1], [0], [0], [1], [0, 0, 1, 1], [], []>} : vector<2x128xbf16>, vector<128x2xbf16>, vector<2x2xf32> -> vector<2x2xf32>
    %24 = arith.addf %20, %23 : vector<2x2xf32>
    %25 = arith.truncf %17 : vector<2x128xf32> to vector<2x128xbf16>
    %c0_25 = arith.constant 0 : index
    %c0_26 = arith.constant 0 : index
    %26 = vector.load %arg12[%c0_25, %c0_26] : memref<128x2xbf16, #tpu.memory_space<vmem>>, vector<128x2xbf16>
    %cst_27 = arith.constant dense<0.000000e+00> : vector<2x2xf32>
    %27 = tpu.matmul %25, %26, %cst_27 {dimension_numbers = #tpu.dot_dimension_numbers<[1], [0], [0], [1], [0, 0, 1, 1], [], []>} : vector<2x128xbf16>, vector<128x2xbf16>, vector<2x2xf32> -> vector<2x2xf32>
    %28 = arith.addf %24, %27 : vector<2x2xf32>
    %c0_28 = arith.constant 0 : index
    %c0_29 = arith.constant 0 : index
    %29 = vector.load %arg13[%c0_28, %c0_29] : memref<1x2xf32, #tpu.memory_space<vmem>>, vector<1x2xf32>
    %30 = vector.broadcast %29 : vector<1x2xf32> to vector<2x2xf32>
    %31 = arith.addf %28, %30 : vector<2x2xf32>
    %c0_30 = arith.constant 0 : index
    %c0_31 = arith.constant 0 : index
    %32 = vector.load %arg14[%c0_30, %c0_31] : memref<2x2xf32, #tpu.memory_space<vmem>>, vector<2x2xf32>
    tpu.vector_store %arg14[%c0_30, %c0_31], %31 {strides = array<i32>} : memref<2x2xf32, #tpu.memory_space<vmem>>, vector<2x2xf32>,
    return
  }
  func.func @transform_0(%arg0: i32) -> (i32, i32) {
    %c0_i32 = arith.constant 0 : i32
    %c0_i32_0 = arith.constant 0 : i32
    %c0_i32_1 = arith.constant 0 : i32
    return %c0_i32, %c0_i32_0 : i32, i32
  }
  func.func @transform_1(%arg0: i32) -> (i32, i32) {
    %c0_i32 = arith.constant 0 : i32
    %c0_i32_0 = arith.constant 0 : i32
    %c0_i32_1 = arith.constant 0 : i32
    return %c0_i32, %c0_i32_0 : i32, i32
  }
  func.func @transform_2(%arg0: i32) -> (i32, i32) {
    %c0_i32 = arith.constant 0 : i32
    %c0_i32_0 = arith.constant 0 : i32
    %c0_i32_1 = arith.constant 0 : i32
    return %c0_i32, %c0_i32_0 : i32, i32
  }
  func.func @transform_3(%arg0: i32) -> (i32, i32) {
    %c0_i32 = arith.constant 0 : i32
    %c0_i32_0 = arith.constant 0 : i32
    %c0_i32_1 = arith.constant 0 : i32
    return %c0_i32, %c0_i32_0 : i32, i32
  }
  func.func @transform_4(%arg0: i32) -> (i32, i32) {
    %c0_i32 = arith.constant 0 : i32
    %c0_i32_0 = arith.constant 0 : i32
    %c0_i32_1 = arith.constant 0 : i32
    return %c0_i32, %c0_i32_0 : i32, i32
  }
  func.func @transform_5(%arg0: i32) -> (i32, i32) {
    %c0_i32 = arith.constant 0 : i32
    %c0_i32_0 = arith.constant 0 : i32
    %c0_i32_1 = arith.constant 0 : i32
    return %c0_i32, %c0_i32_0 : i32, i32
  }
  func.func @transform_6(%arg0: i32) -> (i32, i32) {
    %c0_i32 = arith.constant 0 : i32
    %c0_i32_0 = arith.constant 0 : i32
    %c0_i32_1 = arith.constant 0 : i32
    return %c0_i32, %c0_i32_0 : i32, i32
  }
  func.func @transform_7(%arg0: i32) -> (i32, i32) {
    %c0_i32 = arith.constant 0 : i32
    %c0_i32_0 = arith.constant 0 : i32
    %c0_i32_1 = arith.constant 0 : i32
    return %c0_i32, %c0_i32_0 : i32, i32
  }
  func.func @transform_8(%arg0: i32) -> (i32, i32) {
    %c0_i32 = arith.constant 0 : i32
    %c0_i32_0 = arith.constant 0 : i32
    %c0_i32_1 = arith.constant 0 : i32
    return %c0_i32, %c0_i32_0 : i32, i32
  }
  func.func @transform_9(%arg0: i32) -> (i32, i32) {
    %c0_i32 = arith.constant 0 : i32
    %c0_i32_0 = arith.constant 0 : i32
    %c0_i32_1 = arith.constant 0 : i32
    return %c0_i32, %c0_i32_0 : i32, i32
  }
  func.func @transform_10(%arg0: i32) -> (i32, i32) {
    %c0_i32 = arith.constant 0 : i32
    %c0_i32_0 = arith.constant 0 : i32
    %c0_i32_1 = arith.constant 0 : i32
    return %c0_i32, %c0_i32_0 : i32, i32
  }
  func.func @transform_11(%arg0: i32) -> (i32, i32) {
    %c0_i32 = arith.constant 0 : i32
    %c0_i32_0 = arith.constant 0 : i32
    %c0_i32_1 = arith.constant 0 : i32
    return %c0_i32, %c0_i32_0 : i32, i32
  }
  func.func @transform_12(%arg0: i32) -> (i32, i32) {
    %c0_i32 = arith.constant 0 : i32
    %c0_i32_0 = arith.constant 0 : i32
    %c0_i32_1 = arith.constant 0 : i32
    return %c0_i32, %c0_i32_0 : i32, i32
  }
  func.func @transform_13(%arg0: i32) -> (i32, i32) {
    %c0_i32 = arith.constant 0 : i32
    %c0_i32_0 = arith.constant 0 : i32
    %c0_i32_1 = arith.constant 0 : i32
    return %c0_i32, %c0_i32_0 : i32, i32
  }
}

</mosaic_0001>

<llo_original>
// kernel: itm_model_forward.5
$region0: #{itm_model_forward.5}
  #allocation0 [shape = 'u32[]', space=smem, size = 0x4, offset = 0x4, fixed_abs, tag = 'smem constant byte address 0x4 - core index']
  #allocation1 [shape = 'u32[144,128]{1,0:T(1,128)}', space=vmem, size = 0x12000, scoped, tag = 'internal scratch']
  #allocation2 [shape = 'f32[64,128]{1,0:T(8,128)}', space=vmem, size = 0x8000, scoped, tag = 'scratch operand']
  %s0 = inlined_call_operand.vmem [shape: bf16[2,10,8,192], index: 0, kind: input, shape index: {}]
  %s1 = inlined_call_operand.vmem [shape: bf16[3,192,128], index: 1, kind: input, shape index: {}]
  %s2 = inlined_call_operand.hbm [shape: f32[1,128], index: 2, kind: input, shape index: {}]
  %s3 = inlined_call_operand.vmem [shape: bf16[2,4,512], index: 3, kind: output, shape index: {}]
  %s4 = sld [smem:[#allocation0]]
  $region49: #{itm_model_forward.5} parent=0
    _
  %s6 = ssub.s32 1, %s4
  %s7 = scalar_select 0, %s6, %s4
  $region1: #{itm_model_forward.5} parent=0
    #allocation3 [shape = 'u8[512]{0}', space=vmem, size = 0x400, scoped, tag = 'input window, operand 2, single buffered']
    #allocation4 [shape = 's32[2]{0}', space=sflag, size = 0x8, scoped, tag = 'scoped memory for itm_model_forward.5']
    %8 = vsyncpa [#allocation4], 0
    loop: start=0, step=1, limit=4
    $region2: #{itm_model_forward.5} parent=1 // loop_pre_header
      _
    $region3: #{itm_model_forward.5} parent=1 // loop_header
      %s10 = sphi 0, %s14
      %p11 = scmp.ge.s32.totalorder %s10, 4
      %s17 = sphi 0, %s29
      %s18 = sphi 0, %s25
      %s19 = sphi 0, %s17
      %s20 = sphi 0, %s18
      %s21 = sphi 0, %s19
      %s22 = sphi 0, %s20
      %s34 = sphi 0, %s36
      %s37 = sphi 0, %s34
      %s38 = sphi 0, %s37
      %s54 = sphi 0, %s38
      %s58 = sphi 0, %s58
      %s60 = sphi 0, %s58
      %s61 = sphi 0, %s60
      %s75 = sphi 0, %s61
      %s79 = sphi 0, %s79
      %s81 = sphi 0, %s79
      %s82 = sphi 0, %s81
      %s96 = sphi 0, %s82
      %s104 = sphi 0, %s106
      %s107 = sphi 0, %s104
      %s108 = sphi 0, %s107
      %s124 = sphi 0, %s108
    $region4: #{itm_model_forward.5} parent=1 // loop_header_branch
      %13 = sbr.rel (%p11) target = $region8
    $region5: #{itm_model_forward.5} parent=1 // loop_body
      %s15 = ssub.s32 %s10, 1
      %s16 = ssub.s32 %s10, 2
      %s23 = sadd.s32 1, %s18
      %p24 = scmp.ge.s32.totalorder %s23, 1
      %s25 = scalar_select %p24, 0, %s23
      %s26 = sadd.s32 1, %s17
      %s27 = scalar_select %p24, %s26, %s17
      %p28 = scmp.ge.s32.totalorder %s27, 2
      %s29 = scalar_select %p28, 0, %s27
      %s30 = sadd.s32 %s17, %s18
      %s31 = sadd.s32 %s29, %s25
      %s32 = ssub.s32 %s30, %s31
      %p33 = scmp.eq.s32.totalorder %s32, 0
      %s35 = sadd.s32 %s34, 1
      %s36 = scalar_select %p33, %s34, %s35
      %p39 = pneg %p33
      %p40 = scmp.eq.s32.totalorder %s10, 1
      %p41 = por %p39, %p40
      %p42 = scmp.ne.s32.totalorder %s34, %s37
      %p43 = scmp.eq.s32.totalorder %s10, 0
      %p44 = por %p42, %p43
      %p45 = scmp.ne.s32.totalorder %s34, %s37
      %p46 = scmp.eq.s32.totalorder %s15, 1
      %p47 = por %p45, %p46
      %p48 = scmp.ne.s32.totalorder %s37, %s38
      %p49 = scmp.eq.s32.totalorder %s15, 0
      %p50 = por %p48, %p49
      %p51 = scmp.ne.s32.totalorder %s37, %s38
      %p52 = scmp.eq.s32.totalorder %s16, 1
      %p53 = por %p51, %p52
      %p55 = scmp.ne.s32.totalorder %s38, %s54
      %p56 = scmp.eq.s32.totalorder %s16, 0
      %p57 = por %p55, %p56
      %s59 = sadd.s32 %s58, 1
      %p62 = scmp.eq.s32.totalorder %s10, 1
      %p63 = scmp.ne.s32.totalorder %s58, %s60
      %p64 = scmp.eq.s32.totalorder %s10, 0
      %p65 = por %p63, %p64
      %p66 = scmp.ne.s32.totalorder %s58, %s60
      %p67 = scmp.eq.s32.totalorder %s15, 1
      %p68 = por %p66, %p67
      %p69 = scmp.ne.s32.totalorder %s60, %s61
      %p70 = scmp.eq.s32.totalorder %s15, 0
      %p71 = por %p69, %p70
      %p72 = scmp.ne.s32.totalorder %s60, %s61
      %p73 = scmp.eq.s32.totalorder %s16, 1
      %p74 = por %p72, %p73
      %p76 = scmp.ne.s32.totalorder %s61, %s75
      %p77 = scmp.eq.s32.totalorder %s16, 0
      %p78 = por %p76, %p77
      %s80 = sadd.s32 %s79, 1
      %p83 = scmp.eq.s32.totalorder %s10, 1
      %p84 = scmp.ne.s32.totalorder %s79, %s81
      %p85 = scmp.eq.s32.totalorder %s10, 0
      %p86 = por %p84, %p85
      %p87 = scmp.ne.s32.totalorder %s79, %s81
      %p88 = scmp.eq.s32.totalorder %s15, 1
      %p89 = por %p87, %p88
      %p90 = scmp.ne.s32.totalorder %s81, %s82
      %p91 = scmp.eq.s32.totalorder %s15, 0
      %p92 = por %p90, %p91
      %p93 = scmp.ne.s32.totalorder %s81, %s82
      %p94 = scmp.eq.s32.totalorder %s16, 1
      %p95 = por %p93, %p94
      %p97 = scmp.ne.s32.totalorder %s82, %s96
      %p98 = scmp.eq.s32.totalorder %s16, 0
      %p99 = por %p97, %p98
      %s100 = ssub.s32 %s17, %s29
      %s101 = ssub.s32 %s18, %s25
      %s102 = sor.u32 %s100, %s101
      %p103 = scmp.eq.s32.totalorder %s102, 0
      %s105 = sadd.s32 %s104, 1
      %s106 = scalar_select %p103, %s104, %s105
      %p109 = pneg %p103
      %p110 = scmp.eq.s32.totalorder %s10, 1
      %p111 = por %p109, %p110
      %p112 = scmp.ne.s32.totalorder %s104, %s107
      %p113 = scmp.eq.s32.totalorder %s10, 0
      %p114 = por %p112, %p113
      %p115 = scmp.ne.s32.totalorder %s104, %s107
      %p116 = scmp.eq.s32.totalorder %s15, 1
      %p117 = por %p115, %p116
      %p118 = scmp.ne.s32.totalorder %s107, %s108
      %p119 = scmp.eq.s32.totalorder %s15, 0
      %p120 = por %p118, %p119
      %p121 = scmp.ne.s32.totalorder %s107, %s108
      %p122 = scmp.eq.s32.totalorder %s16, 1
      %p123 = por %p121, %p122
      %p125 = scmp.ne.s32.totalorder %s108, %s124
      %p126 = scmp.eq.s32.totalorder %s16, 0
      %p127 = por %p125, %p126
      %p128 = scmp.le.s32.totalorder 1, %s10
      %p129 = scmp.lt.s32.totalorder %s10, 3
      %p130 = pnand %p128, %p129
      %p131 = pneg %p130
      // Predicated region
      $region9: #{itm_model_forward.5} parent=5 // pred_check
        _
      $region10: #{itm_model_forward.5} parent=5 // pred_check_branch
        %133 = sbr.rel (%p130) target = $region12
      $region11: #{itm_model_forward.5} parent=5 // pred_region
        %s134 = ssub.s32 %s10, 1
        // Predicated region
        $region13: #{itm_model_forward.5} parent=11 // pred_check
          %p135 = pneg %p71
        $region14: #{itm_model_forward.5} parent=11 // pred_check_branch
          %137 = sbr.rel (%p135) target = $region16
        $region15: #{itm_model_forward.5} parent=11 // pred_region
          _
        $region16: #{itm_model_forward.5} parent=11 // pred_fallthru
          _
        // Predicated region
        $region17: #{itm_model_forward.5} parent=11 // pred_check
          %p138 = pneg %p92
        $region18: #{itm_model_forward.5} parent=11 // pred_check_branch
          %140 = sbr.rel (%p138) target = $region20
        $region19: #{itm_model_forward.5} parent=11 // pred_region
          %s142 = ssub.s32 16, 16
          %143 = vsyncadd [#allocation4], %s142
          %s145 = sshll.u32 [#allocation3], 4
          %s146 = int_to_ptr.vmem [resolvable:$true] %s145
          %148 = dma.hbm_to_vmem [thread:$0]  %s2, 16, %s146, [#allocation4]
        $region20: #{itm_model_forward.5} parent=11 // pred_fallthru
          _
      $region12: #{itm_model_forward.5} parent=5 // pred_fallthru
        _
      %p149 = scmp.lt.s32.totalorder %s10, 2
      // Predicated region
      $region21: #{itm_model_forward.5} parent=5 // pred_check
        %p150 = pneg %p149
      $region22: #{itm_model_forward.5} parent=5 // pred_check_branch
        %152 = sbr.rel (%p150) target = $region24
      $region23: #{itm_model_forward.5} parent=5 // pred_region
        // Predicated region
        $region25: #{itm_model_forward.5} parent=23 // pred_check
          %p153 = pneg %p44
        $region26: #{itm_model_forward.5} parent=23 // pred_check_branch
          %155 = sbr.rel (%p153) target = $region28
        $region27: #{itm_model_forward.5} parent=23 // pred_region
          %s156 = sadd.s32 %s17, %s18
          %p157 = scmp.lt.s32.totalorder %s156, 1
          %s158 = scalar_select %p157, %s156, 1
          %s159 = smul.addr %s158, 20
          %s160 = smul.addr %s159, 4
          %s161 = scalar_lea.vmem %s0, %s160
          %s162 = sadd.s32 %s17, %s18
        $region28: #{itm_model_forward.5} parent=23 // pred_fallthru
          _
      $region24: #{itm_model_forward.5} parent=5 // pred_fallthru
        _
      %p163 = scmp.le.s32.totalorder 1, %s10
      %p164 = scmp.lt.s32.totalorder %s10, 3
      %p165 = pnand %p163, %p164
      %p166 = pneg %p165
      // Predicated region
      $region29: #{itm_model_forward.5} parent=5 // pred_check
        _
      $region30: #{itm_model_forward.5} parent=5 // pred_check_branch
        %168 = sbr.rel (%p165) target = $region32
      $region31: #{itm_model_forward.5} parent=5 // pred_region
        %s169 = ssub.s32 %s10, 1
        // Predicated region
        $region33: #{itm_model_forward.5} parent=31 // pred_check
          %p170 = pneg %p92
        $region34: #{itm_model_forward.5} parent=31 // pred_check_branch
          %172 = sbr.rel (%p170) target = $region36
        $region35: #{itm_model_forward.5} parent=31 // pred_region
          %173 = dma.done [#allocation4], 16
        $region36: #{itm_model_forward.5} parent=31 // pred_fallthru
          _
        %s174 = sadd.s32 %s19, %s20
        %p175 = scmp.lt.s32.totalorder %s174, 1
        %s176 = scalar_select %p175, %s174, 1
        %s177 = smul.addr %s176, 20
        %s178 = smul.addr %s177, 4
        %s179 = scalar_lea.vmem %s0, %s178
        %p180 = pneg %p50
        %p181 = pneg %p47
        %p182 = pneg %p71
        %p183 = pneg %p68
        %p184 = pneg %p92
        %p185 = pneg %p89
        %p186 = pneg %p120
        %p187 = pneg %p117
        %p188 = scmp.lt.s32.totalorder %s19, 1
        %s189 = scalar_select %p188, %s19, 1
        %p190 = scmp.lt.s32.totalorder %s20, 0
        %s191 = scalar_select %p190, %s20, 0
        %s192 = smul.addr %s191, 4
        %s193 = smul.addr %s189, 4
        %s194 = sadd.s32 %s192, %s193
        %s195 = smul.addr %s194, 2
        %s196 = scalar_lea.vmem %s3, %s195
        %s197 = sadd.s32 %s19, %s20
        %p198 = scmp.lt.s32.totalorder %s197, 1
        %s199 = scalar_select %p198, %s197, 1
        %s200 = smul.addr %s199, 20
        %s201 = smul.addr %s200, 4
        %s202 = scalar_lea.vmem %s0, %s201
        %s203 = sadd.s32 %s19, %s20
        %p204 = scmp.lt.s32.totalorder %s19, 1
        %s205 = scalar_select %p204, %s19, 1
        %p206 = scmp.lt.s32.totalorder %s20, 0
        %s207 = scalar_select %p206, %s20, 0
        %s208 = smul.addr %s207, 4
        %s209 = smul.addr %s205, 4
        %s210 = sadd.s32 %s208, %s209
        %s211 = smul.addr %s210, 2
        %s212 = scalar_lea.vmem %s3, %s211
        %v214 = vld [vmem:[%s202] sm:$0xff]
        %v215 = vld [vmem:[%s202 + $0x8] sm:$0xff]
        %v216 = vld [vmem:[%s202 + $0x10] sm:$0xff]
        %v217 = vld [vmem:[%s202 + $0x18] sm:$0xff]
        %v218 = vld [vmem:[%s202 + $0x20] sm:$0xff]
        %v219 = vld [vmem:[%s202 + $0x28] sm:$0xff]
        %v220 = vld [vmem:[%s202 + $0x30] sm:$0xff]
        %v221 = vld [vmem:[%s202 + $0x38] sm:$0xff]
        %v222 = vld [vmem:[%s202 + $0x40] sm:$0xff]
        %v223 = vld [vmem:[%s202 + $0x48] sm:$0xff]
        %v224 = vld [vmem:[%s1] sm:$0xf]
        %v225 = vld [vmem:[%s1 + $0x4] sm:$0xf]
        %v226 = vld [vmem:[%s1 + $0x8] sm:$0xf]
        %v227 = vld [vmem:[%s1 + $0xc] sm:$0xf]
        %v228 = vld [vmem:[%s1 + $0x10] sm:$0xf]
        %v229 = vld [vmem:[%s1 + $0x14] sm:$0xf]
        %v230 = vld [vmem:[%s1 + $0x18] sm:$0xf]
        %v231 = vld [vmem:[%s1 + $0x1c] sm:$0xf]
        %v232 = vld [vmem:[%s1 + $0x20] sm:$0xf]
        %v233 = vld [vmem:[%s1 + $0x24] sm:$0xf]
        %v234 = vld [vmem:[%s1 + $0x28] sm:$0xf]
        %v235 = vld [vmem:[%s1 + $0x2c] sm:$0xf]
        %v236 = vld [vmem:[%s1 + $0x30] sm:$0xf]
        %v237 = vld [vmem:[%s1 + $0x34] sm:$0xf]
        %v238 = vld [vmem:[%s1 + $0x38] sm:$0xf]
        %v239 = vld [vmem:[%s1 + $0x3c] sm:$0xf]
        %v240 = vld [vmem:[%s1 + $0x40] sm:$0xf]
        %v241 = vld [vmem:[%s1 + $0x44] sm:$0xf]
        %v242 = vld [vmem:[%s1 + $0x48] sm:$0xf]
        %v243 = vld [vmem:[%s1 + $0x4c] sm:$0xf]
        %v244 = vld [vmem:[%s1 + $0x50] sm:$0xf]
        %v245 = vld [vmem:[%s1 + $0x54] sm:$0xf]
        %v246 = vld [vmem:[%s1 + $0x58] sm:$0xf]
        %v247 = vld [vmem:[%s1 + $0x5c] sm:$0xf]
        %v256 = vunpack.c.l.b16 %v214
        %v257 = vunpack.c.h.b16 %v214
        %v258 = vunpack.c.l.b16 %v215
        %v259 = vunpack.c.h.b16 %v215
        %v260 = vunpack.c.l.b16 %v216
        %v261 = vunpack.c.h.b16 %v216
        %v262 = vunpack.c.l.b16 %v217
        %v263 = vunpack.c.h.b16 %v217
        %v264 = vunpack.c.l.b16 %v218
        %v265 = vunpack.c.h.b16 %v218
        %v266 = vunpack.c.l.b16 %v219
        %v267 = vunpack.c.h.b16 %v219
        %v268 = vunpack.c.l.b16 %v220
        %v269 = vunpack.c.h.b16 %v220
        %v270 = vunpack.c.l.b16 %v221
        %v271 = vunpack.c.h.b16 %v221
        %v272 = vpack.c.b16 %v258, %v256
        %v273 = vpack.c.b16 %v259, %v257
        %v274 = vpack.c.b16 %v262, %v260
        %v275 = vpack.c.b16 %v263, %v261
        %v276 = vpack.c.b16 %v266, %v264
        %v277 = vpack.c.b16 %v267, %v265
        %v278 = vpack.c.b16 %v270, %v268
        %v279 = vpack.c.b16 %v271, %v269
        %v308 = vunpack.c.l.b16 %v224
        %v309 = vunpack.c.l.b16 %v225
        %v310 = vunpack.c.l.b16 %v226
        %v311 = vunpack.c.l.b16 %v227
        %v312 = vunpack.c.l.b16 %v228
        %v313 = vunpack.c.l.b16 %v229
        %v314 = vunpack.c.l.b16 %v230
        %v315 = vunpack.c.l.b16 %v231
        %v316 = vunpack.c.l.b16 %v232
        %v317 = vunpack.c.l.b16 %v233
        %v318 = vunpack.c.l.b16 %v234
        %v319 = vunpack.c.l.b16 %v235
        %v320 = vunpack.c.l.b16 %v236
        %v321 = vunpack.c.l.b16 %v237
        %v322 = vunpack.c.l.b16 %v238
        %v323 = vunpack.c.l.b16 %v239
        %v324 = vunpack.c.l.b16 %v240
        %v325 = vunpack.c.l.b16 %v241
        %v326 = vunpack.c.l.b16 %v242
        %v327 = vunpack.c.l.b16 %v243
        %v328 = vunpack.c.l.b16 %v244
        %v329 = vunpack.c.l.b16 %v245
        %v330 = vunpack.c.l.b16 %v246
        %v331 = vunpack.c.l.b16 %v247
        %v332 = vpack.c.b16 %v309, %v308
        %v333 = vpack.c.b16 %v311, %v310
        %v334 = vpack.c.b16 %v313, %v312
        %v335 = vpack.c.b16 %v315, %v314
        %v336 = vpack.c.b16 %v317, %v316
        %v337 = vpack.c.b16 %v319, %v318
        %v338 = vpack.c.b16 %v321, %v320
        %v339 = vpack.c.b16 %v323, %v322
        %v340 = vpack.c.b16 %v325, %v324
        %v341 = vpack.c.b16 %v327, %v326
        %v342 = vpack.c.b16 %v329, %v328
        %v343 = vpack.c.b16 %v331, %v330
        %vm356 = vcmask 523264
        %v358 = vsel %vm356, %v273, 0
        %v361 = vsel %vm356, %v275, 0
        %v364 = vsel %vm356, %v277, 0
        %v367 = vsel %vm356, %v279, 0
        %369 = vmatprep.subr.bf16.mxu0 0
        %370 = vmatpush1.bf16.msra.mxu0 %v339
        %371 = vmatprep.subr.bf16.mxu0 0
        %372 = vmatpush1.bf16.msra.mxu0 %v338
        %373 = vmatprep.subr.bf16.mxu0 0
        %374 = vmatpush1.bf16.msra.mxu0 %v337
        %375 = vmatprep.subr.bf16.mxu0 0
        %376 = vmatpush1.bf16.msra.mxu0 %v336
        %377 = vmatprep.subr.bf16.mxu0 0
        %378 = vmatpush1.bf16.msra.mxu0 %v335
        %379 = vmatprep.subr.bf16.mxu0 0
        %380 = vmatpush1.bf16.msra.mxu0 %v334
        %381 = vmatprep.subr.bf16.mxu0 0
        %382 = vmatpush1.bf16.msra.mxu0 %v333
        %383 = vmatprep.subr.bf16.mxu0 0
        %384 = vmatpush1.bf16.msra.mxu0 %v332
        %385 = vmatprep.subr.bf16.mxu0 0
        %386 = vmatpush2.bf16.msra.mxu0 0
        %387 = vmatprep.subr.bf16.mxu0 0
        %388 = vmatpush2.bf16.msra.mxu0 0
        %389 = vmatprep.subr.bf16.mxu0 0
        %390 = vmatpush2.bf16.msra.mxu0 0
        %391 = vmatprep.subr.bf16.mxu0 0
        %392 = vmatpush2.bf16.msra.mxu0 0
        %393 = vmatprep.subr.bf16.mxu0 0
        %394 = vmatpush2.bf16.msra.mxu0 %v343
        %395 = vmatprep.subr.bf16.mxu0 0
        %396 = vmatpush2.bf16.msra.mxu0 %v342
        %397 = vmatprep.subr.bf16.mxu0 0
        %398 = vmatpush2.bf16.msra.mxu0 %v341
        %399 = vmatprep.subr.bf16.mxu0 0
        %400 = vmatpush2.bf16.msra.mxu0 %v340
        %401 = vmatprep.mubr.bf16.mxu0 %v358
        %402 = vmatmul.mubr.bf16.gmra.mxu0 %v272
        %v403 = vpop.f32.mrf.mxu0
        %v404 = vadd.f32 0.0, %v403
        %v405 = vpop.f32.mrf.mxu0
        %v406 = vpop.f32.mrf.mxu0
        %v407 = vadd.f32 0.0, %v406
        %v408 = vpop.f32.mrf.mxu0
        %409 = vmatprep.mubr.bf16.mxu0 %v361
        %410 = vmatmul.mubr.bf16.gmra.mxu0 %v274
        %v411 = vpop.f32.mrf.mxu0
        %v412 = vadd.f32 0.0, %v411
        %v413 = vpop.f32.mrf.mxu0
        %v414 = vpop.f32.mrf.mxu0
        %v415 = vadd.f32 0.0, %v414
        %v416 = vpop.f32.mrf.mxu0
        %417 = vmatprep.mubr.bf16.mxu0 %v364
        %418 = vmatmul.mubr.bf16.gmra.mxu0 %v276
        %v419 = vpop.f32.mrf.mxu0
        %v420 = vadd.f32 0.0, %v419
        %v421 = vpop.f32.mrf.mxu0
        %v422 = vpop.f32.mrf.mxu0
        %v423 = vadd.f32 0.0, %v422
        %v424 = vpop.f32.mrf.mxu0
        %425 = vmatprep.mubr.bf16.mxu0 %v367
        %426 = vmatmul.mubr.bf16.gmra.mxu0 %v278
        %v427 = vpop.f32.mrf.mxu0
        %v428 = vadd.f32 0.0, %v427
        %v429 = vpop.f32.mrf.mxu0
        %v430 = vpop.f32.mrf.mxu0
        %v431 = vadd.f32 0.0, %v430
        %v432 = vpop.f32.mrf.mxu0
        %433 = vdwg.mxu0
        %434 = vst [vmem:[#allocation2] sm:$0xff] %v404
        %435 = vst [vmem:[#allocation2 + $0x8] sm:$0xff] %v407
        %436 = vst [vmem:[#allocation2 + $0x10] sm:$0xff] %v412
        %437 = vst [vmem:[#allocation2 + $0x18] sm:$0xff] %v415
        %438 = vst [vmem:[#allocation2 + $0x20] sm:$0xff] %v420
        %439 = vst [vmem:[#allocation2 + $0x28] sm:$0xff] %v423
        %440 = vst [vmem:[#allocation2 + $0x30] sm:$0xff] %v428
        %441 = vst [vmem:[#allocation2 + $0x38] sm:$0xff] %v431
        %s442 = scalar_lea.vmem %s1, 96
        %v443 = vld [vmem:[%s442] sm:$0xf]
        %v444 = vld [vmem:[%s442 + $0x4] sm:$0xf]
        %v445 = vld [vmem:[%s442 + $0x8] sm:$0xf]
        %v446 = vld [vmem:[%s442 + $0xc] sm:$0xf]
        %v447 = vld [vmem:[%s442 + $0x10] sm:$0xf]
        %v448 = vld [vmem:[%s442 + $0x14] sm:$0xf]
        %v449 = vld [vmem:[%s442 + $0x18] sm:$0xf]
        %v450 = vld [vmem:[%s442 + $0x1c] sm:$0xf]
        %v451 = vld [vmem:[%s442 + $0x20] sm:$0xf]
        %v452 = vld [vmem:[%s442 + $0x24] sm:$0xf]
        %v453 = vld [vmem:[%s442 + $0x28] sm:$0xf]
        %v454 = vld [vmem:[%s442 + $0x2c] sm:$0xf]
        %v455 = vld [vmem:[%s442 + $0x30] sm:$0xf]
        %v456 = vld [vmem:[%s442 + $0x34] sm:$0xf]
        %v457 = vld [vmem:[%s442 + $0x38] sm:$0xf]
        %v458 = vld [vmem:[%s442 + $0x3c] sm:$0xf]
        %v459 = vld [vmem:[%s442 + $0x40] sm:$0xf]
        %v460 = vld [vmem:[%s442 + $0x44] sm:$0xf]
        %v461 = vld [vmem:[%s442 + $0x48] sm:$0xf]
        %v462 = vld [vmem:[%s442 + $0x4c] sm:$0xf]
        %v463 = vld [vmem:[%s442 + $0x50] sm:$0xf]
        %v464 = vld [vmem:[%s442 + $0x54] sm:$0xf]
        %v465 = vld [vmem:[%s442 + $0x58] sm:$0xf]
        %v466 = vld [vmem:[%s442 + $0x5c] sm:$0xf]
        %v468 = vunpack.c.l.b16 %v222
        %v469 = vunpack.c.h.b16 %v222
        %v470 = vpack.c.b16 %v260, %v258
        %v471 = vpack.c.b16 %v261, %v259
        %v472 = vpack.c.b16 %v264, %v262
        %v473 = vpack.c.b16 %v265, %v263
        %v474 = vpack.c.b16 %v268, %v266
        %v475 = vpack.c.b16 %v269, %v267
        %v476 = vpack.c.b16 %v468, %v270
        %v477 = vpack.c.b16 %v469, %v271
        %v506 = vunpack.c.l.b16 %v443
        %v507 = vunpack.c.l.b16 %v444
        %v508 = vunpack.c.l.b16 %v445
        %v509 = vunpack.c.l.b16 %v446
        %v510 = vunpack.c.l.b16 %v447
        %v511 = vunpack.c.l.b16 %v448
        %v512 = vunpack.c.l.b16 %v449
        %v513 = vunpack.c.l.b16 %v450
        %v514 = vunpack.c.l.b16 %v451
        %v515 = vunpack.c.l.b16 %v452
        %v516 = vunpack.c.l.b16 %v453
        %v517 = vunpack.c.l.b16 %v454
        %v518 = vunpack.c.l.b16 %v455
        %v519 = vunpack.c.l.b16 %v456
        %v520 = vunpack.c.l.b16 %v457
        %v521 = vunpack.c.l.b16 %v458
        %v522 = vunpack.c.l.b16 %v459
        %v523 = vunpack.c.l.b16 %v460
        %v524 = vunpack.c.l.b16 %v461
        %v525 = vunpack.c.l.b16 %v462
        %v526 = vunpack.c.l.b16 %v463
        %v527 = vunpack.c.l.b16 %v464
        %v528 = vunpack.c.l.b16 %v465
        %v529 = vunpack.c.l.b16 %v466
        %v530 = vpack.c.b16 %v507, %v506
        %v531 = vpack.c.b16 %v509, %v508
        %v532 = vpack.c.b16 %v511, %v510
        %v533 = vpack.c.b16 %v513, %v512
        %v534 = vpack.c.b16 %v515, %v514
        %v535 = vpack.c.b16 %v517, %v516
        %v536 = vpack.c.b16 %v519, %v518
        %v537 = vpack.c.b16 %v521, %v520
        %v538 = vpack.c.b16 %v523, %v522
        %v539 = vpack.c.b16 %v525, %v524
        %v540 = vpack.c.b16 %v527, %v526
        %v541 = vpack.c.b16 %v529, %v528
        %v555 = vsel %vm356, %v471, 0
        %v558 = vsel %vm356, %v473, 0
        %v561 = vsel %vm356, %v475, 0
        %v564 = vsel %vm356, %v477, 0
        %566 = vmatprep.subr.bf16.mxu0 0
        %567 = vmatpush1.bf16.msra.mxu0 %v537
        %568 = vmatprep.subr.bf16.mxu0 0
        %569 = vmatpush1.bf16.msra.mxu0 %v536
        %570 = vmatprep.subr.bf16.mxu0 0
        %571 = vmatpush1.bf16.msra.mxu0 %v535
        %572 = vmatprep.subr.bf16.mxu0 0
        %573 = vmatpush1.bf16.msra.mxu0 %v534
        %574 = vmatprep.subr.bf16.mxu0 0
        %575 = vmatpush1.bf16.msra.mxu0 %v533
        %576 = vmatprep.subr.bf16.mxu0 0
        %577 = vmatpush1.bf16.msra.mxu0 %v532
        %578 = vmatprep.subr.bf16.mxu0 0
        %579 = vmatpush1.bf16.msra.mxu0 %v531
        %580 = vmatprep.subr.bf16.mxu0 0
        %581 = vmatpush1.bf16.msra.mxu0 %v530
        %582 = vmatprep.subr.bf16.mxu0 0
        %583 = vmatpush2.bf16.msra.mxu0 0
        %584 = vmatprep.subr.bf16.mxu0 0
        %585 = vmatpush2.bf16.msra.mxu0 0
        %586 = vmatprep.subr.bf16.mxu0 0
        %587 = vmatpush2.bf16.msra.mxu0 0
        %588 = vmatprep.subr.bf16.mxu0 0
        %589 = vmatpush2.bf16.msra.mxu0 0
        %590 = vmatprep.subr.bf16.mxu0 0
        %591 = vmatpush2.bf16.msra.mxu0 %v541
        %592 = vmatprep.subr.bf16.mxu0 0
        %593 = vmatpush2.bf16.msra.mxu0 %v540
        %594 = vmatprep.subr.bf16.mxu0 0
        %595 = vmatpush2.bf16.msra.mxu0 %v539
        %596 = vmatprep.subr.bf16.mxu0 0
        %597 = vmatpush2.bf16.msra.mxu0 %v538
        %598 = vmatprep.mubr.bf16.mxu0 %v555
        %599 = vmatmul.mubr.bf16.gmra.mxu0 %v470
        %v600 = vpop.f32.mrf.mxu0
        %v601 = vadd.f32 0.0, %v600
        %v602 = vpop.f32.mrf.mxu0
        %v603 = vpop.f32.mrf.mxu0
        %v604 = vadd.f32 0.0, %v603
        %v605 = vpop.f32.mrf.mxu0
        %606 = vmatprep.mubr.bf16.mxu0 %v558
        %607 = vmatmul.mubr.bf16.gmra.mxu0 %v472
        %v608 = vpop.f32.mrf.mxu0
        %v609 = vadd.f32 0.0, %v608
        %v610 = vpop.f32.mrf.mxu0
        %v611 = vpop.f32.mrf.mxu0
        %v612 = vadd.f32 0.0, %v611
        %v613 = vpop.f32.mrf.mxu0
        %614 = vmatprep.mubr.bf16.mxu0 %v561
        %615 = vmatmul.mubr.bf16.gmra.mxu0 %v474
        %v616 = vpop.f32.mrf.mxu0
        %v617 = vadd.f32 0.0, %v616
        %v618 = vpop.f32.mrf.mxu0
        %v619 = vpop.f32.mrf.mxu0
        %v620 = vadd.f32 0.0, %v619
        %v621 = vpop.f32.mrf.mxu0
        %622 = vmatprep.mubr.bf16.mxu0 %v564
        %623 = vmatmul.mubr.bf16.gmra.mxu0 %v476
        %v624 = vpop.f32.mrf.mxu0
        %v625 = vadd.f32 0.0, %v624
        %v626 = vpop.f32.mrf.mxu0
        %v627 = vpop.f32.mrf.mxu0
        %v628 = vadd.f32 0.0, %v627
        %v629 = vpop.f32.mrf.mxu0
        %630 = vdwg.mxu0
        %v631 = vld [vmem:[#allocation2] sm:$0xff]
        %v632 = vld [vmem:[#allocation2 + $0x8] sm:$0xff]
        %v633 = vld [vmem:[#allocation2 + $0x10] sm:$0xff]
        %v634 = vld [vmem:[#allocation2 + $0x18] sm:$0xff]
        %v635 = vld [vmem:[#allocation2 + $0x20] sm:$0xff]
        %v636 = vld [vmem:[#allocation2 + $0x28] sm:$0xff]
        %v637 = vld [vmem:[#allocation2 + $0x30] sm:$0xff]
        %v638 = vld [vmem:[#allocation2 + $0x38] sm:$0xff]
        %v639 = vadd.f32 %v631, %v601
        %v640 = vadd.f32 %v632, %v604
        %v641 = vadd.f32 %v633, %v609
        %v642 = vadd.f32 %v634, %v612
        %v643 = vadd.f32 %v635, %v617
        %v644 = vadd.f32 %v636, %v620
        %v645 = vadd.f32 %v637, %v625
        %v646 = vadd.f32 %v638, %v628
        %647 = vst [vmem:[#allocation2] sm:$0xff] %v639
        %648 = vst [vmem:[#allocation2 + $0x8] sm:$0xff] %v640
        %649 = vst [vmem:[#allocation2 + $0x10] sm:$0xff] %v641
        %650 = vst [vmem:[#allocation2 + $0x18] sm:$0xff] %v642
        %651 = vst [vmem:[#allocation2 + $0x20] sm:$0xff] %v643
        %652 = vst [vmem:[#allocation2 + $0x28] sm:$0xff] %v644
        %653 = vst [vmem:[#allocation2 + $0x30] sm:$0xff] %v645
        %654 = vst [vmem:[#allocation2 + $0x38] sm:$0xff] %v646
        %s655 = scalar_lea.vmem %s1, 192
        %v656 = vld [vmem:[%s655] sm:$0xf]
        %v657 = vld [vmem:[%s655 + $0x4] sm:$0xf]
        %v658 = vld [vmem:[%s655 + $0x8] sm:$0xf]
        %v659 = vld [vmem:[%s655 + $0xc] sm:$0xf]
        %v660 = vld [vmem:[%s655 + $0x10] sm:$0xf]
        %v661 = vld [vmem:[%s655 + $0x14] sm:$0xf]
        %v662 = vld [vmem:[%s655 + $0x18] sm:$0xf]
        %v663 = vld [vmem:[%s655 + $0x1c] sm:$0xf]
        %v664 = vld [vmem:[%s655 + $0x20] sm:$0xf]
        %v665 = vld [vmem:[%s655 + $0x24] sm:$0xf]
        %v666 = vld [vmem:[%s655 + $0x28] sm:$0xf]
        %v667 = vld [vmem:[%s655 + $0x2c] sm:$0xf]
        %v668 = vld [vmem:[%s655 + $0x30] sm:$0xf]
        %v669 = vld [vmem:[%s655 + $0x34] sm:$0xf]
        %v670 = vld [vmem:[%s655 + $0x38] sm:$0xf]
        %v671 = vld [vmem:[%s655 + $0x3c] sm:$0xf]
        %v672 = vld [vmem:[%s655 + $0x40] sm:$0xf]
        %v673 = vld [vmem:[%s655 + $0x44] sm:$0xf]
        %v674 = vld [vmem:[%s655 + $0x48] sm:$0xf]
        %v675 = vld [vmem:[%s655 + $0x4c] sm:$0xf]
        %v676 = vld [vmem:[%s655 + $0x50] sm:$0xf]
        %v677 = vld [vmem:[%s655 + $0x54] sm:$0xf]
        %v678 = vld [vmem:[%s655 + $0x58] sm:$0xf]
        %v679 = vld [vmem:[%s655 + $0x5c] sm:$0xf]
        %v681 = vunpack.c.l.b16 %v223
        %v682 = vunpack.c.h.b16 %v223
        %v683 = vpack.c.b16 %v681, %v468
        %v684 = vpack.c.b16 %v682, %v469
        %v710 = vunpack.c.l.b16 %v656
        %v711 = vunpack.c.l.b16 %v657
        %v712 = vunpack.c.l.b16 %v658
        %v713 = vunpack.c.l.b16 %v659
        %v714 = vunpack.c.l.b16 %v660
        %v715 = vunpack.c.l.b16 %v661
        %v716 = vunpack.c.l.b16 %v662
        %v717 = vunpack.c.l.b16 %v663
        %v718 = vunpack.c.l.b16 %v664
        %v719 = vunpack.c.l.b16 %v665
        %v720 = vunpack.c.l.b16 %v666
        %v721 = vunpack.c.l.b16 %v667
        %v722 = vunpack.c.l.b16 %v668
        %v723 = vunpack.c.l.b16 %v669
        %v724 = vunpack.c.l.b16 %v670
        %v725 = vunpack.c.l.b16 %v671
        %v726 = vunpack.c.l.b16 %v672
        %v727 = vunpack.c.l.b16 %v673
        %v728 = vunpack.c.l.b16 %v674
        %v729 = vunpack.c.l.b16 %v675
        %v730 = vunpack.c.l.b16 %v676
        %v731 = vunpack.c.l.b16 %v677
        %v732 = vunpack.c.l.b16 %v678
        %v733 = vunpack.c.l.b16 %v679
        %v734 = vpack.c.b16 %v711, %v710
        %v735 = vpack.c.b16 %v713, %v712
        %v736 = vpack.c.b16 %v715, %v714
        %v737 = vpack.c.b16 %v717, %v716
        %v738 = vpack.c.b16 %v719, %v718
        %v739 = vpack.c.b16 %v721, %v720
        %v740 = vpack.c.b16 %v723, %v722
        %v741 = vpack.c.b16 %v725, %v724
        %v742 = vpack.c.b16 %v727, %v726
        %v743 = vpack.c.b16 %v729, %v728
        %v744 = vpack.c.b16 %v731, %v730
        %v745 = vpack.c.b16 %v733, %v732
        %v759 = vsel %vm356, %v684, 0
        %761 = vmatprep.subr.bf16.mxu0 0
        %762 = vmatpush1.bf16.msra.mxu0 %v741
        %763 = vmatprep.subr.bf16.mxu0 0
        %764 = vmatpush1.bf16.msra.mxu0 %v740
        %765 = vmatprep.subr.bf16.mxu0 0
        %766 = vmatpush1.bf16.msra.mxu0 %v739
        %767 = vmatprep.subr.bf16.mxu0 0
        %768 = vmatpush1.bf16.msra.mxu0 %v738
        %769 = vmatprep.subr.bf16.mxu0 0
        %770 = vmatpush1.bf16.msra.mxu0 %v737
        %771 = vmatprep.subr.bf16.mxu0 0
        %772 = vmatpush1.bf16.msra.mxu0 %v736
        %773 = vmatprep.subr.bf16.mxu0 0
        %774 = vmatpush1.bf16.msra.mxu0 %v735
        %775 = vmatprep.subr.bf16.mxu0 0
        %776 = vmatpush1.bf16.msra.mxu0 %v734
        %777 = vmatprep.subr.bf16.mxu0 0
        %778 = vmatpush2.bf16.msra.mxu0 0
        %779 = vmatprep.subr.bf16.mxu0 0
        %780 = vmatpush2.bf16.msra.mxu0 0
        %781 = vmatprep.subr.bf16.mxu0 0
        %782 = vmatpush2.bf16.msra.mxu0 0
        %783 = vmatprep.subr.bf16.mxu0 0
        %784 = vmatpush2.bf16.msra.mxu0 0
        %785 = vmatprep.subr.bf16.mxu0 0
        %786 = vmatpush2.bf16.msra.mxu0 %v745
        %787 = vmatprep.subr.bf16.mxu0 0
        %788 = vmatpush2.bf16.msra.mxu0 %v744
        %789 = vmatprep.subr.bf16.mxu0 0
        %790 = vmatpush2.bf16.msra.mxu0 %v743
        %791 = vmatprep.subr.bf16.mxu0 0
        %792 = vmatpush2.bf16.msra.mxu0 %v742
        %793 = vmatprep.mubr.bf16.mxu0 %v361
        %794 = vmatmul.mubr.bf16.gmra.mxu0 %v274
        %v795 = vpop.f32.mrf.mxu0
        %v796 = vadd.f32 0.0, %v795
        %v797 = vpop.f32.mrf.mxu0
        %v798 = vpop.f32.mrf.mxu0
        %v799 = vadd.f32 0.0, %v798
        %v800 = vpop.f32.mrf.mxu0
        %801 = vmatprep.mubr.bf16.mxu0 %v364
        %802 = vmatmul.mubr.bf16.gmra.mxu0 %v276
        %v803 = vpop.f32.mrf.mxu0
        %v804 = vadd.f32 0.0, %v803
        %v805 = vpop.f32.mrf.mxu0
        %v806 = vpop.f32.mrf.mxu0
        %v807 = vadd.f32 0.0, %v806
        %v808 = vpop.f32.mrf.mxu0
        %809 = vmatprep.mubr.bf16.mxu0 %v367
        %810 = vmatmul.mubr.bf16.gmra.mxu0 %v278
        %v811 = vpop.f32.mrf.mxu0
        %v812 = vadd.f32 0.0, %v811
        %v813 = vpop.f32.mrf.mxu0
        %v814 = vpop.f32.mrf.mxu0
        %v815 = vadd.f32 0.0, %v814
        %v816 = vpop.f32.mrf.mxu0
        %817 = vmatprep.mubr.bf16.mxu0 %v759
        %818 = vmatmul.mubr.bf16.gmra.mxu0 %v683
        %v819 = vpop.f32.mrf.mxu0
        %v820 = vadd.f32 0.0, %v819
        %v821 = vpop.f32.mrf.mxu0
        %v822 = vpop.f32.mrf.mxu0
        %v823 = vadd.f32 0.0, %v822
        %v824 = vpop.f32.mrf.mxu0
        %825 = vdwg.mxu0
        %v826 = vld [vmem:[#allocation2] sm:$0xff]
        %v827 = vld [vmem:[#allocation2 + $0x8] sm:$0xff]
        %v828 = vld [vmem:[#allocation2 + $0x10] sm:$0xff]
        %v829 = vld [vmem:[#allocation2 + $0x18] sm:$0xff]
        %v830 = vld [vmem:[#allocation2 + $0x20] sm:$0xff]
        %v831 = vld [vmem:[#allocation2 + $0x28] sm:$0xff]
        %v832 = vld [vmem:[#allocation2 + $0x30] sm:$0xff]
        %v833 = vld [vmem:[#allocation2 + $0x38] sm:$0xff]
        %v834 = vadd.f32 %v826, %v796
        %v835 = vadd.f32 %v827, %v799
        %v836 = vadd.f32 %v828, %v804
        %v837 = vadd.f32 %v829, %v807
        %v838 = vadd.f32 %v830, %v812
        %v839 = vadd.f32 %v831, %v815
        %v840 = vadd.f32 %v832, %v820
        %v841 = vadd.f32 %v833, %v823
        %842 = vst [vmem:[#allocation2] sm:$0xff] %v834
        %843 = vst [vmem:[#allocation2 + $0x8] sm:$0xff] %v835
        %844 = vst [vmem:[#allocation2 + $0x10] sm:$0xff] %v836
        %845 = vst [vmem:[#allocation2 + $0x18] sm:$0xff] %v837
        %846 = vst [vmem:[#allocation2 + $0x20] sm:$0xff] %v838
        %847 = vst [vmem:[#allocation2 + $0x28] sm:$0xff] %v839
        %848 = vst [vmem:[#allocation2 + $0x30] sm:$0xff] %v840
        %849 = vst [vmem:[#allocation2 + $0x38] sm:$0xff] %v841
        %v850 = vld [vmem:[#allocation2] sm:$0xff]
        %v851 = vld [vmem:[#allocation2 + $0x8] sm:$0xff]
        %v852 = vld [vmem:[#allocation2 + $0x10] sm:$0xff]
        %v853 = vld [vmem:[#allocation2 + $0x18] sm:$0xff]
        %v854 = vld [vmem:[#allocation2 + $0x20] sm:$0xff]
        %v855 = vld [vmem:[#allocation2 + $0x28] sm:$0xff]
        %v856 = vld [vmem:[#allocation2 + $0x30] sm:$0xff]
        %v857 = vld [vmem:[#allocation2 + $0x38] sm:$0xff]
        %v858 = vld [vmem:[#allocation3] sm:$0x1]
        %v860 = vlaneseq
        %v861 = vshrl.u32 %v860, 7
        %v862 = vsub.s32 0, %v861
        %v863 = vrot.slane %v858, %v862
        %v865 = vadd.f32 %v850, %v863
        %v866 = vadd.f32 %v851, %v863
        %v867 = vadd.f32 %v852, %v863
        %v868 = vadd.f32 %v853, %v863
        %v869 = vadd.f32 %v854, %v863
        %v870 = vadd.f32 %v855, %v863
        %v871 = vadd.f32 %v856, %v863
        %v872 = vadd.f32 %v857, %v863
        %v873 = vmax.f32 %v865, 0.0
        %v874 = vmax.f32 %v866, 0.0
        %v875 = vmax.f32 %v867, 0.0
        %v876 = vmax.f32 %v868, 0.0
        %v877 = vmax.f32 %v869, 0.0
        %v878 = vmax.f32 %v870, 0.0
        %v879 = vmax.f32 %v871, 0.0
        %v880 = vmax.f32 %v872, 0.0
        %v881 = vmax.f32 %v873, %v874
        %v882 = vmax.f32 %v875, %v876
        %v883 = vmax.f32 %v877, %v878
        %v884 = vmax.f32 %v879, %v880
        %v889 = vcombine.high %v881, %v881
        %v891 = vunpack.c.l.s4 1983009808
        %v892 = vunpack.c.0.s8 %v891
        %v893 = vlaneseq
        %v894 = vshrl.u32 %v893, 7
        %v895 = vsub.s32 %v892, %v894
        %v896 = vrot.slane %v881, %v895
        %v898 = vunpack.c.l.s4 1983009808
        %v899 = vunpack.c.0.s8 %v898
        %v900 = vlaneseq
        %v901 = vshrl.u32 %v900, 7
        %v902 = vsub.s32 %v899, %v901
        %v903 = vrot.slane %v889, %v902
        %v904 = vcombine.high %v896, %v896
        %v905 = vcombine.high %v903, %v903
        %v906 = vcombine.high %v882, %v882
        %v908 = vunpack.c.l.s4 1983009808
        %v909 = vunpack.c.0.s8 %v908
        %v910 = vlaneseq
        %v911 = vshrl.u32 %v910, 7
        %v912 = vsub.s32 %v909, %v911
        %v913 = vrot.slane %v882, %v912
        %v915 = vunpack.c.l.s4 1983009808
        %v916 = vunpack.c.0.s8 %v915
        %v917 = vlaneseq
        %v918 = vshrl.u32 %v917, 7
        %v919 = vsub.s32 %v916, %v918
        %v920 = vrot.slane %v906, %v919
        %v921 = vcombine.high %v913, %v913
        %v922 = vcombine.high %v920, %v920
        %v923 = vcombine.high %v883, %v883
        %v925 = vunpack.c.l.s4 1983009808
        %v926 = vunpack.c.0.s8 %v925
        %v927 = vlaneseq
        %v928 = vshrl.u32 %v927, 7
        %v929 = vsub.s32 %v926, %v928
        %v930 = vrot.slane %v883, %v929
        %v932 = vunpack.c.l.s4 1983009808
        %v933 = vunpack.c.0.s8 %v932
        %v934 = vlaneseq
        %v935 = vshrl.u32 %v934, 7
        %v936 = vsub.s32 %v933, %v935
        %v937 = vrot.slane %v923, %v936
        %v938 = vcombine.high %v930, %v930
        %v939 = vcombine.high %v937, %v937
        %v940 = vcombine.high %v884, %v884
        %v942 = vunpack.c.l.s4 1983009808
        %v943 = vunpack.c.0.s8 %v942
        %v944 = vlaneseq
        %v945 = vshrl.u32 %v944, 7
        %v946 = vsub.s32 %v943, %v945
        %v947 = vrot.slane %v884, %v946
        %v949 = vunpack.c.l.s4 1983009808
        %v950 = vunpack.c.0.s8 %v949
        %v951 = vlaneseq
        %v952 = vshrl.u32 %v951, 7
        %v953 = vsub.s32 %v950, %v952
        %v954 = vrot.slane %v940, %v953
        %v955 = vcombine.high %v947, %v947
        %v956 = vcombine.high %v954, %v954
        %v973 = vrot.slane %v896, 7
        %v974 = vrot.slane %v973, 2
        %v975 = vrot.slane %v904, 7
        %v976 = vrot.slane %v975, 2
        %v977 = vrot.slane %v903, 7
        %v978 = vrot.slane %v977, 2
        %v979 = vrot.slane %v905, 7
        %v980 = vrot.slane %v979, 2
        %v981 = vrot.slane %v913, 7
        %v982 = vrot.slane %v981, 2
        %v983 = vrot.slane %v921, 7
        %v984 = vrot.slane %v983, 2
        %v985 = vrot.slane %v920, 7
        %v986 = vrot.slane %v985, 2
        %v987 = vrot.slane %v922, 7
        %v988 = vrot.slane %v987, 2
        %v989 = vrot.slane %v930, 7
        %v990 = vrot.slane %v989, 2
        %v991 = vrot.slane %v938, 7
        %v992 = vrot.slane %v991, 2
        %v993 = vrot.slane %v937, 7
        %v994 = vrot.slane %v993, 2
        %v995 = vrot.slane %v939, 7
        %v996 = vrot.slane %v995, 2
        %v997 = vrot.slane %v947, 7
        %v998 = vrot.slane %v997, 2
        %v999 = vrot.slane %v955, 7
        %v1000 = vrot.slane %v999, 2
        %v1001 = vrot.slane %v954, 7
        %v1002 = vrot.slane %v1001, 2
        %v1003 = vrot.slane %v956, 7
        %v1004 = vrot.slane %v1003, 2
        %v1021 = vmax.f32 %v896, %v974
        %v1022 = vmax.f32 %v904, %v976
        %v1023 = vmax.f32 %v903, %v978
        %v1024 = vmax.f32 %v905, %v980
        %v1025 = vmax.f32 %v913, %v982
        %v1026 = vmax.f32 %v921, %v984
        %v1027 = vmax.f32 %v920, %v986
        %v1028 = vmax.f32 %v922, %v988
        %v1029 = vmax.f32 %v930, %v990
        %v1030 = vmax.f32 %v938, %v992
        %v1031 = vmax.f32 %v937, %v994
        %v1032 = vmax.f32 %v939, %v996
        %v1033 = vmax.f32 %v947, %v998
        %v1034 = vmax.f32 %v955, %v1000
        %v1035 = vmax.f32 %v954, %v1002
        %v1036 = vmax.f32 %v956, %v1004
        %vm1053 = vcmask 1044484
        %v1054 = vsel %vm1053, %v1021, %v1021
        %vm1055 = vcmask 1046534
        %v1056 = vsel %vm1055, %v1021, %v1054
        %v1057 = vrot.slane %v1022, 7
        %vm1058 = vcmask 1041409
        %v1059 = vsel %vm1058, %v1057, %v1056
        %vm1060 = vcmask 1043459
        %v1061 = vsel %vm1060, %v1057, %v1059
        %vm1062 = vcmask 1045509
        %v1063 = vsel %vm1062, %v1057, %v1061
        %vm1064 = vcmask 1047559
        %v1065 = vsel %vm1064, %v1057, %v1063
        %v1066 = vsel %vm1053, %v1023, %v1023
        %v1067 = vsel %vm1055, %v1023, %v1066
        %v1068 = vrot.slane %v1024, 7
        %v1069 = vsel %vm1058, %v1068, %v1067
        %v1070 = vsel %vm1060, %v1068, %v1069
        %v1071 = vsel %vm1062, %v1068, %v1070
        %v1072 = vsel %vm1064, %v1068, %v1071
        %v1073 = vsel %vm1053, %v1025, %v1025
        %v1074 = vsel %vm1055, %v1025, %v1073
        %v1075 = vrot.slane %v1026, 7
        %v1076 = vsel %vm1058, %v1075, %v1074
        %v1077 = vsel %vm1060, %v1075, %v1076
        %v1078 = vsel %vm1062, %v1075, %v1077
        %v1079 = vsel %vm1064, %v1075, %v1078
        %v1080 = vsel %vm1053, %v1027, %v1027
        %v1081 = vsel %vm1055, %v1027, %v1080
        %v1082 = vrot.slane %v1028, 7
        %v1083 = vsel %vm1058, %v1082, %v1081
        %v1084 = vsel %vm1060, %v1082, %v1083
        %v1085 = vsel %vm1062, %v1082, %v1084
        %v1086 = vsel %vm1064, %v1082, %v1085
        %v1087 = vsel %vm1053, %v1029, %v1029
        %v1088 = vsel %vm1055, %v1029, %v1087
        %v1089 = vrot.slane %v1030, 7
        %v1090 = vsel %vm1058, %v1089, %v1088
        %v1091 = vsel %vm1060, %v1089, %v1090
        %v1092 = vsel %vm1062, %v1089, %v1091
        %v1093 = vsel %vm1064, %v1089, %v1092
        %v1094 = vsel %vm1053, %v1031, %v1031
        %v1095 = vsel %vm1055, %v1031, %v1094
        %v1096 = vrot.slane %v1032, 7
        %v1097 = vsel %vm1058, %v1096, %v1095
        %v1098 = vsel %vm1060, %v1096, %v1097
        %v1099 = vsel %vm1062, %v1096, %v1098
        %v1100 = vsel %vm1064, %v1096, %v1099
        %v1101 = vsel %vm1053, %v1033, %v1033
        %v1102 = vsel %vm1055, %v1033, %v1101
        %v1103 = vrot.slane %v1034, 7
        %v1104 = vsel %vm1058, %v1103, %v1102
        %v1105 = vsel %vm1060, %v1103, %v1104
        %v1106 = vsel %vm1062, %v1103, %v1105
        %v1107 = vsel %vm1064, %v1103, %v1106
        %v1108 = vsel %vm1053, %v1035, %v1035
        %v1109 = vsel %vm1055, %v1035, %v1108
        %v1110 = vrot.slane %v1036, 7
        %v1111 = vsel %vm1058, %v1110, %v1109
        %v1112 = vsel %vm1060, %v1110, %v1111
        %v1113 = vsel %vm1062, %v1110, %v1112
        %v1114 = vsel %vm1064, %v1110, %v1113
        %v1123 = vcombine.low %v1065, %v1079
        %v1125 = vunpack.c.l.s4 1934713408
        %v1126 = vunpack.c.0.s8 %v1125
        %v1127 = vlaneseq
        %v1128 = vshrl.u32 %v1127, 7
        %v1129 = vsub.s32 %v1126, %v1128
        %v1130 = vrot.slane %v1123, %v1129
        %v1131 = vcombine.high %v1130, 0.0
        %v1132 = vcombine.low %v1093, %v1107
        %v1134 = vunpack.c.l.s4 1934713408
        %v1135 = vunpack.c.0.s8 %v1134
        %v1136 = vlaneseq
        %v1137 = vshrl.u32 %v1136, 7
        %v1138 = vsub.s32 %v1135, %v1137
        %v1139 = vrot.slane %v1132, %v1138
        %v1140 = vcombine.high %v1139, 0.0
        %v1141 = vcombine.low %v1072, %v1086
        %v1143 = vunpack.c.l.s4 1934713408
        %v1144 = vunpack.c.0.s8 %v1143
        %v1145 = vlaneseq
        %v1146 = vshrl.u32 %v1145, 7
        %v1147 = vsub.s32 %v1144, %v1146
        %v1148 = vrot.slane %v1141, %v1147
        %v1149 = vcombine.high %v1148, 0.0
        %v1150 = vcombine.low %v1100, %v1114
        %v1152 = vunpack.c.l.s4 1934713408
        %v1153 = vunpack.c.0.s8 %v1152
        %v1154 = vlaneseq
        %v1155 = vshrl.u32 %v1154, 7
        %v1156 = vsub.s32 %v1153, %v1155
        %v1157 = vrot.slane %v1150, %v1156
        %v1158 = vcombine.high %v1157, 0.0
        %v1161 = vcombine.low %v1130, %v1139
        %v1163 = vunpack.c.l.s4 1983009808
        %v1164 = vunpack.c.0.s8 %v1163
        %v1165 = vlaneseq
        %v1166 = vshrl.u32 %v1165, 7
        %v1167 = vsub.s32 %v1164, %v1166
        %v1168 = vrot.slane %v1161, %v1167
        %v1172 = vcombine.low %v1131, %v1140
        %v1174 = vunpack.c.l.s4 1983009808
        %v1175 = vunpack.c.0.s8 %v1174
        %v1176 = vlaneseq
        %v1177 = vshrl.u32 %v1176, 7
        %v1178 = vsub.s32 %v1175, %v1177
        %v1179 = vrot.slane %v1172, %v1178
        %v1183 = vcombine.low %v1148, %v1157
        %v1185 = vunpack.c.l.s4 1983009808
        %v1186 = vunpack.c.0.s8 %v1185
        %v1187 = vlaneseq
        %v1188 = vshrl.u32 %v1187, 7
        %v1189 = vsub.s32 %v1186, %v1188
        %v1190 = vrot.slane %v1183, %v1189
        %v1194 = vcombine.low %v1149, %v1158
        %v1196 = vunpack.c.l.s4 1983009808
        %v1197 = vunpack.c.0.s8 %v1196
        %v1198 = vlaneseq
        %v1199 = vshrl.u32 %v1198, 7
        %v1200 = vsub.s32 %v1197, %v1199
        %v1201 = vrot.slane %v1194, %v1200
        %v1203 = vpack.c.bf16 %v1168, %v1168
        %v1204 = vpack.c.bf16 %v1179, %v1179
        %v1205 = vpack.c.bf16 %v1190, %v1190
        %v1206 = vpack.c.bf16 %v1201, %v1201
        %v1211 = vcombine.low %v1203, %v1204
        %v1212 = vcombine.low %v1205, %v1206
        %v1214 = vunpack.c.l.s4 1983009808
        %v1215 = vunpack.c.0.s8 %v1214
        %v1216 = vlaneseq
        %v1217 = vshrl.u32 %v1216, 7
        %v1218 = vsub.s32 %v1215, %v1217
        %v1219 = vrot.slane %v1211, %v1218
        %v1221 = vunpack.c.l.s4 1983009808
        %v1222 = vunpack.c.0.s8 %v1221
        %v1223 = vlaneseq
        %v1224 = vshrl.u32 %v1223, 7
        %v1225 = vsub.s32 %v1222, %v1224
        %v1226 = vrot.slane %v1212, %v1225
        %v1227 = vcombine.low %v1219, %v1226
        %1229 = vst [vmem:[%s212] sm:$0xff] %v1227
        %p1230 = scmp.lt.s32.totalorder %s19, 1
        %s1231 = scalar_select %p1230, %s19, 1
        %p1232 = scmp.lt.s32.totalorder %s20, 0
        %s1233 = scalar_select %p1232, %s20, 0
        %s1234 = smul.addr %s1233, 4
        %s1235 = smul.addr %s1231, 4
        %s1236 = sadd.s32 %s1234, %s1235
        %s1237 = smul.addr %s1236, 2
        %s1238 = scalar_lea.vmem %s3, %s1237
        // Predicated region
        $region37: #{itm_model_forward.5} parent=31 // pred_check
          %p1239 = pneg %p117
        $region38: #{itm_model_forward.5} parent=31 // pred_check_branch
          %1241 = sbr.rel (%p1239) target = $region40
        $region39: #{itm_model_forward.5} parent=31 // pred_region
          _
        $region40: #{itm_model_forward.5} parent=31 // pred_fallthru
          _
      $region32: #{itm_model_forward.5} parent=5 // pred_fallthru
        _
      %p1242 = scmp.le.s32.totalorder 2, %s10
      // Predicated region
      $region41: #{itm_model_forward.5} parent=5 // pred_check
        %p1243 = pneg %p1242
      $region42: #{itm_model_forward.5} parent=5 // pred_check_branch
        %1245 = sbr.rel (%p1243) target = $region44
      $region43: #{itm_model_forward.5} parent=5 // pred_region
        %s1246 = ssub.s32 %s10, 2
        // Predicated region
        $region45: #{itm_model_forward.5} parent=43 // pred_check
          %p1247 = pneg %p123
        $region46: #{itm_model_forward.5} parent=43 // pred_check_branch
          %1249 = sbr.rel (%p1247) target = $region48
        $region47: #{itm_model_forward.5} parent=43 // pred_region
          %p1250 = scmp.lt.s32.totalorder %s21, 1
          %s1251 = scalar_select %p1250, %s21, 1
          %p1252 = scmp.lt.s32.totalorder %s22, 0
          %s1253 = scalar_select %p1252, %s22, 0
          %s1254 = smul.addr %s1253, 4
          %s1255 = smul.addr %s1251, 4
          %s1256 = sadd.s32 %s1254, %s1255
          %s1257 = smul.addr %s1256, 2
          %s1258 = scalar_lea.vmem %s3, %s1257
        $region48: #{itm_model_forward.5} parent=43 // pred_fallthru
          _
      $region44: #{itm_model_forward.5} parent=5 // pred_fallthru
        _
    $region6: #{itm_model_forward.5} parent=1 // loop_footer
      %s14 = sadd.s32 1, %s10
    $region7: #{itm_model_forward.5} parent=1 // loop_footer_branch
      %9 = sbr.rel target = $region3
    $region8: #{itm_model_forward.5} parent=1 // loop_exit
      _
    %1259 = vsyncpa [#allocation4], 1
    %s1260 = scalar_lea.sflag [#allocation4], 1
    %1261 = vsyncpa %s1260, 1

// kernel: itm_model_forward.6
$region0: #{itm_model_forward.6}
  #allocation0 [shape = 'u32[]', space=smem, size = 0x4, offset = 0x4, fixed_abs, tag = 'smem constant byte address 0x4 - core index']
  #allocation1 [shape = 'u32[144,128]{1,0:T(1,128)}', space=vmem, size = 0x12000, scoped, tag = 'internal scratch']
  #allocation2 [shape = 'f32[2,256]{1,0:T(2,128)}', space=vmem, size = 0x800, scoped, tag = 'scratch operand']
  %s0 = inlined_call_operand.vmem [shape: bf16[2,2048], index: 0, kind: input, shape index: {}]
  %s1 = inlined_call_operand.vmem [shape: bf16[2048,512], index: 1, kind: input, shape index: {}]
  %s2 = inlined_call_operand.vmem [shape: f32[1,512], index: 2, kind: input, shape index: {}]
  %s3 = inlined_call_operand.vmem [shape: bf16[2,512], index: 3, kind: output, shape index: {}]
  %s4 = sld [smem:[#allocation0]]
  $region91: #{itm_model_forward.6} parent=0
    _
  %s6 = ssub.s32 1, %s4
  %s7 = scalar_select 0, %s6, %s4
  $region1: #{itm_model_forward.6} parent=0
    #allocation3 [shape = 'u8[2097152]{0}', space=vmem, size = 0x200000, scoped, tag = 'input window, operand 1']
    loop: start=0, step=1, limit=4
    $region2: #{itm_model_forward.6} parent=1 // loop_pre_header
      _
    $region3: #{itm_model_forward.6} parent=1 // loop_header
      %s9 = sphi 0, %s13
      %p10 = scmp.ge.s32.totalorder %s9, 4
      %s16 = sphi 0, %s35
      %s17 = sphi 0, %s31
      %s18 = sphi 0, %s27
      %s19 = sphi 0, %s16
      %s20 = sphi 0, %s17
      %s21 = sphi 0, %s18
      %s22 = sphi 0, %s19
      %s23 = sphi 0, %s20
      %s24 = sphi 0, %s21
      %s40 = sphi 0, %s42
      %s43 = sphi 0, %s40
      %s44 = sphi 0, %s43
      %s60 = sphi 0, %s44
      %s68 = sphi 0, %s70
      %s71 = sphi 0, %s68
      %s72 = sphi 0, %s71
      %s88 = sphi 0, %s72
      %s94 = sphi 0, %s96
      %s97 = sphi 0, %s94
      %s98 = sphi 0, %s97
      %s114 = sphi 0, %s98
      %s122 = sphi 0, %s124
      %s125 = sphi 0, %s122
      %s126 = sphi 0, %s125
      %s142 = sphi 0, %s126
    $region4: #{itm_model_forward.6} parent=1 // loop_header_branch
      %12 = sbr.rel (%p10) target = $region8
    $region5: #{itm_model_forward.6} parent=1 // loop_body
      %s14 = ssub.s32 %s9, 1
      %s15 = ssub.s32 %s9, 2
      %s25 = sadd.s32 1, %s18
      %p26 = scmp.ge.s32.totalorder %s25, 1
      %s27 = scalar_select %p26, 0, %s25
      %s28 = sadd.s32 1, %s17
      %s29 = scalar_select %p26, %s28, %s17
      %p30 = scmp.ge.s32.totalorder %s29, 2
      %s31 = scalar_select %p30, 0, %s29
      %s32 = sadd.s32 1, %s16
      %s33 = scalar_select %p30, %s32, %s16
      %p34 = scmp.ge.s32.totalorder %s33, 1
      %s35 = scalar_select %p34, 0, %s33
      %s36 = ssub.s32 %s16, %s35
      %s37 = ssub.s32 %s18, %s27
      %s38 = sor.u32 %s36, %s37
      %p39 = scmp.eq.s32.totalorder %s38, 0
      %s41 = sadd.s32 %s40, 1
      %s42 = scalar_select %p39, %s40, %s41
      %p45 = pneg %p39
      %p46 = scmp.eq.s32.totalorder %s9, 1
      %p47 = por %p45, %p46
      %p48 = scmp.ne.s32.totalorder %s40, %s43
      %p49 = scmp.eq.s32.totalorder %s9, 0
      %p50 = por %p48, %p49
      %p51 = scmp.ne.s32.totalorder %s40, %s43
      %p52 = scmp.eq.s32.totalorder %s14, 1
      %p53 = por %p51, %p52
      %p54 = scmp.ne.s32.totalorder %s43, %s44
      %p55 = scmp.eq.s32.totalorder %s14, 0
      %p56 = por %p54, %p55
      %p57 = scmp.ne.s32.totalorder %s43, %s44
      %p58 = scmp.eq.s32.totalorder %s15, 1
      %p59 = por %p57, %p58
      %p61 = scmp.ne.s32.totalorder %s44, %s60
      %p62 = scmp.eq.s32.totalorder %s15, 0
      %p63 = por %p61, %p62
      %s64 = ssub.s32 %s18, %s27
      %s65 = ssub.s32 %s17, %s31
      %s66 = sor.u32 %s64, %s65
      %p67 = scmp.eq.s32.totalorder %s66, 0
      %s69 = sadd.s32 %s68, 1
      %s70 = scalar_select %p67, %s68, %s69
      %p73 = pneg %p67
      %p74 = scmp.eq.s32.totalorder %s9, 1
      %p75 = por %p73, %p74
      %p76 = scmp.ne.s32.totalorder %s68, %s71
      %p77 = scmp.eq.s32.totalorder %s9, 0
      %p78 = por %p76, %p77
      %p79 = scmp.ne.s32.totalorder %s68, %s71
      %p80 = scmp.eq.s32.totalorder %s14, 1
      %p81 = por %p79, %p80
      %p82 = scmp.ne.s32.totalorder %s71, %s72
      %p83 = scmp.eq.s32.totalorder %s14, 0
      %p84 = por %p82, %p83
      %p85 = scmp.ne.s32.totalorder %s71, %s72
      %p86 = scmp.eq.s32.totalorder %s15, 1
      %p87 = por %p85, %p86
      %p89 = scmp.ne.s32.totalorder %s72, %s88
      %p90 = scmp.eq.s32.totalorder %s15, 0
      %p91 = por %p89, %p90
      %s92 = ssub.s32 %s17, %s31
      %p93 = scmp.eq.s32.totalorder %s92, 0
      %s95 = sadd.s32 %s94, 1
      %s96 = scalar_select %p93, %s94, %s95
      %p99 = pneg %p93
      %p100 = scmp.eq.s32.totalorder %s9, 1
      %p101 = por %p99, %p100
      %p102 = scmp.ne.s32.totalorder %s94, %s97
      %p103 = scmp.eq.s32.totalorder %s9, 0
      %p104 = por %p102, %p103
      %p105 = scmp.ne.s32.totalorder %s94, %s97
      %p106 = scmp.eq.s32.totalorder %s14, 1
      %p107 = por %p105, %p106
      %p108 = scmp.ne.s32.totalorder %s97, %s98
      %p109 = scmp.eq.s32.totalorder %s14, 0
      %p110 = por %p108, %p109
      %p111 = scmp.ne.s32.totalorder %s97, %s98
      %p112 = scmp.eq.s32.totalorder %s15, 1
      %p113 = por %p111, %p112
      %p115 = scmp.ne.s32.totalorder %s98, %s114
      %p116 = scmp.eq.s32.totalorder %s15, 0
      %p117 = por %p115, %p116
      %s118 = ssub.s32 %s16, %s35
      %s119 = ssub.s32 %s17, %s31
      %s120 = sor.u32 %s118, %s119
      %p121 = scmp.eq.s32.totalorder %s120, 0
      %s123 = sadd.s32 %s122, 1
      %s124 = scalar_select %p121, %s122, %s123
      %p127 = pneg %p121
      %p128 = scmp.eq.s32.totalorder %s9, 1
      %p129 = por %p127, %p128
      %p130 = scmp.ne.s32.totalorder %s122, %s125
      %p131 = scmp.eq.s32.totalorder %s9, 0
      %p132 = por %p130, %p131
      %p133 = scmp.ne.s32.totalorder %s122, %s125
      %p134 = scmp.eq.s32.totalorder %s14, 1
      %p135 = por %p133, %p134
      %p136 = scmp.ne.s32.totalorder %s125, %s126
      %p137 = scmp.eq.s32.totalorder %s14, 0
      %p138 = por %p136, %p137
      %p139 = scmp.ne.s32.totalorder %s125, %s126
      %p140 = scmp.eq.s32.totalorder %s15, 1
      %p141 = por %p139, %p140
      %p143 = scmp.ne.s32.totalorder %s126, %s142
      %p144 = scmp.eq.s32.totalorder %s15, 0
      %p145 = por %p143, %p144
      %p146 = scmp.le.s32.totalorder 1, %s9
      %p147 = scmp.lt.s32.totalorder %s9, 3
      %p148 = pnand %p146, %p147
      %p149 = pneg %p148
      // Predicated region
      $region9: #{itm_model_forward.6} parent=5 // pred_check
        _
      $region10: #{itm_model_forward.6} parent=5 // pred_check_branch
        %151 = sbr.rel (%p148) target = $region12
      $region11: #{itm_model_forward.6} parent=5 // pred_region
        %s152 = ssub.s32 %s9, 1
        // Predicated region
        $region13: #{itm_model_forward.6} parent=11 // pred_check
          %p153 = pneg %p56
        $region14: #{itm_model_forward.6} parent=11 // pred_check_branch
          %155 = sbr.rel (%p153) target = $region16
        $region15: #{itm_model_forward.6} parent=11 // pred_region
          %s156 = smul.u32 16, %s21
          %p157 = scmp.lt.s32.totalorder %s19, 0
          %s158 = scalar_select %p157, %s19, 0
          %p159 = scmp.lt.s32.totalorder %s156, 15
          %s160 = scalar_select %p159, %s156, 15
          %s161 = smul.addr %s158, 16
          %s162 = sadd.s32 %s160, %s161
          %s163 = scalar_lea.vmem %s0, %s162
          %s164 = smul.u32 16, %s21
        $region16: #{itm_model_forward.6} parent=11 // pred_fallthru
          _
      $region12: #{itm_model_forward.6} parent=5 // pred_fallthru
        _
      %p165 = scmp.lt.s32.totalorder %s9, 2
      // Predicated region
      $region17: #{itm_model_forward.6} parent=5 // pred_check
        %p166 = pneg %p165
      $region18: #{itm_model_forward.6} parent=5 // pred_check_branch
        %168 = sbr.rel (%p166) target = $region20
      $region19: #{itm_model_forward.6} parent=5 // pred_region
        // Predicated region
        $region21: #{itm_model_forward.6} parent=19 // pred_check
          %p169 = pneg %p78
        $region22: #{itm_model_forward.6} parent=19 // pred_check_branch
          %171 = sbr.rel (%p169) target = $region24
        $region23: #{itm_model_forward.6} parent=19 // pred_region
          %s172 = sand.u32 %s68, 1
          %s173 = sand.u32 %s68, 1
          %s174 = smul.addr %s173, 2048
          %s175 = scalar_lea.vmem [#allocation3], %s174
          %s176 = smul.u32 256, %s18
          %s177 = smul.u32 2, %s17
          %s178 = smul.addr %s176, 4
          %s179 = sadd.s32 %s177, %s178
          %s180 = smul.addr %s179, 4
          %s181 = scalar_lea.vmem %s1, %s180
          // Predicated region
          $region25: #{itm_model_forward.6} parent=23 // pred_check
            _
          $region26: #{itm_model_forward.6} parent=23 // pred_check_branch
            %183 = sbr.rel (0) target = $region28
          $region27: #{itm_model_forward.6} parent=23 // pred_region
            // Predicated region
            $region29: #{itm_model_forward.6} parent=27 // pred_check
              _
            $region30: #{itm_model_forward.6} parent=27 // pred_check_branch
              %185 = sbr.rel (0) target = $region32
            $region31: #{itm_model_forward.6} parent=27 // pred_region
              // Predicated region
              $region44: #{itm_model_forward.6} parent=31 // pred_check
                _
              $region45: #{itm_model_forward.6} parent=31 // pred_check_branch
                %711 = sbr.rel (0) target = $region47
              $region46: #{itm_model_forward.6} parent=31 // pred_region
                loop: start=0, step=1, limit=1
                $region48: #{itm_model_forward.6} parent=46 // loop_pre_header
                  _
                $region49: #{itm_model_forward.6} parent=46 // loop_header
                  %s713 = sphi 0, %s717
                  %p714 = scmp.ge.s32.totalorder %s713, 1
                  %s718 = sphi %s181, %s181
                  %s719 = sphi %s175, %s175
                $region50: #{itm_model_forward.6} parent=46 // loop_header_branch
                  %716 = sbr.rel (%p714) target = $region54
                $region51: #{itm_model_forward.6} parent=46 // loop_body
                  %v720 = vld [vmem:[%s718] sm:$0xff]
                  %721 = vst [vmem:[%s719] sm:$0xff] %v720
                  %v722 = vld [vmem:[%s718 + $0x10] sm:$0xff]
                  %723 = vst [vmem:[%s719 + $0x8] sm:$0xff] %v722
                  %v724 = vld [vmem:[%s718 + $0x20] sm:$0xff]
                  %725 = vst [vmem:[%s719 + $0x10] sm:$0xff] %v724
                  %v726 = vld [vmem:[%s718 + $0x30] sm:$0xff]
                  %727 = vst [vmem:[%s719 + $0x18] sm:$0xff] %v726
                  %v728 = vld [vmem:[%s718 + $0x40] sm:$0xff]
                  %729 = vst [vmem:[%s719 + $0x20] sm:$0xff] %v728
                  %v730 = vld [vmem:[%s718 + $0x50] sm:$0xff]
                  %731 = vst [vmem:[%s719 + $0x28] sm:$0xff] %v730
                  %v732 = vld [vmem:[%s718 + $0x60] sm:$0xff]
                  %733 = vst [vmem:[%s719 + $0x30] sm:$0xff] %v732
                  %v734 = vld [vmem:[%s718 + $0x70] sm:$0xff]
                  %735 = vst [vmem:[%s719 + $0x38] sm:$0xff] %v734
                  %v736 = vld [vmem:[%s718 + $0x80] sm:$0xff]
                  %737 = vst [vmem:[%s719 + $0x40] sm:$0xff] %v736
                  %v738 = vld [vmem:[%s718 + $0x90] sm:$0xff]
                  %739 = vst [vmem:[%s719 + $0x48] sm:$0xff] %v738
                  %v740 = vld [vmem:[%s718 + $0xa0] sm:$0xff]
                  %741 = vst [vmem:[%s719 + $0x50] sm:$0xff] %v740
                  %v742 = vld [vmem:[%s718 + $0xb0] sm:$0xff]
                  %743 = vst [vmem:[%s719 + $0x58] sm:$0xff] %v742
                  %v744 = vld [vmem:[%s718 + $0xc0] sm:$0xff]
                  %745 = vst [vmem:[%s719 + $0x60] sm:$0xff] %v744
                  %v746 = vld [vmem:[%s718 + $0xd0] sm:$0xff]
                  %747 = vst [vmem:[%s719 + $0x68] sm:$0xff] %v746
                  %v748 = vld [vmem:[%s718 + $0xe0] sm:$0xff]
                  %749 = vst [vmem:[%s719 + $0x70] sm:$0xff] %v748
                  %v750 = vld [vmem:[%s718 + $0xf0] sm:$0xff]
                  %751 = vst [vmem:[%s719 + $0x78] sm:$0xff] %v750
                  %v752 = vld [vmem:[%s718 + $0x100] sm:$0xff]
                  %753 = vst [vmem:[%s719 + $0x80] sm:$0xff] %v752
                  %v754 = vld [vmem:[%s718 + $0x110] sm:$0xff]
                  %755 = vst [vmem:[%s719 + $0x88] sm:$0xff] %v754
                  %v756 = vld [vmem:[%s718 + $0x120] sm:$0xff]
                  %757 = vst [vmem:[%s719 + $0x90] sm:$0xff] %v756
                  %v758 = vld [vmem:[%s718 + $0x130] sm:$0xff]
                  %759 = vst [vmem:[%s719 + $0x98] sm:$0xff] %v758
                  %v760 = vld [vmem:[%s718 + $0x140] sm:$0xff]
                  %761 = vst [vmem:[%s719 + $0xa0] sm:$0xff] %v760
                  %v762 = vld [vmem:[%s718 + $0x150] sm:$0xff]
                  %763 = vst [vmem:[%s719 + $0xa8] sm:$0xff] %v762
                  %v764 = vld [vmem:[%s718 + $0x160] sm:$0xff]
                  %765 = vst [vmem:[%s719 + $0xb0] sm:$0xff] %v764
                  %v766 = vld [vmem:[%s718 + $0x170] sm:$0xff]
                  %767 = vst [vmem:[%s719 + $0xb8] sm:$0xff] %v766
                  %v768 = vld [vmem:[%s718 + $0x180] sm:$0xff]
                  %769 = vst [vmem:[%s719 + $0xc0] sm:$0xff] %v768
                  %v770 = vld [vmem:[%s718 + $0x190] sm:$0xff]
                  %771 = vst [vmem:[%s719 + $0xc8] sm:$0xff] %v770
                  %v772 = vld [vmem:[%s718 + $0x1a0] sm:$0xff]
                  %773 = vst [vmem:[%s719 + $0xd0] sm:$0xff] %v772
                  %v774 = vld [vmem:[%s718 + $0x1b0] sm:$0xff]
                  %775 = vst [vmem:[%s719 + $0xd8] sm:$0xff] %v774
                  %v776 = vld [vmem:[%s718 + $0x1c0] sm:$0xff]
                  %777 = vst [vmem:[%s719 + $0xe0] sm:$0xff] %v776
                  %v778 = vld [vmem:[%s718 + $0x1d0] sm:$0xff]
                  %779 = vst [vmem:[%s719 + $0xe8] sm:$0xff] %v778
                  %v780 = vld [vmem:[%s718 + $0x1e0] sm:$0xff]
                  %781 = vst [vmem:[%s719 + $0xf0] sm:$0xff] %v780
                  %v782 = vld [vmem:[%s718 + $0x1f0] sm:$0xff]
                  %783 = vst [vmem:[%s719 + $0xf8] sm:$0xff] %v782
                  %v784 = vld [vmem:[%s718 + $0x200] sm:$0xff]
                  %785 = vst [vmem:[%s719 + $0x100] sm:$0xff] %v784
                  %v786 = vld [vmem:[%s718 + $0x210] sm:$0xff]
                  %787 = vst [vmem:[%s719 + $0x108] sm:$0xff] %v786
                  %v788 = vld [vmem:[%s718 + $0x220] sm:$0xff]
                  %789 = vst [vmem:[%s719 + $0x110] sm:$0xff] %v788
                  %v790 = vld [vmem:[%s718 + $0x230] sm:$0xff]
                  %791 = vst [vmem:[%s719 + $0x118] sm:$0xff] %v790
                  %v792 = vld [vmem:[%s718 + $0x240] sm:$0xff]
                  %793 = vst [vmem:[%s719 + $0x120] sm:$0xff] %v792
                  %v794 = vld [vmem:[%s718 + $0x250] sm:$0xff]
                  %795 = vst [vmem:[%s719 + $0x128] sm:$0xff] %v794
                  %v796 = vld [vmem:[%s718 + $0x260] sm:$0xff]
                  %797 = vst [vmem:[%s719 + $0x130] sm:$0xff] %v796
                  %v798 = vld [vmem:[%s718 + $0x270] sm:$0xff]
                  %799 = vst [vmem:[%s719 + $0x138] sm:$0xff] %v798
                  %v800 = vld [vmem:[%s718 + $0x280] sm:$0xff]
                  %801 = vst [vmem:[%s719 + $0x140] sm:$0xff] %v800
                  %v802 = vld [vmem:[%s718 + $0x290] sm:$0xff]
                  %803 = vst [vmem:[%s719 + $0x148] sm:$0xff] %v802
                  %v804 = vld [vmem:[%s718 + $0x2a0] sm:$0xff]
                  %805 = vst [vmem:[%s719 + $0x150] sm:$0xff] %v804
                  %v806 = vld [vmem:[%s718 + $0x2b0] sm:$0xff]
                  %807 = vst [vmem:[%s719 + $0x158] sm:$0xff] %v806
                  %v808 = vld [vmem:[%s718 + $0x2c0] sm:$0xff]
                  %809 = vst [vmem:[%s719 + $0x160] sm:$0xff] %v808
                  %v810 = vld [vmem:[%s718 + $0x2d0] sm:$0xff]
                  %811 = vst [vmem:[%s719 + $0x168] sm:$0xff] %v810
                  %v812 = vld [vmem:[%s718 + $0x2e0] sm:$0xff]
                  %813 = vst [vmem:[%s719 + $0x170] sm:$0xff] %v812
                  %v814 = vld [vmem:[%s718 + $0x2f0] sm:$0xff]
                  %815 = vst [vmem:[%s719 + $0x178] sm:$0xff] %v814
                  %v816 = vld [vmem:[%s718 + $0x300] sm:$0xff]
                  %817 = vst [vmem:[%s719 + $0x180] sm:$0xff] %v816
                  %v818 = vld [vmem:[%s718 + $0x310] sm:$0xff]
                  %819 = vst [vmem:[%s719 + $0x188] sm:$0xff] %v818
                  %v820 = vld [vmem:[%s718 + $0x320] sm:$0xff]
                  %821 = vst [vmem:[%s719 + $0x190] sm:$0xff] %v820
                  %v822 = vld [vmem:[%s718 + $0x330] sm:$0xff]
                  %823 = vst [vmem:[%s719 + $0x198] sm:$0xff] %v822
                  %v824 = vld [vmem:[%s718 + $0x340] sm:$0xff]
                  %825 = vst [vmem:[%s719 + $0x1a0] sm:$0xff] %v824
                  %v826 = vld [vmem:[%s718 + $0x350] sm:$0xff]
                  %827 = vst [vmem:[%s719 + $0x1a8] sm:$0xff] %v826
                  %v828 = vld [vmem:[%s718 + $0x360] sm:$0xff]
                  %829 = vst [vmem:[%s719 + $0x1b0] sm:$0xff] %v828
                  %v830 = vld [vmem:[%s718 + $0x370] sm:$0xff]
                  %831 = vst [vmem:[%s719 + $0x1b8] sm:$0xff] %v830
                  %v832 = vld [vmem:[%s718 + $0x380] sm:$0xff]
                  %833 = vst [vmem:[%s719 + $0x1c0] sm:$0xff] %v832
                  %v834 = vld [vmem:[%s718 + $0x390] sm:$0xff]
                  %835 = vst [vmem:[%s719 + $0x1c8] sm:$0xff] %v834
                  %v836 = vld [vmem:[%s718 + $0x3a0] sm:$0xff]
                  %837 = vst [vmem:[%s719 + $0x1d0] sm:$0xff] %v836
                  %v838 = vld [vmem:[%s718 + $0x3b0] sm:$0xff]
                  %839 = vst [vmem:[%s719 + $0x1d8] sm:$0xff] %v838
                  %v840 = vld [vmem:[%s718 + $0x3c0] sm:$0xff]
                  %841 = vst [vmem:[%s719 + $0x1e0] sm:$0xff] %v840
                  %v842 = vld [vmem:[%s718 + $0x3d0] sm:$0xff]
                  %843 = vst [vmem:[%s719 + $0x1e8] sm:$0xff] %v842
                  %v844 = vld [vmem:[%s718 + $0x3e0] sm:$0xff]
                  %845 = vst [vmem:[%s719 + $0x1f0] sm:$0xff] %v844
                  %v846 = vld [vmem:[%s718 + $0x3f0] sm:$0xff]
                  %847 = vst [vmem:[%s719 + $0x1f8] sm:$0xff] %v846
                  %v848 = vld [vmem:[%s718 + $0x400] sm:$0xff]
                  %849 = vst [vmem:[%s719 + $0x200] sm:$0xff] %v848
                  %v850 = vld [vmem:[%s718 + $0x410] sm:$0xff]
                  %851 = vst [vmem:[%s719 + $0x208] sm:$0xff] %v850
                  %v852 = vld [vmem:[%s718 + $0x420] sm:$0xff]
                  %853 = vst [vmem:[%s719 + $0x210] sm:$0xff] %v852
                  %v854 = vld [vmem:[%s718 + $0x430] sm:$0xff]
                  %855 = vst [vmem:[%s719 + $0x218] sm:$0xff] %v854
                  %v856 = vld [vmem:[%s718 + $0x440] sm:$0xff]
                  %857 = vst [vmem:[%s719 + $0x220] sm:$0xff] %v856
                  %v858 = vld [vmem:[%s718 + $0x450] sm:$0xff]
                  %859 = vst [vmem:[%s719 + $0x228] sm:$0xff] %v858
                  %v860 = vld [vmem:[%s718 + $0x460] sm:$0xff]
                  %861 = vst [vmem:[%s719 + $0x230] sm:$0xff] %v860
                  %v862 = vld [vmem:[%s718 + $0x470] sm:$0xff]
                  %863 = vst [vmem:[%s719 + $0x238] sm:$0xff] %v862
                  %v864 = vld [vmem:[%s718 + $0x480] sm:$0xff]
                  %865 = vst [vmem:[%s719 + $0x240] sm:$0xff] %v864
                  %v866 = vld [vmem:[%s718 + $0x490] sm:$0xff]
                  %867 = vst [vmem:[%s719 + $0x248] sm:$0xff] %v866
                  %v868 = vld [vmem:[%s718 + $0x4a0] sm:$0xff]
                  %869 = vst [vmem:[%s719 + $0x250] sm:$0xff] %v868
                  %v870 = vld [vmem:[%s718 + $0x4b0] sm:$0xff]
                  %871 = vst [vmem:[%s719 + $0x258] sm:$0xff] %v870
                  %v872 = vld [vmem:[%s718 + $0x4c0] sm:$0xff]
                  %873 = vst [vmem:[%s719 + $0x260] sm:$0xff] %v872
                  %v874 = vld [vmem:[%s718 + $0x4d0] sm:$0xff]
                  %875 = vst [vmem:[%s719 + $0x268] sm:$0xff] %v874
                  %v876 = vld [vmem:[%s718 + $0x4e0] sm:$0xff]
                  %877 = vst [vmem:[%s719 + $0x270] sm:$0xff] %v876
                  %v878 = vld [vmem:[%s718 + $0x4f0] sm:$0xff]
                  %879 = vst [vmem:[%s719 + $0x278] sm:$0xff] %v878
                  %v880 = vld [vmem:[%s718 + $0x500] sm:$0xff]
                  %881 = vst [vmem:[%s719 + $0x280] sm:$0xff] %v880
                  %v882 = vld [vmem:[%s718 + $0x510] sm:$0xff]
                  %883 = vst [vmem:[%s719 + $0x288] sm:$0xff] %v882
                  %v884 = vld [vmem:[%s718 + $0x520] sm:$0xff]
                  %885 = vst [vmem:[%s719 + $0x290] sm:$0xff] %v884
                  %v886 = vld [vmem:[%s718 + $0x530] sm:$0xff]
                  %887 = vst [vmem:[%s719 + $0x298] sm:$0xff] %v886
                  %v888 = vld [vmem:[%s718 + $0x540] sm:$0xff]
                  %889 = vst [vmem:[%s719 + $0x2a0] sm:$0xff] %v888
                  %v890 = vld [vmem:[%s718 + $0x550] sm:$0xff]
                  %891 = vst [vmem:[%s719 + $0x2a8] sm:$0xff] %v890
                  %v892 = vld [vmem:[%s718 + $0x560] sm:$0xff]
                  %893 = vst [vmem:[%s719 + $0x2b0] sm:$0xff] %v892
                  %v894 = vld [vmem:[%s718 + $0x570] sm:$0xff]
                  %895 = vst [vmem:[%s719 + $0x2b8] sm:$0xff] %v894
                  %v896 = vld [vmem:[%s718 + $0x580] sm:$0xff]
                  %897 = vst [vmem:[%s719 + $0x2c0] sm:$0xff] %v896
                  %v898 = vld [vmem:[%s718 + $0x590] sm:$0xff]
                  %899 = vst [vmem:[%s719 + $0x2c8] sm:$0xff] %v898
                  %v900 = vld [vmem:[%s718 + $0x5a0] sm:$0xff]
                  %901 = vst [vmem:[%s719 + $0x2d0] sm:$0xff] %v900
                  %v902 = vld [vmem:[%s718 + $0x5b0] sm:$0xff]
                  %903 = vst [vmem:[%s719 + $0x2d8] sm:$0xff] %v902
                  %v904 = vld [vmem:[%s718 + $0x5c0] sm:$0xff]
                  %905 = vst [vmem:[%s719 + $0x2e0] sm:$0xff] %v904
                  %v906 = vld [vmem:[%s718 + $0x5d0] sm:$0xff]
                  %907 = vst [vmem:[%s719 + $0x2e8] sm:$0xff] %v906
                  %v908 = vld [vmem:[%s718 + $0x5e0] sm:$0xff]
                  %909 = vst [vmem:[%s719 + $0x2f0] sm:$0xff] %v908
                  %v910 = vld [vmem:[%s718 + $0x5f0] sm:$0xff]
                  %911 = vst [vmem:[%s719 + $0x2f8] sm:$0xff] %v910
                  %v912 = vld [vmem:[%s718 + $0x600] sm:$0xff]
                  %913 = vst [vmem:[%s719 + $0x300] sm:$0xff] %v912
                  %v914 = vld [vmem:[%s718 + $0x610] sm:$0xff]
                  %915 = vst [vmem:[%s719 + $0x308] sm:$0xff] %v914
                  %v916 = vld [vmem:[%s718 + $0x620] sm:$0xff]
                  %917 = vst [vmem:[%s719 + $0x310] sm:$0xff] %v916
                  %v918 = vld [vmem:[%s718 + $0x630] sm:$0xff]
                  %919 = vst [vmem:[%s719 + $0x318] sm:$0xff] %v918
                  %v920 = vld [vmem:[%s718 + $0x640] sm:$0xff]
                  %921 = vst [vmem:[%s719 + $0x320] sm:$0xff] %v920
                  %v922 = vld [vmem:[%s718 + $0x650] sm:$0xff]
                  %923 = vst [vmem:[%s719 + $0x328] sm:$0xff] %v922
                  %v924 = vld [vmem:[%s718 + $0x660] sm:$0xff]
                  %925 = vst [vmem:[%s719 + $0x330] sm:$0xff] %v924
                  %v926 = vld [vmem:[%s718 + $0x670] sm:$0xff]
                  %927 = vst [vmem:[%s719 + $0x338] sm:$0xff] %v926
                  %v928 = vld [vmem:[%s718 + $0x680] sm:$0xff]
                  %929 = vst [vmem:[%s719 + $0x340] sm:$0xff] %v928
                  %v930 = vld [vmem:[%s718 + $0x690] sm:$0xff]
                  %931 = vst [vmem:[%s719 + $0x348] sm:$0xff] %v930
                  %v932 = vld [vmem:[%s718 + $0x6a0] sm:$0xff]
                  %933 = vst [vmem:[%s719 + $0x350] sm:$0xff] %v932
                  %v934 = vld [vmem:[%s718 + $0x6b0] sm:$0xff]
                  %935 = vst [vmem:[%s719 + $0x358] sm:$0xff] %v934
                  %v936 = vld [vmem:[%s718 + $0x6c0] sm:$0xff]
                  %937 = vst [vmem:[%s719 + $0x360] sm:$0xff] %v936
                  %v938 = vld [vmem:[%s718 + $0x6d0] sm:$0xff]
                  %939 = vst [vmem:[%s719 + $0x368] sm:$0xff] %v938
                  %v940 = vld [vmem:[%s718 + $0x6e0] sm:$0xff]
                  %941 = vst [vmem:[%s719 + $0x370] sm:$0xff] %v940
                  %v942 = vld [vmem:[%s718 + $0x6f0] sm:$0xff]
                  %943 = vst [vmem:[%s719 + $0x378] sm:$0xff] %v942
                  %v944 = vld [vmem:[%s718 + $0x700] sm:$0xff]
                  %945 = vst [vmem:[%s719 + $0x380] sm:$0xff] %v944
                  %v946 = vld [vmem:[%s718 + $0x710] sm:$0xff]
                  %947 = vst [vmem:[%s719 + $0x388] sm:$0xff] %v946
                  %v948 = vld [vmem:[%s718 + $0x720] sm:$0xff]
                  %949 = vst [vmem:[%s719 + $0x390] sm:$0xff] %v948
                  %v950 = vld [vmem:[%s718 + $0x730] sm:$0xff]
                  %951 = vst [vmem:[%s719 + $0x398] sm:$0xff] %v950
                  %v952 = vld [vmem:[%s718 + $0x740] sm:$0xff]
                  %953 = vst [vmem:[%s719 + $0x3a0] sm:$0xff] %v952
                  %v954 = vld [vmem:[%s718 + $0x750] sm:$0xff]
                  %955 = vst [vmem:[%s719 + $0x3a8] sm:$0xff] %v954
                  %v956 = vld [vmem:[%s718 + $0x760] sm:$0xff]
                  %957 = vst [vmem:[%s719 + $0x3b0] sm:$0xff] %v956
                  %v958 = vld [vmem:[%s718 + $0x770] sm:$0xff]
                  %959 = vst [vmem:[%s719 + $0x3b8] sm:$0xff] %v958
                  %v960 = vld [vmem:[%s718 + $0x780] sm:$0xff]
                  %961 = vst [vmem:[%s719 + $0x3c0] sm:$0xff] %v960
                  %v962 = vld [vmem:[%s718 + $0x790] sm:$0xff]
                  %963 = vst [vmem:[%s719 + $0x3c8] sm:$0xff] %v962
                  %v964 = vld [vmem:[%s718 + $0x7a0] sm:$0xff]
                  %965 = vst [vmem:[%s719 + $0x3d0] sm:$0xff] %v964
                  %v966 = vld [vmem:[%s718 + $0x7b0] sm:$0xff]
                  %967 = vst [vmem:[%s719 + $0x3d8] sm:$0xff] %v966
                  %v968 = vld [vmem:[%s718 + $0x7c0] sm:$0xff]
                  %969 = vst [vmem:[%s719 + $0x3e0] sm:$0xff] %v968
                  %v970 = vld [vmem:[%s718 + $0x7d0] sm:$0xff]
                  %971 = vst [vmem:[%s719 + $0x3e8] sm:$0xff] %v970
                  %v972 = vld [vmem:[%s718 + $0x7e0] sm:$0xff]
                  %973 = vst [vmem:[%s719 + $0x3f0] sm:$0xff] %v972
                  %v974 = vld [vmem:[%s718 + $0x7f0] sm:$0xff]
                  %975 = vst [vmem:[%s719 + $0x3f8] sm:$0xff] %v974
                  %v976 = vld [vmem:[%s718 + $0x800] sm:$0xff]
                  %977 = vst [vmem:[%s719 + $0x400] sm:$0xff] %v976
                  %v978 = vld [vmem:[%s718 + $0x810] sm:$0xff]
                  %979 = vst [vmem:[%s719 + $0x408] sm:$0xff] %v978
                  %v980 = vld [vmem:[%s718 + $0x820] sm:$0xff]
                  %981 = vst [vmem:[%s719 + $0x410] sm:$0xff] %v980
                  %v982 = vld [vmem:[%s718 + $0x830] sm:$0xff]
                  %983 = vst [vmem:[%s719 + $0x418] sm:$0xff] %v982
                  %v984 = vld [vmem:[%s718 + $0x840] sm:$0xff]
                  %985 = vst [vmem:[%s719 + $0x420] sm:$0xff] %v984
                  %v986 = vld [vmem:[%s718 + $0x850] sm:$0xff]
                  %987 = vst [vmem:[%s719 + $0x428] sm:$0xff] %v986
                  %v988 = vld [vmem:[%s718 + $0x860] sm:$0xff]
                  %989 = vst [vmem:[%s719 + $0x430] sm:$0xff] %v988
                  %v990 = vld [vmem:[%s718 + $0x870] sm:$0xff]
                  %991 = vst [vmem:[%s719 + $0x438] sm:$0xff] %v990
                  %v992 = vld [vmem:[%s718 + $0x880] sm:$0xff]
                  %993 = vst [vmem:[%s719 + $0x440] sm:$0xff] %v992
                  %v994 = vld [vmem:[%s718 + $0x890] sm:$0xff]
                  %995 = vst [vmem:[%s719 + $0x448] sm:$0xff] %v994
                  %v996 = vld [vmem:[%s718 + $0x8a0] sm:$0xff]
                  %997 = vst [vmem:[%s719 + $0x450] sm:$0xff] %v996
                  %v998 = vld [vmem:[%s718 + $0x8b0] sm:$0xff]
                  %999 = vst [vmem:[%s719 + $0x458] sm:$0xff] %v998
                  %v1000 = vld [vmem:[%s718 + $0x8c0] sm:$0xff]
                  %1001 = vst [vmem:[%s719 + $0x460] sm:$0xff] %v1000
                  %v1002 = vld [vmem:[%s718 + $0x8d0] sm:$0xff]
                  %1003 = vst [vmem:[%s719 + $0x468] sm:$0xff] %v1002
                  %v1004 = vld [vmem:[%s718 + $0x8e0] sm:$0xff]
                  %1005 = vst [vmem:[%s719 + $0x470] sm:$0xff] %v1004
                  %v1006 = vld [vmem:[%s718 + $0x8f0] sm:$0xff]
                  %1007 = vst [vmem:[%s719 + $0x478] sm:$0xff] %v1006
                  %v1008 = vld [vmem:[%s718 + $0x900] sm:$0xff]
                  %1009 = vst [vmem:[%s719 + $0x480] sm:$0xff] %v1008
                  %v1010 = vld [vmem:[%s718 + $0x910] sm:$0xff]
                  %1011 = vst [vmem:[%s719 + $0x488] sm:$0xff] %v1010
                  %v1012 = vld [vmem:[%s718 + $0x920] sm:$0xff]
                  %1013 = vst [vmem:[%s719 + $0x490] sm:$0xff] %v1012
                  %v1014 = vld [vmem:[%s718 + $0x930] sm:$0xff]
                  %1015 = vst [vmem:[%s719 + $0x498] sm:$0xff] %v1014
                  %v1016 = vld [vmem:[%s718 + $0x940] sm:$0xff]
                  %1017 = vst [vmem:[%s719 + $0x4a0] sm:$0xff] %v1016
                  %v1018 = vld [vmem:[%s718 + $0x950] sm:$0xff]
                  %1019 = vst [vmem:[%s719 + $0x4a8] sm:$0xff] %v1018
                  %v1020 = vld [vmem:[%s718 + $0x960] sm:$0xff]
                  %1021 = vst [vmem:[%s719 + $0x4b0] sm:$0xff] %v1020
                  %v1022 = vld [vmem:[%s718 + $0x970] sm:$0xff]
                  %1023 = vst [vmem:[%s719 + $0x4b8] sm:$0xff] %v1022
                  %v1024 = vld [vmem:[%s718 + $0x980] sm:$0xff]
                  %1025 = vst [vmem:[%s719 + $0x4c0] sm:$0xff] %v1024
                  %v1026 = vld [vmem:[%s718 + $0x990] sm:$0xff]
                  %1027 = vst [vmem:[%s719 + $0x4c8] sm:$0xff] %v1026
                  %v1028 = vld [vmem:[%s718 + $0x9a0] sm:$0xff]
                  %1029 = vst [vmem:[%s719 + $0x4d0] sm:$0xff] %v1028
                  %v1030 = vld [vmem:[%s718 + $0x9b0] sm:$0xff]
                  %1031 = vst [vmem:[%s719 + $0x4d8] sm:$0xff] %v1030
                  %v1032 = vld [vmem:[%s718 + $0x9c0] sm:$0xff]
                  %1033 = vst [vmem:[%s719 + $0x4e0] sm:$0xff] %v1032
                  %v1034 = vld [vmem:[%s718 + $0x9d0] sm:$0xff]
                  %1035 = vst [vmem:[%s719 + $0x4e8] sm:$0xff] %v1034
                  %v1036 = vld [vmem:[%s718 + $0x9e0] sm:$0xff]
                  %1037 = vst [vmem:[%s719 + $0x4f0] sm:$0xff] %v1036
                  %v1038 = vld [vmem:[%s718 + $0x9f0] sm:$0xff]
                  %1039 = vst [vmem:[%s719 + $0x4f8] sm:$0xff] %v1038
                  %v1040 = vld [vmem:[%s718 + $0xa00] sm:$0xff]
                  %1041 = vst [vmem:[%s719 + $0x500] sm:$0xff] %v1040
                  %v1042 = vld [vmem:[%s718 + $0xa10] sm:$0xff]
                  %1043 = vst [vmem:[%s719 + $0x508] sm:$0xff] %v1042
                  %v1044 = vld [vmem:[%s718 + $0xa20] sm:$0xff]
                  %1045 = vst [vmem:[%s719 + $0x510] sm:$0xff] %v1044
                  %v1046 = vld [vmem:[%s718 + $0xa30] sm:$0xff]
                  %1047 = vst [vmem:[%s719 + $0x518] sm:$0xff] %v1046
                  %v1048 = vld [vmem:[%s718 + $0xa40] sm:$0xff]
                  %1049 = vst [vmem:[%s719 + $0x520] sm:$0xff] %v1048
                  %v1050 = vld [vmem:[%s718 + $0xa50] sm:$0xff]
                  %1051 = vst [vmem:[%s719 + $0x528] sm:$0xff] %v1050
                  %v1052 = vld [vmem:[%s718 + $0xa60] sm:$0xff]
                  %1053 = vst [vmem:[%s719 + $0x530] sm:$0xff] %v1052
                  %v1054 = vld [vmem:[%s718 + $0xa70] sm:$0xff]
                  %1055 = vst [vmem:[%s719 + $0x538] sm:$0xff] %v1054
                  %v1056 = vld [vmem:[%s718 + $0xa80] sm:$0xff]
                  %1057 = vst [vmem:[%s719 + $0x540] sm:$0xff] %v1056
                  %v1058 = vld [vmem:[%s718 + $0xa90] sm:$0xff]
                  %1059 = vst [vmem:[%s719 + $0x548] sm:$0xff] %v1058
                  %v1060 = vld [vmem:[%s718 + $0xaa0] sm:$0xff]
                  %1061 = vst [vmem:[%s719 + $0x550] sm:$0xff] %v1060
                  %v1062 = vld [vmem:[%s718 + $0xab0] sm:$0xff]
                  %1063 = vst [vmem:[%s719 + $0x558] sm:$0xff] %v1062
                  %v1064 = vld [vmem:[%s718 + $0xac0] sm:$0xff]
                  %1065 = vst [vmem:[%s719 + $0x560] sm:$0xff] %v1064
                  %v1066 = vld [vmem:[%s718 + $0xad0] sm:$0xff]
                  %1067 = vst [vmem:[%s719 + $0x568] sm:$0xff] %v1066
                  %v1068 = vld [vmem:[%s718 + $0xae0] sm:$0xff]
                  %1069 = vst [vmem:[%s719 + $0x570] sm:$0xff] %v1068
                  %v1070 = vld [vmem:[%s718 + $0xaf0] sm:$0xff]
                  %1071 = vst [vmem:[%s719 + $0x578] sm:$0xff] %v1070
                  %v1072 = vld [vmem:[%s718 + $0xb00] sm:$0xff]
                  %1073 = vst [vmem:[%s719 + $0x580] sm:$0xff] %v1072
                  %v1074 = vld [vmem:[%s718 + $0xb10] sm:$0xff]
                  %1075 = vst [vmem:[%s719 + $0x588] sm:$0xff] %v1074
                  %v1076 = vld [vmem:[%s718 + $0xb20] sm:$0xff]
                  %1077 = vst [vmem:[%s719 + $0x590] sm:$0xff] %v1076
                  %v1078 = vld [vmem:[%s718 + $0xb30] sm:$0xff]
                  %1079 = vst [vmem:[%s719 + $0x598] sm:$0xff] %v1078
                  %v1080 = vld [vmem:[%s718 + $0xb40] sm:$0xff]
                  %1081 = vst [vmem:[%s719 + $0x5a0] sm:$0xff] %v1080
                  %v1082 = vld [vmem:[%s718 + $0xb50] sm:$0xff]
                  %1083 = vst [vmem:[%s719 + $0x5a8] sm:$0xff] %v1082
                  %v1084 = vld [vmem:[%s718 + $0xb60] sm:$0xff]
                  %1085 = vst [vmem:[%s719 + $0x5b0] sm:$0xff] %v1084
                  %v1086 = vld [vmem:[%s718 + $0xb70] sm:$0xff]
                  %1087 = vst [vmem:[%s719 + $0x5b8] sm:$0xff] %v1086
                  %v1088 = vld [vmem:[%s718 + $0xb80] sm:$0xff]
                  %1089 = vst [vmem:[%s719 + $0x5c0] sm:$0xff] %v1088
                  %v1090 = vld [vmem:[%s718 + $0xb90] sm:$0xff]
                  %1091 = vst [vmem:[%s719 + $0x5c8] sm:$0xff] %v1090
                  %v1092 = vld [vmem:[%s718 + $0xba0] sm:$0xff]
                  %1093 = vst [vmem:[%s719 + $0x5d0] sm:$0xff] %v1092
                  %v1094 = vld [vmem:[%s718 + $0xbb0] sm:$0xff]
                  %1095 = vst [vmem:[%s719 + $0x5d8] sm:$0xff] %v1094
                  %v1096 = vld [vmem:[%s718 + $0xbc0] sm:$0xff]
                  %1097 = vst [vmem:[%s719 + $0x5e0] sm:$0xff] %v1096
                  %v1098 = vld [vmem:[%s718 + $0xbd0] sm:$0xff]
                  %1099 = vst [vmem:[%s719 + $0x5e8] sm:$0xff] %v1098
                  %v1100 = vld [vmem:[%s718 + $0xbe0] sm:$0xff]
                  %1101 = vst [vmem:[%s719 + $0x5f0] sm:$0xff] %v1100
                  %v1102 = vld [vmem:[%s718 + $0xbf0] sm:$0xff]
                  %1103 = vst [vmem:[%s719 + $0x5f8] sm:$0xff] %v1102
                  %v1104 = vld [vmem:[%s718 + $0xc00] sm:$0xff]
                  %1105 = vst [vmem:[%s719 + $0x600] sm:$0xff] %v1104
                  %v1106 = vld [vmem:[%s718 + $0xc10] sm:$0xff]
                  %1107 = vst [vmem:[%s719 + $0x608] sm:$0xff] %v1106
                  %v1108 = vld [vmem:[%s718 + $0xc20] sm:$0xff]
                  %1109 = vst [vmem:[%s719 + $0x610] sm:$0xff] %v1108
                  %v1110 = vld [vmem:[%s718 + $0xc30] sm:$0xff]
                  %1111 = vst [vmem:[%s719 + $0x618] sm:$0xff] %v1110
                  %v1112 = vld [vmem:[%s718 + $0xc40] sm:$0xff]
                  %1113 = vst [vmem:[%s719 + $0x620] sm:$0xff] %v1112
                  %v1114 = vld [vmem:[%s718 + $0xc50] sm:$0xff]
                  %1115 = vst [vmem:[%s719 + $0x628] sm:$0xff] %v1114
                  %v1116 = vld [vmem:[%s718 + $0xc60] sm:$0xff]
                  %1117 = vst [vmem:[%s719 + $0x630] sm:$0xff] %v1116
                  %v1118 = vld [vmem:[%s718 + $0xc70] sm:$0xff]
                  %1119 = vst [vmem:[%s719 + $0x638] sm:$0xff] %v1118
                  %v1120 = vld [vmem:[%s718 + $0xc80] sm:$0xff]
                  %1121 = vst [vmem:[%s719 + $0x640] sm:$0xff] %v1120
                  %v1122 = vld [vmem:[%s718 + $0xc90] sm:$0xff]
                  %1123 = vst [vmem:[%s719 + $0x648] sm:$0xff] %v1122
                  %v1124 = vld [vmem:[%s718 + $0xca0] sm:$0xff]
                  %1125 = vst [vmem:[%s719 + $0x650] sm:$0xff] %v1124
                  %v1126 = vld [vmem:[%s718 + $0xcb0] sm:$0xff]
                  %1127 = vst [vmem:[%s719 + $0x658] sm:$0xff] %v1126
                  %v1128 = vld [vmem:[%s718 + $0xcc0] sm:$0xff]
                  %1129 = vst [vmem:[%s719 + $0x660] sm:$0xff] %v1128
                  %v1130 = vld [vmem:[%s718 + $0xcd0] sm:$0xff]
                  %1131 = vst [vmem:[%s719 + $0x668] sm:$0xff] %v1130
                  %v1132 = vld [vmem:[%s718 + $0xce0] sm:$0xff]
                  %1133 = vst [vmem:[%s719 + $0x670] sm:$0xff] %v1132
                  %v1134 = vld [vmem:[%s718 + $0xcf0] sm:$0xff]
                  %1135 = vst [vmem:[%s719 + $0x678] sm:$0xff] %v1134
                  %v1136 = vld [vmem:[%s718 + $0xd00] sm:$0xff]
                  %1137 = vst [vmem:[%s719 + $0x680] sm:$0xff] %v1136
                  %v1138 = vld [vmem:[%s718 + $0xd10] sm:$0xff]
                  %1139 = vst [vmem:[%s719 + $0x688] sm:$0xff] %v1138
                  %v1140 = vld [vmem:[%s718 + $0xd20] sm:$0xff]
                  %1141 = vst [vmem:[%s719 + $0x690] sm:$0xff] %v1140
                  %v1142 = vld [vmem:[%s718 + $0xd30] sm:$0xff]
                  %1143 = vst [vmem:[%s719 + $0x698] sm:$0xff] %v1142
                  %v1144 = vld [vmem:[%s718 + $0xd40] sm:$0xff]
                  %1145 = vst [vmem:[%s719 + $0x6a0] sm:$0xff] %v1144
                  %v1146 = vld [vmem:[%s718 + $0xd50] sm:$0xff]
                  %1147 = vst [vmem:[%s719 + $0x6a8] sm:$0xff] %v1146
                  %v1148 = vld [vmem:[%s718 + $0xd60] sm:$0xff]
                  %1149 = vst [vmem:[%s719 + $0x6b0] sm:$0xff] %v1148
                  %v1150 = vld [vmem:[%s718 + $0xd70] sm:$0xff]
                  %1151 = vst [vmem:[%s719 + $0x6b8] sm:$0xff] %v1150
                  %v1152 = vld [vmem:[%s718 + $0xd80] sm:$0xff]
                  %1153 = vst [vmem:[%s719 + $0x6c0] sm:$0xff] %v1152
                  %v1154 = vld [vmem:[%s718 + $0xd90] sm:$0xff]
                  %1155 = vst [vmem:[%s719 + $0x6c8] sm:$0xff] %v1154
                  %v1156 = vld [vmem:[%s718 + $0xda0] sm:$0xff]
                  %1157 = vst [vmem:[%s719 + $0x6d0] sm:$0xff] %v1156
                  %v1158 = vld [vmem:[%s718 + $0xdb0] sm:$0xff]
                  %1159 = vst [vmem:[%s719 + $0x6d8] sm:$0xff] %v1158
                  %v1160 = vld [vmem:[%s718 + $0xdc0] sm:$0xff]
                  %1161 = vst [vmem:[%s719 + $0x6e0] sm:$0xff] %v1160
                  %v1162 = vld [vmem:[%s718 + $0xdd0] sm:$0xff]
                  %1163 = vst [vmem:[%s719 + $0x6e8] sm:$0xff] %v1162
                  %v1164 = vld [vmem:[%s718 + $0xde0] sm:$0xff]
                  %1165 = vst [vmem:[%s719 + $0x6f0] sm:$0xff] %v1164
                  %v1166 = vld [vmem:[%s718 + $0xdf0] sm:$0xff]
                  %1167 = vst [vmem:[%s719 + $0x6f8] sm:$0xff] %v1166
                  %v1168 = vld [vmem:[%s718 + $0xe00] sm:$0xff]
                  %1169 = vst [vmem:[%s719 + $0x700] sm:$0xff] %v1168
                  %v1170 = vld [vmem:[%s718 + $0xe10] sm:$0xff]
                  %1171 = vst [vmem:[%s719 + $0x708] sm:$0xff] %v1170
                  %v1172 = vld [vmem:[%s718 + $0xe20] sm:$0xff]
                  %1173 = vst [vmem:[%s719 + $0x710] sm:$0xff] %v1172
                  %v1174 = vld [vmem:[%s718 + $0xe30] sm:$0xff]
                  %1175 = vst [vmem:[%s719 + $0x718] sm:$0xff] %v1174
                  %v1176 = vld [vmem:[%s718 + $0xe40] sm:$0xff]
                  %1177 = vst [vmem:[%s719 + $0x720] sm:$0xff] %v1176
                  %v1178 = vld [vmem:[%s718 + $0xe50] sm:$0xff]
                  %1179 = vst [vmem:[%s719 + $0x728] sm:$0xff] %v1178
                  %v1180 = vld [vmem:[%s718 + $0xe60] sm:$0xff]
                  %1181 = vst [vmem:[%s719 + $0x730] sm:$0xff] %v1180
                  %v1182 = vld [vmem:[%s718 + $0xe70] sm:$0xff]
                  %1183 = vst [vmem:[%s719 + $0x738] sm:$0xff] %v1182
                  %v1184 = vld [vmem:[%s718 + $0xe80] sm:$0xff]
                  %1185 = vst [vmem:[%s719 + $0x740] sm:$0xff] %v1184
                  %v1186 = vld [vmem:[%s718 + $0xe90] sm:$0xff]
                  %1187 = vst [vmem:[%s719 + $0x748] sm:$0xff] %v1186
                  %v1188 = vld [vmem:[%s718 + $0xea0] sm:$0xff]
                  %1189 = vst [vmem:[%s719 + $0x750] sm:$0xff] %v1188
                  %v1190 = vld [vmem:[%s718 + $0xeb0] sm:$0xff]
                  %1191 = vst [vmem:[%s719 + $0x758] sm:$0xff] %v1190
                  %v1192 = vld [vmem:[%s718 + $0xec0] sm:$0xff]
                  %1193 = vst [vmem:[%s719 + $0x760] sm:$0xff] %v1192
                  %v1194 = vld [vmem:[%s718 + $0xed0] sm:$0xff]
                  %1195 = vst [vmem:[%s719 + $0x768] sm:$0xff] %v1194
                  %v1196 = vld [vmem:[%s718 + $0xee0] sm:$0xff]
                  %1197 = vst [vmem:[%s719 + $0x770] sm:$0xff] %v1196
                  %v1198 = vld [vmem:[%s718 + $0xef0] sm:$0xff]
                  %1199 = vst [vmem:[%s719 + $0x778] sm:$0xff] %v1198
                  %v1200 = vld [vmem:[%s718 + $0xf00] sm:$0xff]
                  %1201 = vst [vmem:[%s719 + $0x780] sm:$0xff] %v1200
                  %v1202 = vld [vmem:[%s718 + $0xf10] sm:$0xff]
                  %1203 = vst [vmem:[%s719 + $0x788] sm:$0xff] %v1202
                  %v1204 = vld [vmem:[%s718 + $0xf20] sm:$0xff]
                  %1205 = vst [vmem:[%s719 + $0x790] sm:$0xff] %v1204
                  %v1206 = vld [vmem:[%s718 + $0xf30] sm:$0xff]
                  %1207 = vst [vmem:[%s719 + $0x798] sm:$0xff] %v1206
                  %v1208 = vld [vmem:[%s718 + $0xf40] sm:$0xff]
                  %1209 = vst [vmem:[%s719 + $0x7a0] sm:$0xff] %v1208
                  %v1210 = vld [vmem:[%s718 + $0xf50] sm:$0xff]
                  %1211 = vst [vmem:[%s719 + $0x7a8] sm:$0xff] %v1210
                  %v1212 = vld [vmem:[%s718 + $0xf60] sm:$0xff]
                  %1213 = vst [vmem:[%s719 + $0x7b0] sm:$0xff] %v1212
                  %v1214 = vld [vmem:[%s718 + $0xf70] sm:$0xff]
                  %1215 = vst [vmem:[%s719 + $0x7b8] sm:$0xff] %v1214
                  %v1216 = vld [vmem:[%s718 + $0xf80] sm:$0xff]
                  %1217 = vst [vmem:[%s719 + $0x7c0] sm:$0xff] %v1216
                  %v1218 = vld [vmem:[%s718 + $0xf90] sm:$0xff]
                  %1219 = vst [vmem:[%s719 + $0x7c8] sm:$0xff] %v1218
                  %v1220 = vld [vmem:[%s718 + $0xfa0] sm:$0xff]
                  %1221 = vst [vmem:[%s719 + $0x7d0] sm:$0xff] %v1220
                  %v1222 = vld [vmem:[%s718 + $0xfb0] sm:$0xff]
                  %1223 = vst [vmem:[%s719 + $0x7d8] sm:$0xff] %v1222
                  %v1224 = vld [vmem:[%s718 + $0xfc0] sm:$0xff]
                  %1225 = vst [vmem:[%s719 + $0x7e0] sm:$0xff] %v1224
                  %v1226 = vld [vmem:[%s718 + $0xfd0] sm:$0xff]
                  %1227 = vst [vmem:[%s719 + $0x7e8] sm:$0xff] %v1226
                  %v1228 = vld [vmem:[%s718 + $0xfe0] sm:$0xff]
                  %1229 = vst [vmem:[%s719 + $0x7f0] sm:$0xff] %v1228
                  %v1230 = vld [vmem:[%s718 + $0xff0] sm:$0xff]
                  %1231 = vst [vmem:[%s719 + $0x7f8] sm:$0xff] %v1230
                $region52: #{itm_model_forward.6} parent=46 // loop_footer
                  %s717 = sadd.s32 1, %s713
                $region53: #{itm_model_forward.6} parent=46 // loop_footer_branch
                  %712 = sbr.rel target = $region49
                $region54: #{itm_model_forward.6} parent=46 // loop_exit
                  _
              $region47: #{itm_model_forward.6} parent=31 // pred_fallthru
                _
              // Predicated region
              $region55: #{itm_model_forward.6} parent=31 // pred_check
                _
              $region56: #{itm_model_forward.6} parent=31 // pred_check_branch
                %1233 = sbr.rel target = $region58
              $region57: #{itm_model_forward.6} parent=31 // pred_region
                _
              $region58: #{itm_model_forward.6} parent=31 // pred_fallthru
                _
            $region32: #{itm_model_forward.6} parent=27 // pred_fallthru
              _
            // Predicated region
            $region33: #{itm_model_forward.6} parent=27 // pred_check
              _
            $region34: #{itm_model_forward.6} parent=27 // pred_check_branch
              %187 = sbr.rel target = $region36
            $region35: #{itm_model_forward.6} parent=27 // pred_region
              %s189 = ssub.s32 256, 1
              loop: start=0, step=1, limit=1
              $region37: #{itm_model_forward.6} parent=35 // loop_pre_header
                _
              $region38: #{itm_model_forward.6} parent=35 // loop_header
                %s191 = sphi 0, %s195
                %p192 = scmp.ge.s32.totalorder %s191, 1
                %s196 = sphi %s181, %s181
                %s197 = sphi %s175, %s175
              $region39: #{itm_model_forward.6} parent=35 // loop_header_branch
                %194 = sbr.rel (%p192) target = $region43
              $region40: #{itm_model_forward.6} parent=35 // loop_body
                %v198 = vld [vmem:[%s196] sm:%s189]
                %199 = vst [vmem:[%s197] sm:%s189] %v198
                %v200 = vld [vmem:[%s196 + $0x10] sm:%s189]
                %201 = vst [vmem:[%s197 + $0x8] sm:%s189] %v200
                %v202 = vld [vmem:[%s196 + $0x20] sm:%s189]
                %203 = vst [vmem:[%s197 + $0x10] sm:%s189] %v202
                %v204 = vld [vmem:[%s196 + $0x30] sm:%s189]
                %205 = vst [vmem:[%s197 + $0x18] sm:%s189] %v204
                %v206 = vld [vmem:[%s196 + $0x40] sm:%s189]
                %207 = vst [vmem:[%s197 + $0x20] sm:%s189] %v206
                %v208 = vld [vmem:[%s196 + $0x50] sm:%s189]
                %209 = vst [vmem:[%s197 + $0x28] sm:%s189] %v208
                %v210 = vld [vmem:[%s196 + $0x60] sm:%s189]
                %211 = vst [vmem:[%s197 + $0x30] sm:%s189] %v210
                %v212 = vld [vmem:[%s196 + $0x70] sm:%s189]
                %213 = vst [vmem:[%s197 + $0x38] sm:%s189] %v212
                %v214 = vld [vmem:[%s196 + $0x80] sm:%s189]
                %215 = vst [vmem:[%s197 + $0x40] sm:%s189] %v214
                %v216 = vld [vmem:[%s196 + $0x90] sm:%s189]
                %217 = vst [vmem:[%s197 + $0x48] sm:%s189] %v216
                %v218 = vld [vmem:[%s196 + $0xa0] sm:%s189]
                %219 = vst [vmem:[%s197 + $0x50] sm:%s189] %v218
                %v220 = vld [vmem:[%s196 + $0xb0] sm:%s189]
                %221 = vst [vmem:[%s197 + $0x58] sm:%s189] %v220
                %v222 = vld [vmem:[%s196 + $0xc0] sm:%s189]
                %223 = vst [vmem:[%s197 + $0x60] sm:%s189] %v222
                %v224 = vld [vmem:[%s196 + $0xd0] sm:%s189]
                %225 = vst [vmem:[%s197 + $0x68] sm:%s189] %v224
                %v226 = vld [vmem:[%s196 + $0xe0] sm:%s189]
                %227 = vst [vmem:[%s197 + $0x70] sm:%s189] %v226
                %v228 = vld [vmem:[%s196 + $0xf0] sm:%s189]
                %229 = vst [vmem:[%s197 + $0x78] sm:%s189] %v228
                %v230 = vld [vmem:[%s196 + $0x100] sm:%s189]
                %231 = vst [vmem:[%s197 + $0x80] sm:%s189] %v230
                %v232 = vld [vmem:[%s196 + $0x110] sm:%s189]
                %233 = vst [vmem:[%s197 + $0x88] sm:%s189] %v232
                %v234 = vld [vmem:[%s196 + $0x120] sm:%s189]
                %235 = vst [vmem:[%s197 + $0x90] sm:%s189] %v234
                %v236 = vld [vmem:[%s196 + $0x130] sm:%s189]
                %237 = vst [vmem:[%s197 + $0x98] sm:%s189] %v236
                %v238 = vld [vmem:[%s196 + $0x140] sm:%s189]
                %239 = vst [vmem:[%s197 + $0xa0] sm:%s189] %v238
                %v240 = vld [vmem:[%s196 + $0x150] sm:%s189]
                %241 = vst [vmem:[%s197 + $0xa8] sm:%s189] %v240
                %v242 = vld [vmem:[%s196 + $0x160] sm:%s189]
                %243 = vst [vmem:[%s197 + $0xb0] sm:%s189] %v242
                %v244 = vld [vmem:[%s196 + $0x170] sm:%s189]
                %245 = vst [vmem:[%s197 + $0xb8] sm:%s189] %v244
                %v246 = vld [vmem:[%s196 + $0x180] sm:%s189]
                %247 = vst [vmem:[%s197 + $0xc0] sm:%s189] %v246
                %v248 = vld [vmem:[%s196 + $0x190] sm:%s189]
                %249 = vst [vmem:[%s197 + $0xc8] sm:%s189] %v248
                %v250 = vld [vmem:[%s196 + $0x1a0] sm:%s189]
                %251 = vst [vmem:[%s197 + $0xd0] sm:%s189] %v250
                %v252 = vld [vmem:[%s196 + $0x1b0] sm:%s189]
                %253 = vst [vmem:[%s197 + $0xd8] sm:%s189] %v252
                %v254 = vld [vmem:[%s196 + $0x1c0] sm:%s189]
                %255 = vst [vmem:[%s197 + $0xe0] sm:%s189] %v254
                %v256 = vld [vmem:[%s196 + $0x1d0] sm:%s189]
                %257 = vst [vmem:[%s197 + $0xe8] sm:%s189] %v256
                %v258 = vld [vmem:[%s196 + $0x1e0] sm:%s189]
                %259 = vst [vmem:[%s197 + $0xf0] sm:%s189] %v258
                %v260 = vld [vmem:[%s196 + $0x1f0] sm:%s189]
                %261 = vst [vmem:[%s197 + $0xf8] sm:%s189] %v260
                %v262 = vld [vmem:[%s196 + $0x200] sm:%s189]
                %263 = vst [vmem:[%s197 + $0x100] sm:%s189] %v262
                %v264 = vld [vmem:[%s196 + $0x210] sm:%s189]
                %265 = vst [vmem:[%s197 + $0x108] sm:%s189] %v264
                %v266 = vld [vmem:[%s196 + $0x220] sm:%s189]
                %267 = vst [vmem:[%s197 + $0x110] sm:%s189] %v266
                %v268 = vld [vmem:[%s196 + $0x230] sm:%s189]
                %269 = vst [vmem:[%s197 + $0x118] sm:%s189] %v268
                %v270 = vld [vmem:[%s196 + $0x240] sm:%s189]
                %271 = vst [vmem:[%s197 + $0x120] sm:%s189] %v270
                %v272 = vld [vmem:[%s196 + $0x250] sm:%s189]
                %273 = vst [vmem:[%s197 + $0x128] sm:%s189] %v272
                %v274 = vld [vmem:[%s196 + $0x260] sm:%s189]
                %275 = vst [vmem:[%s197 + $0x130] sm:%s189] %v274
                %v276 = vld [vmem:[%s196 + $0x270] sm:%s189]
                %277 = vst [vmem:[%s197 + $0x138] sm:%s189] %v276
                %v278 = vld [vmem:[%s196 + $0x280] sm:%s189]
                %279 = vst [vmem:[%s197 + $0x140] sm:%s189] %v278
                %v280 = vld [vmem:[%s196 + $0x290] sm:%s189]
                %281 = vst [vmem:[%s197 + $0x148] sm:%s189] %v280
                %v282 = vld [vmem:[%s196 + $0x2a0] sm:%s189]
                %283 = vst [vmem:[%s197 + $0x150] sm:%s189] %v282
                %v284 = vld [vmem:[%s196 + $0x2b0] sm:%s189]
                %285 = vst [vmem:[%s197 + $0x158] sm:%s189] %v284
                %v286 = vld [vmem:[%s196 + $0x2c0] sm:%s189]
                %287 = vst [vmem:[%s197 + $0x160] sm:%s189] %v286
                %v288 = vld [vmem:[%s196 + $0x2d0] sm:%s189]
                %289 = vst [vmem:[%s197 + $0x168] sm:%s189] %v288
                %v290 = vld [vmem:[%s196 + $0x2e0] sm:%s189]
                %291 = vst [vmem:[%s197 + $0x170] sm:%s189] %v290
                %v292 = vld [vmem:[%s196 + $0x2f0] sm:%s189]
                %293 = vst [vmem:[%s197 + $0x178] sm:%s189] %v292
                %v294 = vld [vmem:[%s196 + $0x300] sm:%s189]
                %295 = vst [vmem:[%s197 + $0x180] sm:%s189] %v294
                %v296 = vld [vmem:[%s196 + $0x310] sm:%s189]
                %297 = vst [vmem:[%s197 + $0x188] sm:%s189] %v296
                %v298 = vld [vmem:[%s196 + $0x320] sm:%s189]
                %299 = vst [vmem:[%s197 + $0x190] sm:%s189] %v298
                %v300 = vld [vmem:[%s196 + $0x330] sm:%s189]
                %301 = vst [vmem:[%s197 + $0x198] sm:%s189] %v300
                %v302 = vld [vmem:[%s196 + $0x340] sm:%s189]
                %303 = vst [vmem:[%s197 + $0x1a0] sm:%s189] %v302
                %v304 = vld [vmem:[%s196 + $0x350] sm:%s189]
                %305 = vst [vmem:[%s197 + $0x1a8] sm:%s189] %v304
                %v306 = vld [vmem:[%s196 + $0x360] sm:%s189]
                %307 = vst [vmem:[%s197 + $0x1b0] sm:%s189] %v306
                %v308 = vld [vmem:[%s196 + $0x370] sm:%s189]
                %309 = vst [vmem:[%s197 + $0x1b8] sm:%s189] %v308
                %v310 = vld [vmem:[%s196 + $0x380] sm:%s189]
                %311 = vst [vmem:[%s197 + $0x1c0] sm:%s189] %v310
                %v312 = vld [vmem:[%s196 + $0x390] sm:%s189]
                %313 = vst [vmem:[%s197 + $0x1c8] sm:%s189] %v312
                %v314 = vld [vmem:[%s196 + $0x3a0] sm:%s189]
                %315 = vst [vmem:[%s197 + $0x1d0] sm:%s189] %v314
                %v316 = vld [vmem:[%s196 + $0x3b0] sm:%s189]
                %317 = vst [vmem:[%s197 + $0x1d8] sm:%s189] %v316
                %v318 = vld [vmem:[%s196 + $0x3c0] sm:%s189]
                %319 = vst [vmem:[%s197 + $0x1e0] sm:%s189] %v318
                %v320 = vld [vmem:[%s196 + $0x3d0] sm:%s189]
                %321 = vst [vmem:[%s197 + $0x1e8] sm:%s189] %v320
                %v322 = vld [vmem:[%s196 + $0x3e0] sm:%s189]
                %323 = vst [vmem:[%s197 + $0x1f0] sm:%s189] %v322
                %v324 = vld [vmem:[%s196 + $0x3f0] sm:%s189]
                %325 = vst [vmem:[%s197 + $0x1f8] sm:%s189] %v324
                %v326 = vld [vmem:[%s196 + $0x400] sm:%s189]
                %327 = vst [vmem:[%s197 + $0x200] sm:%s189] %v326
                %v328 = vld [vmem:[%s196 + $0x410] sm:%s189]
                %329 = vst [vmem:[%s197 + $0x208] sm:%s189] %v328
                %v330 = vld [vmem:[%s196 + $0x420] sm:%s189]
                %331 = vst [vmem:[%s197 + $0x210] sm:%s189] %v330
                %v332 = vld [vmem:[%s196 + $0x430] sm:%s189]
                %333 = vst [vmem:[%s197 + $0x218] sm:%s189] %v332
                %v334 = vld [vmem:[%s196 + $0x440] sm:%s189]
                %335 = vst [vmem:[%s197 + $0x220] sm:%s189] %v334
                %v336 = vld [vmem:[%s196 + $0x450] sm:%s189]
                %337 = vst [vmem:[%s197 + $0x228] sm:%s189] %v336
                %v338 = vld [vmem:[%s196 + $0x460] sm:%s189]
                %339 = vst [vmem:[%s197 + $0x230] sm:%s189] %v338
                %v340 = vld [vmem:[%s196 + $0x470] sm:%s189]
                %341 = vst [vmem:[%s197 + $0x238] sm:%s189] %v340
                %v342 = vld [vmem:[%s196 + $0x480] sm:%s189]
                %343 = vst [vmem:[%s197 + $0x240] sm:%s189] %v342
                %v344 = vld [vmem:[%s196 + $0x490] sm:%s189]
                %345 = vst [vmem:[%s197 + $0x248] sm:%s189] %v344
                %v346 = vld [vmem:[%s196 + $0x4a0] sm:%s189]
                %347 = vst [vmem:[%s197 + $0x250] sm:%s189] %v346
                %v348 = vld [vmem:[%s196 + $0x4b0] sm:%s189]
                %349 = vst [vmem:[%s197 + $0x258] sm:%s189] %v348
                %v350 = vld [vmem:[%s196 + $0x4c0] sm:%s189]
                %351 = vst [vmem:[%s197 + $0x260] sm:%s189] %v350
                %v352 = vld [vmem:[%s196 + $0x4d0] sm:%s189]
                %353 = vst [vmem:[%s197 + $0x268] sm:%s189] %v352
                %v354 = vld [vmem:[%s196 + $0x4e0] sm:%s189]
                %355 = vst [vmem:[%s197 + $0x270] sm:%s189] %v354
                %v356 = vld [vmem:[%s196 + $0x4f0] sm:%s189]
                %357 = vst [vmem:[%s197 + $0x278] sm:%s189] %v356
                %v358 = vld [vmem:[%s196 + $0x500] sm:%s189]
                %359 = vst [vmem:[%s197 + $0x280] sm:%s189] %v358
                %v360 = vld [vmem:[%s196 + $0x510] sm:%s189]
                %361 = vst [vmem:[%s197 + $0x288] sm:%s189] %v360
                %v362 = vld [vmem:[%s196 + $0x520] sm:%s189]
                %363 = vst [vmem:[%s197 + $0x290] sm:%s189] %v362
                %v364 = vld [vmem:[%s196 + $0x530] sm:%s189]
                %365 = vst [vmem:[%s197 + $0x298] sm:%s189] %v364
                %v366 = vld [vmem:[%s196 + $0x540] sm:%s189]
                %367 = vst [vmem:[%s197 + $0x2a0] sm:%s189] %v366
                %v368 = vld [vmem:[%s196 + $0x550] sm:%s189]
                %369 = vst [vmem:[%s197 + $0x2a8] sm:%s189] %v368
                %v370 = vld [vmem:[%s196 + $0x560] sm:%s189]
                %371 = vst [vmem:[%s197 + $0x2b0] sm:%s189] %v370
                %v372 = vld [vmem:[%s196 + $0x570] sm:%s189]
                %373 = vst [vmem:[%s197 + $0x2b8] sm:%s189] %v372
                %v374 = vld [vmem:[%s196 + $0x580] sm:%s189]
                %375 = vst [vmem:[%s197 + $0x2c0] sm:%s189] %v374
                %v376 = vld [vmem:[%s196 + $0x590] sm:%s189]
                %377 = vst [vmem:[%s197 + $0x2c8] sm:%s189] %v376
                %v378 = vld [vmem:[%s196 + $0x5a0] sm:%s189]
                %379 = vst [vmem:[%s197 + $0x2d0] sm:%s189] %v378
                %v380 = vld [vmem:[%s196 + $0x5b0] sm:%s189]
                %381 = vst [vmem:[%s197 + $0x2d8] sm:%s189] %v380
                %v382 = vld [vmem:[%s196 + $0x5c0] sm:%s189]
                %383 = vst [vmem:[%s197 + $0x2e0] sm:%s189] %v382
                %v384 = vld [vmem:[%s196 + $0x5d0] sm:%s189]
                %385 = vst [vmem:[%s197 + $0x2e8] sm:%s189] %v384
                %v386 = vld [vmem:[%s196 + $0x5e0] sm:%s189]
                %387 = vst [vmem:[%s197 + $0x2f0] sm:%s189] %v386
                %v388 = vld [vmem:[%s196 + $0x5f0] sm:%s189]
                %389 = vst [vmem:[%s197 + $0x2f8] sm:%s189] %v388
                %v390 = vld [vmem:[%s196 + $0x600] sm:%s189]
                %391 = vst [vmem:[%s197 + $0x300] sm:%s189] %v390
                %v392 = vld [vmem:[%s196 + $0x610] sm:%s189]
                %393 = vst [vmem:[%s197 + $0x308] sm:%s189] %v392
                %v394 = vld [vmem:[%s196 + $0x620] sm:%s189]
                %395 = vst [vmem:[%s197 + $0x310] sm:%s189] %v394
                %v396 = vld [vmem:[%s196 + $0x630] sm:%s189]
                %397 = vst [vmem:[%s197 + $0x318] sm:%s189] %v396
                %v398 = vld [vmem:[%s196 + $0x640] sm:%s189]
                %399 = vst [vmem:[%s197 + $0x320] sm:%s189] %v398
                %v400 = vld [vmem:[%s196 + $0x650] sm:%s189]
                %401 = vst [vmem:[%s197 + $0x328] sm:%s189] %v400
                %v402 = vld [vmem:[%s196 + $0x660] sm:%s189]
                %403 = vst [vmem:[%s197 + $0x330] sm:%s189] %v402
                %v404 = vld [vmem:[%s196 + $0x670] sm:%s189]
                %405 = vst [vmem:[%s197 + $0x338] sm:%s189] %v404
                %v406 = vld [vmem:[%s196 + $0x680] sm:%s189]
                %407 = vst [vmem:[%s197 + $0x340] sm:%s189] %v406
                %v408 = vld [vmem:[%s196 + $0x690] sm:%s189]
                %409 = vst [vmem:[%s197 + $0x348] sm:%s189] %v408
                %v410 = vld [vmem:[%s196 + $0x6a0] sm:%s189]
                %411 = vst [vmem:[%s197 + $0x350] sm:%s189] %v410
                %v412 = vld [vmem:[%s196 + $0x6b0] sm:%s189]
                %413 = vst [vmem:[%s197 + $0x358] sm:%s189] %v412
                %v414 = vld [vmem:[%s196 + $0x6c0] sm:%s189]
                %415 = vst [vmem:[%s197 + $0x360] sm:%s189] %v414
                %v416 = vld [vmem:[%s196 + $0x6d0] sm:%s189]
                %417 = vst [vmem:[%s197 + $0x368] sm:%s189] %v416
                %v418 = vld [vmem:[%s196 + $0x6e0] sm:%s189]
                %419 = vst [vmem:[%s197 + $0x370] sm:%s189] %v418
                %v420 = vld [vmem:[%s196 + $0x6f0] sm:%s189]
                %421 = vst [vmem:[%s197 + $0x378] sm:%s189] %v420
                %v422 = vld [vmem:[%s196 + $0x700] sm:%s189]
                %423 = vst [vmem:[%s197 + $0x380] sm:%s189] %v422
                %v424 = vld [vmem:[%s196 + $0x710] sm:%s189]
                %425 = vst [vmem:[%s197 + $0x388] sm:%s189] %v424
                %v426 = vld [vmem:[%s196 + $0x720] sm:%s189]
                %427 = vst [vmem:[%s197 + $0x390] sm:%s189] %v426
                %v428 = vld [vmem:[%s196 + $0x730] sm:%s189]
                %429 = vst [vmem:[%s197 + $0x398] sm:%s189] %v428
                %v430 = vld [vmem:[%s196 + $0x740] sm:%s189]
                %431 = vst [vmem:[%s197 + $0x3a0] sm:%s189] %v430
                %v432 = vld [vmem:[%s196 + $0x750] sm:%s189]
                %433 = vst [vmem:[%s197 + $0x3a8] sm:%s189] %v432
                %v434 = vld [vmem:[%s196 + $0x760] sm:%s189]
                %435 = vst [vmem:[%s197 + $0x3b0] sm:%s189] %v434
                %v436 = vld [vmem:[%s196 + $0x770] sm:%s189]
                %437 = vst [vmem:[%s197 + $0x3b8] sm:%s189] %v436
                %v438 = vld [vmem:[%s196 + $0x780] sm:%s189]
                %439 = vst [vmem:[%s197 + $0x3c0] sm:%s189] %v438
                %v440 = vld [vmem:[%s196 + $0x790] sm:%s189]
                %441 = vst [vmem:[%s197 + $0x3c8] sm:%s189] %v440
                %v442 = vld [vmem:[%s196 + $0x7a0] sm:%s189]
                %443 = vst [vmem:[%s197 + $0x3d0] sm:%s189] %v442
                %v444 = vld [vmem:[%s196 + $0x7b0] sm:%s189]
                %445 = vst [vmem:[%s197 + $0x3d8] sm:%s189] %v444
                %v446 = vld [vmem:[%s196 + $0x7c0] sm:%s189]
                %447 = vst [vmem:[%s197 + $0x3e0] sm:%s189] %v446
                %v448 = vld [vmem:[%s196 + $0x7d0] sm:%s189]
                %449 = vst [vmem:[%s197 + $0x3e8] sm:%s189] %v448
                %v450 = vld [vmem:[%s196 + $0x7e0] sm:%s189]
                %451 = vst [vmem:[%s197 + $0x3f0] sm:%s189] %v450
                %v452 = vld [vmem:[%s196 + $0x7f0] sm:%s189]
                %453 = vst [vmem:[%s197 + $0x3f8] sm:%s189] %v452
                %v454 = vld [vmem:[%s196 + $0x800] sm:%s189]
                %455 = vst [vmem:[%s197 + $0x400] sm:%s189] %v454
                %v456 = vld [vmem:[%s196 + $0x810] sm:%s189]
                %457 = vst [vmem:[%s197 + $0x408] sm:%s189] %v456
                %v458 = vld [vmem:[%s196 + $0x820] sm:%s189]
                %459 = vst [vmem:[%s197 + $0x410] sm:%s189] %v458
                %v460 = vld [vmem:[%s196 + $0x830] sm:%s189]
                %461 = vst [vmem:[%s197 + $0x418] sm:%s189] %v460
                %v462 = vld [vmem:[%s196 + $0x840] sm:%s189]
                %463 = vst [vmem:[%s197 + $0x420] sm:%s189] %v462
                %v464 = vld [vmem:[%s196 + $0x850] sm:%s189]
                %465 = vst [vmem:[%s197 + $0x428] sm:%s189] %v464
                %v466 = vld [vmem:[%s196 + $0x860] sm:%s189]
                %467 = vst [vmem:[%s197 + $0x430] sm:%s189] %v466
                %v468 = vld [vmem:[%s196 + $0x870] sm:%s189]
                %469 = vst [vmem:[%s197 + $0x438] sm:%s189] %v468
                %v470 = vld [vmem:[%s196 + $0x880] sm:%s189]
                %471 = vst [vmem:[%s197 + $0x440] sm:%s189] %v470
                %v472 = vld [vmem:[%s196 + $0x890] sm:%s189]
                %473 = vst [vmem:[%s197 + $0x448] sm:%s189] %v472
                %v474 = vld [vmem:[%s196 + $0x8a0] sm:%s189]
                %475 = vst [vmem:[%s197 + $0x450] sm:%s189] %v474
                %v476 = vld [vmem:[%s196 + $0x8b0] sm:%s189]
                %477 = vst [vmem:[%s197 + $0x458] sm:%s189] %v476
                %v478 = vld [vmem:[%s196 + $0x8c0] sm:%s189]
                %479 = vst [vmem:[%s197 + $0x460] sm:%s189] %v478
                %v480 = vld [vmem:[%s196 + $0x8d0] sm:%s189]
                %481 = vst [vmem:[%s197 + $0x468] sm:%s189] %v480
                %v482 = vld [vmem:[%s196 + $0x8e0] sm:%s189]
                %483 = vst [vmem:[%s197 + $0x470] sm:%s189] %v482
                %v484 = vld [vmem:[%s196 + $0x8f0] sm:%s189]
                %485 = vst [vmem:[%s197 + $0x478] sm:%s189] %v484
                %v486 = vld [vmem:[%s196 + $0x900] sm:%s189]
                %487 = vst [vmem:[%s197 + $0x480] sm:%s189] %v486
                %v488 = vld [vmem:[%s196 + $0x910] sm:%s189]
                %489 = vst [vmem:[%s197 + $0x488] sm:%s189] %v488
                %v490 = vld [vmem:[%s196 + $0x920] sm:%s189]
                %491 = vst [vmem:[%s197 + $0x490] sm:%s189] %v490
                %v492 = vld [vmem:[%s196 + $0x930] sm:%s189]
                %493 = vst [vmem:[%s197 + $0x498] sm:%s189] %v492
                %v494 = vld [vmem:[%s196 + $0x940] sm:%s189]
                %495 = vst [vmem:[%s197 + $0x4a0] sm:%s189] %v494
                %v496 = vld [vmem:[%s196 + $0x950] sm:%s189]
                %497 = vst [vmem:[%s197 + $0x4a8] sm:%s189] %v496
                %v498 = vld [vmem:[%s196 + $0x960] sm:%s189]
                %499 = vst [vmem:[%s197 + $0x4b0] sm:%s189] %v498
                %v500 = vld [vmem:[%s196 + $0x970] sm:%s189]
                %501 = vst [vmem:[%s197 + $0x4b8] sm:%s189] %v500
                %v502 = vld [vmem:[%s196 + $0x980] sm:%s189]
                %503 = vst [vmem:[%s197 + $0x4c0] sm:%s189] %v502
                %v504 = vld [vmem:[%s196 + $0x990] sm:%s189]
                %505 = vst [vmem:[%s197 + $0x4c8] sm:%s189] %v504
                %v506 = vld [vmem:[%s196 + $0x9a0] sm:%s189]
                %507 = vst [vmem:[%s197 + $0x4d0] sm:%s189] %v506
                %v508 = vld [vmem:[%s196 + $0x9b0] sm:%s189]
                %509 = vst [vmem:[%s197 + $0x4d8] sm:%s189] %v508
                %v510 = vld [vmem:[%s196 + $0x9c0] sm:%s189]
                %511 = vst [vmem:[%s197 + $0x4e0] sm:%s189] %v510
                %v512 = vld [vmem:[%s196 + $0x9d0] sm:%s189]
                %513 = vst [vmem:[%s197 + $0x4e8] sm:%s189] %v512
                %v514 = vld [vmem:[%s196 + $0x9e0] sm:%s189]
                %515 = vst [vmem:[%s197 + $0x4f0] sm:%s189] %v514
                %v516 = vld [vmem:[%s196 + $0x9f0] sm:%s189]
                %517 = vst [vmem:[%s197 + $0x4f8] sm:%s189] %v516
                %v518 = vld [vmem:[%s196 + $0xa00] sm:%s189]
                %519 = vst [vmem:[%s197 + $0x500] sm:%s189] %v518
                %v520 = vld [vmem:[%s196 + $0xa10] sm:%s189]
                %521 = vst [vmem:[%s197 + $0x508] sm:%s189] %v520
                %v522 = vld [vmem:[%s196 + $0xa20] sm:%s189]
                %523 = vst [vmem:[%s197 + $0x510] sm:%s189] %v522
                %v524 = vld [vmem:[%s196 + $0xa30] sm:%s189]
                %525 = vst [vmem:[%s197 + $0x518] sm:%s189] %v524
                %v526 = vld [vmem:[%s196 + $0xa40] sm:%s189]
                %527 = vst [vmem:[%s197 + $0x520] sm:%s189] %v526
                %v528 = vld [vmem:[%s196 + $0xa50] sm:%s189]
                %529 = vst [vmem:[%s197 + $0x528] sm:%s189] %v528
                %v530 = vld [vmem:[%s196 + $0xa60] sm:%s189]
                %531 = vst [vmem:[%s197 + $0x530] sm:%s189] %v530
                %v532 = vld [vmem:[%s196 + $0xa70] sm:%s189]
                %533 = vst [vmem:[%s197 + $0x538] sm:%s189] %v532
                %v534 = vld [vmem:[%s196 + $0xa80] sm:%s189]
                %535 = vst [vmem:[%s197 + $0x540] sm:%s189] %v534
                %v536 = vld [vmem:[%s196 + $0xa90] sm:%s189]
                %537 = vst [vmem:[%s197 + $0x548] sm:%s189] %v536
                %v538 = vld [vmem:[%s196 + $0xaa0] sm:%s189]
                %539 = vst [vmem:[%s197 + $0x550] sm:%s189] %v538
                %v540 = vld [vmem:[%s196 + $0xab0] sm:%s189]
                %541 = vst [vmem:[%s197 + $0x558] sm:%s189] %v540
                %v542 = vld [vmem:[%s196 + $0xac0] sm:%s189]
                %543 = vst [vmem:[%s197 + $0x560] sm:%s189] %v542
                %v544 = vld [vmem:[%s196 + $0xad0] sm:%s189]
                %545 = vst [vmem:[%s197 + $0x568] sm:%s189] %v544
                %v546 = vld [vmem:[%s196 + $0xae0] sm:%s189]
                %547 = vst [vmem:[%s197 + $0x570] sm:%s189] %v546
                %v548 = vld [vmem:[%s196 + $0xaf0] sm:%s189]
                %549 = vst [vmem:[%s197 + $0x578] sm:%s189] %v548
                %v550 = vld [vmem:[%s196 + $0xb00] sm:%s189]
                %551 = vst [vmem:[%s197 + $0x580] sm:%s189] %v550
                %v552 = vld [vmem:[%s196 + $0xb10] sm:%s189]
                %553 = vst [vmem:[%s197 + $0x588] sm:%s189] %v552
                %v554 = vld [vmem:[%s196 + $0xb20] sm:%s189]
                %555 = vst [vmem:[%s197 + $0x590] sm:%s189] %v554
                %v556 = vld [vmem:[%s196 + $0xb30] sm:%s189]
                %557 = vst [vmem:[%s197 + $0x598] sm:%s189] %v556
                %v558 = vld [vmem:[%s196 + $0xb40] sm:%s189]
                %559 = vst [vmem:[%s197 + $0x5a0] sm:%s189] %v558
                %v560 = vld [vmem:[%s196 + $0xb50] sm:%s189]
                %561 = vst [vmem:[%s197 + $0x5a8] sm:%s189] %v560
                %v562 = vld [vmem:[%s196 + $0xb60] sm:%s189]
                %563 = vst [vmem:[%s197 + $0x5b0] sm:%s189] %v562
                %v564 = vld [vmem:[%s196 + $0xb70] sm:%s189]
                %565 = vst [vmem:[%s197 + $0x5b8] sm:%s189] %v564
                %v566 = vld [vmem:[%s196 + $0xb80] sm:%s189]
                %567 = vst [vmem:[%s197 + $0x5c0] sm:%s189] %v566
                %v568 = vld [vmem:[%s196 + $0xb90] sm:%s189]
                %569 = vst [vmem:[%s197 + $0x5c8] sm:%s189] %v568
                %v570 = vld [vmem:[%s196 + $0xba0] sm:%s189]
                %571 = vst [vmem:[%s197 + $0x5d0] sm:%s189] %v570
                %v572 = vld [vmem:[%s196 + $0xbb0] sm:%s189]
                %573 = vst [vmem:[%s197 + $0x5d8] sm:%s189] %v572
                %v574 = vld [vmem:[%s196 + $0xbc0] sm:%s189]
                %575 = vst [vmem:[%s197 + $0x5e0] sm:%s189] %v574
                %v576 = vld [vmem:[%s196 + $0xbd0] sm:%s189]
                %577 = vst [vmem:[%s197 + $0x5e8] sm:%s189] %v576
                %v578 = vld [vmem:[%s196 + $0xbe0] sm:%s189]
                %579 = vst [vmem:[%s197 + $0x5f0] sm:%s189] %v578
                %v580 = vld [vmem:[%s196 + $0xbf0] sm:%s189]
                %581 = vst [vmem:[%s197 + $0x5f8] sm:%s189] %v580
                %v582 = vld [vmem:[%s196 + $0xc00] sm:%s189]
                %583 = vst [vmem:[%s197 + $0x600] sm:%s189] %v582
                %v584 = vld [vmem:[%s196 + $0xc10] sm:%s189]
                %585 = vst [vmem:[%s197 + $0x608] sm:%s189] %v584
                %v586 = vld [vmem:[%s196 + $0xc20] sm:%s189]
                %587 = vst [vmem:[%s197 + $0x610] sm:%s189] %v586
                %v588 = vld [vmem:[%s196 + $0xc30] sm:%s189]
                %589 = vst [vmem:[%s197 + $0x618] sm:%s189] %v588
                %v590 = vld [vmem:[%s196 + $0xc40] sm:%s189]
                %591 = vst [vmem:[%s197 + $0x620] sm:%s189] %v590
                %v592 = vld [vmem:[%s196 + $0xc50] sm:%s189]
                %593 = vst [vmem:[%s197 + $0x628] sm:%s189] %v592
                %v594 = vld [vmem:[%s196 + $0xc60] sm:%s189]
                %595 = vst [vmem:[%s197 + $0x630] sm:%s189] %v594
                %v596 = vld [vmem:[%s196 + $0xc70] sm:%s189]
                %597 = vst [vmem:[%s197 + $0x638] sm:%s189] %v596
                %v598 = vld [vmem:[%s196 + $0xc80] sm:%s189]
                %599 = vst [vmem:[%s197 + $0x640] sm:%s189] %v598
                %v600 = vld [vmem:[%s196 + $0xc90] sm:%s189]
                %601 = vst [vmem:[%s197 + $0x648] sm:%s189] %v600
                %v602 = vld [vmem:[%s196 + $0xca0] sm:%s189]
                %603 = vst [vmem:[%s197 + $0x650] sm:%s189] %v602
                %v604 = vld [vmem:[%s196 + $0xcb0] sm:%s189]
                %605 = vst [vmem:[%s197 + $0x658] sm:%s189] %v604
                %v606 = vld [vmem:[%s196 + $0xcc0] sm:%s189]
                %607 = vst [vmem:[%s197 + $0x660] sm:%s189] %v606
                %v608 = vld [vmem:[%s196 + $0xcd0] sm:%s189]
                %609 = vst [vmem:[%s197 + $0x668] sm:%s189] %v608
                %v610 = vld [vmem:[%s196 + $0xce0] sm:%s189]
                %611 = vst [vmem:[%s197 + $0x670] sm:%s189] %v610
                %v612 = vld [vmem:[%s196 + $0xcf0] sm:%s189]
                %613 = vst [vmem:[%s197 + $0x678] sm:%s189] %v612
                %v614 = vld [vmem:[%s196 + $0xd00] sm:%s189]
                %615 = vst [vmem:[%s197 + $0x680] sm:%s189] %v614
                %v616 = vld [vmem:[%s196 + $0xd10] sm:%s189]
                %617 = vst [vmem:[%s197 + $0x688] sm:%s189] %v616
                %v618 = vld [vmem:[%s196 + $0xd20] sm:%s189]
                %619 = vst [vmem:[%s197 + $0x690] sm:%s189] %v618
                %v620 = vld [vmem:[%s196 + $0xd30] sm:%s189]
                %621 = vst [vmem:[%s197 + $0x698] sm:%s189] %v620
                %v622 = vld [vmem:[%s196 + $0xd40] sm:%s189]
                %623 = vst [vmem:[%s197 + $0x6a0] sm:%s189] %v622
                %v624 = vld [vmem:[%s196 + $0xd50] sm:%s189]
                %625 = vst [vmem:[%s197 + $0x6a8] sm:%s189] %v624
                %v626 = vld [vmem:[%s196 + $0xd60] sm:%s189]
                %627 = vst [vmem:[%s197 + $0x6b0] sm:%s189] %v626
                %v628 = vld [vmem:[%s196 + $0xd70] sm:%s189]
                %629 = vst [vmem:[%s197 + $0x6b8] sm:%s189] %v628
                %v630 = vld [vmem:[%s196 + $0xd80] sm:%s189]
                %631 = vst [vmem:[%s197 + $0x6c0] sm:%s189] %v630
                %v632 = vld [vmem:[%s196 + $0xd90] sm:%s189]
                %633 = vst [vmem:[%s197 + $0x6c8] sm:%s189] %v632
                %v634 = vld [vmem:[%s196 + $0xda0] sm:%s189]
                %635 = vst [vmem:[%s197 + $0x6d0] sm:%s189] %v634
                %v636 = vld [vmem:[%s196 + $0xdb0] sm:%s189]
                %637 = vst [vmem:[%s197 + $0x6d8] sm:%s189] %v636
                %v638 = vld [vmem:[%s196 + $0xdc0] sm:%s189]
                %639 = vst [vmem:[%s197 + $0x6e0] sm:%s189] %v638
                %v640 = vld [vmem:[%s196 + $0xdd0] sm:%s189]
                %641 = vst [vmem:[%s197 + $0x6e8] sm:%s189] %v640
                %v642 = vld [vmem:[%s196 + $0xde0] sm:%s189]
                %643 = vst [vmem:[%s197 + $0x6f0] sm:%s189] %v642
                %v644 = vld [vmem:[%s196 + $0xdf0] sm:%s189]
                %645 = vst [vmem:[%s197 + $0x6f8] sm:%s189] %v644
                %v646 = vld [vmem:[%s196 + $0xe00] sm:%s189]
                %647 = vst [vmem:[%s197 + $0x700] sm:%s189] %v646
                %v648 = vld [vmem:[%s196 + $0xe10] sm:%s189]
                %649 = vst [vmem:[%s197 + $0x708] sm:%s189] %v648
                %v650 = vld [vmem:[%s196 + $0xe20] sm:%s189]
                %651 = vst [vmem:[%s197 + $0x710] sm:%s189] %v650
                %v652 = vld [vmem:[%s196 + $0xe30] sm:%s189]
                %653 = vst [vmem:[%s197 + $0x718] sm:%s189] %v652
                %v654 = vld [vmem:[%s196 + $0xe40] sm:%s189]
                %655 = vst [vmem:[%s197 + $0x720] sm:%s189] %v654
                %v656 = vld [vmem:[%s196 + $0xe50] sm:%s189]
                %657 = vst [vmem:[%s197 + $0x728] sm:%s189] %v656
                %v658 = vld [vmem:[%s196 + $0xe60] sm:%s189]
                %659 = vst [vmem:[%s197 + $0x730] sm:%s189] %v658
                %v660 = vld [vmem:[%s196 + $0xe70] sm:%s189]
                %661 = vst [vmem:[%s197 + $0x738] sm:%s189] %v660
                %v662 = vld [vmem:[%s196 + $0xe80] sm:%s189]
                %663 = vst [vmem:[%s197 + $0x740] sm:%s189] %v662
                %v664 = vld [vmem:[%s196 + $0xe90] sm:%s189]
                %665 = vst [vmem:[%s197 + $0x748] sm:%s189] %v664
                %v666 = vld [vmem:[%s196 + $0xea0] sm:%s189]
                %667 = vst [vmem:[%s197 + $0x750] sm:%s189] %v666
                %v668 = vld [vmem:[%s196 + $0xeb0] sm:%s189]
                %669 = vst [vmem:[%s197 + $0x758] sm:%s189] %v668
                %v670 = vld [vmem:[%s196 + $0xec0] sm:%s189]
                %671 = vst [vmem:[%s197 + $0x760] sm:%s189] %v670
                %v672 = vld [vmem:[%s196 + $0xed0] sm:%s189]
                %673 = vst [vmem:[%s197 + $0x768] sm:%s189] %v672
                %v674 = vld [vmem:[%s196 + $0xee0] sm:%s189]
                %675 = vst [vmem:[%s197 + $0x770] sm:%s189] %v674
                %v676 = vld [vmem:[%s196 + $0xef0] sm:%s189]
                %677 = vst [vmem:[%s197 + $0x778] sm:%s189] %v676
                %v678 = vld [vmem:[%s196 + $0xf00] sm:%s189]
                %679 = vst [vmem:[%s197 + $0x780] sm:%s189] %v678
                %v680 = vld [vmem:[%s196 + $0xf10] sm:%s189]
                %681 = vst [vmem:[%s197 + $0x788] sm:%s189] %v680
                %v682 = vld [vmem:[%s196 + $0xf20] sm:%s189]
                %683 = vst [vmem:[%s197 + $0x790] sm:%s189] %v682
                %v684 = vld [vmem:[%s196 + $0xf30] sm:%s189]
                %685 = vst [vmem:[%s197 + $0x798] sm:%s189] %v684
                %v686 = vld [vmem:[%s196 + $0xf40] sm:%s189]
                %687 = vst [vmem:[%s197 + $0x7a0] sm:%s189] %v686
                %v688 = vld [vmem:[%s196 + $0xf50] sm:%s189]
                %689 = vst [vmem:[%s197 + $0x7a8] sm:%s189] %v688
                %v690 = vld [vmem:[%s196 + $0xf60] sm:%s189]
                %691 = vst [vmem:[%s197 + $0x7b0] sm:%s189] %v690
                %v692 = vld [vmem:[%s196 + $0xf70] sm:%s189]
                %693 = vst [vmem:[%s197 + $0x7b8] sm:%s189] %v692
                %v694 = vld [vmem:[%s196 + $0xf80] sm:%s189]
                %695 = vst [vmem:[%s197 + $0x7c0] sm:%s189] %v694
                %v696 = vld [vmem:[%s196 + $0xf90] sm:%s189]
                %697 = vst [vmem:[%s197 + $0x7c8] sm:%s189] %v696
                %v698 = vld [vmem:[%s196 + $0xfa0] sm:%s189]
                %699 = vst [vmem:[%s197 + $0x7d0] sm:%s189] %v698
                %v700 = vld [vmem:[%s196 + $0xfb0] sm:%s189]
                %701 = vst [vmem:[%s197 + $0x7d8] sm:%s189] %v700
                %v702 = vld [vmem:[%s196 + $0xfc0] sm:%s189]
                %703 = vst [vmem:[%s197 + $0x7e0] sm:%s189] %v702
                %v704 = vld [vmem:[%s196 + $0xfd0] sm:%s189]
                %705 = vst [vmem:[%s197 + $0x7e8] sm:%s189] %v704
                %v706 = vld [vmem:[%s196 + $0xfe0] sm:%s189]
                %707 = vst [vmem:[%s197 + $0x7f0] sm:%s189] %v706
                %v708 = vld [vmem:[%s196 + $0xff0] sm:%s189]
                %709 = vst [vmem:[%s197 + $0x7f8] sm:%s189] %v708
              $region41: #{itm_model_forward.6} parent=35 // loop_footer
                %s195 = sadd.s32 1, %s191
              $region42: #{itm_model_forward.6} parent=35 // loop_footer_branch
                %190 = sbr.rel target = $region38
              $region43: #{itm_model_forward.6} parent=35 // loop_exit
                _
            $region36: #{itm_model_forward.6} parent=27 // pred_fallthru
              _
          $region28: #{itm_model_forward.6} parent=23 // pred_fallthru
            _
          %1234 = vnop
        $region24: #{itm_model_forward.6} parent=19 // pred_fallthru
          _
        // Predicated region
        $region59: #{itm_model_forward.6} parent=19 // pred_check
          %p1235 = pneg %p104
        $region60: #{itm_model_forward.6} parent=19 // pred_check_branch
          %1237 = sbr.rel (%p1235) target = $region62
        $region61: #{itm_model_forward.6} parent=19 // pred_region
          %s1238 = smul.u32 2, %s17
          %p1239 = scmp.lt.s32.totalorder %s1238, 3
          %s1240 = scalar_select %p1239, %s1238, 3
          %s1241 = scalar_lea.vmem %s2, %s1240
          %s1242 = smul.u32 2, %s17
        $region62: #{itm_model_forward.6} parent=19 // pred_fallthru
          _
      $region20: #{itm_model_forward.6} parent=5 // pred_fallthru
        _
      %p1243 = scmp.le.s32.totalorder 1, %s9
      %p1244 = scmp.lt.s32.totalorder %s9, 3
      %p1245 = pnand %p1243, %p1244
      %p1246 = pneg %p1245
      // Predicated region
      $region63: #{itm_model_forward.6} parent=5 // pred_check
        _
      $region64: #{itm_model_forward.6} parent=5 // pred_check_branch
        %1248 = sbr.rel (%p1245) target = $region66
      $region65: #{itm_model_forward.6} parent=5 // pred_region
        %s1249 = ssub.s32 %s9, 1
        %s1250 = sand.u32 %s71, 1
        %s1251 = sand.u32 %s71, 1
        %s1252 = smul.addr %s1251, 2048
        %s1253 = scalar_lea.vmem [#allocation3], %s1252
        // Predicated region
        $region67: #{itm_model_forward.6} parent=65 // pred_check
          %p1254 = pneg %p84
        $region68: #{itm_model_forward.6} parent=65 // pred_check_branch
          %1256 = sbr.rel (%p1254) target = $region70
        $region69: #{itm_model_forward.6} parent=65 // pred_region
          _
        $region70: #{itm_model_forward.6} parent=65 // pred_fallthru
          _
        %s1257 = smul.u32 16, %s21
        %p1258 = scmp.lt.s32.totalorder %s19, 0
        %s1259 = scalar_select %p1258, %s19, 0
        %p1260 = scmp.lt.s32.totalorder %s1257, 15
        %s1261 = scalar_select %p1260, %s1257, 15
        %s1262 = smul.addr %s1259, 16
        %s1263 = sadd.s32 %s1261, %s1262
        %s1264 = scalar_lea.vmem %s0, %s1263
        %p1265 = pneg %p56
        %p1266 = pneg %p53
        %s1267 = sand.u32 %s71, 1
        %s1268 = sand.u32 %s71, 1
        %s1269 = smul.addr %s1268, 2048
        %s1270 = scalar_lea.vmem [#allocation3], %s1269
        %p1271 = pneg %p84
        %p1272 = pneg %p81
        %s1273 = smul.u32 2, %s20
        %p1274 = scmp.lt.s32.totalorder %s1273, 3
        %s1275 = scalar_select %p1274, %s1273, 3
        %s1276 = scalar_lea.vmem %s2, %s1275
        %p1277 = pneg %p110
        %p1278 = pneg %p107
        %p1279 = pneg %p138
        %p1280 = pneg %p135
        %s1281 = smul.u32 2, %s20
        %p1282 = scmp.lt.s32.totalorder %s19, 0
        %s1283 = scalar_select %p1282, %s19, 0
        %p1284 = scmp.lt.s32.totalorder %s1281, 3
        %s1285 = scalar_select %p1284, %s1281, 3
        %s1286 = smul.addr %s1283, 4
        %s1287 = sadd.s32 %s1285, %s1286
        %s1288 = scalar_lea.vmem %s3, %s1287
        %s1289 = smul.u32 16, %s21
        %p1290 = scmp.lt.s32.totalorder %s19, 0
        %s1291 = scalar_select %p1290, %s19, 0
        %p1292 = scmp.lt.s32.totalorder %s1289, 15
        %s1293 = scalar_select %p1292, %s1289, 15
        %s1294 = smul.addr %s1291, 16
        %s1295 = sadd.s32 %s1293, %s1294
        %s1296 = scalar_lea.vmem %s0, %s1295
        %s1297 = smul.u32 16, %s21
        %s1298 = smul.u32 256, %s21
        %s1299 = smul.u32 2, %s20
        %s1300 = smul.u32 2, %s20
        %p1301 = scmp.lt.s32.totalorder %s1300, 3
        %s1302 = scalar_select %p1301, %s1300, 3
        %s1303 = scalar_lea.vmem %s2, %s1302
        %s1304 = smul.u32 2, %s20
        %s1305 = smul.u32 2, %s20
        %p1306 = scmp.lt.s32.totalorder %s19, 0
        %s1307 = scalar_select %p1306, %s19, 0
        %p1308 = scmp.lt.s32.totalorder %s1305, 3
        %s1309 = scalar_select %p1308, %s1305, 3
        %s1310 = smul.addr %s1307, 4
        %s1311 = sadd.s32 %s1309, %s1310
        %s1312 = scalar_lea.vmem %s3, %s1311
        %s1313 = smul.u32 2, %s20
        %p1314 = scmp.eq.s32.totalorder %s21, 0
        // Predicated region
        $region71: #{itm_model_forward.6} parent=65 // pred_check
          %p1315 = pneg %p1314
        $region72: #{itm_model_forward.6} parent=65 // pred_check_branch
          %1317 = sbr.rel (%p1315) target = $region74
        $region73: #{itm_model_forward.6} parent=65 // pred_region
          %1318 = vst [vmem:[#allocation2] sm:$0xf] 0.0
        $region74: #{itm_model_forward.6} parent=65 // pred_fallthru
          _
        %v1319 = vld [vmem:[#allocation2] sm:$0xf]
        %v1320 = vld [vmem:[%s1296] sm:$0xff]
        %v1321 = vld [vmem:[%s1296 + $0x8] sm:$0xff]
        %v1322 = vld [vmem:[%s1253] sm:$0xff]
        %v1323 = vld [vmem:[%s1253 + $0x8] sm:$0xff]
        %v1324 = vld [vmem:[%s1253 + $0x10] sm:$0xff]
        %v1325 = vld [vmem:[%s1253 + $0x18] sm:$0xff]
        %v1326 = vld [vmem:[%s1253 + $0x20] sm:$0xff]
        %v1327 = vld [vmem:[%s1253 + $0x28] sm:$0xff]
        %v1328 = vld [vmem:[%s1253 + $0x30] sm:$0xff]
        %v1329 = vld [vmem:[%s1253 + $0x38] sm:$0xff]
        %v1330 = vld [vmem:[%s1253 + $0x40] sm:$0xff]
        %v1331 = vld [vmem:[%s1253 + $0x48] sm:$0xff]
        %v1332 = vld [vmem:[%s1253 + $0x50] sm:$0xff]
        %v1333 = vld [vmem:[%s1253 + $0x58] sm:$0xff]
        %v1334 = vld [vmem:[%s1253 + $0x60] sm:$0xff]
        %v1335 = vld [vmem:[%s1253 + $0x68] sm:$0xff]
        %v1336 = vld [vmem:[%s1253 + $0x70] sm:$0xff]
        %v1337 = vld [vmem:[%s1253 + $0x78] sm:$0xff]
        %v1338 = vld [vmem:[%s1253 + $0x80] sm:$0xff]
        %v1339 = vld [vmem:[%s1253 + $0x88] sm:$0xff]
        %v1340 = vld [vmem:[%s1253 + $0x90] sm:$0xff]
        %v1341 = vld [vmem:[%s1253 + $0x98] sm:$0xff]
        %v1342 = vld [vmem:[%s1253 + $0xa0] sm:$0xff]
        %v1343 = vld [vmem:[%s1253 + $0xa8] sm:$0xff]
        %v1344 = vld [vmem:[%s1253 + $0xb0] sm:$0xff]
        %v1345 = vld [vmem:[%s1253 + $0xb8] sm:$0xff]
        %v1346 = vld [vmem:[%s1253 + $0xc0] sm:$0xff]
        %v1347 = vld [vmem:[%s1253 + $0xc8] sm:$0xff]
        %v1348 = vld [vmem:[%s1253 + $0xd0] sm:$0xff]
        %v1349 = vld [vmem:[%s1253 + $0xd8] sm:$0xff]
        %v1350 = vld [vmem:[%s1253 + $0xe0] sm:$0xff]
        %v1351 = vld [vmem:[%s1253 + $0xe8] sm:$0xff]
        %v1352 = vld [vmem:[%s1253 + $0xf0] sm:$0xff]
        %v1353 = vld [vmem:[%s1253 + $0xf8] sm:$0xff]
        %v1354 = vld [vmem:[%s1253 + $0x100] sm:$0xff]
        %v1355 = vld [vmem:[%s1253 + $0x108] sm:$0xff]
        %v1356 = vld [vmem:[%s1253 + $0x110] sm:$0xff]
        %v1357 = vld [vmem:[%s1253 + $0x118] sm:$0xff]
        %v1358 = vld [vmem:[%s1253 + $0x120] sm:$0xff]
        %v1359 = vld [vmem:[%s1253 + $0x128] sm:$0xff]
        %v1360 = vld [vmem:[%s1253 + $0x130] sm:$0xff]
        %v1361 = vld [vmem:[%s1253 + $0x138] sm:$0xff]
        %v1362 = vld [vmem:[%s1253 + $0x140] sm:$0xff]
        %v1363 = vld [vmem:[%s1253 + $0x148] sm:$0xff]
        %v1364 = vld [vmem:[%s1253 + $0x150] sm:$0xff]
        %v1365 = vld [vmem:[%s1253 + $0x158] sm:$0xff]
        %v1366 = vld [vmem:[%s1253 + $0x160] sm:$0xff]
        %v1367 = vld [vmem:[%s1253 + $0x168] sm:$0xff]
        %v1368 = vld [vmem:[%s1253 + $0x170] sm:$0xff]
        %v1369 = vld [vmem:[%s1253 + $0x178] sm:$0xff]
        %v1370 = vld [vmem:[%s1253 + $0x180] sm:$0xff]
        %v1371 = vld [vmem:[%s1253 + $0x188] sm:$0xff]
        %v1372 = vld [vmem:[%s1253 + $0x190] sm:$0xff]
        %v1373 = vld [vmem:[%s1253 + $0x198] sm:$0xff]
        %v1374 = vld [vmem:[%s1253 + $0x1a0] sm:$0xff]
        %v1375 = vld [vmem:[%s1253 + $0x1a8] sm:$0xff]
        %v1376 = vld [vmem:[%s1253 + $0x1b0] sm:$0xff]
        %v1377 = vld [vmem:[%s1253 + $0x1b8] sm:$0xff]
        %v1378 = vld [vmem:[%s1253 + $0x1c0] sm:$0xff]
        %v1379 = vld [vmem:[%s1253 + $0x1c8] sm:$0xff]
        %v1380 = vld [vmem:[%s1253 + $0x1d0] sm:$0xff]
        %v1381 = vld [vmem:[%s1253 + $0x1d8] sm:$0xff]
        %v1382 = vld [vmem:[%s1253 + $0x1e0] sm:$0xff]
        %v1383 = vld [vmem:[%s1253 + $0x1e8] sm:$0xff]
        %v1384 = vld [vmem:[%s1253 + $0x1f0] sm:$0xff]
        %v1385 = vld [vmem:[%s1253 + $0x1f8] sm:$0xff]
        %v1386 = vld [vmem:[%s1253 + $0x200] sm:$0xff]
        %v1387 = vld [vmem:[%s1253 + $0x208] sm:$0xff]
        %v1388 = vld [vmem:[%s1253 + $0x210] sm:$0xff]
        %v1389 = vld [vmem:[%s1253 + $0x218] sm:$0xff]
        %v1390 = vld [vmem:[%s1253 + $0x220] sm:$0xff]
        %v1391 = vld [vmem:[%s1253 + $0x228] sm:$0xff]
        %v1392 = vld [vmem:[%s1253 + $0x230] sm:$0xff]
        %v1393 = vld [vmem:[%s1253 + $0x238] sm:$0xff]
        %v1394 = vld [vmem:[%s1253 + $0x240] sm:$0xff]
        %v1395 = vld [vmem:[%s1253 + $0x248] sm:$0xff]
        %v1396 = vld [vmem:[%s1253 + $0x250] sm:$0xff]
        %v1397 = vld [vmem:[%s1253 + $0x258] sm:$0xff]
        %v1398 = vld [vmem:[%s1253 + $0x260] sm:$0xff]
        %v1399 = vld [vmem:[%s1253 + $0x268] sm:$0xff]
        %v1400 = vld [vmem:[%s1253 + $0x270] sm:$0xff]
        %v1401 = vld [vmem:[%s1253 + $0x278] sm:$0xff]
        %v1402 = vld [vmem:[%s1253 + $0x280] sm:$0xff]
        %v1403 = vld [vmem:[%s1253 + $0x288] sm:$0xff]
        %v1404 = vld [vmem:[%s1253 + $0x290] sm:$0xff]
        %v1405 = vld [vmem:[%s1253 + $0x298] sm:$0xff]
        %v1406 = vld [vmem:[%s1253 + $0x2a0] sm:$0xff]
        %v1407 = vld [vmem:[%s1253 + $0x2a8] sm:$0xff]
        %v1408 = vld [vmem:[%s1253 + $0x2b0] sm:$0xff]
        %v1409 = vld [vmem:[%s1253 + $0x2b8] sm:$0xff]
        %v1410 = vld [vmem:[%s1253 + $0x2c0] sm:$0xff]
        %v1411 = vld [vmem:[%s1253 + $0x2c8] sm:$0xff]
        %v1412 = vld [vmem:[%s1253 + $0x2d0] sm:$0xff]
        %v1413 = vld [vmem:[%s1253 + $0x2d8] sm:$0xff]
        %v1414 = vld [vmem:[%s1253 + $0x2e0] sm:$0xff]
        %v1415 = vld [vmem:[%s1253 + $0x2e8] sm:$0xff]
        %v1416 = vld [vmem:[%s1253 + $0x2f0] sm:$0xff]
        %v1417 = vld [vmem:[%s1253 + $0x2f8] sm:$0xff]
        %v1418 = vld [vmem:[%s1253 + $0x300] sm:$0xff]
        %v1419 = vld [vmem:[%s1253 + $0x308] sm:$0xff]
        %v1420 = vld [vmem:[%s1253 + $0x310] sm:$0xff]
        %v1421 = vld [vmem:[%s1253 + $0x318] sm:$0xff]
        %v1422 = vld [vmem:[%s1253 + $0x320] sm:$0xff]
        %v1423 = vld [vmem:[%s1253 + $0x328] sm:$0xff]
        %v1424 = vld [vmem:[%s1253 + $0x330] sm:$0xff]
        %v1425 = vld [vmem:[%s1253 + $0x338] sm:$0xff]
        %v1426 = vld [vmem:[%s1253 + $0x340] sm:$0xff]
        %v1427 = vld [vmem:[%s1253 + $0x348] sm:$0xff]
        %v1428 = vld [vmem:[%s1253 + $0x350] sm:$0xff]
        %v1429 = vld [vmem:[%s1253 + $0x358] sm:$0xff]
        %v1430 = vld [vmem:[%s1253 + $0x360] sm:$0xff]
        %v1431 = vld [vmem:[%s1253 + $0x368] sm:$0xff]
        %v1432 = vld [vmem:[%s1253 + $0x370] sm:$0xff]
        %v1433 = vld [vmem:[%s1253 + $0x378] sm:$0xff]
        %v1434 = vld [vmem:[%s1253 + $0x380] sm:$0xff]
        %v1435 = vld [vmem:[%s1253 + $0x388] sm:$0xff]
        %v1436 = vld [vmem:[%s1253 + $0x390] sm:$0xff]
        %v1437 = vld [vmem:[%s1253 + $0x398] sm:$0xff]
        %v1438 = vld [vmem:[%s1253 + $0x3a0] sm:$0xff]
        %v1439 = vld [vmem:[%s1253 + $0x3a8] sm:$0xff]
        %v1440 = vld [vmem:[%s1253 + $0x3b0] sm:$0xff]
        %v1441 = vld [vmem:[%s1253 + $0x3b8] sm:$0xff]
        %v1442 = vld [vmem:[%s1253 + $0x3c0] sm:$0xff]
        %v1443 = vld [vmem:[%s1253 + $0x3c8] sm:$0xff]
        %v1444 = vld [vmem:[%s1253 + $0x3d0] sm:$0xff]
        %v1445 = vld [vmem:[%s1253 + $0x3d8] sm:$0xff]
        %v1446 = vld [vmem:[%s1253 + $0x3e0] sm:$0xff]
        %v1447 = vld [vmem:[%s1253 + $0x3e8] sm:$0xff]
        %v1448 = vld [vmem:[%s1253 + $0x3f0] sm:$0xff]
        %v1449 = vld [vmem:[%s1253 + $0x3f8] sm:$0xff]
        %v1450 = vld [vmem:[%s1253 + $0x400] sm:$0xff]
        %v1451 = vld [vmem:[%s1253 + $0x408] sm:$0xff]
        %v1452 = vld [vmem:[%s1253 + $0x410] sm:$0xff]
        %v1453 = vld [vmem:[%s1253 + $0x418] sm:$0xff]
        %v1454 = vld [vmem:[%s1253 + $0x420] sm:$0xff]
        %v1455 = vld [vmem:[%s1253 + $0x428] sm:$0xff]
        %v1456 = vld [vmem:[%s1253 + $0x430] sm:$0xff]
        %v1457 = vld [vmem:[%s1253 + $0x438] sm:$0xff]
        %v1458 = vld [vmem:[%s1253 + $0x440] sm:$0xff]
        %v1459 = vld [vmem:[%s1253 + $0x448] sm:$0xff]
        %v1460 = vld [vmem:[%s1253 + $0x450] sm:$0xff]
        %v1461 = vld [vmem:[%s1253 + $0x458] sm:$0xff]
        %v1462 = vld [vmem:[%s1253 + $0x460] sm:$0xff]
        %v1463 = vld [vmem:[%s1253 + $0x468] sm:$0xff]
        %v1464 = vld [vmem:[%s1253 + $0x470] sm:$0xff]
        %v1465 = vld [vmem:[%s1253 + $0x478] sm:$0xff]
        %v1466 = vld [vmem:[%s1253 + $0x480] sm:$0xff]
        %v1467 = vld [vmem:[%s1253 + $0x488] sm:$0xff]
        %v1468 = vld [vmem:[%s1253 + $0x490] sm:$0xff]
        %v1469 = vld [vmem:[%s1253 + $0x498] sm:$0xff]
        %v1470 = vld [vmem:[%s1253 + $0x4a0] sm:$0xff]
        %v1471 = vld [vmem:[%s1253 + $0x4a8] sm:$0xff]
        %v1472 = vld [vmem:[%s1253 + $0x4b0] sm:$0xff]
        %v1473 = vld [vmem:[%s1253 + $0x4b8] sm:$0xff]
        %v1474 = vld [vmem:[%s1253 + $0x4c0] sm:$0xff]
        %v1475 = vld [vmem:[%s1253 + $0x4c8] sm:$0xff]
        %v1476 = vld [vmem:[%s1253 + $0x4d0] sm:$0xff]
        %v1477 = vld [vmem:[%s1253 + $0x4d8] sm:$0xff]
        %v1478 = vld [vmem:[%s1253 + $0x4e0] sm:$0xff]
        %v1479 = vld [vmem:[%s1253 + $0x4e8] sm:$0xff]
        %v1480 = vld [vmem:[%s1253 + $0x4f0] sm:$0xff]
        %v1481 = vld [vmem:[%s1253 + $0x4f8] sm:$0xff]
        %v1482 = vld [vmem:[%s1253 + $0x500] sm:$0xff]
        %v1483 = vld [vmem:[%s1253 + $0x508] sm:$0xff]
        %v1484 = vld [vmem:[%s1253 + $0x510] sm:$0xff]
        %v1485 = vld [vmem:[%s1253 + $0x518] sm:$0xff]
        %v1486 = vld [vmem:[%s1253 + $0x520] sm:$0xff]
        %v1487 = vld [vmem:[%s1253 + $0x528] sm:$0xff]
        %v1488 = vld [vmem:[%s1253 + $0x530] sm:$0xff]
        %v1489 = vld [vmem:[%s1253 + $0x538] sm:$0xff]
        %v1490 = vld [vmem:[%s1253 + $0x540] sm:$0xff]
        %v1491 = vld [vmem:[%s1253 + $0x548] sm:$0xff]
        %v1492 = vld [vmem:[%s1253 + $0x550] sm:$0xff]
        %v1493 = vld [vmem:[%s1253 + $0x558] sm:$0xff]
        %v1494 = vld [vmem:[%s1253 + $0x560] sm:$0xff]
        %v1495 = vld [vmem:[%s1253 + $0x568] sm:$0xff]
        %v1496 = vld [vmem:[%s1253 + $0x570] sm:$0xff]
        %v1497 = vld [vmem:[%s1253 + $0x578] sm:$0xff]
        %v1498 = vld [vmem:[%s1253 + $0x580] sm:$0xff]
        %v1499 = vld [vmem:[%s1253 + $0x588] sm:$0xff]
        %v1500 = vld [vmem:[%s1253 + $0x590] sm:$0xff]
        %v1501 = vld [vmem:[%s1253 + $0x598] sm:$0xff]
        %v1502 = vld [vmem:[%s1253 + $0x5a0] sm:$0xff]
        %v1503 = vld [vmem:[%s1253 + $0x5a8] sm:$0xff]
        %v1504 = vld [vmem:[%s1253 + $0x5b0] sm:$0xff]
        %v1505 = vld [vmem:[%s1253 + $0x5b8] sm:$0xff]
        %v1506 = vld [vmem:[%s1253 + $0x5c0] sm:$0xff]
        %v1507 = vld [vmem:[%s1253 + $0x5c8] sm:$0xff]
        %v1508 = vld [vmem:[%s1253 + $0x5d0] sm:$0xff]
        %v1509 = vld [vmem:[%s1253 + $0x5d8] sm:$0xff]
        %v1510 = vld [vmem:[%s1253 + $0x5e0] sm:$0xff]
        %v1511 = vld [vmem:[%s1253 + $0x5e8] sm:$0xff]
        %v1512 = vld [vmem:[%s1253 + $0x5f0] sm:$0xff]
        %v1513 = vld [vmem:[%s1253 + $0x5f8] sm:$0xff]
        %v1514 = vld [vmem:[%s1253 + $0x600] sm:$0xff]
        %v1515 = vld [vmem:[%s1253 + $0x608] sm:$0xff]
        %v1516 = vld [vmem:[%s1253 + $0x610] sm:$0xff]
        %v1517 = vld [vmem:[%s1253 + $0x618] sm:$0xff]
        %v1518 = vld [vmem:[%s1253 + $0x620] sm:$0xff]
        %v1519 = vld [vmem:[%s1253 + $0x628] sm:$0xff]
        %v1520 = vld [vmem:[%s1253 + $0x630] sm:$0xff]
        %v1521 = vld [vmem:[%s1253 + $0x638] sm:$0xff]
        %v1522 = vld [vmem:[%s1253 + $0x640] sm:$0xff]
        %v1523 = vld [vmem:[%s1253 + $0x648] sm:$0xff]
        %v1524 = vld [vmem:[%s1253 + $0x650] sm:$0xff]
        %v1525 = vld [vmem:[%s1253 + $0x658] sm:$0xff]
        %v1526 = vld [vmem:[%s1253 + $0x660] sm:$0xff]
        %v1527 = vld [vmem:[%s1253 + $0x668] sm:$0xff]
        %v1528 = vld [vmem:[%s1253 + $0x670] sm:$0xff]
        %v1529 = vld [vmem:[%s1253 + $0x678] sm:$0xff]
        %v1530 = vld [vmem:[%s1253 + $0x680] sm:$0xff]
        %v1531 = vld [vmem:[%s1253 + $0x688] sm:$0xff]
        %v1532 = vld [vmem:[%s1253 + $0x690] sm:$0xff]
        %v1533 = vld [vmem:[%s1253 + $0x698] sm:$0xff]
        %v1534 = vld [vmem:[%s1253 + $0x6a0] sm:$0xff]
        %v1535 = vld [vmem:[%s1253 + $0x6a8] sm:$0xff]
        %v1536 = vld [vmem:[%s1253 + $0x6b0] sm:$0xff]
        %v1537 = vld [vmem:[%s1253 + $0x6b8] sm:$0xff]
        %v1538 = vld [vmem:[%s1253 + $0x6c0] sm:$0xff]
        %v1539 = vld [vmem:[%s1253 + $0x6c8] sm:$0xff]
        %v1540 = vld [vmem:[%s1253 + $0x6d0] sm:$0xff]
        %v1541 = vld [vmem:[%s1253 + $0x6d8] sm:$0xff]
        %v1542 = vld [vmem:[%s1253 + $0x6e0] sm:$0xff]
        %v1543 = vld [vmem:[%s1253 + $0x6e8] sm:$0xff]
        %v1544 = vld [vmem:[%s1253 + $0x6f0] sm:$0xff]
        %v1545 = vld [vmem:[%s1253 + $0x6f8] sm:$0xff]
        %v1546 = vld [vmem:[%s1253 + $0x700] sm:$0xff]
        %v1547 = vld [vmem:[%s1253 + $0x708] sm:$0xff]
        %v1548 = vld [vmem:[%s1253 + $0x710] sm:$0xff]
        %v1549 = vld [vmem:[%s1253 + $0x718] sm:$0xff]
        %v1550 = vld [vmem:[%s1253 + $0x720] sm:$0xff]
        %v1551 = vld [vmem:[%s1253 + $0x728] sm:$0xff]
        %v1552 = vld [vmem:[%s1253 + $0x730] sm:$0xff]
        %v1553 = vld [vmem:[%s1253 + $0x738] sm:$0xff]
        %v1554 = vld [vmem:[%s1253 + $0x740] sm:$0xff]
        %v1555 = vld [vmem:[%s1253 + $0x748] sm:$0xff]
        %v1556 = vld [vmem:[%s1253 + $0x750] sm:$0xff]
        %v1557 = vld [vmem:[%s1253 + $0x758] sm:$0xff]
        %v1558 = vld [vmem:[%s1253 + $0x760] sm:$0xff]
        %v1559 = vld [vmem:[%s1253 + $0x768] sm:$0xff]
        %v1560 = vld [vmem:[%s1253 + $0x770] sm:$0xff]
        %v1561 = vld [vmem:[%s1253 + $0x778] sm:$0xff]
        %v1562 = vld [vmem:[%s1253 + $0x780] sm:$0xff]
        %v1563 = vld [vmem:[%s1253 + $0x788] sm:$0xff]
        %v1564 = vld [vmem:[%s1253 + $0x790] sm:$0xff]
        %v1565 = vld [vmem:[%s1253 + $0x798] sm:$0xff]
        %v1566 = vld [vmem:[%s1253 + $0x7a0] sm:$0xff]
        %v1567 = vld [vmem:[%s1253 + $0x7a8] sm:$0xff]
        %v1568 = vld [vmem:[%s1253 + $0x7b0] sm:$0xff]
        %v1569 = vld [vmem:[%s1253 + $0x7b8] sm:$0xff]
        %v1570 = vld [vmem:[%s1253 + $0x7c0] sm:$0xff]
        %v1571 = vld [vmem:[%s1253 + $0x7c8] sm:$0xff]
        %v1572 = vld [vmem:[%s1253 + $0x7d0] sm:$0xff]
        %v1573 = vld [vmem:[%s1253 + $0x7d8] sm:$0xff]
        %v1574 = vld [vmem:[%s1253 + $0x7e0] sm:$0xff]
        %v1575 = vld [vmem:[%s1253 + $0x7e8] sm:$0xff]
        %v1576 = vld [vmem:[%s1253 + $0x7f0] sm:$0xff]
        %v1577 = vld [vmem:[%s1253 + $0x7f8] sm:$0xff]
        %v1580 = vcombine.high %v1320, %v1320
        %v1582 = vunpack.c.l.s4 1966171168
        %v1583 = vunpack.c.0.s8 %v1582
        %v1584 = vlaneseq
        %v1585 = vshrl.u32 %v1584, 7
        %v1586 = vsub.s32 %v1583, %v1585
        %v1587 = vrot.slane %v1320, %v1586
        %v1589 = vunpack.c.l.s4 1966171168
        %v1590 = vunpack.c.0.s8 %v1589
        %v1591 = vlaneseq
        %v1592 = vshrl.u32 %v1591, 7
        %v1593 = vsub.s32 %v1590, %v1592
        %v1594 = vrot.slane %v1580, %v1593
        %v1595 = vcombine.high %v1587, %v1587
        %v1596 = vcombine.high %v1594, %v1594
        %v1598 = vunpack.c.l.s4 1966171168
        %v1599 = vunpack.c.0.s8 %v1598
        %v1600 = vlaneseq
        %v1601 = vshrl.u32 %v1600, 7
        %v1602 = vsub.s32 %v1599, %v1601
        %v1603 = vrot.slane %v1587, %v1602
        %v1605 = vunpack.c.l.s4 1966171168
        %v1606 = vunpack.c.0.s8 %v1605
        %v1607 = vlaneseq
        %v1608 = vshrl.u32 %v1607, 7
        %v1609 = vsub.s32 %v1606, %v1608
        %v1610 = vrot.slane %v1594, %v1609
        %v1612 = vunpack.c.l.s4 1966171168
        %v1613 = vunpack.c.0.s8 %v1612
        %v1614 = vlaneseq
        %v1615 = vshrl.u32 %v1614, 7
        %v1616 = vsub.s32 %v1613, %v1615
        %v1617 = vrot.slane %v1595, %v1616
        %v1619 = vunpack.c.l.s4 1966171168
        %v1620 = vunpack.c.0.s8 %v1619
        %v1621 = vlaneseq
        %v1622 = vshrl.u32 %v1621, 7
        %v1623 = vsub.s32 %v1620, %v1622
        %v1624 = vrot.slane %v1596, %v1623
        %v1625 = vcombine.high %v1603, %v1603
        %v1626 = vcombine.high %v1610, %v1610
        %v1627 = vcombine.high %v1617, %v1617
        %v1628 = vcombine.high %v1624, %v1624
        %v1629 = vcombine.high %v1321, %v1321
        %v1631 = vunpack.c.l.s4 1966171168
        %v1632 = vunpack.c.0.s8 %v1631
        %v1633 = vlaneseq
        %v1634 = vshrl.u32 %v1633, 7
        %v1635 = vsub.s32 %v1632, %v1634
        %v1636 = vrot.slane %v1321, %v1635
        %v1638 = vunpack.c.l.s4 1966171168
        %v1639 = vunpack.c.0.s8 %v1638
        %v1640 = vlaneseq
        %v1641 = vshrl.u32 %v1640, 7
        %v1642 = vsub.s32 %v1639, %v1641
        %v1643 = vrot.slane %v1629, %v1642
        %v1644 = vcombine.high %v1636, %v1636
        %v1645 = vcombine.high %v1643, %v1643
        %v1647 = vunpack.c.l.s4 1966171168
        %v1648 = vunpack.c.0.s8 %v1647
        %v1649 = vlaneseq
        %v1650 = vshrl.u32 %v1649, 7
        %v1651 = vsub.s32 %v1648, %v1650
        %v1652 = vrot.slane %v1636, %v1651
        %v1654 = vunpack.c.l.s4 1966171168
        %v1655 = vunpack.c.0.s8 %v1654
        %v1656 = vlaneseq
        %v1657 = vshrl.u32 %v1656, 7
        %v1658 = vsub.s32 %v1655, %v1657
        %v1659 = vrot.slane %v1643, %v1658
        %v1661 = vunpack.c.l.s4 1966171168
        %v1662 = vunpack.c.0.s8 %v1661
        %v1663 = vlaneseq
        %v1664 = vshrl.u32 %v1663, 7
        %v1665 = vsub.s32 %v1662, %v1664
        %v1666 = vrot.slane %v1644, %v1665
        %v1668 = vunpack.c.l.s4 1966171168
        %v1669 = vunpack.c.0.s8 %v1668
        %v1670 = vlaneseq
        %v1671 = vshrl.u32 %v1670, 7
        %v1672 = vsub.s32 %v1669, %v1671
        %v1673 = vrot.slane %v1645, %v1672
        %v1674 = vcombine.high %v1652, %v1652
        %v1675 = vcombine.high %v1659, %v1659
        %v1676 = vcombine.high %v1666, %v1666
        %v1677 = vcombine.high %v1673, %v1673
        %v1950 = vunpack.c.l.b16 %v1322
        %v1951 = vunpack.c.h.b16 %v1322
        %v1952 = vunpack.c.l.b16 %v1323
        %v1953 = vunpack.c.h.b16 %v1323
        %v1954 = vunpack.c.l.b16 %v1324
        %v1955 = vunpack.c.h.b16 %v1324
        %v1956 = vunpack.c.l.b16 %v1325
        %v1957 = vunpack.c.h.b16 %v1325
        %v1958 = vunpack.c.l.b16 %v1326
        %v1959 = vunpack.c.h.b16 %v1326
        %v1960 = vunpack.c.l.b16 %v1327
        %v1961 = vunpack.c.h.b16 %v1327
        %v1962 = vunpack.c.l.b16 %v1328
        %v1963 = vunpack.c.h.b16 %v1328
        %v1964 = vunpack.c.l.b16 %v1329
        %v1965 = vunpack.c.h.b16 %v1329
        %v1966 = vunpack.c.l.b16 %v1330
        %v1967 = vunpack.c.h.b16 %v1330
        %v1968 = vunpack.c.l.b16 %v1331
        %v1969 = vunpack.c.h.b16 %v1331
        %v1970 = vunpack.c.l.b16 %v1332
        %v1971 = vunpack.c.h.b16 %v1332
        %v1972 = vunpack.c.l.b16 %v1333
        %v1973 = vunpack.c.h.b16 %v1333
        %v1974 = vunpack.c.l.b16 %v1334
        %v1975 = vunpack.c.h.b16 %v1334
        %v1976 = vunpack.c.l.b16 %v1335
        %v1977 = vunpack.c.h.b16 %v1335
        %v1978 = vunpack.c.l.b16 %v1336
        %v1979 = vunpack.c.h.b16 %v1336
        %v1980 = vunpack.c.l.b16 %v1337
        %v1981 = vunpack.c.h.b16 %v1337
        %v1982 = vunpack.c.l.b16 %v1338
        %v1983 = vunpack.c.h.b16 %v1338
        %v1984 = vunpack.c.l.b16 %v1339
        %v1985 = vunpack.c.h.b16 %v1339
        %v1986 = vunpack.c.l.b16 %v1340
        %v1987 = vunpack.c.h.b16 %v1340
        %v1988 = vunpack.c.l.b16 %v1341
        %v1989 = vunpack.c.h.b16 %v1341
        %v1990 = vunpack.c.l.b16 %v1342
        %v1991 = vunpack.c.h.b16 %v1342
        %v1992 = vunpack.c.l.b16 %v1343
        %v1993 = vunpack.c.h.b16 %v1343
        %v1994 = vunpack.c.l.b16 %v1344
        %v1995 = vunpack.c.h.b16 %v1344
        %v1996 = vunpack.c.l.b16 %v1345
        %v1997 = vunpack.c.h.b16 %v1345
        %v1998 = vunpack.c.l.b16 %v1346
        %v1999 = vunpack.c.h.b16 %v1346
        %v2000 = vunpack.c.l.b16 %v1347
        %v2001 = vunpack.c.h.b16 %v1347
        %v2002 = vunpack.c.l.b16 %v1348
        %v2003 = vunpack.c.h.b16 %v1348
        %v2004 = vunpack.c.l.b16 %v1349
        %v2005 = vunpack.c.h.b16 %v1349
        %v2006 = vunpack.c.l.b16 %v1350
        %v2007 = vunpack.c.h.b16 %v1350
        %v2008 = vunpack.c.l.b16 %v1351
        %v2009 = vunpack.c.h.b16 %v1351
        %v2010 = vunpack.c.l.b16 %v1352
        %v2011 = vunpack.c.h.b16 %v1352
        %v2012 = vunpack.c.l.b16 %v1353
        %v2013 = vunpack.c.h.b16 %v1353
        %v2014 = vunpack.c.l.b16 %v1354
        %v2015 = vunpack.c.h.b16 %v1354
        %v2016 = vunpack.c.l.b16 %v1355
        %v2017 = vunpack.c.h.b16 %v1355
        %v2018 = vunpack.c.l.b16 %v1356
        %v2019 = vunpack.c.h.b16 %v1356
        %v2020 = vunpack.c.l.b16 %v1357
        %v2021 = vunpack.c.h.b16 %v1357
        %v2022 = vunpack.c.l.b16 %v1358
        %v2023 = vunpack.c.h.b16 %v1358
        %v2024 = vunpack.c.l.b16 %v1359
        %v2025 = vunpack.c.h.b16 %v1359
        %v2026 = vunpack.c.l.b16 %v1360
        %v2027 = vunpack.c.h.b16 %v1360
        %v2028 = vunpack.c.l.b16 %v1361
        %v2029 = vunpack.c.h.b16 %v1361
        %v2030 = vunpack.c.l.b16 %v1362
        %v2031 = vunpack.c.h.b16 %v1362
        %v2032 = vunpack.c.l.b16 %v1363
        %v2033 = vunpack.c.h.b16 %v1363
        %v2034 = vunpack.c.l.b16 %v1364
        %v2035 = vunpack.c.h.b16 %v1364
        %v2036 = vunpack.c.l.b16 %v1365
        %v2037 = vunpack.c.h.b16 %v1365
        %v2038 = vunpack.c.l.b16 %v1366
        %v2039 = vunpack.c.h.b16 %v1366
        %v2040 = vunpack.c.l.b16 %v1367
        %v2041 = vunpack.c.h.b16 %v1367
        %v2042 = vunpack.c.l.b16 %v1368
        %v2043 = vunpack.c.h.b16 %v1368
        %v2044 = vunpack.c.l.b16 %v1369
        %v2045 = vunpack.c.h.b16 %v1369
        %v2046 = vunpack.c.l.b16 %v1370
        %v2047 = vunpack.c.h.b16 %v1370
        %v2048 = vunpack.c.l.b16 %v1371
        %v2049 = vunpack.c.h.b16 %v1371
        %v2050 = vunpack.c.l.b16 %v1372
        %v2051 = vunpack.c.h.b16 %v1372
        %v2052 = vunpack.c.l.b16 %v1373
        %v2053 = vunpack.c.h.b16 %v1373
        %v2054 = vunpack.c.l.b16 %v1374
        %v2055 = vunpack.c.h.b16 %v1374
        %v2056 = vunpack.c.l.b16 %v1375
        %v2057 = vunpack.c.h.b16 %v1375
        %v2058 = vunpack.c.l.b16 %v1376
        %v2059 = vunpack.c.h.b16 %v1376
        %v2060 = vunpack.c.l.b16 %v1377
        %v2061 = vunpack.c.h.b16 %v1377
        %v2062 = vunpack.c.l.b16 %v1378
        %v2063 = vunpack.c.h.b16 %v1378
        %v2064 = vunpack.c.l.b16 %v1379
        %v2065 = vunpack.c.h.b16 %v1379
        %v2066 = vunpack.c.l.b16 %v1380
        %v2067 = vunpack.c.h.b16 %v1380
        %v2068 = vunpack.c.l.b16 %v1381
        %v2069 = vunpack.c.h.b16 %v1381
        %v2070 = vunpack.c.l.b16 %v1382
        %v2071 = vunpack.c.h.b16 %v1382
        %v2072 = vunpack.c.l.b16 %v1383
        %v2073 = vunpack.c.h.b16 %v1383
        %v2074 = vunpack.c.l.b16 %v1384
        %v2075 = vunpack.c.h.b16 %v1384
        %v2076 = vunpack.c.l.b16 %v1385
        %v2077 = vunpack.c.h.b16 %v1385
        %v2078 = vunpack.c.l.b16 %v1386
        %v2079 = vunpack.c.h.b16 %v1386
        %v2080 = vunpack.c.l.b16 %v1387
        %v2081 = vunpack.c.h.b16 %v1387
        %v2082 = vunpack.c.l.b16 %v1388
        %v2083 = vunpack.c.h.b16 %v1388
        %v2084 = vunpack.c.l.b16 %v1389
        %v2085 = vunpack.c.h.b16 %v1389
        %v2086 = vunpack.c.l.b16 %v1390
        %v2087 = vunpack.c.h.b16 %v1390
        %v2088 = vunpack.c.l.b16 %v1391
        %v2089 = vunpack.c.h.b16 %v1391
        %v2090 = vunpack.c.l.b16 %v1392
        %v2091 = vunpack.c.h.b16 %v1392
        %v2092 = vunpack.c.l.b16 %v1393
        %v2093 = vunpack.c.h.b16 %v1393
        %v2094 = vunpack.c.l.b16 %v1394
        %v2095 = vunpack.c.h.b16 %v1394
        %v2096 = vunpack.c.l.b16 %v1395
        %v2097 = vunpack.c.h.b16 %v1395
        %v2098 = vunpack.c.l.b16 %v1396
        %v2099 = vunpack.c.h.b16 %v1396
        %v2100 = vunpack.c.l.b16 %v1397
        %v2101 = vunpack.c.h.b16 %v1397
        %v2102 = vunpack.c.l.b16 %v1398
        %v2103 = vunpack.c.h.b16 %v1398
        %v2104 = vunpack.c.l.b16 %v1399
        %v2105 = vunpack.c.h.b16 %v1399
        %v2106 = vunpack.c.l.b16 %v1400
        %v2107 = vunpack.c.h.b16 %v1400
        %v2108 = vunpack.c.l.b16 %v1401
        %v2109 = vunpack.c.h.b16 %v1401
        %v2110 = vunpack.c.l.b16 %v1402
        %v2111 = vunpack.c.h.b16 %v1402
        %v2112 = vunpack.c.l.b16 %v1403
        %v2113 = vunpack.c.h.b16 %v1403
        %v2114 = vunpack.c.l.b16 %v1404
        %v2115 = vunpack.c.h.b16 %v1404
        %v2116 = vunpack.c.l.b16 %v1405
        %v2117 = vunpack.c.h.b16 %v1405
        %v2118 = vunpack.c.l.b16 %v1406
        %v2119 = vunpack.c.h.b16 %v1406
        %v2120 = vunpack.c.l.b16 %v1407
        %v2121 = vunpack.c.h.b16 %v1407
        %v2122 = vunpack.c.l.b16 %v1408
        %v2123 = vunpack.c.h.b16 %v1408
        %v2124 = vunpack.c.l.b16 %v1409
        %v2125 = vunpack.c.h.b16 %v1409
        %v2126 = vunpack.c.l.b16 %v1410
        %v2127 = vunpack.c.h.b16 %v1410
        %v2128 = vunpack.c.l.b16 %v1411
        %v2129 = vunpack.c.h.b16 %v1411
        %v2130 = vunpack.c.l.b16 %v1412
        %v2131 = vunpack.c.h.b16 %v1412
        %v2132 = vunpack.c.l.b16 %v1413
        %v2133 = vunpack.c.h.b16 %v1413
        %v2134 = vunpack.c.l.b16 %v1414
        %v2135 = vunpack.c.h.b16 %v1414
        %v2136 = vunpack.c.l.b16 %v1415
        %v2137 = vunpack.c.h.b16 %v1415
        %v2138 = vunpack.c.l.b16 %v1416
        %v2139 = vunpack.c.h.b16 %v1416
        %v2140 = vunpack.c.l.b16 %v1417
        %v2141 = vunpack.c.h.b16 %v1417
        %v2142 = vunpack.c.l.b16 %v1418
        %v2143 = vunpack.c.h.b16 %v1418
        %v2144 = vunpack.c.l.b16 %v1419
        %v2145 = vunpack.c.h.b16 %v1419
        %v2146 = vunpack.c.l.b16 %v1420
        %v2147 = vunpack.c.h.b16 %v1420
        %v2148 = vunpack.c.l.b16 %v1421
        %v2149 = vunpack.c.h.b16 %v1421
        %v2150 = vunpack.c.l.b16 %v1422
        %v2151 = vunpack.c.h.b16 %v1422
        %v2152 = vunpack.c.l.b16 %v1423
        %v2153 = vunpack.c.h.b16 %v1423
        %v2154 = vunpack.c.l.b16 %v1424
        %v2155 = vunpack.c.h.b16 %v1424
        %v2156 = vunpack.c.l.b16 %v1425
        %v2157 = vunpack.c.h.b16 %v1425
        %v2158 = vunpack.c.l.b16 %v1426
        %v2159 = vunpack.c.h.b16 %v1426
        %v2160 = vunpack.c.l.b16 %v1427
        %v2161 = vunpack.c.h.b16 %v1427
        %v2162 = vunpack.c.l.b16 %v1428
        %v2163 = vunpack.c.h.b16 %v1428
        %v2164 = vunpack.c.l.b16 %v1429
        %v2165 = vunpack.c.h.b16 %v1429
        %v2166 = vunpack.c.l.b16 %v1430
        %v2167 = vunpack.c.h.b16 %v1430
        %v2168 = vunpack.c.l.b16 %v1431
        %v2169 = vunpack.c.h.b16 %v1431
        %v2170 = vunpack.c.l.b16 %v1432
        %v2171 = vunpack.c.h.b16 %v1432
        %v2172 = vunpack.c.l.b16 %v1433
        %v2173 = vunpack.c.h.b16 %v1433
        %v2174 = vunpack.c.l.b16 %v1434
        %v2175 = vunpack.c.h.b16 %v1434
        %v2176 = vunpack.c.l.b16 %v1435
        %v2177 = vunpack.c.h.b16 %v1435
        %v2178 = vunpack.c.l.b16 %v1436
        %v2179 = vunpack.c.h.b16 %v1436
        %v2180 = vunpack.c.l.b16 %v1437
        %v2181 = vunpack.c.h.b16 %v1437
        %v2182 = vunpack.c.l.b16 %v1438
        %v2183 = vunpack.c.h.b16 %v1438
        %v2184 = vunpack.c.l.b16 %v1439
        %v2185 = vunpack.c.h.b16 %v1439
        %v2186 = vunpack.c.l.b16 %v1440
        %v2187 = vunpack.c.h.b16 %v1440
        %v2188 = vunpack.c.l.b16 %v1441
        %v2189 = vunpack.c.h.b16 %v1441
        %v2190 = vunpack.c.l.b16 %v1442
        %v2191 = vunpack.c.h.b16 %v1442
        %v2192 = vunpack.c.l.b16 %v1443
        %v2193 = vunpack.c.h.b16 %v1443
        %v2194 = vunpack.c.l.b16 %v1444
        %v2195 = vunpack.c.h.b16 %v1444
        %v2196 = vunpack.c.l.b16 %v1445
        %v2197 = vunpack.c.h.b16 %v1445
        %v2198 = vunpack.c.l.b16 %v1446
        %v2199 = vunpack.c.h.b16 %v1446
        %v2200 = vunpack.c.l.b16 %v1447
        %v2201 = vunpack.c.h.b16 %v1447
        %v2202 = vunpack.c.l.b16 %v1448
        %v2203 = vunpack.c.h.b16 %v1448
        %v2204 = vunpack.c.l.b16 %v1449
        %v2205 = vunpack.c.h.b16 %v1449
        %v2206 = vunpack.c.l.b16 %v1450
        %v2207 = vunpack.c.h.b16 %v1450
        %v2208 = vunpack.c.l.b16 %v1451
        %v2209 = vunpack.c.h.b16 %v1451
        %v2210 = vunpack.c.l.b16 %v1452
        %v2211 = vunpack.c.h.b16 %v1452
        %v2212 = vunpack.c.l.b16 %v1453
        %v2213 = vunpack.c.h.b16 %v1453
        %v2214 = vunpack.c.l.b16 %v1454
        %v2215 = vunpack.c.h.b16 %v1454
        %v2216 = vunpack.c.l.b16 %v1455
        %v2217 = vunpack.c.h.b16 %v1455
        %v2218 = vunpack.c.l.b16 %v1456
        %v2219 = vunpack.c.h.b16 %v1456
        %v2220 = vunpack.c.l.b16 %v1457
        %v2221 = vunpack.c.h.b16 %v1457
        %v2222 = vunpack.c.l.b16 %v1458
        %v2223 = vunpack.c.h.b16 %v1458
        %v2224 = vunpack.c.l.b16 %v1459
        %v2225 = vunpack.c.h.b16 %v1459
        %v2226 = vunpack.c.l.b16 %v1460
        %v2227 = vunpack.c.h.b16 %v1460
        %v2228 = vunpack.c.l.b16 %v1461
        %v2229 = vunpack.c.h.b16 %v1461
        %v2230 = vunpack.c.l.b16 %v1462
        %v2231 = vunpack.c.h.b16 %v1462
        %v2232 = vunpack.c.l.b16 %v1463
        %v2233 = vunpack.c.h.b16 %v1463
        %v2234 = vunpack.c.l.b16 %v1464
        %v2235 = vunpack.c.h.b16 %v1464
        %v2236 = vunpack.c.l.b16 %v1465
        %v2237 = vunpack.c.h.b16 %v1465
        %v2238 = vunpack.c.l.b16 %v1466
        %v2239 = vunpack.c.h.b16 %v1466
        %v2240 = vunpack.c.l.b16 %v1467
        %v2241 = vunpack.c.h.b16 %v1467
        %v2242 = vunpack.c.l.b16 %v1468
        %v2243 = vunpack.c.h.b16 %v1468
        %v2244 = vunpack.c.l.b16 %v1469
        %v2245 = vunpack.c.h.b16 %v1469
        %v2246 = vunpack.c.l.b16 %v1470
        %v2247 = vunpack.c.h.b16 %v1470
        %v2248 = vunpack.c.l.b16 %v1471
        %v2249 = vunpack.c.h.b16 %v1471
        %v2250 = vunpack.c.l.b16 %v1472
        %v2251 = vunpack.c.h.b16 %v1472
        %v2252 = vunpack.c.l.b16 %v1473
        %v2253 = vunpack.c.h.b16 %v1473
        %v2254 = vunpack.c.l.b16 %v1474
        %v2255 = vunpack.c.h.b16 %v1474
        %v2256 = vunpack.c.l.b16 %v1475
        %v2257 = vunpack.c.h.b16 %v1475
        %v2258 = vunpack.c.l.b16 %v1476
        %v2259 = vunpack.c.h.b16 %v1476
        %v2260 = vunpack.c.l.b16 %v1477
        %v2261 = vunpack.c.h.b16 %v1477
        %v2262 = vunpack.c.l.b16 %v1478
        %v2263 = vunpack.c.h.b16 %v1478
        %v2264 = vunpack.c.l.b16 %v1479
        %v2265 = vunpack.c.h.b16 %v1479
        %v2266 = vunpack.c.l.b16 %v1480
        %v2267 = vunpack.c.h.b16 %v1480
        %v2268 = vunpack.c.l.b16 %v1481
        %v2269 = vunpack.c.h.b16 %v1481
        %v2270 = vunpack.c.l.b16 %v1482
        %v2271 = vunpack.c.h.b16 %v1482
        %v2272 = vunpack.c.l.b16 %v1483
        %v2273 = vunpack.c.h.b16 %v1483
        %v2274 = vunpack.c.l.b16 %v1484
        %v2275 = vunpack.c.h.b16 %v1484
        %v2276 = vunpack.c.l.b16 %v1485
        %v2277 = vunpack.c.h.b16 %v1485
        %v2278 = vunpack.c.l.b16 %v1486
        %v2279 = vunpack.c.h.b16 %v1486
        %v2280 = vunpack.c.l.b16 %v1487
        %v2281 = vunpack.c.h.b16 %v1487
        %v2282 = vunpack.c.l.b16 %v1488
        %v2283 = vunpack.c.h.b16 %v1488
        %v2284 = vunpack.c.l.b16 %v1489
        %v2285 = vunpack.c.h.b16 %v1489
        %v2286 = vunpack.c.l.b16 %v1490
        %v2287 = vunpack.c.h.b16 %v1490
        %v2288 = vunpack.c.l.b16 %v1491
        %v2289 = vunpack.c.h.b16 %v1491
        %v2290 = vunpack.c.l.b16 %v1492
        %v2291 = vunpack.c.h.b16 %v1492
        %v2292 = vunpack.c.l.b16 %v1493
        %v2293 = vunpack.c.h.b16 %v1493
        %v2294 = vunpack.c.l.b16 %v1494
        %v2295 = vunpack.c.h.b16 %v1494
        %v2296 = vunpack.c.l.b16 %v1495
        %v2297 = vunpack.c.h.b16 %v1495
        %v2298 = vunpack.c.l.b16 %v1496
        %v2299 = vunpack.c.h.b16 %v1496
        %v2300 = vunpack.c.l.b16 %v1497
        %v2301 = vunpack.c.h.b16 %v1497
        %v2302 = vunpack.c.l.b16 %v1498
        %v2303 = vunpack.c.h.b16 %v1498
        %v2304 = vunpack.c.l.b16 %v1499
        %v2305 = vunpack.c.h.b16 %v1499
        %v2306 = vunpack.c.l.b16 %v1500
        %v2307 = vunpack.c.h.b16 %v1500
        %v2308 = vunpack.c.l.b16 %v1501
        %v2309 = vunpack.c.h.b16 %v1501
        %v2310 = vunpack.c.l.b16 %v1502
        %v2311 = vunpack.c.h.b16 %v1502
        %v2312 = vunpack.c.l.b16 %v1503
        %v2313 = vunpack.c.h.b16 %v1503
        %v2314 = vunpack.c.l.b16 %v1504
        %v2315 = vunpack.c.h.b16 %v1504
        %v2316 = vunpack.c.l.b16 %v1505
        %v2317 = vunpack.c.h.b16 %v1505
        %v2318 = vunpack.c.l.b16 %v1506
        %v2319 = vunpack.c.h.b16 %v1506
        %v2320 = vunpack.c.l.b16 %v1507
        %v2321 = vunpack.c.h.b16 %v1507
        %v2322 = vunpack.c.l.b16 %v1508
        %v2323 = vunpack.c.h.b16 %v1508
        %v2324 = vunpack.c.l.b16 %v1509
        %v2325 = vunpack.c.h.b16 %v1509
        %v2326 = vunpack.c.l.b16 %v1510
        %v2327 = vunpack.c.h.b16 %v1510
        %v2328 = vunpack.c.l.b16 %v1511
        %v2329 = vunpack.c.h.b16 %v1511
        %v2330 = vunpack.c.l.b16 %v1512
        %v2331 = vunpack.c.h.b16 %v1512
        %v2332 = vunpack.c.l.b16 %v1513
        %v2333 = vunpack.c.h.b16 %v1513
        %v2334 = vunpack.c.l.b16 %v1514
        %v2335 = vunpack.c.h.b16 %v1514
        %v2336 = vunpack.c.l.b16 %v1515
        %v2337 = vunpack.c.h.b16 %v1515
        %v2338 = vunpack.c.l.b16 %v1516
        %v2339 = vunpack.c.h.b16 %v1516
        %v2340 = vunpack.c.l.b16 %v1517
        %v2341 = vunpack.c.h.b16 %v1517
        %v2342 = vunpack.c.l.b16 %v1518
        %v2343 = vunpack.c.h.b16 %v1518
        %v2344 = vunpack.c.l.b16 %v1519
        %v2345 = vunpack.c.h.b16 %v1519
        %v2346 = vunpack.c.l.b16 %v1520
        %v2347 = vunpack.c.h.b16 %v1520
        %v2348 = vunpack.c.l.b16 %v1521
        %v2349 = vunpack.c.h.b16 %v1521
        %v2350 = vunpack.c.l.b16 %v1522
        %v2351 = vunpack.c.h.b16 %v1522
        %v2352 = vunpack.c.l.b16 %v1523
        %v2353 = vunpack.c.h.b16 %v1523
        %v2354 = vunpack.c.l.b16 %v1524
        %v2355 = vunpack.c.h.b16 %v1524
        %v2356 = vunpack.c.l.b16 %v1525
        %v2357 = vunpack.c.h.b16 %v1525
        %v2358 = vunpack.c.l.b16 %v1526
        %v2359 = vunpack.c.h.b16 %v1526
        %v2360 = vunpack.c.l.b16 %v1527
        %v2361 = vunpack.c.h.b16 %v1527
        %v2362 = vunpack.c.l.b16 %v1528
        %v2363 = vunpack.c.h.b16 %v1528
        %v2364 = vunpack.c.l.b16 %v1529
        %v2365 = vunpack.c.h.b16 %v1529
        %v2366 = vunpack.c.l.b16 %v1530
        %v2367 = vunpack.c.h.b16 %v1530
        %v2368 = vunpack.c.l.b16 %v1531
        %v2369 = vunpack.c.h.b16 %v1531
        %v2370 = vunpack.c.l.b16 %v1532
        %v2371 = vunpack.c.h.b16 %v1532
        %v2372 = vunpack.c.l.b16 %v1533
        %v2373 = vunpack.c.h.b16 %v1533
        %v2374 = vunpack.c.l.b16 %v1534
        %v2375 = vunpack.c.h.b16 %v1534
        %v2376 = vunpack.c.l.b16 %v1535
        %v2377 = vunpack.c.h.b16 %v1535
        %v2378 = vunpack.c.l.b16 %v1536
        %v2379 = vunpack.c.h.b16 %v1536
        %v2380 = vunpack.c.l.b16 %v1537
        %v2381 = vunpack.c.h.b16 %v1537
        %v2382 = vunpack.c.l.b16 %v1538
        %v2383 = vunpack.c.h.b16 %v1538
        %v2384 = vunpack.c.l.b16 %v1539
        %v2385 = vunpack.c.h.b16 %v1539
        %v2386 = vunpack.c.l.b16 %v1540
        %v2387 = vunpack.c.h.b16 %v1540
        %v2388 = vunpack.c.l.b16 %v1541
        %v2389 = vunpack.c.h.b16 %v1541
        %v2390 = vunpack.c.l.b16 %v1542
        %v2391 = vunpack.c.h.b16 %v1542
        %v2392 = vunpack.c.l.b16 %v1543
        %v2393 = vunpack.c.h.b16 %v1543
        %v2394 = vunpack.c.l.b16 %v1544
        %v2395 = vunpack.c.h.b16 %v1544
        %v2396 = vunpack.c.l.b16 %v1545
        %v2397 = vunpack.c.h.b16 %v1545
        %v2398 = vunpack.c.l.b16 %v1546
        %v2399 = vunpack.c.h.b16 %v1546
        %v2400 = vunpack.c.l.b16 %v1547
        %v2401 = vunpack.c.h.b16 %v1547
        %v2402 = vunpack.c.l.b16 %v1548
        %v2403 = vunpack.c.h.b16 %v1548
        %v2404 = vunpack.c.l.b16 %v1549
        %v2405 = vunpack.c.h.b16 %v1549
        %v2406 = vunpack.c.l.b16 %v1550
        %v2407 = vunpack.c.h.b16 %v1550
        %v2408 = vunpack.c.l.b16 %v1551
        %v2409 = vunpack.c.h.b16 %v1551
        %v2410 = vunpack.c.l.b16 %v1552
        %v2411 = vunpack.c.h.b16 %v1552
        %v2412 = vunpack.c.l.b16 %v1553
        %v2413 = vunpack.c.h.b16 %v1553
        %v2414 = vunpack.c.l.b16 %v1554
        %v2415 = vunpack.c.h.b16 %v1554
        %v2416 = vunpack.c.l.b16 %v1555
        %v2417 = vunpack.c.h.b16 %v1555
        %v2418 = vunpack.c.l.b16 %v1556
        %v2419 = vunpack.c.h.b16 %v1556
        %v2420 = vunpack.c.l.b16 %v1557
        %v2421 = vunpack.c.h.b16 %v1557
        %v2422 = vunpack.c.l.b16 %v1558
        %v2423 = vunpack.c.h.b16 %v1558
        %v2424 = vunpack.c.l.b16 %v1559
        %v2425 = vunpack.c.h.b16 %v1559
        %v2426 = vunpack.c.l.b16 %v1560
        %v2427 = vunpack.c.h.b16 %v1560
        %v2428 = vunpack.c.l.b16 %v1561
        %v2429 = vunpack.c.h.b16 %v1561
        %v2430 = vunpack.c.l.b16 %v1562
        %v2431 = vunpack.c.h.b16 %v1562
        %v2432 = vunpack.c.l.b16 %v1563
        %v2433 = vunpack.c.h.b16 %v1563
        %v2434 = vunpack.c.l.b16 %v1564
        %v2435 = vunpack.c.h.b16 %v1564
        %v2436 = vunpack.c.l.b16 %v1565
        %v2437 = vunpack.c.h.b16 %v1565
        %v2438 = vunpack.c.l.b16 %v1566
        %v2439 = vunpack.c.h.b16 %v1566
        %v2440 = vunpack.c.l.b16 %v1567
        %v2441 = vunpack.c.h.b16 %v1567
        %v2442 = vunpack.c.l.b16 %v1568
        %v2443 = vunpack.c.h.b16 %v1568
        %v2444 = vunpack.c.l.b16 %v1569
        %v2445 = vunpack.c.h.b16 %v1569
        %v2446 = vunpack.c.l.b16 %v1570
        %v2447 = vunpack.c.h.b16 %v1570
        %v2448 = vunpack.c.l.b16 %v1571
        %v2449 = vunpack.c.h.b16 %v1571
        %v2450 = vunpack.c.l.b16 %v1572
        %v2451 = vunpack.c.h.b16 %v1572
        %v2452 = vunpack.c.l.b16 %v1573
        %v2453 = vunpack.c.h.b16 %v1573
        %v2454 = vunpack.c.l.b16 %v1574
        %v2455 = vunpack.c.h.b16 %v1574
        %v2456 = vunpack.c.l.b16 %v1575
        %v2457 = vunpack.c.h.b16 %v1575
        %v2458 = vunpack.c.l.b16 %v1576
        %v2459 = vunpack.c.h.b16 %v1576
        %v2460 = vunpack.c.l.b16 %v1577
        %v2461 = vunpack.c.h.b16 %v1577
        %v2462 = vpack.c.b16 %v1952, %v1950
        %v2463 = vpack.c.b16 %v1953, %v1951
        %v2464 = vpack.c.b16 %v1956, %v1954
        %v2465 = vpack.c.b16 %v1957, %v1955
        %v2466 = vpack.c.b16 %v1960, %v1958
        %v2467 = vpack.c.b16 %v1961, %v1959
        %v2468 = vpack.c.b16 %v1964, %v1962
        %v2469 = vpack.c.b16 %v1965, %v1963
        %v2470 = vpack.c.b16 %v1968, %v1966
        %v2471 = vpack.c.b16 %v1969, %v1967
        %v2472 = vpack.c.b16 %v1972, %v1970
        %v2473 = vpack.c.b16 %v1973, %v1971
        %v2474 = vpack.c.b16 %v1976, %v1974
        %v2475 = vpack.c.b16 %v1977, %v1975
        %v2476 = vpack.c.b16 %v1980, %v1978
        %v2477 = vpack.c.b16 %v1981, %v1979
        %v2478 = vpack.c.b16 %v1984, %v1982
        %v2479 = vpack.c.b16 %v1985, %v1983
        %v2480 = vpack.c.b16 %v1988, %v1986
        %v2481 = vpack.c.b16 %v1989, %v1987
        %v2482 = vpack.c.b16 %v1992, %v1990
        %v2483 = vpack.c.b16 %v1993, %v1991
        %v2484 = vpack.c.b16 %v1996, %v1994
        %v2485 = vpack.c.b16 %v1997, %v1995
        %v2486 = vpack.c.b16 %v2000, %v1998
        %v2487 = vpack.c.b16 %v2001, %v1999
        %v2488 = vpack.c.b16 %v2004, %v2002
        %v2489 = vpack.c.b16 %v2005, %v2003
        %v2490 = vpack.c.b16 %v2008, %v2006
        %v2491 = vpack.c.b16 %v2009, %v2007
        %v2492 = vpack.c.b16 %v2012, %v2010
        %v2493 = vpack.c.b16 %v2013, %v2011
        %v2494 = vpack.c.b16 %v2016, %v2014
        %v2495 = vpack.c.b16 %v2017, %v2015
        %v2496 = vpack.c.b16 %v2020, %v2018
        %v2497 = vpack.c.b16 %v2021, %v2019
        %v2498 = vpack.c.b16 %v2024, %v2022
        %v2499 = vpack.c.b16 %v2025, %v2023
        %v2500 = vpack.c.b16 %v2028, %v2026
        %v2501 = vpack.c.b16 %v2029, %v2027
        %v2502 = vpack.c.b16 %v2032, %v2030
        %v2503 = vpack.c.b16 %v2033, %v2031
        %v2504 = vpack.c.b16 %v2036, %v2034
        %v2505 = vpack.c.b16 %v2037, %v2035
        %v2506 = vpack.c.b16 %v2040, %v2038
        %v2507 = vpack.c.b16 %v2041, %v2039
        %v2508 = vpack.c.b16 %v2044, %v2042
        %v2509 = vpack.c.b16 %v2045, %v2043
        %v2510 = vpack.c.b16 %v2048, %v2046
        %v2511 = vpack.c.b16 %v2049, %v2047
        %v2512 = vpack.c.b16 %v2052, %v2050
        %v2513 = vpack.c.b16 %v2053, %v2051
        %v2514 = vpack.c.b16 %v2056, %v2054
        %v2515 = vpack.c.b16 %v2057, %v2055
        %v2516 = vpack.c.b16 %v2060, %v2058
        %v2517 = vpack.c.b16 %v2061, %v2059
        %v2518 = vpack.c.b16 %v2064, %v2062
        %v2519 = vpack.c.b16 %v2065, %v2063
        %v2520 = vpack.c.b16 %v2068, %v2066
        %v2521 = vpack.c.b16 %v2069, %v2067
        %v2522 = vpack.c.b16 %v2072, %v2070
        %v2523 = vpack.c.b16 %v2073, %v2071
        %v2524 = vpack.c.b16 %v2076, %v2074
        %v2525 = vpack.c.b16 %v2077, %v2075
        %v2526 = vpack.c.b16 %v2080, %v2078
        %v2527 = vpack.c.b16 %v2081, %v2079
        %v2528 = vpack.c.b16 %v2084, %v2082
        %v2529 = vpack.c.b16 %v2085, %v2083
        %v2530 = vpack.c.b16 %v2088, %v2086
        %v2531 = vpack.c.b16 %v2089, %v2087
        %v2532 = vpack.c.b16 %v2092, %v2090
        %v2533 = vpack.c.b16 %v2093, %v2091
        %v2534 = vpack.c.b16 %v2096, %v2094
        %v2535 = vpack.c.b16 %v2097, %v2095
        %v2536 = vpack.c.b16 %v2100, %v2098
        %v2537 = vpack.c.b16 %v2101, %v2099
        %v2538 = vpack.c.b16 %v2104, %v2102
        %v2539 = vpack.c.b16 %v2105, %v2103
        %v2540 = vpack.c.b16 %v2108, %v2106
        %v2541 = vpack.c.b16 %v2109, %v2107
        %v2542 = vpack.c.b16 %v2112, %v2110
        %v2543 = vpack.c.b16 %v2113, %v2111
        %v2544 = vpack.c.b16 %v2116, %v2114
        %v2545 = vpack.c.b16 %v2117, %v2115
        %v2546 = vpack.c.b16 %v2120, %v2118
        %v2547 = vpack.c.b16 %v2121, %v2119
        %v2548 = vpack.c.b16 %v2124, %v2122
        %v2549 = vpack.c.b16 %v2125, %v2123
        %v2550 = vpack.c.b16 %v2128, %v2126
        %v2551 = vpack.c.b16 %v2129, %v2127
        %v2552 = vpack.c.b16 %v2132, %v2130
        %v2553 = vpack.c.b16 %v2133, %v2131
        %v2554 = vpack.c.b16 %v2136, %v2134
        %v2555 = vpack.c.b16 %v2137, %v2135
        %v2556 = vpack.c.b16 %v2140, %v2138
        %v2557 = vpack.c.b16 %v2141, %v2139
        %v2558 = vpack.c.b16 %v2144, %v2142
        %v2559 = vpack.c.b16 %v2145, %v2143
        %v2560 = vpack.c.b16 %v2148, %v2146
        %v2561 = vpack.c.b16 %v2149, %v2147
        %v2562 = vpack.c.b16 %v2152, %v2150
        %v2563 = vpack.c.b16 %v2153, %v2151
        %v2564 = vpack.c.b16 %v2156, %v2154
        %v2565 = vpack.c.b16 %v2157, %v2155
        %v2566 = vpack.c.b16 %v2160, %v2158
        %v2567 = vpack.c.b16 %v2161, %v2159
        %v2568 = vpack.c.b16 %v2164, %v2162
        %v2569 = vpack.c.b16 %v2165, %v2163
        %v2570 = vpack.c.b16 %v2168, %v2166
        %v2571 = vpack.c.b16 %v2169, %v2167
        %v2572 = vpack.c.b16 %v2172, %v2170
        %v2573 = vpack.c.b16 %v2173, %v2171
        %v2574 = vpack.c.b16 %v2176, %v2174
        %v2575 = vpack.c.b16 %v2177, %v2175
        %v2576 = vpack.c.b16 %v2180, %v2178
        %v2577 = vpack.c.b16 %v2181, %v2179
        %v2578 = vpack.c.b16 %v2184, %v2182
        %v2579 = vpack.c.b16 %v2185, %v2183
        %v2580 = vpack.c.b16 %v2188, %v2186
        %v2581 = vpack.c.b16 %v2189, %v2187
        %v2582 = vpack.c.b16 %v2192, %v2190
        %v2583 = vpack.c.b16 %v2193, %v2191
        %v2584 = vpack.c.b16 %v2196, %v2194
        %v2585 = vpack.c.b16 %v2197, %v2195
        %v2586 = vpack.c.b16 %v2200, %v2198
        %v2587 = vpack.c.b16 %v2201, %v2199
        %v2588 = vpack.c.b16 %v2204, %v2202
        %v2589 = vpack.c.b16 %v2205, %v2203
        %v2590 = vpack.c.b16 %v2208, %v2206
        %v2591 = vpack.c.b16 %v2209, %v2207
        %v2592 = vpack.c.b16 %v2212, %v2210
        %v2593 = vpack.c.b16 %v2213, %v2211
        %v2594 = vpack.c.b16 %v2216, %v2214
        %v2595 = vpack.c.b16 %v2217, %v2215
        %v2596 = vpack.c.b16 %v2220, %v2218
        %v2597 = vpack.c.b16 %v2221, %v2219
        %v2598 = vpack.c.b16 %v2224, %v2222
        %v2599 = vpack.c.b16 %v2225, %v2223
        %v2600 = vpack.c.b16 %v2228, %v2226
        %v2601 = vpack.c.b16 %v2229, %v2227
        %v2602 = vpack.c.b16 %v2232, %v2230
        %v2603 = vpack.c.b16 %v2233, %v2231
        %v2604 = vpack.c.b16 %v2236, %v2234
        %v2605 = vpack.c.b16 %v2237, %v2235
        %v2606 = vpack.c.b16 %v2240, %v2238
        %v2607 = vpack.c.b16 %v2241, %v2239
        %v2608 = vpack.c.b16 %v2244, %v2242
        %v2609 = vpack.c.b16 %v2245, %v2243
        %v2610 = vpack.c.b16 %v2248, %v2246
        %v2611 = vpack.c.b16 %v2249, %v2247
        %v2612 = vpack.c.b16 %v2252, %v2250
        %v2613 = vpack.c.b16 %v2253, %v2251
        %v2614 = vpack.c.b16 %v2256, %v2254
        %v2615 = vpack.c.b16 %v2257, %v2255
        %v2616 = vpack.c.b16 %v2260, %v2258
        %v2617 = vpack.c.b16 %v2261, %v2259
        %v2618 = vpack.c.b16 %v2264, %v2262
        %v2619 = vpack.c.b16 %v2265, %v2263
        %v2620 = vpack.c.b16 %v2268, %v2266
        %v2621 = vpack.c.b16 %v2269, %v2267
        %v2622 = vpack.c.b16 %v2272, %v2270
        %v2623 = vpack.c.b16 %v2273, %v2271
        %v2624 = vpack.c.b16 %v2276, %v2274
        %v2625 = vpack.c.b16 %v2277, %v2275
        %v2626 = vpack.c.b16 %v2280, %v2278
        %v2627 = vpack.c.b16 %v2281, %v2279
        %v2628 = vpack.c.b16 %v2284, %v2282
        %v2629 = vpack.c.b16 %v2285, %v2283
        %v2630 = vpack.c.b16 %v2288, %v2286
        %v2631 = vpack.c.b16 %v2289, %v2287
        %v2632 = vpack.c.b16 %v2292, %v2290
        %v2633 = vpack.c.b16 %v2293, %v2291
        %v2634 = vpack.c.b16 %v2296, %v2294
        %v2635 = vpack.c.b16 %v2297, %v2295
        %v2636 = vpack.c.b16 %v2300, %v2298
        %v2637 = vpack.c.b16 %v2301, %v2299
        %v2638 = vpack.c.b16 %v2304, %v2302
        %v2639 = vpack.c.b16 %v2305, %v2303
        %v2640 = vpack.c.b16 %v2308, %v2306
        %v2641 = vpack.c.b16 %v2309, %v2307
        %v2642 = vpack.c.b16 %v2312, %v2310
        %v2643 = vpack.c.b16 %v2313, %v2311
        %v2644 = vpack.c.b16 %v2316, %v2314
        %v2645 = vpack.c.b16 %v2317, %v2315
        %v2646 = vpack.c.b16 %v2320, %v2318
        %v2647 = vpack.c.b16 %v2321, %v2319
        %v2648 = vpack.c.b16 %v2324, %v2322
        %v2649 = vpack.c.b16 %v2325, %v2323
        %v2650 = vpack.c.b16 %v2328, %v2326
        %v2651 = vpack.c.b16 %v2329, %v2327
        %v2652 = vpack.c.b16 %v2332, %v2330
        %v2653 = vpack.c.b16 %v2333, %v2331
        %v2654 = vpack.c.b16 %v2336, %v2334
        %v2655 = vpack.c.b16 %v2337, %v2335
        %v2656 = vpack.c.b16 %v2340, %v2338
        %v2657 = vpack.c.b16 %v2341, %v2339
        %v2658 = vpack.c.b16 %v2344, %v2342
        %v2659 = vpack.c.b16 %v2345, %v2343
        %v2660 = vpack.c.b16 %v2348, %v2346
        %v2661 = vpack.c.b16 %v2349, %v2347
        %v2662 = vpack.c.b16 %v2352, %v2350
        %v2663 = vpack.c.b16 %v2353, %v2351
        %v2664 = vpack.c.b16 %v2356, %v2354
        %v2665 = vpack.c.b16 %v2357, %v2355
        %v2666 = vpack.c.b16 %v2360, %v2358
        %v2667 = vpack.c.b16 %v2361, %v2359
        %v2668 = vpack.c.b16 %v2364, %v2362
        %v2669 = vpack.c.b16 %v2365, %v2363
        %v2670 = vpack.c.b16 %v2368, %v2366
        %v2671 = vpack.c.b16 %v2369, %v2367
        %v2672 = vpack.c.b16 %v2372, %v2370
        %v2673 = vpack.c.b16 %v2373, %v2371
        %v2674 = vpack.c.b16 %v2376, %v2374
        %v2675 = vpack.c.b16 %v2377, %v2375
        %v2676 = vpack.c.b16 %v2380, %v2378
        %v2677 = vpack.c.b16 %v2381, %v2379
        %v2678 = vpack.c.b16 %v2384, %v2382
        %v2679 = vpack.c.b16 %v2385, %v2383
        %v2680 = vpack.c.b16 %v2388, %v2386
        %v2681 = vpack.c.b16 %v2389, %v2387
        %v2682 = vpack.c.b16 %v2392, %v2390
        %v2683 = vpack.c.b16 %v2393, %v2391
        %v2684 = vpack.c.b16 %v2396, %v2394
        %v2685 = vpack.c.b16 %v2397, %v2395
        %v2686 = vpack.c.b16 %v2400, %v2398
        %v2687 = vpack.c.b16 %v2401, %v2399
        %v2688 = vpack.c.b16 %v2404, %v2402
        %v2689 = vpack.c.b16 %v2405, %v2403
        %v2690 = vpack.c.b16 %v2408, %v2406
        %v2691 = vpack.c.b16 %v2409, %v2407
        %v2692 = vpack.c.b16 %v2412, %v2410
        %v2693 = vpack.c.b16 %v2413, %v2411
        %v2694 = vpack.c.b16 %v2416, %v2414
        %v2695 = vpack.c.b16 %v2417, %v2415
        %v2696 = vpack.c.b16 %v2420, %v2418
        %v2697 = vpack.c.b16 %v2421, %v2419
        %v2698 = vpack.c.b16 %v2424, %v2422
        %v2699 = vpack.c.b16 %v2425, %v2423
        %v2700 = vpack.c.b16 %v2428, %v2426
        %v2701 = vpack.c.b16 %v2429, %v2427
        %v2702 = vpack.c.b16 %v2432, %v2430
        %v2703 = vpack.c.b16 %v2433, %v2431
        %v2704 = vpack.c.b16 %v2436, %v2434
        %v2705 = vpack.c.b16 %v2437, %v2435
        %v2706 = vpack.c.b16 %v2440, %v2438
        %v2707 = vpack.c.b16 %v2441, %v2439
        %v2708 = vpack.c.b16 %v2444, %v2442
        %v2709 = vpack.c.b16 %v2445, %v2443
        %v2710 = vpack.c.b16 %v2448, %v2446
        %v2711 = vpack.c.b16 %v2449, %v2447
        %v2712 = vpack.c.b16 %v2452, %v2450
        %v2713 = vpack.c.b16 %v2453, %v2451
        %v2714 = vpack.c.b16 %v2456, %v2454
        %v2715 = vpack.c.b16 %v2457, %v2455
        %v2716 = vpack.c.b16 %v2460, %v2458
        %v2717 = vpack.c.b16 %v2461, %v2459
        %2974 = vmatprep.subr.bf16.mxu0 %v2477
        %2975 = vmatpush1.bf16.msra.mxu0 %v2476
        %2976 = vmatprep.subr.bf16.mxu0 %v2475
        %2977 = vmatpush1.bf16.msra.mxu0 %v2474
        %2978 = vmatprep.subr.bf16.mxu0 %v2473
        %2979 = vmatpush1.bf16.msra.mxu0 %v2472
        %2980 = vmatprep.subr.bf16.mxu0 %v2471
        %2981 = vmatpush1.bf16.msra.mxu0 %v2470
        %2982 = vmatprep.subr.bf16.mxu0 %v2469
        %2983 = vmatpush1.bf16.msra.mxu0 %v2468
        %2984 = vmatprep.subr.bf16.mxu0 %v2467
        %2985 = vmatpush1.bf16.msra.mxu0 %v2466
        %2986 = vmatprep.subr.bf16.mxu0 %v2465
        %2987 = vmatpush1.bf16.msra.mxu0 %v2464
        %2988 = vmatprep.subr.bf16.mxu0 %v2463
        %2989 = vmatpush1.bf16.msra.mxu0 %v2462
        %2990 = vmatprep.subr.bf16.mxu0 %v2493
        %2991 = vmatpush2.bf16.msra.mxu0 %v2492
        %2992 = vmatprep.subr.bf16.mxu0 %v2491
        %2993 = vmatpush2.bf16.msra.mxu0 %v2490
        %2994 = vmatprep.subr.bf16.mxu0 %v2489
        %2995 = vmatpush2.bf16.msra.mxu0 %v2488
        %2996 = vmatprep.subr.bf16.mxu0 %v2487
        %2997 = vmatpush2.bf16.msra.mxu0 %v2486
        %2998 = vmatprep.subr.bf16.mxu0 %v2485
        %2999 = vmatpush2.bf16.msra.mxu0 %v2484
        %3000 = vmatprep.subr.bf16.mxu0 %v2483
        %3001 = vmatpush2.bf16.msra.mxu0 %v2482
        %3002 = vmatprep.subr.bf16.mxu0 %v2481
        %3003 = vmatpush2.bf16.msra.mxu0 %v2480
        %3004 = vmatprep.subr.bf16.mxu0 %v2479
        %3005 = vmatpush2.bf16.msra.mxu0 %v2478
        %3006 = vmatprep.mubr.bf16.mxu0 %v1617
        %3007 = vmatmul.mubr.bf16.gmra.mxu0 %v1603
        %v3008 = vpop.f32.mrf.mxu0
        %v3009 = vadd.f32 0.0, %v3008
        %v3010 = vpop.f32.mrf.mxu0
        %v3011 = vadd.f32 0.0, %v3010
        %v3012 = vpop.f32.mrf.mxu0
        %v3013 = vpop.f32.mrf.mxu0
        %3014 = vdwg.mxu0
        %3015 = vmatprep.subr.bf16.mxu0 %v2509
        %3016 = vmatpush1.bf16.msra.mxu0 %v2508
        %3017 = vmatprep.subr.bf16.mxu0 %v2507
        %3018 = vmatpush1.bf16.msra.mxu0 %v2506
        %3019 = vmatprep.subr.bf16.mxu0 %v2505
        %3020 = vmatpush1.bf16.msra.mxu0 %v2504
        %3021 = vmatprep.subr.bf16.mxu0 %v2503
        %3022 = vmatpush1.bf16.msra.mxu0 %v2502
        %3023 = vmatprep.subr.bf16.mxu0 %v2501
        %3024 = vmatpush1.bf16.msra.mxu0 %v2500
        %3025 = vmatprep.subr.bf16.mxu0 %v2499
        %3026 = vmatpush1.bf16.msra.mxu0 %v2498
        %3027 = vmatprep.subr.bf16.mxu0 %v2497
        %3028 = vmatpush1.bf16.msra.mxu0 %v2496
        %3029 = vmatprep.subr.bf16.mxu0 %v2495
        %3030 = vmatpush1.bf16.msra.mxu0 %v2494
        %3031 = vmatprep.subr.bf16.mxu0 %v2525
        %3032 = vmatpush2.bf16.msra.mxu0 %v2524
        %3033 = vmatprep.subr.bf16.mxu0 %v2523
        %3034 = vmatpush2.bf16.msra.mxu0 %v2522
        %3035 = vmatprep.subr.bf16.mxu0 %v2521
        %3036 = vmatpush2.bf16.msra.mxu0 %v2520
        %3037 = vmatprep.subr.bf16.mxu0 %v2519
        %3038 = vmatpush2.bf16.msra.mxu0 %v2518
        %3039 = vmatprep.subr.bf16.mxu0 %v2517
        %3040 = vmatpush2.bf16.msra.mxu0 %v2516
        %3041 = vmatprep.subr.bf16.mxu0 %v2515
        %3042 = vmatpush2.bf16.msra.mxu0 %v2514
        %3043 = vmatprep.subr.bf16.mxu0 %v2513
        %3044 = vmatpush2.bf16.msra.mxu0 %v2512
        %3045 = vmatprep.subr.bf16.mxu0 %v2511
        %3046 = vmatpush2.bf16.msra.mxu0 %v2510
        %3047 = vmatprep.mubr.bf16.mxu0 %v1627
        %3048 = vmatmul.mubr.bf16.gmra.mxu0 %v1625
        %v3049 = vpop.f32.mrf.mxu0
        %v3050 = vadd.f32 %v3009, %v3049
        %v3051 = vpop.f32.mrf.mxu0
        %v3052 = vadd.f32 %v3011, %v3051
        %v3053 = vpop.f32.mrf.mxu0
        %v3054 = vpop.f32.mrf.mxu0
        %3055 = vdwg.mxu0
        %3056 = vmatprep.subr.bf16.mxu0 %v2541
        %3057 = vmatpush1.bf16.msra.mxu0 %v2540
        %3058 = vmatprep.subr.bf16.mxu0 %v2539
        %3059 = vmatpush1.bf16.msra.mxu0 %v2538
        %3060 = vmatprep.subr.bf16.mxu0 %v2537
        %3061 = vmatpush1.bf16.msra.mxu0 %v2536
        %3062 = vmatprep.subr.bf16.mxu0 %v2535
        %3063 = vmatpush1.bf16.msra.mxu0 %v2534
        %3064 = vmatprep.subr.bf16.mxu0 %v2533
        %3065 = vmatpush1.bf16.msra.mxu0 %v2532
        %3066 = vmatprep.subr.bf16.mxu0 %v2531
        %3067 = vmatpush1.bf16.msra.mxu0 %v2530
        %3068 = vmatprep.subr.bf16.mxu0 %v2529
        %3069 = vmatpush1.bf16.msra.mxu0 %v2528
        %3070 = vmatprep.subr.bf16.mxu0 %v2527
        %3071 = vmatpush1.bf16.msra.mxu0 %v2526
        %3072 = vmatprep.subr.bf16.mxu0 %v2557
        %3073 = vmatpush2.bf16.msra.mxu0 %v2556
        %3074 = vmatprep.subr.bf16.mxu0 %v2555
        %3075 = vmatpush2.bf16.msra.mxu0 %v2554
        %3076 = vmatprep.subr.bf16.mxu0 %v2553
        %3077 = vmatpush2.bf16.msra.mxu0 %v2552
        %3078 = vmatprep.subr.bf16.mxu0 %v2551
        %3079 = vmatpush2.bf16.msra.mxu0 %v2550
        %3080 = vmatprep.subr.bf16.mxu0 %v2549
        %3081 = vmatpush2.bf16.msra.mxu0 %v2548
        %3082 = vmatprep.subr.bf16.mxu0 %v2547
        %3083 = vmatpush2.bf16.msra.mxu0 %v2546
        %3084 = vmatprep.subr.bf16.mxu0 %v2545
        %3085 = vmatpush2.bf16.msra.mxu0 %v2544
        %3086 = vmatprep.subr.bf16.mxu0 %v2543
        %3087 = vmatpush2.bf16.msra.mxu0 %v2542
        %3088 = vmatprep.mubr.bf16.mxu0 %v1624
        %3089 = vmatmul.mubr.bf16.gmra.mxu0 %v1610
        %v3090 = vpop.f32.mrf.mxu0
        %v3091 = vadd.f32 %v3050, %v3090
        %v3092 = vpop.f32.mrf.mxu0
        %v3093 = vadd.f32 %v3052, %v3092
        %v3094 = vpop.f32.mrf.mxu0
        %v3095 = vpop.f32.mrf.mxu0
        %3096 = vdwg.mxu0
        %3097 = vmatprep.subr.bf16.mxu0 %v2573
        %3098 = vmatpush1.bf16.msra.mxu0 %v2572
        %3099 = vmatprep.subr.bf16.mxu0 %v2571
        %3100 = vmatpush1.bf16.msra.mxu0 %v2570
        %3101 = vmatprep.subr.bf16.mxu0 %v2569
        %3102 = vmatpush1.bf16.msra.mxu0 %v2568
        %3103 = vmatprep.subr.bf16.mxu0 %v2567
        %3104 = vmatpush1.bf16.msra.mxu0 %v2566
        %3105 = vmatprep.subr.bf16.mxu0 %v2565
        %3106 = vmatpush1.bf16.msra.mxu0 %v2564
        %3107 = vmatprep.subr.bf16.mxu0 %v2563
        %3108 = vmatpush1.bf16.msra.mxu0 %v2562
        %3109 = vmatprep.subr.bf16.mxu0 %v2561
        %3110 = vmatpush1.bf16.msra.mxu0 %v2560
        %3111 = vmatprep.subr.bf16.mxu0 %v2559
        %3112 = vmatpush1.bf16.msra.mxu0 %v2558
        %3113 = vmatprep.subr.bf16.mxu0 %v2589
        %3114 = vmatpush2.bf16.msra.mxu0 %v2588
        %3115 = vmatprep.subr.bf16.mxu0 %v2587
        %3116 = vmatpush2.bf16.msra.mxu0 %v2586
        %3117 = vmatprep.subr.bf16.mxu0 %v2585
        %3118 = vmatpush2.bf16.msra.mxu0 %v2584
        %3119 = vmatprep.subr.bf16.mxu0 %v2583
        %3120 = vmatpush2.bf16.msra.mxu0 %v2582
        %3121 = vmatprep.subr.bf16.mxu0 %v2581
        %3122 = vmatpush2.bf16.msra.mxu0 %v2580
        %3123 = vmatprep.subr.bf16.mxu0 %v2579
        %3124 = vmatpush2.bf16.msra.mxu0 %v2578
        %3125 = vmatprep.subr.bf16.mxu0 %v2577
        %3126 = vmatpush2.bf16.msra.mxu0 %v2576
        %3127 = vmatprep.subr.bf16.mxu0 %v2575
        %3128 = vmatpush2.bf16.msra.mxu0 %v2574
        %3129 = vmatprep.mubr.bf16.mxu0 %v1628
        %3130 = vmatmul.mubr.bf16.gmra.mxu0 %v1626
        %v3131 = vpop.f32.mrf.mxu0
        %v3132 = vadd.f32 %v3091, %v3131
        %v3133 = vpop.f32.mrf.mxu0
        %v3134 = vadd.f32 %v3093, %v3133
        %v3135 = vpop.f32.mrf.mxu0
        %v3136 = vpop.f32.mrf.mxu0
        %3137 = vdwg.mxu0
        %3138 = vmatprep.subr.bf16.mxu0 %v2605
        %3139 = vmatpush1.bf16.msra.mxu0 %v2604
        %3140 = vmatprep.subr.bf16.mxu0 %v2603
        %3141 = vmatpush1.bf16.msra.mxu0 %v2602
        %3142 = vmatprep.subr.bf16.mxu0 %v2601
        %3143 = vmatpush1.bf16.msra.mxu0 %v2600
        %3144 = vmatprep.subr.bf16.mxu0 %v2599
        %3145 = vmatpush1.bf16.msra.mxu0 %v2598
        %3146 = vmatprep.subr.bf16.mxu0 %v2597
        %3147 = vmatpush1.bf16.msra.mxu0 %v2596
        %3148 = vmatprep.subr.bf16.mxu0 %v2595
        %3149 = vmatpush1.bf16.msra.mxu0 %v2594
        %3150 = vmatprep.subr.bf16.mxu0 %v2593
        %3151 = vmatpush1.bf16.msra.mxu0 %v2592
        %3152 = vmatprep.subr.bf16.mxu0 %v2591
        %3153 = vmatpush1.bf16.msra.mxu0 %v2590
        %3154 = vmatprep.subr.bf16.mxu0 %v2621
        %3155 = vmatpush2.bf16.msra.mxu0 %v2620
        %3156 = vmatprep.subr.bf16.mxu0 %v2619
        %3157 = vmatpush2.bf16.msra.mxu0 %v2618
        %3158 = vmatprep.subr.bf16.mxu0 %v2617
        %3159 = vmatpush2.bf16.msra.mxu0 %v2616
        %3160 = vmatprep.subr.bf16.mxu0 %v2615
        %3161 = vmatpush2.bf16.msra.mxu0 %v2614
        %3162 = vmatprep.subr.bf16.mxu0 %v2613
        %3163 = vmatpush2.bf16.msra.mxu0 %v2612
        %3164 = vmatprep.subr.bf16.mxu0 %v2611
        %3165 = vmatpush2.bf16.msra.mxu0 %v2610
        %3166 = vmatprep.subr.bf16.mxu0 %v2609
        %3167 = vmatpush2.bf16.msra.mxu0 %v2608
        %3168 = vmatprep.subr.bf16.mxu0 %v2607
        %3169 = vmatpush2.bf16.msra.mxu0 %v2606
        %3170 = vmatprep.mubr.bf16.mxu0 %v1666
        %3171 = vmatmul.mubr.bf16.gmra.mxu0 %v1652
        %v3172 = vpop.f32.mrf.mxu0
        %v3173 = vadd.f32 %v3132, %v3172
        %v3174 = vpop.f32.mrf.mxu0
        %v3175 = vadd.f32 %v3134, %v3174
        %v3176 = vpop.f32.mrf.mxu0
        %v3177 = vpop.f32.mrf.mxu0
        %3178 = vdwg.mxu0
        %3179 = vmatprep.subr.bf16.mxu0 %v2637
        %3180 = vmatpush1.bf16.msra.mxu0 %v2636
        %3181 = vmatprep.subr.bf16.mxu0 %v2635
        %3182 = vmatpush1.bf16.msra.mxu0 %v2634
        %3183 = vmatprep.subr.bf16.mxu0 %v2633
        %3184 = vmatpush1.bf16.msra.mxu0 %v2632
        %3185 = vmatprep.subr.bf16.mxu0 %v2631
        %3186 = vmatpush1.bf16.msra.mxu0 %v2630
        %3187 = vmatprep.subr.bf16.mxu0 %v2629
        %3188 = vmatpush1.bf16.msra.mxu0 %v2628
        %3189 = vmatprep.subr.bf16.mxu0 %v2627
        %3190 = vmatpush1.bf16.msra.mxu0 %v2626
        %3191 = vmatprep.subr.bf16.mxu0 %v2625
        %3192 = vmatpush1.bf16.msra.mxu0 %v2624
        %3193 = vmatprep.subr.bf16.mxu0 %v2623
        %3194 = vmatpush1.bf16.msra.mxu0 %v2622
        %3195 = vmatprep.subr.bf16.mxu0 %v2653
        %3196 = vmatpush2.bf16.msra.mxu0 %v2652
        %3197 = vmatprep.subr.bf16.mxu0 %v2651
        %3198 = vmatpush2.bf16.msra.mxu0 %v2650
        %3199 = vmatprep.subr.bf16.mxu0 %v2649
        %3200 = vmatpush2.bf16.msra.mxu0 %v2648
        %3201 = vmatprep.subr.bf16.mxu0 %v2647
        %3202 = vmatpush2.bf16.msra.mxu0 %v2646
        %3203 = vmatprep.subr.bf16.mxu0 %v2645
        %3204 = vmatpush2.bf16.msra.mxu0 %v2644
        %3205 = vmatprep.subr.bf16.mxu0 %v2643
        %3206 = vmatpush2.bf16.msra.mxu0 %v2642
        %3207 = vmatprep.subr.bf16.mxu0 %v2641
        %3208 = vmatpush2.bf16.msra.mxu0 %v2640
        %3209 = vmatprep.subr.bf16.mxu0 %v2639
        %3210 = vmatpush2.bf16.msra.mxu0 %v2638
        %3211 = vmatprep.mubr.bf16.mxu0 %v1676
        %3212 = vmatmul.mubr.bf16.gmra.mxu0 %v1674
        %v3213 = vpop.f32.mrf.mxu0
        %v3214 = vadd.f32 %v3173, %v3213
        %v3215 = vpop.f32.mrf.mxu0
        %v3216 = vadd.f32 %v3175, %v3215
        %v3217 = vpop.f32.mrf.mxu0
        %v3218 = vpop.f32.mrf.mxu0
        %3219 = vdwg.mxu0
        %3220 = vmatprep.subr.bf16.mxu0 %v2669
        %3221 = vmatpush1.bf16.msra.mxu0 %v2668
        %3222 = vmatprep.subr.bf16.mxu0 %v2667
        %3223 = vmatpush1.bf16.msra.mxu0 %v2666
        %3224 = vmatprep.subr.bf16.mxu0 %v2665
        %3225 = vmatpush1.bf16.msra.mxu0 %v2664
        %3226 = vmatprep.subr.bf16.mxu0 %v2663
        %3227 = vmatpush1.bf16.msra.mxu0 %v2662
        %3228 = vmatprep.subr.bf16.mxu0 %v2661
        %3229 = vmatpush1.bf16.msra.mxu0 %v2660
        %3230 = vmatprep.subr.bf16.mxu0 %v2659
        %3231 = vmatpush1.bf16.msra.mxu0 %v2658
        %3232 = vmatprep.subr.bf16.mxu0 %v2657
        %3233 = vmatpush1.bf16.msra.mxu0 %v2656
        %3234 = vmatprep.subr.bf16.mxu0 %v2655
        %3235 = vmatpush1.bf16.msra.mxu0 %v2654
        %3236 = vmatprep.subr.bf16.mxu0 %v2685
        %3237 = vmatpush2.bf16.msra.mxu0 %v2684
        %3238 = vmatprep.subr.bf16.mxu0 %v2683
        %3239 = vmatpush2.bf16.msra.mxu0 %v2682
        %3240 = vmatprep.subr.bf16.mxu0 %v2681
        %3241 = vmatpush2.bf16.msra.mxu0 %v2680
        %3242 = vmatprep.subr.bf16.mxu0 %v2679
        %3243 = vmatpush2.bf16.msra.mxu0 %v2678
        %3244 = vmatprep.subr.bf16.mxu0 %v2677
        %3245 = vmatpush2.bf16.msra.mxu0 %v2676
        %3246 = vmatprep.subr.bf16.mxu0 %v2675
        %3247 = vmatpush2.bf16.msra.mxu0 %v2674
        %3248 = vmatprep.subr.bf16.mxu0 %v2673
        %3249 = vmatpush2.bf16.msra.mxu0 %v2672
        %3250 = vmatprep.subr.bf16.mxu0 %v2671
        %3251 = vmatpush2.bf16.msra.mxu0 %v2670
        %3252 = vmatprep.mubr.bf16.mxu0 %v1673
        %3253 = vmatmul.mubr.bf16.gmra.mxu0 %v1659
        %v3254 = vpop.f32.mrf.mxu0
        %v3255 = vadd.f32 %v3214, %v3254
        %v3256 = vpop.f32.mrf.mxu0
        %v3257 = vadd.f32 %v3216, %v3256
        %v3258 = vpop.f32.mrf.mxu0
        %v3259 = vpop.f32.mrf.mxu0
        %3260 = vdwg.mxu0
        %3261 = vmatprep.subr.bf16.mxu0 %v2701
        %3262 = vmatpush1.bf16.msra.mxu0 %v2700
        %3263 = vmatprep.subr.bf16.mxu0 %v2699
        %3264 = vmatpush1.bf16.msra.mxu0 %v2698
        %3265 = vmatprep.subr.bf16.mxu0 %v2697
        %3266 = vmatpush1.bf16.msra.mxu0 %v2696
        %3267 = vmatprep.subr.bf16.mxu0 %v2695
        %3268 = vmatpush1.bf16.msra.mxu0 %v2694
        %3269 = vmatprep.subr.bf16.mxu0 %v2693
        %3270 = vmatpush1.bf16.msra.mxu0 %v2692
        %3271 = vmatprep.subr.bf16.mxu0 %v2691
        %3272 = vmatpush1.bf16.msra.mxu0 %v2690
        %3273 = vmatprep.subr.bf16.mxu0 %v2689
        %3274 = vmatpush1.bf16.msra.mxu0 %v2688
        %3275 = vmatprep.subr.bf16.mxu0 %v2687
        %3276 = vmatpush1.bf16.msra.mxu0 %v2686
        %3277 = vmatprep.subr.bf16.mxu0 %v2717
        %3278 = vmatpush2.bf16.msra.mxu0 %v2716
        %3279 = vmatprep.subr.bf16.mxu0 %v2715
        %3280 = vmatpush2.bf16.msra.mxu0 %v2714
        %3281 = vmatprep.subr.bf16.mxu0 %v2713
        %3282 = vmatpush2.bf16.msra.mxu0 %v2712
        %3283 = vmatprep.subr.bf16.mxu0 %v2711
        %3284 = vmatpush2.bf16.msra.mxu0 %v2710
        %3285 = vmatprep.subr.bf16.mxu0 %v2709
        %3286 = vmatpush2.bf16.msra.mxu0 %v2708
        %3287 = vmatprep.subr.bf16.mxu0 %v2707
        %3288 = vmatpush2.bf16.msra.mxu0 %v2706
        %3289 = vmatprep.subr.bf16.mxu0 %v2705
        %3290 = vmatpush2.bf16.msra.mxu0 %v2704
        %3291 = vmatprep.subr.bf16.mxu0 %v2703
        %3292 = vmatpush2.bf16.msra.mxu0 %v2702
        %3293 = vmatprep.mubr.bf16.mxu0 %v1677
        %3294 = vmatmul.mubr.bf16.gmra.mxu0 %v1675
        %v3295 = vpop.f32.mrf.mxu0
        %v3296 = vadd.f32 %v3255, %v3295
        %v3297 = vpop.f32.mrf.mxu0
        %v3298 = vadd.f32 %v3257, %v3297
        %v3299 = vpop.f32.mrf.mxu0
        %v3300 = vpop.f32.mrf.mxu0
        %3301 = vdwg.mxu0
        %v3304 = vcombine.low %v3296, %v3298
        %v3306 = vunpack.c.l.s4 1983009808
        %v3307 = vunpack.c.0.s8 %v3306
        %v3308 = vlaneseq
        %v3309 = vshrl.u32 %v3308, 7
        %v3310 = vsub.s32 %v3307, %v3309
        %v3311 = vrot.slane %v3304, %v3310
        %v3313 = vadd.f32 %v1319, %v3311
        %3314 = vst [vmem:[#allocation2] sm:$0xf] %v3313
        // Predicated region
        $region75: #{itm_model_forward.6} parent=65 // pred_check
          %p3315 = pneg %p1314
        $region76: #{itm_model_forward.6} parent=65 // pred_check_branch
          %3317 = sbr.rel (%p3315) target = $region78
        $region77: #{itm_model_forward.6} parent=65 // pred_region
          %v3318 = vld [vmem:[#allocation2] sm:$0xf]
          %v3319 = vld [vmem:[%s1303] sm:$0x3]
          %v3321 = vlaneseq
          %v3322 = vshrl.u32 %v3321, 7
          %v3323 = vsub.s32 0, %v3322
          %v3324 = vrot.slane %v3319, %v3323
          %v3325 = vlaneseq
          %v3326 = vshrl.u32 %v3325, 7
          %v3327 = vsub.s32 1, %v3326
          %v3328 = vrot.slane %v3319, %v3327
          %v3329 = vcombine.low %v3324, %v3328
          %v3331 = vunpack.c.l.s4 1983009808
          %v3332 = vunpack.c.0.s8 %v3331
          %v3333 = vlaneseq
          %v3334 = vshrl.u32 %v3333, 7
          %v3335 = vsub.s32 %v3332, %v3334
          %v3336 = vrot.slane %v3329, %v3335
          %v3338 = vadd.f32 %v3318, %v3336
          %v3339 = vmax.f32 %v3338, 0.0
          %v3342 = vunpack.c.l.s4 1983009808
          %v3343 = vunpack.c.0.s8 %v3342
          %v3344 = vlaneseq
          %v3345 = vshrl.u32 %v3344, 7
          %v3346 = vsub.s32 %v3343, %v3345
          %v3347 = vrot.slane %v3339, %v3346
          %v3348 = vcombine.high %v3347, %v3347
          %v3351 = vpack.c.bf16 %v3347, %v3347
          %v3352 = vpack.c.bf16 %v3348, %v3348
          %v3355 = vcombine.low %v3351, %v3352
          %v3357 = vunpack.c.l.s4 1966171168
          %v3358 = vunpack.c.0.s8 %v3357
          %v3359 = vlaneseq
          %v3360 = vshrl.u32 %v3359, 7
          %v3361 = vsub.s32 %v3358, %v3360
          %v3362 = vrot.slane %v3355, %v3361
          %v3364 = vunpack.c.l.s4 1966171168
          %v3365 = vunpack.c.0.s8 %v3364
          %v3366 = vlaneseq
          %v3367 = vshrl.u32 %v3366, 7
          %v3368 = vsub.s32 %v3365, %v3367
          %v3369 = vrot.slane %v3362, %v3368
          %3371 = vst [vmem:[%s1312] sm:$0x3] %v3369
        $region78: #{itm_model_forward.6} parent=65 // pred_fallthru
          _
        %s3372 = smul.u32 2, %s20
        %p3373 = scmp.lt.s32.totalorder %s19, 0
        %s3374 = scalar_select %p3373, %s19, 0
        %p3375 = scmp.lt.s32.totalorder %s3372, 3
        %s3376 = scalar_select %p3375, %s3372, 3
        %s3377 = smul.addr %s3374, 4
        %s3378 = sadd.s32 %s3376, %s3377
        %s3379 = scalar_lea.vmem %s3, %s3378
        // Predicated region
        $region79: #{itm_model_forward.6} parent=65 // pred_check
          %p3380 = pneg %p135
        $region80: #{itm_model_forward.6} parent=65 // pred_check_branch
          %3382 = sbr.rel (%p3380) target = $region82
        $region81: #{itm_model_forward.6} parent=65 // pred_region
          %s3383 = smul.u32 2, %s20
        $region82: #{itm_model_forward.6} parent=65 // pred_fallthru
          _
      $region66: #{itm_model_forward.6} parent=5 // pred_fallthru
        _
      %p3384 = scmp.le.s32.totalorder 2, %s9
      // Predicated region
      $region83: #{itm_model_forward.6} parent=5 // pred_check
        %p3385 = pneg %p3384
      $region84: #{itm_model_forward.6} parent=5 // pred_check_branch
        %3387 = sbr.rel (%p3385) target = $region86
      $region85: #{itm_model_forward.6} parent=5 // pred_region
        %s3388 = ssub.s32 %s9, 2
        // Predicated region
        $region87: #{itm_model_forward.6} parent=85 // pred_check
          %p3389 = pneg %p141
        $region88: #{itm_model_forward.6} parent=85 // pred_check_branch
          %3391 = sbr.rel (%p3389) target = $region90
        $region89: #{itm_model_forward.6} parent=85 // pred_region
          %s3392 = smul.u32 2, %s23
          %p3393 = scmp.lt.s32.totalorder %s22, 0
          %s3394 = scalar_select %p3393, %s22, 0
          %p3395 = scmp.lt.s32.totalorder %s3392, 3
          %s3396 = scalar_select %p3395, %s3392, 3
          %s3397 = smul.addr %s3394, 4
          %s3398 = sadd.s32 %s3396, %s3397
          %s3399 = scalar_lea.vmem %s3, %s3398
        $region90: #{itm_model_forward.6} parent=85 // pred_fallthru
          _
      $region86: #{itm_model_forward.6} parent=5 // pred_fallthru
        _
    $region6: #{itm_model_forward.6} parent=1 // loop_footer
      %s13 = sadd.s32 1, %s9
    $region7: #{itm_model_forward.6} parent=1 // loop_footer_branch
      %8 = sbr.rel target = $region3
    $region8: #{itm_model_forward.6} parent=1 // loop_exit
      _

// kernel: itm_model_forward.4
$region0: #{itm_model_forward.4}
  #allocation0 [shape = 'u32[]', space=smem, size = 0x4, offset = 0x4, fixed_abs, tag = 'smem constant byte address 0x4 - core index']
  #allocation1 [shape = 'u32[144,128]{1,0:T(1,128)}', space=vmem, size = 0x12000, scoped, tag = 'internal scratch']
  #allocation2 [shape = 'f32[256,64]{1,0:T(8,128)}', space=vmem, size = 0x20000, scoped, tag = 'scratch operand']
  %s0 = inlined_call_operand.vmem [shape: bf16[2,18,16,9], index: 0, kind: input, shape index: {}]
  %s1 = inlined_call_operand.vmem [shape: bf16[3,9,64], index: 1, kind: input, shape index: {}]
  %s2 = inlined_call_operand.hbm [shape: f32[1,64], index: 2, kind: input, shape index: {}]
  %s3 = inlined_call_operand.vmem [shape: bf16[2,8,512], index: 3, kind: output, shape index: {}]
  %s4 = sld [smem:[#allocation0]]
  $region49: #{itm_model_forward.4} parent=0
    _
  %s6 = ssub.s32 1, %s4
  %s7 = scalar_select 0, %s6, %s4
  $region1: #{itm_model_forward.4} parent=0
    #allocation3 [shape = 'u8[512]{0}', space=vmem, size = 0x400, scoped, tag = 'input window, operand 2, single buffered']
    #allocation4 [shape = 's32[2]{0}', space=sflag, size = 0x8, scoped, tag = 'scoped memory for itm_model_forward.4']
    %8 = vsyncpa [#allocation4], 0
    loop: start=0, step=1, limit=4
    $region2: #{itm_model_forward.4} parent=1 // loop_pre_header
      _
    $region3: #{itm_model_forward.4} parent=1 // loop_header
      %s10 = sphi 0, %s14
      %p11 = scmp.ge.s32.totalorder %s10, 4
      %s17 = sphi 0, %s29
      %s18 = sphi 0, %s25
      %s19 = sphi 0, %s17
      %s20 = sphi 0, %s18
      %s21 = sphi 0, %s19
      %s22 = sphi 0, %s20
      %s34 = sphi 0, %s36
      %s37 = sphi 0, %s34
      %s38 = sphi 0, %s37
      %s54 = sphi 0, %s38
      %s58 = sphi 0, %s58
      %s60 = sphi 0, %s58
      %s61 = sphi 0, %s60
      %s75 = sphi 0, %s61
      %s79 = sphi 0, %s79
      %s81 = sphi 0, %s79
      %s82 = sphi 0, %s81
      %s96 = sphi 0, %s82
      %s104 = sphi 0, %s106
      %s107 = sphi 0, %s104
      %s108 = sphi 0, %s107
      %s124 = sphi 0, %s108
    $region4: #{itm_model_forward.4} parent=1 // loop_header_branch
      %13 = sbr.rel (%p11) target = $region8
    $region5: #{itm_model_forward.4} parent=1 // loop_body
      %s15 = ssub.s32 %s10, 1
      %s16 = ssub.s32 %s10, 2
      %s23 = sadd.s32 1, %s18
      %p24 = scmp.ge.s32.totalorder %s23, 1
      %s25 = scalar_select %p24, 0, %s23
      %s26 = sadd.s32 1, %s17
      %s27 = scalar_select %p24, %s26, %s17
      %p28 = scmp.ge.s32.totalorder %s27, 2
      %s29 = scalar_select %p28, 0, %s27
      %s30 = sadd.s32 %s17, %s18
      %s31 = sadd.s32 %s29, %s25
      %s32 = ssub.s32 %s30, %s31
      %p33 = scmp.eq.s32.totalorder %s32, 0
      %s35 = sadd.s32 %s34, 1
      %s36 = scalar_select %p33, %s34, %s35
      %p39 = pneg %p33
      %p40 = scmp.eq.s32.totalorder %s10, 1
      %p41 = por %p39, %p40
      %p42 = scmp.ne.s32.totalorder %s34, %s37
      %p43 = scmp.eq.s32.totalorder %s10, 0
      %p44 = por %p42, %p43
      %p45 = scmp.ne.s32.totalorder %s34, %s37
      %p46 = scmp.eq.s32.totalorder %s15, 1
      %p47 = por %p45, %p46
      %p48 = scmp.ne.s32.totalorder %s37, %s38
      %p49 = scmp.eq.s32.totalorder %s15, 0
      %p50 = por %p48, %p49
      %p51 = scmp.ne.s32.totalorder %s37, %s38
      %p52 = scmp.eq.s32.totalorder %s16, 1
      %p53 = por %p51, %p52
      %p55 = scmp.ne.s32.totalorder %s38, %s54
      %p56 = scmp.eq.s32.totalorder %s16, 0
      %p57 = por %p55, %p56
      %s59 = sadd.s32 %s58, 1
      %p62 = scmp.eq.s32.totalorder %s10, 1
      %p63 = scmp.ne.s32.totalorder %s58, %s60
      %p64 = scmp.eq.s32.totalorder %s10, 0
      %p65 = por %p63, %p64
      %p66 = scmp.ne.s32.totalorder %s58, %s60
      %p67 = scmp.eq.s32.totalorder %s15, 1
      %p68 = por %p66, %p67
      %p69 = scmp.ne.s32.totalorder %s60, %s61
      %p70 = scmp.eq.s32.totalorder %s15, 0
      %p71 = por %p69, %p70
      %p72 = scmp.ne.s32.totalorder %s60, %s61
      %p73 = scmp.eq.s32.totalorder %s16, 1
      %p74 = por %p72, %p73
      %p76 = scmp.ne.s32.totalorder %s61, %s75
      %p77 = scmp.eq.s32.totalorder %s16, 0
      %p78 = por %p76, %p77
      %s80 = sadd.s32 %s79, 1
      %p83 = scmp.eq.s32.totalorder %s10, 1
      %p84 = scmp.ne.s32.totalorder %s79, %s81
      %p85 = scmp.eq.s32.totalorder %s10, 0
      %p86 = por %p84, %p85
      %p87 = scmp.ne.s32.totalorder %s79, %s81
      %p88 = scmp.eq.s32.totalorder %s15, 1
      %p89 = por %p87, %p88
      %p90 = scmp.ne.s32.totalorder %s81, %s82
      %p91 = scmp.eq.s32.totalorder %s15, 0
      %p92 = por %p90, %p91
      %p93 = scmp.ne.s32.totalorder %s81, %s82
      %p94 = scmp.eq.s32.totalorder %s16, 1
      %p95 = por %p93, %p94
      %p97 = scmp.ne.s32.totalorder %s82, %s96
      %p98 = scmp.eq.s32.totalorder %s16, 0
      %p99 = por %p97, %p98
      %s100 = ssub.s32 %s17, %s29
      %s101 = ssub.s32 %s18, %s25
      %s102 = sor.u32 %s100, %s101
      %p103 = scmp.eq.s32.totalorder %s102, 0
      %s105 = sadd.s32 %s104, 1
      %s106 = scalar_select %p103, %s104, %s105
      %p109 = pneg %p103
      %p110 = scmp.eq.s32.totalorder %s10, 1
      %p111 = por %p109, %p110
      %p112 = scmp.ne.s32.totalorder %s104, %s107
      %p113 = scmp.eq.s32.totalorder %s10, 0
      %p114 = por %p112, %p113
      %p115 = scmp.ne.s32.totalorder %s104, %s107
      %p116 = scmp.eq.s32.totalorder %s15, 1
      %p117 = por %p115, %p116
      %p118 = scmp.ne.s32.totalorder %s107, %s108
      %p119 = scmp.eq.s32.totalorder %s15, 0
      %p120 = por %p118, %p119
      %p121 = scmp.ne.s32.totalorder %s107, %s108
      %p122 = scmp.eq.s32.totalorder %s16, 1
      %p123 = por %p121, %p122
      %p125 = scmp.ne.s32.totalorder %s108, %s124
      %p126 = scmp.eq.s32.totalorder %s16, 0
      %p127 = por %p125, %p126
      %p128 = scmp.le.s32.totalorder 1, %s10
      %p129 = scmp.lt.s32.totalorder %s10, 3
      %p130 = pnand %p128, %p129
      %p131 = pneg %p130
      // Predicated region
      $region9: #{itm_model_forward.4} parent=5 // pred_check
        _
      $region10: #{itm_model_forward.4} parent=5 // pred_check_branch
        %133 = sbr.rel (%p130) target = $region12
      $region11: #{itm_model_forward.4} parent=5 // pred_region
        %s134 = ssub.s32 %s10, 1
        // Predicated region
        $region13: #{itm_model_forward.4} parent=11 // pred_check
          %p135 = pneg %p71
        $region14: #{itm_model_forward.4} parent=11 // pred_check_branch
          %137 = sbr.rel (%p135) target = $region16
        $region15: #{itm_model_forward.4} parent=11 // pred_region
          _
        $region16: #{itm_model_forward.4} parent=11 // pred_fallthru
          _
        // Predicated region
        $region17: #{itm_model_forward.4} parent=11 // pred_check
          %p138 = pneg %p92
        $region18: #{itm_model_forward.4} parent=11 // pred_check_branch
          %140 = sbr.rel (%p138) target = $region20
        $region19: #{itm_model_forward.4} parent=11 // pred_region
          %s142 = ssub.s32 16, 16
          %143 = vsyncadd [#allocation4], %s142
          %s145 = sshll.u32 [#allocation3], 4
          %s146 = int_to_ptr.vmem [resolvable:$true] %s145
          %148 = dma.hbm_to_vmem [thread:$0]  %s2, 16, %s146, [#allocation4]
        $region20: #{itm_model_forward.4} parent=11 // pred_fallthru
          _
      $region12: #{itm_model_forward.4} parent=5 // pred_fallthru
        _
      %p149 = scmp.lt.s32.totalorder %s10, 2
      // Predicated region
      $region21: #{itm_model_forward.4} parent=5 // pred_check
        %p150 = pneg %p149
      $region22: #{itm_model_forward.4} parent=5 // pred_check_branch
        %152 = sbr.rel (%p150) target = $region24
      $region23: #{itm_model_forward.4} parent=5 // pred_region
        // Predicated region
        $region25: #{itm_model_forward.4} parent=23 // pred_check
          %p153 = pneg %p44
        $region26: #{itm_model_forward.4} parent=23 // pred_check_branch
          %155 = sbr.rel (%p153) target = $region28
        $region27: #{itm_model_forward.4} parent=23 // pred_region
          %s156 = sadd.s32 %s17, %s18
          %p157 = scmp.lt.s32.totalorder %s156, 1
          %s158 = scalar_select %p157, %s156, 1
          %s159 = smul.addr %s158, 36
          %s160 = smul.addr %s159, 4
          %s161 = scalar_lea.vmem %s0, %s160
          %s162 = sadd.s32 %s17, %s18
        $region28: #{itm_model_forward.4} parent=23 // pred_fallthru
          _
      $region24: #{itm_model_forward.4} parent=5 // pred_fallthru
        _
      %p163 = scmp.le.s32.totalorder 1, %s10
      %p164 = scmp.lt.s32.totalorder %s10, 3
      %p165 = pnand %p163, %p164
      %p166 = pneg %p165
      // Predicated region
      $region29: #{itm_model_forward.4} parent=5 // pred_check
        _
      $region30: #{itm_model_forward.4} parent=5 // pred_check_branch
        %168 = sbr.rel (%p165) target = $region32
      $region31: #{itm_model_forward.4} parent=5 // pred_region
        %s169 = ssub.s32 %s10, 1
        // Predicated region
        $region33: #{itm_model_forward.4} parent=31 // pred_check
          %p170 = pneg %p92
        $region34: #{itm_model_forward.4} parent=31 // pred_check_branch
          %172 = sbr.rel (%p170) target = $region36
        $region35: #{itm_model_forward.4} parent=31 // pred_region
          %173 = dma.done [#allocation4], 16
        $region36: #{itm_model_forward.4} parent=31 // pred_fallthru
          _
        %s174 = sadd.s32 %s19, %s20
        %p175 = scmp.lt.s32.totalorder %s174, 1
        %s176 = scalar_select %p175, %s174, 1
        %s177 = smul.addr %s176, 36
        %s178 = smul.addr %s177, 4
        %s179 = scalar_lea.vmem %s0, %s178
        %p180 = pneg %p50
        %p181 = pneg %p47
        %p182 = pneg %p71
        %p183 = pneg %p68
        %p184 = pneg %p92
        %p185 = pneg %p89
        %p186 = pneg %p120
        %p187 = pneg %p117
        %p188 = scmp.lt.s32.totalorder %s19, 1
        %s189 = scalar_select %p188, %s19, 1
        %p190 = scmp.lt.s32.totalorder %s20, 0
        %s191 = scalar_select %p190, %s20, 0
        %s192 = smul.addr %s191, 4
        %s193 = smul.addr %s189, 4
        %s194 = sadd.s32 %s192, %s193
        %s195 = smul.addr %s194, 4
        %s196 = scalar_lea.vmem %s3, %s195
        %s197 = sadd.s32 %s19, %s20
        %p198 = scmp.lt.s32.totalorder %s197, 1
        %s199 = scalar_select %p198, %s197, 1
        %s200 = smul.addr %s199, 36
        %s201 = smul.addr %s200, 4
        %s202 = scalar_lea.vmem %s0, %s201
        %s203 = sadd.s32 %s19, %s20
        %p204 = scmp.lt.s32.totalorder %s19, 1
        %s205 = scalar_select %p204, %s19, 1
        %p206 = scmp.lt.s32.totalorder %s20, 0
        %s207 = scalar_select %p206, %s20, 0
        %s208 = smul.addr %s207, 4
        %s209 = smul.addr %s205, 4
        %s210 = sadd.s32 %s208, %s209
        %s211 = smul.addr %s210, 4
        %s212 = scalar_lea.vmem %s3, %s211
        %v214 = vld [vmem:[%s202] sm:$0xf]
        %v215 = vld [vmem:[%s202 + $0x4] sm:$0xf]
        %v216 = vld [vmem:[%s202 + $0x8] sm:$0xf]
        %v217 = vld [vmem:[%s202 + $0xc] sm:$0xf]
        %v218 = vld [vmem:[%s202 + $0x10] sm:$0xf]
        %v219 = vld [vmem:[%s202 + $0x14] sm:$0xf]
        %v220 = vld [vmem:[%s202 + $0x18] sm:$0xf]
        %v221 = vld [vmem:[%s202 + $0x1c] sm:$0xf]
        %v222 = vld [vmem:[%s202 + $0x20] sm:$0xf]
        %v223 = vld [vmem:[%s202 + $0x24] sm:$0xf]
        %v224 = vld [vmem:[%s202 + $0x28] sm:$0xf]
        %v225 = vld [vmem:[%s202 + $0x2c] sm:$0xf]
        %v226 = vld [vmem:[%s202 + $0x30] sm:$0xf]
        %v227 = vld [vmem:[%s202 + $0x34] sm:$0xf]
        %v228 = vld [vmem:[%s202 + $0x38] sm:$0xf]
        %v229 = vld [vmem:[%s202 + $0x3c] sm:$0xf]
        %v230 = vld [vmem:[%s202 + $0x40] sm:$0xf]
        %v231 = vld [vmem:[%s202 + $0x44] sm:$0xf]
        %v232 = vld [vmem:[%s202 + $0x48] sm:$0xf]
        %v233 = vld [vmem:[%s202 + $0x4c] sm:$0xf]
        %v234 = vld [vmem:[%s202 + $0x50] sm:$0xf]
        %v235 = vld [vmem:[%s202 + $0x54] sm:$0xf]
        %v236 = vld [vmem:[%s202 + $0x58] sm:$0xf]
        %v237 = vld [vmem:[%s202 + $0x5c] sm:$0xf]
        %v238 = vld [vmem:[%s202 + $0x60] sm:$0xf]
        %v239 = vld [vmem:[%s202 + $0x64] sm:$0xf]
        %v240 = vld [vmem:[%s202 + $0x68] sm:$0xf]
        %v241 = vld [vmem:[%s202 + $0x6c] sm:$0xf]
        %v242 = vld [vmem:[%s202 + $0x70] sm:$0xf]
        %v243 = vld [vmem:[%s202 + $0x74] sm:$0xf]
        %v244 = vld [vmem:[%s202 + $0x78] sm:$0xf]
        %v245 = vld [vmem:[%s202 + $0x7c] sm:$0xf]
        %v246 = vld [vmem:[%s202 + $0x80] sm:$0xf]
        %v247 = vld [vmem:[%s202 + $0x84] sm:$0xf]
        %v248 = vld [vmem:[%s202 + $0x88] sm:$0xf]
        %v249 = vld [vmem:[%s202 + $0x8c] sm:$0xf]
        %v250 = vld [vmem:[%s1] sm:$0xf]
        %v251 = vld [vmem:[%s1 + $0x4] sm:$0x1]
        %v284 = vunpack.c.l.b16 %v214
        %v285 = vunpack.c.l.b16 %v215
        %v286 = vunpack.c.l.b16 %v216
        %v287 = vunpack.c.l.b16 %v217
        %v288 = vunpack.c.l.b16 %v218
        %v289 = vunpack.c.l.b16 %v219
        %v290 = vunpack.c.l.b16 %v220
        %v291 = vunpack.c.l.b16 %v221
        %v292 = vunpack.c.l.b16 %v222
        %v293 = vunpack.c.l.b16 %v223
        %v294 = vunpack.c.l.b16 %v224
        %v295 = vunpack.c.l.b16 %v225
        %v296 = vunpack.c.l.b16 %v226
        %v297 = vunpack.c.l.b16 %v227
        %v298 = vunpack.c.l.b16 %v228
        %v299 = vunpack.c.l.b16 %v229
        %v300 = vunpack.c.l.b16 %v230
        %v301 = vunpack.c.l.b16 %v231
        %v302 = vunpack.c.l.b16 %v232
        %v303 = vunpack.c.l.b16 %v233
        %v304 = vunpack.c.l.b16 %v234
        %v305 = vunpack.c.l.b16 %v235
        %v306 = vunpack.c.l.b16 %v236
        %v307 = vunpack.c.l.b16 %v237
        %v308 = vunpack.c.l.b16 %v238
        %v309 = vunpack.c.l.b16 %v239
        %v310 = vunpack.c.l.b16 %v240
        %v311 = vunpack.c.l.b16 %v241
        %v312 = vunpack.c.l.b16 %v242
        %v313 = vunpack.c.l.b16 %v243
        %v314 = vunpack.c.l.b16 %v244
        %v315 = vunpack.c.l.b16 %v245
        %v316 = vpack.c.b16 %v285, %v284
        %v317 = vpack.c.b16 %v287, %v286
        %v318 = vpack.c.b16 %v289, %v288
        %v319 = vpack.c.b16 %v291, %v290
        %v320 = vpack.c.b16 %v293, %v292
        %v321 = vpack.c.b16 %v295, %v294
        %v322 = vpack.c.b16 %v297, %v296
        %v323 = vpack.c.b16 %v299, %v298
        %v324 = vpack.c.b16 %v301, %v300
        %v325 = vpack.c.b16 %v303, %v302
        %v326 = vpack.c.b16 %v305, %v304
        %v327 = vpack.c.b16 %v307, %v306
        %v328 = vpack.c.b16 %v309, %v308
        %v329 = vpack.c.b16 %v311, %v310
        %v330 = vpack.c.b16 %v313, %v312
        %v331 = vpack.c.b16 %v315, %v314
        %v334 = vunpack.c.l.b16 %v250
        %v335 = vunpack.c.l.b16 %v251
        %v336 = vpack.c.b16 %v335, %v334
        %vm337 = vcmask 72704
        %v339 = vsel %vm337, %v316, 0
        %v342 = vsel %vm337, %v317, 0
        %v345 = vsel %vm337, %v318, 0
        %v348 = vsel %vm337, %v319, 0
        %v351 = vsel %vm337, %v320, 0
        %v354 = vsel %vm337, %v321, 0
        %v357 = vsel %vm337, %v322, 0
        %v360 = vsel %vm337, %v323, 0
        %v363 = vsel %vm337, %v324, 0
        %v366 = vsel %vm337, %v325, 0
        %v369 = vsel %vm337, %v326, 0
        %v372 = vsel %vm337, %v327, 0
        %v375 = vsel %vm337, %v328, 0
        %v378 = vsel %vm337, %v329, 0
        %v381 = vsel %vm337, %v330, 0
        %v384 = vsel %vm337, %v331, 0
        %vm386 = vcmask 1043456
        %vm387 = vcmask 1044480
        %v388 = vsel %vm386, 4294967295, 65535
        %v389 = vsel %vm387, %v388, 0
        %v391 = vand.u32 %v336, %v389
        %393 = vmatprep.subr.bf16.mxu0 0
        %394 = vmatpush1.bf16.msra.mxu0 0
        %395 = vmatprep.subr.bf16.mxu0 0
        %396 = vmatpush1.bf16.msra.mxu0 0
        %397 = vmatprep.subr.bf16.mxu0 0
        %398 = vmatpush1.bf16.msra.mxu0 0
        %399 = vmatprep.subr.bf16.mxu0 0
        %400 = vmatpush1.bf16.msra.mxu0 0
        %401 = vmatprep.subr.bf16.mxu0 0
        %402 = vmatpush1.bf16.msra.mxu0 0
        %403 = vmatprep.subr.bf16.mxu0 0
        %404 = vmatpush1.bf16.msra.mxu0 0
        %405 = vmatprep.subr.bf16.mxu0 0
        %406 = vmatpush1.bf16.msra.mxu0 0
        %407 = vmatprep.subr.bf16.mxu0 0
        %408 = vmatpush1.bf16.msra.mxu0 %v391
        %409 = vmatprep.subr.bf16.mxu0 0
        %410 = vmatpush2.bf16.msra.mxu0 0
        %411 = vmatprep.subr.bf16.mxu0 0
        %412 = vmatpush2.bf16.msra.mxu0 0
        %413 = vmatprep.subr.bf16.mxu0 0
        %414 = vmatpush2.bf16.msra.mxu0 0
        %415 = vmatprep.subr.bf16.mxu0 0
        %416 = vmatpush2.bf16.msra.mxu0 0
        %417 = vmatprep.subr.bf16.mxu0 0
        %418 = vmatpush2.bf16.msra.mxu0 0
        %419 = vmatprep.subr.bf16.mxu0 0
        %420 = vmatpush2.bf16.msra.mxu0 0
        %421 = vmatprep.subr.bf16.mxu0 0
        %422 = vmatpush2.bf16.msra.mxu0 0
        %423 = vmatprep.subr.bf16.mxu0 0
        %424 = vmatpush2.bf16.msra.mxu0 0
        %425 = vmatprep.mubr.bf16.mxu0 0
        %426 = vmatmul.mubr.bf16.gmra.mxu0 %v339
        %v427 = vpop.f32.mrf.mxu0
        %v428 = vadd.f32 0.0, %v427
        %v429 = vpop.f32.mrf.mxu0
        %v430 = vpop.f32.mrf.mxu0
        %v431 = vadd.f32 0.0, %v430
        %v432 = vpop.f32.mrf.mxu0
        %433 = vmatprep.mubr.bf16.mxu0 0
        %434 = vmatmul.mubr.bf16.gmra.mxu0 %v342
        %v435 = vpop.f32.mrf.mxu0
        %v436 = vadd.f32 0.0, %v435
        %v437 = vpop.f32.mrf.mxu0
        %v438 = vpop.f32.mrf.mxu0
        %v439 = vadd.f32 0.0, %v438
        %v440 = vpop.f32.mrf.mxu0
        %441 = vmatprep.mubr.bf16.mxu0 0
        %442 = vmatmul.mubr.bf16.gmra.mxu0 %v345
        %v443 = vpop.f32.mrf.mxu0
        %v444 = vadd.f32 0.0, %v443
        %v445 = vpop.f32.mrf.mxu0
        %v446 = vpop.f32.mrf.mxu0
        %v447 = vadd.f32 0.0, %v446
        %v448 = vpop.f32.mrf.mxu0
        %449 = vmatprep.mubr.bf16.mxu0 0
        %450 = vmatmul.mubr.bf16.gmra.mxu0 %v348
        %v451 = vpop.f32.mrf.mxu0
        %v452 = vadd.f32 0.0, %v451
        %v453 = vpop.f32.mrf.mxu0
        %v454 = vpop.f32.mrf.mxu0
        %v455 = vadd.f32 0.0, %v454
        %v456 = vpop.f32.mrf.mxu0
        %457 = vmatprep.mubr.bf16.mxu0 0
        %458 = vmatmul.mubr.bf16.gmra.mxu0 %v351
        %v459 = vpop.f32.mrf.mxu0
        %v460 = vadd.f32 0.0, %v459
        %v461 = vpop.f32.mrf.mxu0
        %v462 = vpop.f32.mrf.mxu0
        %v463 = vadd.f32 0.0, %v462
        %v464 = vpop.f32.mrf.mxu0
        %465 = vmatprep.mubr.bf16.mxu0 0
        %466 = vmatmul.mubr.bf16.gmra.mxu0 %v354
        %v467 = vpop.f32.mrf.mxu0
        %v468 = vadd.f32 0.0, %v467
        %v469 = vpop.f32.mrf.mxu0
        %v470 = vpop.f32.mrf.mxu0
        %v471 = vadd.f32 0.0, %v470
        %v472 = vpop.f32.mrf.mxu0
        %473 = vmatprep.mubr.bf16.mxu0 0
        %474 = vmatmul.mubr.bf16.gmra.mxu0 %v357
        %v475 = vpop.f32.mrf.mxu0
        %v476 = vadd.f32 0.0, %v475
        %v477 = vpop.f32.mrf.mxu0
        %v478 = vpop.f32.mrf.mxu0
        %v479 = vadd.f32 0.0, %v478
        %v480 = vpop.f32.mrf.mxu0
        %481 = vmatprep.mubr.bf16.mxu0 0
        %482 = vmatmul.mubr.bf16.gmra.mxu0 %v360
        %v483 = vpop.f32.mrf.mxu0
        %v484 = vadd.f32 0.0, %v483
        %v485 = vpop.f32.mrf.mxu0
        %v486 = vpop.f32.mrf.mxu0
        %v487 = vadd.f32 0.0, %v486
        %v488 = vpop.f32.mrf.mxu0
        %489 = vmatprep.mubr.bf16.mxu0 0
        %490 = vmatmul.mubr.bf16.gmra.mxu0 %v363
        %v491 = vpop.f32.mrf.mxu0
        %v492 = vadd.f32 0.0, %v491
        %v493 = vpop.f32.mrf.mxu0
        %v494 = vpop.f32.mrf.mxu0
        %v495 = vadd.f32 0.0, %v494
        %v496 = vpop.f32.mrf.mxu0
        %497 = vmatprep.mubr.bf16.mxu0 0
        %498 = vmatmul.mubr.bf16.gmra.mxu0 %v366
        %v499 = vpop.f32.mrf.mxu0
        %v500 = vadd.f32 0.0, %v499
        %v501 = vpop.f32.mrf.mxu0
        %v502 = vpop.f32.mrf.mxu0
        %v503 = vadd.f32 0.0, %v502
        %v504 = vpop.f32.mrf.mxu0
        %505 = vmatprep.mubr.bf16.mxu0 0
        %506 = vmatmul.mubr.bf16.gmra.mxu0 %v369
        %v507 = vpop.f32.mrf.mxu0
        %v508 = vadd.f32 0.0, %v507
        %v509 = vpop.f32.mrf.mxu0
        %v510 = vpop.f32.mrf.mxu0
        %v511 = vadd.f32 0.0, %v510
        %v512 = vpop.f32.mrf.mxu0
        %513 = vmatprep.mubr.bf16.mxu0 0
        %514 = vmatmul.mubr.bf16.gmra.mxu0 %v372
        %v515 = vpop.f32.mrf.mxu0
        %v516 = vadd.f32 0.0, %v515
        %v517 = vpop.f32.mrf.mxu0
        %v518 = vpop.f32.mrf.mxu0
        %v519 = vadd.f32 0.0, %v518
        %v520 = vpop.f32.mrf.mxu0
        %521 = vmatprep.mubr.bf16.mxu0 0
        %522 = vmatmul.mubr.bf16.gmra.mxu0 %v375
        %v523 = vpop.f32.mrf.mxu0
        %v524 = vadd.f32 0.0, %v523
        %v525 = vpop.f32.mrf.mxu0
        %v526 = vpop.f32.mrf.mxu0
        %v527 = vadd.f32 0.0, %v526
        %v528 = vpop.f32.mrf.mxu0
        %529 = vmatprep.mubr.bf16.mxu0 0
        %530 = vmatmul.mubr.bf16.gmra.mxu0 %v378
        %v531 = vpop.f32.mrf.mxu0
        %v532 = vadd.f32 0.0, %v531
        %v533 = vpop.f32.mrf.mxu0
        %v534 = vpop.f32.mrf.mxu0
        %v535 = vadd.f32 0.0, %v534
        %v536 = vpop.f32.mrf.mxu0
        %537 = vmatprep.mubr.bf16.mxu0 0
        %538 = vmatmul.mubr.bf16.gmra.mxu0 %v381
        %v539 = vpop.f32.mrf.mxu0
        %v540 = vadd.f32 0.0, %v539
        %v541 = vpop.f32.mrf.mxu0
        %v542 = vpop.f32.mrf.mxu0
        %v543 = vadd.f32 0.0, %v542
        %v544 = vpop.f32.mrf.mxu0
        %545 = vmatprep.mubr.bf16.mxu0 0
        %546 = vmatmul.mubr.bf16.gmra.mxu0 %v384
        %v547 = vpop.f32.mrf.mxu0
        %v548 = vadd.f32 0.0, %v547
        %v549 = vpop.f32.mrf.mxu0
        %v550 = vpop.f32.mrf.mxu0
        %v551 = vadd.f32 0.0, %v550
        %v552 = vpop.f32.mrf.mxu0
        %553 = vdwg.mxu0
        %vm554 = vcmask 523264
        %555 = vst.msk [vmem:[#allocation2] sm:$0xff] %vm554, %v428
        %556 = vst.msk [vmem:[#allocation2 + $0x8] sm:$0xff] %vm554, %v431
        %557 = vst.msk [vmem:[#allocation2 + $0x10] sm:$0xff] %vm554, %v436
        %558 = vst.msk [vmem:[#allocation2 + $0x18] sm:$0xff] %vm554, %v439
        %559 = vst.msk [vmem:[#allocation2 + $0x20] sm:$0xff] %vm554, %v444
        %560 = vst.msk [vmem:[#allocation2 + $0x28] sm:$0xff] %vm554, %v447
        %561 = vst.msk [vmem:[#allocation2 + $0x30] sm:$0xff] %vm554, %v452
        %562 = vst.msk [vmem:[#allocation2 + $0x38] sm:$0xff] %vm554, %v455
        %563 = vst.msk [vmem:[#allocation2 + $0x40] sm:$0xff] %vm554, %v460
        %564 = vst.msk [vmem:[#allocation2 + $0x48] sm:$0xff] %vm554, %v463
        %565 = vst.msk [vmem:[#allocation2 + $0x50] sm:$0xff] %vm554, %v468
        %566 = vst.msk [vmem:[#allocation2 + $0x58] sm:$0xff] %vm554, %v471
        %567 = vst.msk [vmem:[#allocation2 + $0x60] sm:$0xff] %vm554, %v476
        %568 = vst.msk [vmem:[#allocation2 + $0x68] sm:$0xff] %vm554, %v479
        %569 = vst.msk [vmem:[#allocation2 + $0x70] sm:$0xff] %vm554, %v484
        %570 = vst.msk [vmem:[#allocation2 + $0x78] sm:$0xff] %vm554, %v487
        %571 = vst.msk [vmem:[#allocation2 + $0x80] sm:$0xff] %vm554, %v492
        %572 = vst.msk [vmem:[#allocation2 + $0x88] sm:$0xff] %vm554, %v495
        %573 = vst.msk [vmem:[#allocation2 + $0x90] sm:$0xff] %vm554, %v500
        %574 = vst.msk [vmem:[#allocation2 + $0x98] sm:$0xff] %vm554, %v503
        %575 = vst.msk [vmem:[#allocation2 + $0xa0] sm:$0xff] %vm554, %v508
        %576 = vst.msk [vmem:[#allocation2 + $0xa8] sm:$0xff] %vm554, %v511
        %577 = vst.msk [vmem:[#allocation2 + $0xb0] sm:$0xff] %vm554, %v516
        %578 = vst.msk [vmem:[#allocation2 + $0xb8] sm:$0xff] %vm554, %v519
        %579 = vst.msk [vmem:[#allocation2 + $0xc0] sm:$0xff] %vm554, %v524
        %580 = vst.msk [vmem:[#allocation2 + $0xc8] sm:$0xff] %vm554, %v527
        %581 = vst.msk [vmem:[#allocation2 + $0xd0] sm:$0xff] %vm554, %v532
        %582 = vst.msk [vmem:[#allocation2 + $0xd8] sm:$0xff] %vm554, %v535
        %583 = vst.msk [vmem:[#allocation2 + $0xe0] sm:$0xff] %vm554, %v540
        %584 = vst.msk [vmem:[#allocation2 + $0xe8] sm:$0xff] %vm554, %v543
        %585 = vst.msk [vmem:[#allocation2 + $0xf0] sm:$0xff] %vm554, %v548
        %586 = vst.msk [vmem:[#allocation2 + $0xf8] sm:$0xff] %vm554, %v551
        %s587 = scalar_lea.vmem %s1, 8
        %v588 = vld [vmem:[%s587] sm:$0xf]
        %v589 = vld [vmem:[%s587 + $0x4] sm:$0x1]
        %v592 = vunpack.c.l.b16 %v246
        %v593 = vunpack.c.l.b16 %v247
        %v594 = vpack.c.b16 %v593, %v592
        %v597 = vunpack.c.l.b16 %v588
        %v598 = vunpack.c.l.b16 %v589
        %v599 = vpack.c.b16 %v598, %v597
        %v601 = vsel %vm337, %v594, 0
        %v604 = vand.u32 %v599, %v389
        %606 = vmatprep.subr.bf16.mxu0 0
        %607 = vmatpush1.bf16.msra.mxu0 0
        %608 = vmatprep.subr.bf16.mxu0 0
        %609 = vmatpush1.bf16.msra.mxu0 0
        %610 = vmatprep.subr.bf16.mxu0 0
        %611 = vmatpush1.bf16.msra.mxu0 0
        %612 = vmatprep.subr.bf16.mxu0 0
        %613 = vmatpush1.bf16.msra.mxu0 0
        %614 = vmatprep.subr.bf16.mxu0 0
        %615 = vmatpush1.bf16.msra.mxu0 0
        %616 = vmatprep.subr.bf16.mxu0 0
        %617 = vmatpush1.bf16.msra.mxu0 0
        %618 = vmatprep.subr.bf16.mxu0 0
        %619 = vmatpush1.bf16.msra.mxu0 0
        %620 = vmatprep.subr.bf16.mxu0 0
        %621 = vmatpush1.bf16.msra.mxu0 %v604
        %622 = vmatprep.subr.bf16.mxu0 0
        %623 = vmatpush2.bf16.msra.mxu0 0
        %624 = vmatprep.subr.bf16.mxu0 0
        %625 = vmatpush2.bf16.msra.mxu0 0
        %626 = vmatprep.subr.bf16.mxu0 0
        %627 = vmatpush2.bf16.msra.mxu0 0
        %628 = vmatprep.subr.bf16.mxu0 0
        %629 = vmatpush2.bf16.msra.mxu0 0
        %630 = vmatprep.subr.bf16.mxu0 0
        %631 = vmatpush2.bf16.msra.mxu0 0
        %632 = vmatprep.subr.bf16.mxu0 0
        %633 = vmatpush2.bf16.msra.mxu0 0
        %634 = vmatprep.subr.bf16.mxu0 0
        %635 = vmatpush2.bf16.msra.mxu0 0
        %636 = vmatprep.subr.bf16.mxu0 0
        %637 = vmatpush2.bf16.msra.mxu0 0
        %638 = vmatprep.mubr.bf16.mxu0 0
        %639 = vmatmul.mubr.bf16.gmra.mxu0 %v342
        %v640 = vpop.f32.mrf.mxu0
        %v641 = vadd.f32 0.0, %v640
        %v642 = vpop.f32.mrf.mxu0
        %v643 = vpop.f32.mrf.mxu0
        %v644 = vadd.f32 0.0, %v643
        %v645 = vpop.f32.mrf.mxu0
        %646 = vmatprep.mubr.bf16.mxu0 0
        %647 = vmatmul.mubr.bf16.gmra.mxu0 %v345
        %v648 = vpop.f32.mrf.mxu0
        %v649 = vadd.f32 0.0, %v648
        %v650 = vpop.f32.mrf.mxu0
        %v651 = vpop.f32.mrf.mxu0
        %v652 = vadd.f32 0.0, %v651
        %v653 = vpop.f32.mrf.mxu0
        %654 = vmatprep.mubr.bf16.mxu0 0
        %655 = vmatmul.mubr.bf16.gmra.mxu0 %v348
        %v656 = vpop.f32.mrf.mxu0
        %v657 = vadd.f32 0.0, %v656
        %v658 = vpop.f32.mrf.mxu0
        %v659 = vpop.f32.mrf.mxu0
        %v660 = vadd.f32 0.0, %v659
        %v661 = vpop.f32.mrf.mxu0
        %662 = vmatprep.mubr.bf16.mxu0 0
        %663 = vmatmul.mubr.bf16.gmra.mxu0 %v351
        %v664 = vpop.f32.mrf.mxu0
        %v665 = vadd.f32 0.0, %v664
        %v666 = vpop.f32.mrf.mxu0
        %v667 = vpop.f32.mrf.mxu0
        %v668 = vadd.f32 0.0, %v667
        %v669 = vpop.f32.mrf.mxu0
        %670 = vmatprep.mubr.bf16.mxu0 0
        %671 = vmatmul.mubr.bf16.gmra.mxu0 %v354
        %v672 = vpop.f32.mrf.mxu0
        %v673 = vadd.f32 0.0, %v672
        %v674 = vpop.f32.mrf.mxu0
        %v675 = vpop.f32.mrf.mxu0
        %v676 = vadd.f32 0.0, %v675
        %v677 = vpop.f32.mrf.mxu0
        %678 = vmatprep.mubr.bf16.mxu0 0
        %679 = vmatmul.mubr.bf16.gmra.mxu0 %v357
        %v680 = vpop.f32.mrf.mxu0
        %v681 = vadd.f32 0.0, %v680
        %v682 = vpop.f32.mrf.mxu0
        %v683 = vpop.f32.mrf.mxu0
        %v684 = vadd.f32 0.0, %v683
        %v685 = vpop.f32.mrf.mxu0
        %686 = vmatprep.mubr.bf16.mxu0 0
        %687 = vmatmul.mubr.bf16.gmra.mxu0 %v360
        %v688 = vpop.f32.mrf.mxu0
        %v689 = vadd.f32 0.0, %v688
        %v690 = vpop.f32.mrf.mxu0
        %v691 = vpop.f32.mrf.mxu0
        %v692 = vadd.f32 0.0, %v691
        %v693 = vpop.f32.mrf.mxu0
        %694 = vmatprep.mubr.bf16.mxu0 0
        %695 = vmatmul.mubr.bf16.gmra.mxu0 %v363
        %v696 = vpop.f32.mrf.mxu0
        %v697 = vadd.f32 0.0, %v696
        %v698 = vpop.f32.mrf.mxu0
        %v699 = vpop.f32.mrf.mxu0
        %v700 = vadd.f32 0.0, %v699
        %v701 = vpop.f32.mrf.mxu0
        %702 = vmatprep.mubr.bf16.mxu0 0
        %703 = vmatmul.mubr.bf16.gmra.mxu0 %v366
        %v704 = vpop.f32.mrf.mxu0
        %v705 = vadd.f32 0.0, %v704
        %v706 = vpop.f32.mrf.mxu0
        %v707 = vpop.f32.mrf.mxu0
        %v708 = vadd.f32 0.0, %v707
        %v709 = vpop.f32.mrf.mxu0
        %710 = vmatprep.mubr.bf16.mxu0 0
        %711 = vmatmul.mubr.bf16.gmra.mxu0 %v369
        %v712 = vpop.f32.mrf.mxu0
        %v713 = vadd.f32 0.0, %v712
        %v714 = vpop.f32.mrf.mxu0
        %v715 = vpop.f32.mrf.mxu0
        %v716 = vadd.f32 0.0, %v715
        %v717 = vpop.f32.mrf.mxu0
        %718 = vmatprep.mubr.bf16.mxu0 0
        %719 = vmatmul.mubr.bf16.gmra.mxu0 %v372
        %v720 = vpop.f32.mrf.mxu0
        %v721 = vadd.f32 0.0, %v720
        %v722 = vpop.f32.mrf.mxu0
        %v723 = vpop.f32.mrf.mxu0
        %v724 = vadd.f32 0.0, %v723
        %v725 = vpop.f32.mrf.mxu0
        %726 = vmatprep.mubr.bf16.mxu0 0
        %727 = vmatmul.mubr.bf16.gmra.mxu0 %v375
        %v728 = vpop.f32.mrf.mxu0
        %v729 = vadd.f32 0.0, %v728
        %v730 = vpop.f32.mrf.mxu0
        %v731 = vpop.f32.mrf.mxu0
        %v732 = vadd.f32 0.0, %v731
        %v733 = vpop.f32.mrf.mxu0
        %734 = vmatprep.mubr.bf16.mxu0 0
        %735 = vmatmul.mubr.bf16.gmra.mxu0 %v378
        %v736 = vpop.f32.mrf.mxu0
        %v737 = vadd.f32 0.0, %v736
        %v738 = vpop.f32.mrf.mxu0
        %v739 = vpop.f32.mrf.mxu0
        %v740 = vadd.f32 0.0, %v739
        %v741 = vpop.f32.mrf.mxu0
        %742 = vmatprep.mubr.bf16.mxu0 0
        %743 = vmatmul.mubr.bf16.gmra.mxu0 %v381
        %v744 = vpop.f32.mrf.mxu0
        %v745 = vadd.f32 0.0, %v744
        %v746 = vpop.f32.mrf.mxu0
        %v747 = vpop.f32.mrf.mxu0
        %v748 = vadd.f32 0.0, %v747
        %v749 = vpop.f32.mrf.mxu0
        %750 = vmatprep.mubr.bf16.mxu0 0
        %751 = vmatmul.mubr.bf16.gmra.mxu0 %v384
        %v752 = vpop.f32.mrf.mxu0
        %v753 = vadd.f32 0.0, %v752
        %v754 = vpop.f32.mrf.mxu0
        %v755 = vpop.f32.mrf.mxu0
        %v756 = vadd.f32 0.0, %v755
        %v757 = vpop.f32.mrf.mxu0
        %758 = vmatprep.mubr.bf16.mxu0 0
        %759 = vmatmul.mubr.bf16.gmra.mxu0 %v601
        %v760 = vpop.f32.mrf.mxu0
        %v761 = vadd.f32 0.0, %v760
        %v762 = vpop.f32.mrf.mxu0
        %v763 = vpop.f32.mrf.mxu0
        %v764 = vadd.f32 0.0, %v763
        %v765 = vpop.f32.mrf.mxu0
        %766 = vdwg.mxu0
        %v767 = vld [vmem:[#allocation2] sm:$0xff]
        %v768 = vld [vmem:[#allocation2 + $0x8] sm:$0xff]
        %v769 = vld [vmem:[#allocation2 + $0x10] sm:$0xff]
        %v770 = vld [vmem:[#allocation2 + $0x18] sm:$0xff]
        %v771 = vld [vmem:[#allocation2 + $0x20] sm:$0xff]
        %v772 = vld [vmem:[#allocation2 + $0x28] sm:$0xff]
        %v773 = vld [vmem:[#allocation2 + $0x30] sm:$0xff]
        %v774 = vld [vmem:[#allocation2 + $0x38] sm:$0xff]
        %v775 = vld [vmem:[#allocation2 + $0x40] sm:$0xff]
        %v776 = vld [vmem:[#allocation2 + $0x48] sm:$0xff]
        %v777 = vld [vmem:[#allocation2 + $0x50] sm:$0xff]
        %v778 = vld [vmem:[#allocation2 + $0x58] sm:$0xff]
        %v779 = vld [vmem:[#allocation2 + $0x60] sm:$0xff]
        %v780 = vld [vmem:[#allocation2 + $0x68] sm:$0xff]
        %v781 = vld [vmem:[#allocation2 + $0x70] sm:$0xff]
        %v782 = vld [vmem:[#allocation2 + $0x78] sm:$0xff]
        %v783 = vld [vmem:[#allocation2 + $0x80] sm:$0xff]
        %v784 = vld [vmem:[#allocation2 + $0x88] sm:$0xff]
        %v785 = vld [vmem:[#allocation2 + $0x90] sm:$0xff]
        %v786 = vld [vmem:[#allocation2 + $0x98] sm:$0xff]
        %v787 = vld [vmem:[#allocation2 + $0xa0] sm:$0xff]
        %v788 = vld [vmem:[#allocation2 + $0xa8] sm:$0xff]
        %v789 = vld [vmem:[#allocation2 + $0xb0] sm:$0xff]
        %v790 = vld [vmem:[#allocation2 + $0xb8] sm:$0xff]
        %v791 = vld [vmem:[#allocation2 + $0xc0] sm:$0xff]
        %v792 = vld [vmem:[#allocation2 + $0xc8] sm:$0xff]
        %v793 = vld [vmem:[#allocation2 + $0xd0] sm:$0xff]
        %v794 = vld [vmem:[#allocation2 + $0xd8] sm:$0xff]
        %v795 = vld [vmem:[#allocation2 + $0xe0] sm:$0xff]
        %v796 = vld [vmem:[#allocation2 + $0xe8] sm:$0xff]
        %v797 = vld [vmem:[#allocation2 + $0xf0] sm:$0xff]
        %v798 = vld [vmem:[#allocation2 + $0xf8] sm:$0xff]
        %v799 = vadd.f32 %v767, %v641
        %v800 = vadd.f32 %v768, %v644
        %v801 = vadd.f32 %v769, %v649
        %v802 = vadd.f32 %v770, %v652
        %v803 = vadd.f32 %v771, %v657
        %v804 = vadd.f32 %v772, %v660
        %v805 = vadd.f32 %v773, %v665
        %v806 = vadd.f32 %v774, %v668
        %v807 = vadd.f32 %v775, %v673
        %v808 = vadd.f32 %v776, %v676
        %v809 = vadd.f32 %v777, %v681
        %v810 = vadd.f32 %v778, %v684
        %v811 = vadd.f32 %v779, %v689
        %v812 = vadd.f32 %v780, %v692
        %v813 = vadd.f32 %v781, %v697
        %v814 = vadd.f32 %v782, %v700
        %v815 = vadd.f32 %v783, %v705
        %v816 = vadd.f32 %v784, %v708
        %v817 = vadd.f32 %v785, %v713
        %v818 = vadd.f32 %v786, %v716
        %v819 = vadd.f32 %v787, %v721
        %v820 = vadd.f32 %v788, %v724
        %v821 = vadd.f32 %v789, %v729
        %v822 = vadd.f32 %v790, %v732
        %v823 = vadd.f32 %v791, %v737
        %v824 = vadd.f32 %v792, %v740
        %v825 = vadd.f32 %v793, %v745
        %v826 = vadd.f32 %v794, %v748
        %v827 = vadd.f32 %v795, %v753
        %v828 = vadd.f32 %v796, %v756
        %v829 = vadd.f32 %v797, %v761
        %v830 = vadd.f32 %v798, %v764
        %831 = vst.msk [vmem:[#allocation2] sm:$0xff] %vm554, %v799
        %832 = vst.msk [vmem:[#allocation2 + $0x8] sm:$0xff] %vm554, %v800
        %833 = vst.msk [vmem:[#allocation2 + $0x10] sm:$0xff] %vm554, %v801
        %834 = vst.msk [vmem:[#allocation2 + $0x18] sm:$0xff] %vm554, %v802
        %835 = vst.msk [vmem:[#allocation2 + $0x20] sm:$0xff] %vm554, %v803
        %836 = vst.msk [vmem:[#allocation2 + $0x28] sm:$0xff] %vm554, %v804
        %837 = vst.msk [vmem:[#allocation2 + $0x30] sm:$0xff] %vm554, %v805
        %838 = vst.msk [vmem:[#allocation2 + $0x38] sm:$0xff] %vm554, %v806
        %839 = vst.msk [vmem:[#allocation2 + $0x40] sm:$0xff] %vm554, %v807
        %840 = vst.msk [vmem:[#allocation2 + $0x48] sm:$0xff] %vm554, %v808
        %841 = vst.msk [vmem:[#allocation2 + $0x50] sm:$0xff] %vm554, %v809
        %842 = vst.msk [vmem:[#allocation2 + $0x58] sm:$0xff] %vm554, %v810
        %843 = vst.msk [vmem:[#allocation2 + $0x60] sm:$0xff] %vm554, %v811
        %844 = vst.msk [vmem:[#allocation2 + $0x68] sm:$0xff] %vm554, %v812
        %845 = vst.msk [vmem:[#allocation2 + $0x70] sm:$0xff] %vm554, %v813
        %846 = vst.msk [vmem:[#allocation2 + $0x78] sm:$0xff] %vm554, %v814
        %847 = vst.msk [vmem:[#allocation2 + $0x80] sm:$0xff] %vm554, %v815
        %848 = vst.msk [vmem:[#allocation2 + $0x88] sm:$0xff] %vm554, %v816
        %849 = vst.msk [vmem:[#allocation2 + $0x90] sm:$0xff] %vm554, %v817
        %850 = vst.msk [vmem:[#allocation2 + $0x98] sm:$0xff] %vm554, %v818
        %851 = vst.msk [vmem:[#allocation2 + $0xa0] sm:$0xff] %vm554, %v819
        %852 = vst.msk [vmem:[#allocation2 + $0xa8] sm:$0xff] %vm554, %v820
        %853 = vst.msk [vmem:[#allocation2 + $0xb0] sm:$0xff] %vm554, %v821
        %854 = vst.msk [vmem:[#allocation2 + $0xb8] sm:$0xff] %vm554, %v822
        %855 = vst.msk [vmem:[#allocation2 + $0xc0] sm:$0xff] %vm554, %v823
        %856 = vst.msk [vmem:[#allocation2 + $0xc8] sm:$0xff] %vm554, %v824
        %857 = vst.msk [vmem:[#allocation2 + $0xd0] sm:$0xff] %vm554, %v825
        %858 = vst.msk [vmem:[#allocation2 + $0xd8] sm:$0xff] %vm554, %v826
        %859 = vst.msk [vmem:[#allocation2 + $0xe0] sm:$0xff] %vm554, %v827
        %860 = vst.msk [vmem:[#allocation2 + $0xe8] sm:$0xff] %vm554, %v828
        %861 = vst.msk [vmem:[#allocation2 + $0xf0] sm:$0xff] %vm554, %v829
        %862 = vst.msk [vmem:[#allocation2 + $0xf8] sm:$0xff] %vm554, %v830
        %s863 = scalar_lea.vmem %s1, 16
        %v864 = vld [vmem:[%s863] sm:$0xf]
        %v865 = vld [vmem:[%s863 + $0x4] sm:$0x1]
        %v868 = vunpack.c.l.b16 %v248
        %v869 = vunpack.c.l.b16 %v249
        %v870 = vpack.c.b16 %v869, %v868
        %v873 = vunpack.c.l.b16 %v864
        %v874 = vunpack.c.l.b16 %v865
        %v875 = vpack.c.b16 %v874, %v873
        %v877 = vsel %vm337, %v870, 0
        %v880 = vand.u32 %v875, %v389
        %882 = vmatprep.subr.bf16.mxu0 0
        %883 = vmatpush1.bf16.msra.mxu0 0
        %884 = vmatprep.subr.bf16.mxu0 0
        %885 = vmatpush1.bf16.msra.mxu0 0
        %886 = vmatprep.subr.bf16.mxu0 0
        %887 = vmatpush1.bf16.msra.mxu0 0
        %888 = vmatprep.subr.bf16.mxu0 0
        %889 = vmatpush1.bf16.msra.mxu0 0
        %890 = vmatprep.subr.bf16.mxu0 0
        %891 = vmatpush1.bf16.msra.mxu0 0
        %892 = vmatprep.subr.bf16.mxu0 0
        %893 = vmatpush1.bf16.msra.mxu0 0
        %894 = vmatprep.subr.bf16.mxu0 0
        %895 = vmatpush1.bf16.msra.mxu0 0
        %896 = vmatprep.subr.bf16.mxu0 0
        %897 = vmatpush1.bf16.msra.mxu0 %v880
        %898 = vmatprep.subr.bf16.mxu0 0
        %899 = vmatpush2.bf16.msra.mxu0 0
        %900 = vmatprep.subr.bf16.mxu0 0
        %901 = vmatpush2.bf16.msra.mxu0 0
        %902 = vmatprep.subr.bf16.mxu0 0
        %903 = vmatpush2.bf16.msra.mxu0 0
        %904 = vmatprep.subr.bf16.mxu0 0
        %905 = vmatpush2.bf16.msra.mxu0 0
        %906 = vmatprep.subr.bf16.mxu0 0
        %907 = vmatpush2.bf16.msra.mxu0 0
        %908 = vmatprep.subr.bf16.mxu0 0
        %909 = vmatpush2.bf16.msra.mxu0 0
        %910 = vmatprep.subr.bf16.mxu0 0
        %911 = vmatpush2.bf16.msra.mxu0 0
        %912 = vmatprep.subr.bf16.mxu0 0
        %913 = vmatpush2.bf16.msra.mxu0 0
        %914 = vmatprep.mubr.bf16.mxu0 0
        %915 = vmatmul.mubr.bf16.gmra.mxu0 %v345
        %v916 = vpop.f32.mrf.mxu0
        %v917 = vadd.f32 0.0, %v916
        %v918 = vpop.f32.mrf.mxu0
        %v919 = vpop.f32.mrf.mxu0
        %v920 = vadd.f32 0.0, %v919
        %v921 = vpop.f32.mrf.mxu0
        %922 = vmatprep.mubr.bf16.mxu0 0
        %923 = vmatmul.mubr.bf16.gmra.mxu0 %v348
        %v924 = vpop.f32.mrf.mxu0
        %v925 = vadd.f32 0.0, %v924
        %v926 = vpop.f32.mrf.mxu0
        %v927 = vpop.f32.mrf.mxu0
        %v928 = vadd.f32 0.0, %v927
        %v929 = vpop.f32.mrf.mxu0
        %930 = vmatprep.mubr.bf16.mxu0 0
        %931 = vmatmul.mubr.bf16.gmra.mxu0 %v351
        %v932 = vpop.f32.mrf.mxu0
        %v933 = vadd.f32 0.0, %v932
        %v934 = vpop.f32.mrf.mxu0
        %v935 = vpop.f32.mrf.mxu0
        %v936 = vadd.f32 0.0, %v935
        %v937 = vpop.f32.mrf.mxu0
        %938 = vmatprep.mubr.bf16.mxu0 0
        %939 = vmatmul.mubr.bf16.gmra.mxu0 %v354
        %v940 = vpop.f32.mrf.mxu0
        %v941 = vadd.f32 0.0, %v940
        %v942 = vpop.f32.mrf.mxu0
        %v943 = vpop.f32.mrf.mxu0
        %v944 = vadd.f32 0.0, %v943
        %v945 = vpop.f32.mrf.mxu0
        %946 = vmatprep.mubr.bf16.mxu0 0
        %947 = vmatmul.mubr.bf16.gmra.mxu0 %v357
        %v948 = vpop.f32.mrf.mxu0
        %v949 = vadd.f32 0.0, %v948
        %v950 = vpop.f32.mrf.mxu0
        %v951 = vpop.f32.mrf.mxu0
        %v952 = vadd.f32 0.0, %v951
        %v953 = vpop.f32.mrf.mxu0
        %954 = vmatprep.mubr.bf16.mxu0 0
        %955 = vmatmul.mubr.bf16.gmra.mxu0 %v360
        %v956 = vpop.f32.mrf.mxu0
        %v957 = vadd.f32 0.0, %v956
        %v958 = vpop.f32.mrf.mxu0
        %v959 = vpop.f32.mrf.mxu0
        %v960 = vadd.f32 0.0, %v959
        %v961 = vpop.f32.mrf.mxu0
        %962 = vmatprep.mubr.bf16.mxu0 0
        %963 = vmatmul.mubr.bf16.gmra.mxu0 %v363
        %v964 = vpop.f32.mrf.mxu0
        %v965 = vadd.f32 0.0, %v964
        %v966 = vpop.f32.mrf.mxu0
        %v967 = vpop.f32.mrf.mxu0
        %v968 = vadd.f32 0.0, %v967
        %v969 = vpop.f32.mrf.mxu0
        %970 = vmatprep.mubr.bf16.mxu0 0
        %971 = vmatmul.mubr.bf16.gmra.mxu0 %v366
        %v972 = vpop.f32.mrf.mxu0
        %v973 = vadd.f32 0.0, %v972
        %v974 = vpop.f32.mrf.mxu0
        %v975 = vpop.f32.mrf.mxu0
        %v976 = vadd.f32 0.0, %v975
        %v977 = vpop.f32.mrf.mxu0
        %978 = vmatprep.mubr.bf16.mxu0 0
        %979 = vmatmul.mubr.bf16.gmra.mxu0 %v369
        %v980 = vpop.f32.mrf.mxu0
        %v981 = vadd.f32 0.0, %v980
        %v982 = vpop.f32.mrf.mxu0
        %v983 = vpop.f32.mrf.mxu0
        %v984 = vadd.f32 0.0, %v983
        %v985 = vpop.f32.mrf.mxu0
        %986 = vmatprep.mubr.bf16.mxu0 0
        %987 = vmatmul.mubr.bf16.gmra.mxu0 %v372
        %v988 = vpop.f32.mrf.mxu0
        %v989 = vadd.f32 0.0, %v988
        %v990 = vpop.f32.mrf.mxu0
        %v991 = vpop.f32.mrf.mxu0
        %v992 = vadd.f32 0.0, %v991
        %v993 = vpop.f32.mrf.mxu0
        %994 = vmatprep.mubr.bf16.mxu0 0
        %995 = vmatmul.mubr.bf16.gmra.mxu0 %v375
        %v996 = vpop.f32.mrf.mxu0
        %v997 = vadd.f32 0.0, %v996
        %v998 = vpop.f32.mrf.mxu0
        %v999 = vpop.f32.mrf.mxu0
        %v1000 = vadd.f32 0.0, %v999
        %v1001 = vpop.f32.mrf.mxu0
        %1002 = vmatprep.mubr.bf16.mxu0 0
        %1003 = vmatmul.mubr.bf16.gmra.mxu0 %v378
        %v1004 = vpop.f32.mrf.mxu0
        %v1005 = vadd.f32 0.0, %v1004
        %v1006 = vpop.f32.mrf.mxu0
        %v1007 = vpop.f32.mrf.mxu0
        %v1008 = vadd.f32 0.0, %v1007
        %v1009 = vpop.f32.mrf.mxu0
        %1010 = vmatprep.mubr.bf16.mxu0 0
        %1011 = vmatmul.mubr.bf16.gmra.mxu0 %v381
        %v1012 = vpop.f32.mrf.mxu0
        %v1013 = vadd.f32 0.0, %v1012
        %v1014 = vpop.f32.mrf.mxu0
        %v1015 = vpop.f32.mrf.mxu0
        %v1016 = vadd.f32 0.0, %v1015
        %v1017 = vpop.f32.mrf.mxu0
        %1018 = vmatprep.mubr.bf16.mxu0 0
        %1019 = vmatmul.mubr.bf16.gmra.mxu0 %v384
        %v1020 = vpop.f32.mrf.mxu0
        %v1021 = vadd.f32 0.0, %v1020
        %v1022 = vpop.f32.mrf.mxu0
        %v1023 = vpop.f32.mrf.mxu0
        %v1024 = vadd.f32 0.0, %v1023
        %v1025 = vpop.f32.mrf.mxu0
        %1026 = vmatprep.mubr.bf16.mxu0 0
        %1027 = vmatmul.mubr.bf16.gmra.mxu0 %v601
        %v1028 = vpop.f32.mrf.mxu0
        %v1029 = vadd.f32 0.0, %v1028
        %v1030 = vpop.f32.mrf.mxu0
        %v1031 = vpop.f32.mrf.mxu0
        %v1032 = vadd.f32 0.0, %v1031
        %v1033 = vpop.f32.mrf.mxu0
        %1034 = vmatprep.mubr.bf16.mxu0 0
        %1035 = vmatmul.mubr.bf16.gmra.mxu0 %v877
        %v1036 = vpop.f32.mrf.mxu0
        %v1037 = vadd.f32 0.0, %v1036
        %v1038 = vpop.f32.mrf.mxu0
        %v1039 = vpop.f32.mrf.mxu0
        %v1040 = vadd.f32 0.0, %v1039
        %v1041 = vpop.f32.mrf.mxu0
        %1042 = vdwg.mxu0
        %v1043 = vld [vmem:[#allocation2] sm:$0xff]
        %v1044 = vld [vmem:[#allocation2 + $0x8] sm:$0xff]
        %v1045 = vld [vmem:[#allocation2 + $0x10] sm:$0xff]
        %v1046 = vld [vmem:[#allocation2 + $0x18] sm:$0xff]
        %v1047 = vld [vmem:[#allocation2 + $0x20] sm:$0xff]
        %v1048 = vld [vmem:[#allocation2 + $0x28] sm:$0xff]
        %v1049 = vld [vmem:[#allocation2 + $0x30] sm:$0xff]
        %v1050 = vld [vmem:[#allocation2 + $0x38] sm:$0xff]
        %v1051 = vld [vmem:[#allocation2 + $0x40] sm:$0xff]
        %v1052 = vld [vmem:[#allocation2 + $0x48] sm:$0xff]
        %v1053 = vld [vmem:[#allocation2 + $0x50] sm:$0xff]
        %v1054 = vld [vmem:[#allocation2 + $0x58] sm:$0xff]
        %v1055 = vld [vmem:[#allocation2 + $0x60] sm:$0xff]
        %v1056 = vld [vmem:[#allocation2 + $0x68] sm:$0xff]
        %v1057 = vld [vmem:[#allocation2 + $0x70] sm:$0xff]
        %v1058 = vld [vmem:[#allocation2 + $0x78] sm:$0xff]
        %v1059 = vld [vmem:[#allocation2 + $0x80] sm:$0xff]
        %v1060 = vld [vmem:[#allocation2 + $0x88] sm:$0xff]
        %v1061 = vld [vmem:[#allocation2 + $0x90] sm:$0xff]
        %v1062 = vld [vmem:[#allocation2 + $0x98] sm:$0xff]
        %v1063 = vld [vmem:[#allocation2 + $0xa0] sm:$0xff]
        %v1064 = vld [vmem:[#allocation2 + $0xa8] sm:$0xff]
        %v1065 = vld [vmem:[#allocation2 + $0xb0] sm:$0xff]
        %v1066 = vld [vmem:[#allocation2 + $0xb8] sm:$0xff]
        %v1067 = vld [vmem:[#allocation2 + $0xc0] sm:$0xff]
        %v1068 = vld [vmem:[#allocation2 + $0xc8] sm:$0xff]
        %v1069 = vld [vmem:[#allocation2 + $0xd0] sm:$0xff]
        %v1070 = vld [vmem:[#allocation2 + $0xd8] sm:$0xff]
        %v1071 = vld [vmem:[#allocation2 + $0xe0] sm:$0xff]
        %v1072 = vld [vmem:[#allocation2 + $0xe8] sm:$0xff]
        %v1073 = vld [vmem:[#allocation2 + $0xf0] sm:$0xff]
        %v1074 = vld [vmem:[#allocation2 + $0xf8] sm:$0xff]
        %v1075 = vadd.f32 %v1043, %v917
        %v1076 = vadd.f32 %v1044, %v920
        %v1077 = vadd.f32 %v1045, %v925
        %v1078 = vadd.f32 %v1046, %v928
        %v1079 = vadd.f32 %v1047, %v933
        %v1080 = vadd.f32 %v1048, %v936
        %v1081 = vadd.f32 %v1049, %v941
        %v1082 = vadd.f32 %v1050, %v944
        %v1083 = vadd.f32 %v1051, %v949
        %v1084 = vadd.f32 %v1052, %v952
        %v1085 = vadd.f32 %v1053, %v957
        %v1086 = vadd.f32 %v1054, %v960
        %v1087 = vadd.f32 %v1055, %v965
        %v1088 = vadd.f32 %v1056, %v968
        %v1089 = vadd.f32 %v1057, %v973
        %v1090 = vadd.f32 %v1058, %v976
        %v1091 = vadd.f32 %v1059, %v981
        %v1092 = vadd.f32 %v1060, %v984
        %v1093 = vadd.f32 %v1061, %v989
        %v1094 = vadd.f32 %v1062, %v992
        %v1095 = vadd.f32 %v1063, %v997
        %v1096 = vadd.f32 %v1064, %v1000
        %v1097 = vadd.f32 %v1065, %v1005
        %v1098 = vadd.f32 %v1066, %v1008
        %v1099 = vadd.f32 %v1067, %v1013
        %v1100 = vadd.f32 %v1068, %v1016
        %v1101 = vadd.f32 %v1069, %v1021
        %v1102 = vadd.f32 %v1070, %v1024
        %v1103 = vadd.f32 %v1071, %v1029
        %v1104 = vadd.f32 %v1072, %v1032
        %v1105 = vadd.f32 %v1073, %v1037
        %v1106 = vadd.f32 %v1074, %v1040
        %1107 = vst.msk [vmem:[#allocation2] sm:$0xff] %vm554, %v1075
        %1108 = vst.msk [vmem:[#allocation2 + $0x8] sm:$0xff] %vm554, %v1076
        %1109 = vst.msk [vmem:[#allocation2 + $0x10] sm:$0xff] %vm554, %v1077
        %1110 = vst.msk [vmem:[#allocation2 + $0x18] sm:$0xff] %vm554, %v1078
        %1111 = vst.msk [vmem:[#allocation2 + $0x20] sm:$0xff] %vm554, %v1079
        %1112 = vst.msk [vmem:[#allocation2 + $0x28] sm:$0xff] %vm554, %v1080
        %1113 = vst.msk [vmem:[#allocation2 + $0x30] sm:$0xff] %vm554, %v1081
        %1114 = vst.msk [vmem:[#allocation2 + $0x38] sm:$0xff] %vm554, %v1082
        %1115 = vst.msk [vmem:[#allocation2 + $0x40] sm:$0xff] %vm554, %v1083
        %1116 = vst.msk [vmem:[#allocation2 + $0x48] sm:$0xff] %vm554, %v1084
        %1117 = vst.msk [vmem:[#allocation2 + $0x50] sm:$0xff] %vm554, %v1085
        %1118 = vst.msk [vmem:[#allocation2 + $0x58] sm:$0xff] %vm554, %v1086
        %1119 = vst.msk [vmem:[#allocation2 + $0x60] sm:$0xff] %vm554, %v1087
        %1120 = vst.msk [vmem:[#allocation2 + $0x68] sm:$0xff] %vm554, %v1088
        %1121 = vst.msk [vmem:[#allocation2 + $0x70] sm:$0xff] %vm554, %v1089
        %1122 = vst.msk [vmem:[#allocation2 + $0x78] sm:$0xff] %vm554, %v1090
        %1123 = vst.msk [vmem:[#allocation2 + $0x80] sm:$0xff] %vm554, %v1091
        %1124 = vst.msk [vmem:[#allocation2 + $0x88] sm:$0xff] %vm554, %v1092
        %1125 = vst.msk [vmem:[#allocation2 + $0x90] sm:$0xff] %vm554, %v1093
        %1126 = vst.msk [vmem:[#allocation2 + $0x98] sm:$0xff] %vm554, %v1094
        %1127 = vst.msk [vmem:[#allocation2 + $0xa0] sm:$0xff] %vm554, %v1095
        %1128 = vst.msk [vmem:[#allocation2 + $0xa8] sm:$0xff] %vm554, %v1096
        %1129 = vst.msk [vmem:[#allocation2 + $0xb0] sm:$0xff] %vm554, %v1097
        %1130 = vst.msk [vmem:[#allocation2 + $0xb8] sm:$0xff] %vm554, %v1098
        %1131 = vst.msk [vmem:[#allocation2 + $0xc0] sm:$0xff] %vm554, %v1099
        %1132 = vst.msk [vmem:[#allocation2 + $0xc8] sm:$0xff] %vm554, %v1100
        %1133 = vst.msk [vmem:[#allocation2 + $0xd0] sm:$0xff] %vm554, %v1101
        %1134 = vst.msk [vmem:[#allocation2 + $0xd8] sm:$0xff] %vm554, %v1102
        %1135 = vst.msk [vmem:[#allocation2 + $0xe0] sm:$0xff] %vm554, %v1103
        %1136 = vst.msk [vmem:[#allocation2 + $0xe8] sm:$0xff] %vm554, %v1104
        %1137 = vst.msk [vmem:[#allocation2 + $0xf0] sm:$0xff] %vm554, %v1105
        %1138 = vst.msk [vmem:[#allocation2 + $0xf8] sm:$0xff] %vm554, %v1106
        %v1139 = vld [vmem:[#allocation2] sm:$0xff]
        %v1140 = vld [vmem:[#allocation2 + $0x8] sm:$0xff]
        %v1141 = vld [vmem:[#allocation2 + $0x10] sm:$0xff]
        %v1142 = vld [vmem:[#allocation2 + $0x18] sm:$0xff]
        %v1143 = vld [vmem:[#allocation2 + $0x20] sm:$0xff]
        %v1144 = vld [vmem:[#allocation2 + $0x28] sm:$0xff]
        %v1145 = vld [vmem:[#allocation2 + $0x30] sm:$0xff]
        %v1146 = vld [vmem:[#allocation2 + $0x38] sm:$0xff]
        %v1147 = vld [vmem:[#allocation2 + $0x40] sm:$0xff]
        %v1148 = vld [vmem:[#allocation2 + $0x48] sm:$0xff]
        %v1149 = vld [vmem:[#allocation2 + $0x50] sm:$0xff]
        %v1150 = vld [vmem:[#allocation2 + $0x58] sm:$0xff]
        %v1151 = vld [vmem:[#allocation2 + $0x60] sm:$0xff]
        %v1152 = vld [vmem:[#allocation2 + $0x68] sm:$0xff]
        %v1153 = vld [vmem:[#allocation2 + $0x70] sm:$0xff]
        %v1154 = vld [vmem:[#allocation2 + $0x78] sm:$0xff]
        %v1155 = vld [vmem:[#allocation2 + $0x80] sm:$0xff]
        %v1156 = vld [vmem:[#allocation2 + $0x88] sm:$0xff]
        %v1157 = vld [vmem:[#allocation2 + $0x90] sm:$0xff]
        %v1158 = vld [vmem:[#allocation2 + $0x98] sm:$0xff]
        %v1159 = vld [vmem:[#allocation2 + $0xa0] sm:$0xff]
        %v1160 = vld [vmem:[#allocation2 + $0xa8] sm:$0xff]
        %v1161 = vld [vmem:[#allocation2 + $0xb0] sm:$0xff]
        %v1162 = vld [vmem:[#allocation2 + $0xb8] sm:$0xff]
        %v1163 = vld [vmem:[#allocation2 + $0xc0] sm:$0xff]
        %v1164 = vld [vmem:[#allocation2 + $0xc8] sm:$0xff]
        %v1165 = vld [vmem:[#allocation2 + $0xd0] sm:$0xff]
        %v1166 = vld [vmem:[#allocation2 + $0xd8] sm:$0xff]
        %v1167 = vld [vmem:[#allocation2 + $0xe0] sm:$0xff]
        %v1168 = vld [vmem:[#allocation2 + $0xe8] sm:$0xff]
        %v1169 = vld [vmem:[#allocation2 + $0xf0] sm:$0xff]
        %v1170 = vld [vmem:[#allocation2 + $0xf8] sm:$0xff]
        %v1171 = vld [vmem:[#allocation3] sm:$0x1]
        %v1173 = vlaneseq
        %v1174 = vshrl.u32 %v1173, 7
        %v1175 = vsub.s32 0, %v1174
        %v1176 = vrot.slane %v1171, %v1175
        %v1178 = vadd.f32 %v1139, %v1176
        %v1179 = vadd.f32 %v1140, %v1176
        %v1180 = vadd.f32 %v1141, %v1176
        %v1181 = vadd.f32 %v1142, %v1176
        %v1182 = vadd.f32 %v1143, %v1176
        %v1183 = vadd.f32 %v1144, %v1176
        %v1184 = vadd.f32 %v1145, %v1176
        %v1185 = vadd.f32 %v1146, %v1176
        %v1186 = vadd.f32 %v1147, %v1176
        %v1187 = vadd.f32 %v1148, %v1176
        %v1188 = vadd.f32 %v1149, %v1176
        %v1189 = vadd.f32 %v1150, %v1176
        %v1190 = vadd.f32 %v1151, %v1176
        %v1191 = vadd.f32 %v1152, %v1176
        %v1192 = vadd.f32 %v1153, %v1176
        %v1193 = vadd.f32 %v1154, %v1176
        %v1194 = vadd.f32 %v1155, %v1176
        %v1195 = vadd.f32 %v1156, %v1176
        %v1196 = vadd.f32 %v1157, %v1176
        %v1197 = vadd.f32 %v1158, %v1176
        %v1198 = vadd.f32 %v1159, %v1176
        %v1199 = vadd.f32 %v1160, %v1176
        %v1200 = vadd.f32 %v1161, %v1176
        %v1201 = vadd.f32 %v1162, %v1176
        %v1202 = vadd.f32 %v1163, %v1176
        %v1203 = vadd.f32 %v1164, %v1176
        %v1204 = vadd.f32 %v1165, %v1176
        %v1205 = vadd.f32 %v1166, %v1176
        %v1206 = vadd.f32 %v1167, %v1176
        %v1207 = vadd.f32 %v1168, %v1176
        %v1208 = vadd.f32 %v1169, %v1176
        %v1209 = vadd.f32 %v1170, %v1176
        %v1210 = vmax.f32 %v1178, 0.0
        %v1211 = vmax.f32 %v1179, 0.0
        %v1212 = vmax.f32 %v1180, 0.0
        %v1213 = vmax.f32 %v1181, 0.0
        %v1214 = vmax.f32 %v1182, 0.0
        %v1215 = vmax.f32 %v1183, 0.0
        %v1216 = vmax.f32 %v1184, 0.0
        %v1217 = vmax.f32 %v1185, 0.0
        %v1218 = vmax.f32 %v1186, 0.0
        %v1219 = vmax.f32 %v1187, 0.0
        %v1220 = vmax.f32 %v1188, 0.0
        %v1221 = vmax.f32 %v1189, 0.0
        %v1222 = vmax.f32 %v1190, 0.0
        %v1223 = vmax.f32 %v1191, 0.0
        %v1224 = vmax.f32 %v1192, 0.0
        %v1225 = vmax.f32 %v1193, 0.0
        %v1226 = vmax.f32 %v1194, 0.0
        %v1227 = vmax.f32 %v1195, 0.0
        %v1228 = vmax.f32 %v1196, 0.0
        %v1229 = vmax.f32 %v1197, 0.0
        %v1230 = vmax.f32 %v1198, 0.0
        %v1231 = vmax.f32 %v1199, 0.0
        %v1232 = vmax.f32 %v1200, 0.0
        %v1233 = vmax.f32 %v1201, 0.0
        %v1234 = vmax.f32 %v1202, 0.0
        %v1235 = vmax.f32 %v1203, 0.0
        %v1236 = vmax.f32 %v1204, 0.0
        %v1237 = vmax.f32 %v1205, 0.0
        %v1238 = vmax.f32 %v1206, 0.0
        %v1239 = vmax.f32 %v1207, 0.0
        %v1240 = vmax.f32 %v1208, 0.0
        %v1241 = vmax.f32 %v1209, 0.0
        %v1242 = vmax.f32 %v1210, %v1212
        %v1243 = vmax.f32 %v1211, %v1213
        %v1244 = vmax.f32 %v1214, %v1216
        %v1245 = vmax.f32 %v1215, %v1217
        %v1246 = vmax.f32 %v1218, %v1220
        %v1247 = vmax.f32 %v1219, %v1221
        %v1248 = vmax.f32 %v1222, %v1224
        %v1249 = vmax.f32 %v1223, %v1225
        %v1250 = vmax.f32 %v1226, %v1228
        %v1251 = vmax.f32 %v1227, %v1229
        %v1252 = vmax.f32 %v1230, %v1232
        %v1253 = vmax.f32 %v1231, %v1233
        %v1254 = vmax.f32 %v1234, %v1236
        %v1255 = vmax.f32 %v1235, %v1237
        %v1256 = vmax.f32 %v1238, %v1240
        %v1257 = vmax.f32 %v1239, %v1241
        %v1274 = vcombine.high %v1242, %v1242
        %v1276 = vunpack.c.l.s4 1983009808
        %v1277 = vunpack.c.0.s8 %v1276
        %v1278 = vlaneseq
        %v1279 = vshrl.u32 %v1278, 7
        %v1280 = vsub.s32 %v1277, %v1279
        %v1281 = vrot.slane %v1242, %v1280
        %v1283 = vunpack.c.l.s4 1983009808
        %v1284 = vunpack.c.0.s8 %v1283
        %v1285 = vlaneseq
        %v1286 = vshrl.u32 %v1285, 7
        %v1287 = vsub.s32 %v1284, %v1286
        %v1288 = vrot.slane %v1274, %v1287
        %v1289 = vcombine.high %v1281, %v1281
        %v1290 = vcombine.high %v1288, %v1288
        %v1291 = vcombine.high %v1243, %v1243
        %v1293 = vunpack.c.l.s4 1983009808
        %v1294 = vunpack.c.0.s8 %v1293
        %v1295 = vlaneseq
        %v1296 = vshrl.u32 %v1295, 7
        %v1297 = vsub.s32 %v1294, %v1296
        %v1298 = vrot.slane %v1243, %v1297
        %v1300 = vunpack.c.l.s4 1983009808
        %v1301 = vunpack.c.0.s8 %v1300
        %v1302 = vlaneseq
        %v1303 = vshrl.u32 %v1302, 7
        %v1304 = vsub.s32 %v1301, %v1303
        %v1305 = vrot.slane %v1291, %v1304
        %v1306 = vcombine.high %v1298, %v1298
        %v1307 = vcombine.high %v1305, %v1305
        %v1308 = vcombine.high %v1244, %v1244
        %v1310 = vunpack.c.l.s4 1983009808
        %v1311 = vunpack.c.0.s8 %v1310
        %v1312 = vlaneseq
        %v1313 = vshrl.u32 %v1312, 7
        %v1314 = vsub.s32 %v1311, %v1313
        %v1315 = vrot.slane %v1244, %v1314
        %v1317 = vunpack.c.l.s4 1983009808
        %v1318 = vunpack.c.0.s8 %v1317
        %v1319 = vlaneseq
        %v1320 = vshrl.u32 %v1319, 7
        %v1321 = vsub.s32 %v1318, %v1320
        %v1322 = vrot.slane %v1308, %v1321
        %v1323 = vcombine.high %v1315, %v1315
        %v1324 = vcombine.high %v1322, %v1322
        %v1325 = vcombine.high %v1245, %v1245
        %v1327 = vunpack.c.l.s4 1983009808
        %v1328 = vunpack.c.0.s8 %v1327
        %v1329 = vlaneseq
        %v1330 = vshrl.u32 %v1329, 7
        %v1331 = vsub.s32 %v1328, %v1330
        %v1332 = vrot.slane %v1245, %v1331
        %v1334 = vunpack.c.l.s4 1983009808
        %v1335 = vunpack.c.0.s8 %v1334
        %v1336 = vlaneseq
        %v1337 = vshrl.u32 %v1336, 7
        %v1338 = vsub.s32 %v1335, %v1337
        %v1339 = vrot.slane %v1325, %v1338
        %v1340 = vcombine.high %v1332, %v1332
        %v1341 = vcombine.high %v1339, %v1339
        %v1342 = vcombine.high %v1246, %v1246
        %v1344 = vunpack.c.l.s4 1983009808
        %v1345 = vunpack.c.0.s8 %v1344
        %v1346 = vlaneseq
        %v1347 = vshrl.u32 %v1346, 7
        %v1348 = vsub.s32 %v1345, %v1347
        %v1349 = vrot.slane %v1246, %v1348
        %v1351 = vunpack.c.l.s4 1983009808
        %v1352 = vunpack.c.0.s8 %v1351
        %v1353 = vlaneseq
        %v1354 = vshrl.u32 %v1353, 7
        %v1355 = vsub.s32 %v1352, %v1354
        %v1356 = vrot.slane %v1342, %v1355
        %v1357 = vcombine.high %v1349, %v1349
        %v1358 = vcombine.high %v1356, %v1356
        %v1359 = vcombine.high %v1247, %v1247
        %v1361 = vunpack.c.l.s4 1983009808
        %v1362 = vunpack.c.0.s8 %v1361
        %v1363 = vlaneseq
        %v1364 = vshrl.u32 %v1363, 7
        %v1365 = vsub.s32 %v1362, %v1364
        %v1366 = vrot.slane %v1247, %v1365
        %v1368 = vunpack.c.l.s4 1983009808
        %v1369 = vunpack.c.0.s8 %v1368
        %v1370 = vlaneseq
        %v1371 = vshrl.u32 %v1370, 7
        %v1372 = vsub.s32 %v1369, %v1371
        %v1373 = vrot.slane %v1359, %v1372
        %v1374 = vcombine.high %v1366, %v1366
        %v1375 = vcombine.high %v1373, %v1373
        %v1376 = vcombine.high %v1248, %v1248
        %v1378 = vunpack.c.l.s4 1983009808
        %v1379 = vunpack.c.0.s8 %v1378
        %v1380 = vlaneseq
        %v1381 = vshrl.u32 %v1380, 7
        %v1382 = vsub.s32 %v1379, %v1381
        %v1383 = vrot.slane %v1248, %v1382
        %v1385 = vunpack.c.l.s4 1983009808
        %v1386 = vunpack.c.0.s8 %v1385
        %v1387 = vlaneseq
        %v1388 = vshrl.u32 %v1387, 7
        %v1389 = vsub.s32 %v1386, %v1388
        %v1390 = vrot.slane %v1376, %v1389
        %v1391 = vcombine.high %v1383, %v1383
        %v1392 = vcombine.high %v1390, %v1390
        %v1393 = vcombine.high %v1249, %v1249
        %v1395 = vunpack.c.l.s4 1983009808
        %v1396 = vunpack.c.0.s8 %v1395
        %v1397 = vlaneseq
        %v1398 = vshrl.u32 %v1397, 7
        %v1399 = vsub.s32 %v1396, %v1398
        %v1400 = vrot.slane %v1249, %v1399
        %v1402 = vunpack.c.l.s4 1983009808
        %v1403 = vunpack.c.0.s8 %v1402
        %v1404 = vlaneseq
        %v1405 = vshrl.u32 %v1404, 7
        %v1406 = vsub.s32 %v1403, %v1405
        %v1407 = vrot.slane %v1393, %v1406
        %v1408 = vcombine.high %v1400, %v1400
        %v1409 = vcombine.high %v1407, %v1407
        %v1410 = vcombine.high %v1250, %v1250
        %v1412 = vunpack.c.l.s4 1983009808
        %v1413 = vunpack.c.0.s8 %v1412
        %v1414 = vlaneseq
        %v1415 = vshrl.u32 %v1414, 7
        %v1416 = vsub.s32 %v1413, %v1415
        %v1417 = vrot.slane %v1250, %v1416
        %v1419 = vunpack.c.l.s4 1983009808
        %v1420 = vunpack.c.0.s8 %v1419
        %v1421 = vlaneseq
        %v1422 = vshrl.u32 %v1421, 7
        %v1423 = vsub.s32 %v1420, %v1422
        %v1424 = vrot.slane %v1410, %v1423
        %v1425 = vcombine.high %v1417, %v1417
        %v1426 = vcombine.high %v1424, %v1424
        %v1427 = vcombine.high %v1251, %v1251
        %v1429 = vunpack.c.l.s4 1983009808
        %v1430 = vunpack.c.0.s8 %v1429
        %v1431 = vlaneseq
        %v1432 = vshrl.u32 %v1431, 7
        %v1433 = vsub.s32 %v1430, %v1432
        %v1434 = vrot.slane %v1251, %v1433
        %v1436 = vunpack.c.l.s4 1983009808
        %v1437 = vunpack.c.0.s8 %v1436
        %v1438 = vlaneseq
        %v1439 = vshrl.u32 %v1438, 7
        %v1440 = vsub.s32 %v1437, %v1439
        %v1441 = vrot.slane %v1427, %v1440
        %v1442 = vcombine.high %v1434, %v1434
        %v1443 = vcombine.high %v1441, %v1441
        %v1444 = vcombine.high %v1252, %v1252
        %v1446 = vunpack.c.l.s4 1983009808
        %v1447 = vunpack.c.0.s8 %v1446
        %v1448 = vlaneseq
        %v1449 = vshrl.u32 %v1448, 7
        %v1450 = vsub.s32 %v1447, %v1449
        %v1451 = vrot.slane %v1252, %v1450
        %v1453 = vunpack.c.l.s4 1983009808
        %v1454 = vunpack.c.0.s8 %v1453
        %v1455 = vlaneseq
        %v1456 = vshrl.u32 %v1455, 7
        %v1457 = vsub.s32 %v1454, %v1456
        %v1458 = vrot.slane %v1444, %v1457
        %v1459 = vcombine.high %v1451, %v1451
        %v1460 = vcombine.high %v1458, %v1458
        %v1461 = vcombine.high %v1253, %v1253
        %v1463 = vunpack.c.l.s4 1983009808
        %v1464 = vunpack.c.0.s8 %v1463
        %v1465 = vlaneseq
        %v1466 = vshrl.u32 %v1465, 7
        %v1467 = vsub.s32 %v1464, %v1466
        %v1468 = vrot.slane %v1253, %v1467
        %v1470 = vunpack.c.l.s4 1983009808
        %v1471 = vunpack.c.0.s8 %v1470
        %v1472 = vlaneseq
        %v1473 = vshrl.u32 %v1472, 7
        %v1474 = vsub.s32 %v1471, %v1473
        %v1475 = vrot.slane %v1461, %v1474
        %v1476 = vcombine.high %v1468, %v1468
        %v1477 = vcombine.high %v1475, %v1475
        %v1478 = vcombine.high %v1254, %v1254
        %v1480 = vunpack.c.l.s4 1983009808
        %v1481 = vunpack.c.0.s8 %v1480
        %v1482 = vlaneseq
        %v1483 = vshrl.u32 %v1482, 7
        %v1484 = vsub.s32 %v1481, %v1483
        %v1485 = vrot.slane %v1254, %v1484
        %v1487 = vunpack.c.l.s4 1983009808
        %v1488 = vunpack.c.0.s8 %v1487
        %v1489 = vlaneseq
        %v1490 = vshrl.u32 %v1489, 7
        %v1491 = vsub.s32 %v1488, %v1490
        %v1492 = vrot.slane %v1478, %v1491
        %v1493 = vcombine.high %v1485, %v1485
        %v1494 = vcombine.high %v1492, %v1492
        %v1495 = vcombine.high %v1255, %v1255
        %v1497 = vunpack.c.l.s4 1983009808
        %v1498 = vunpack.c.0.s8 %v1497
        %v1499 = vlaneseq
        %v1500 = vshrl.u32 %v1499, 7
        %v1501 = vsub.s32 %v1498, %v1500
        %v1502 = vrot.slane %v1255, %v1501
        %v1504 = vunpack.c.l.s4 1983009808
        %v1505 = vunpack.c.0.s8 %v1504
        %v1506 = vlaneseq
        %v1507 = vshrl.u32 %v1506, 7
        %v1508 = vsub.s32 %v1505, %v1507
        %v1509 = vrot.slane %v1495, %v1508
        %v1510 = vcombine.high %v1502, %v1502
        %v1511 = vcombine.high %v1509, %v1509
        %v1512 = vcombine.high %v1256, %v1256
        %v1514 = vunpack.c.l.s4 1983009808
        %v1515 = vunpack.c.0.s8 %v1514
        %v1516 = vlaneseq
        %v1517 = vshrl.u32 %v1516, 7
        %v1518 = vsub.s32 %v1515, %v1517
        %v1519 = vrot.slane %v1256, %v1518
        %v1521 = vunpack.c.l.s4 1983009808
        %v1522 = vunpack.c.0.s8 %v1521
        %v1523 = vlaneseq
        %v1524 = vshrl.u32 %v1523, 7
        %v1525 = vsub.s32 %v1522, %v1524
        %v1526 = vrot.slane %v1512, %v1525
        %v1527 = vcombine.high %v1519, %v1519
        %v1528 = vcombine.high %v1526, %v1526
        %v1529 = vcombine.high %v1257, %v1257
        %v1531 = vunpack.c.l.s4 1983009808
        %v1532 = vunpack.c.0.s8 %v1531
        %v1533 = vlaneseq
        %v1534 = vshrl.u32 %v1533, 7
        %v1535 = vsub.s32 %v1532, %v1534
        %v1536 = vrot.slane %v1257, %v1535
        %v1538 = vunpack.c.l.s4 1983009808
        %v1539 = vunpack.c.0.s8 %v1538
        %v1540 = vlaneseq
        %v1541 = vshrl.u32 %v1540, 7
        %v1542 = vsub.s32 %v1539, %v1541
        %v1543 = vrot.slane %v1529, %v1542
        %v1544 = vcombine.high %v1536, %v1536
        %v1545 = vcombine.high %v1543, %v1543
        %v1610 = vrot.slane %v1281, 7
        %v1611 = vrot.slane %v1610, 2
        %v1612 = vrot.slane %v1289, 7
        %v1613 = vrot.slane %v1612, 2
        %v1614 = vrot.slane %v1288, 7
        %v1615 = vrot.slane %v1614, 2
        %v1616 = vrot.slane %v1290, 7
        %v1617 = vrot.slane %v1616, 2
        %v1618 = vrot.slane %v1298, 7
        %v1619 = vrot.slane %v1618, 2
        %v1620 = vrot.slane %v1306, 7
        %v1621 = vrot.slane %v1620, 2
        %v1622 = vrot.slane %v1305, 7
        %v1623 = vrot.slane %v1622, 2
        %v1624 = vrot.slane %v1307, 7
        %v1625 = vrot.slane %v1624, 2
        %v1626 = vrot.slane %v1315, 7
        %v1627 = vrot.slane %v1626, 2
        %v1628 = vrot.slane %v1323, 7
        %v1629 = vrot.slane %v1628, 2
        %v1630 = vrot.slane %v1322, 7
        %v1631 = vrot.slane %v1630, 2
        %v1632 = vrot.slane %v1324, 7
        %v1633 = vrot.slane %v1632, 2
        %v1634 = vrot.slane %v1332, 7
        %v1635 = vrot.slane %v1634, 2
        %v1636 = vrot.slane %v1340, 7
        %v1637 = vrot.slane %v1636, 2
        %v1638 = vrot.slane %v1339, 7
        %v1639 = vrot.slane %v1638, 2
        %v1640 = vrot.slane %v1341, 7
        %v1641 = vrot.slane %v1640, 2
        %v1642 = vrot.slane %v1349, 7
        %v1643 = vrot.slane %v1642, 2
        %v1644 = vrot.slane %v1357, 7
        %v1645 = vrot.slane %v1644, 2
        %v1646 = vrot.slane %v1356, 7
        %v1647 = vrot.slane %v1646, 2
        %v1648 = vrot.slane %v1358, 7
        %v1649 = vrot.slane %v1648, 2
        %v1650 = vrot.slane %v1366, 7
        %v1651 = vrot.slane %v1650, 2
        %v1652 = vrot.slane %v1374, 7
        %v1653 = vrot.slane %v1652, 2
        %v1654 = vrot.slane %v1373, 7
        %v1655 = vrot.slane %v1654, 2
        %v1656 = vrot.slane %v1375, 7
        %v1657 = vrot.slane %v1656, 2
        %v1658 = vrot.slane %v1383, 7
        %v1659 = vrot.slane %v1658, 2
        %v1660 = vrot.slane %v1391, 7
        %v1661 = vrot.slane %v1660, 2
        %v1662 = vrot.slane %v1390, 7
        %v1663 = vrot.slane %v1662, 2
        %v1664 = vrot.slane %v1392, 7
        %v1665 = vrot.slane %v1664, 2
        %v1666 = vrot.slane %v1400, 7
        %v1667 = vrot.slane %v1666, 2
        %v1668 = vrot.slane %v1408, 7
        %v1669 = vrot.slane %v1668, 2
        %v1670 = vrot.slane %v1407, 7
        %v1671 = vrot.slane %v1670, 2
        %v1672 = vrot.slane %v1409, 7
        %v1673 = vrot.slane %v1672, 2
        %v1674 = vrot.slane %v1417, 7
        %v1675 = vrot.slane %v1674, 2
        %v1676 = vrot.slane %v1425, 7
        %v1677 = vrot.slane %v1676, 2
        %v1678 = vrot.slane %v1424, 7
        %v1679 = vrot.slane %v1678, 2
        %v1680 = vrot.slane %v1426, 7
        %v1681 = vrot.slane %v1680, 2
        %v1682 = vrot.slane %v1434, 7
        %v1683 = vrot.slane %v1682, 2
        %v1684 = vrot.slane %v1442, 7
        %v1685 = vrot.slane %v1684, 2
        %v1686 = vrot.slane %v1441, 7
        %v1687 = vrot.slane %v1686, 2
        %v1688 = vrot.slane %v1443, 7
        %v1689 = vrot.slane %v1688, 2
        %v1690 = vrot.slane %v1451, 7
        %v1691 = vrot.slane %v1690, 2
        %v1692 = vrot.slane %v1459, 7
        %v1693 = vrot.slane %v1692, 2
        %v1694 = vrot.slane %v1458, 7
        %v1695 = vrot.slane %v1694, 2
        %v1696 = vrot.slane %v1460, 7
        %v1697 = vrot.slane %v1696, 2
        %v1698 = vrot.slane %v1468, 7
        %v1699 = vrot.slane %v1698, 2
        %v1700 = vrot.slane %v1476, 7
        %v1701 = vrot.slane %v1700, 2
        %v1702 = vrot.slane %v1475, 7
        %v1703 = vrot.slane %v1702, 2
        %v1704 = vrot.slane %v1477, 7
        %v1705 = vrot.slane %v1704, 2
        %v1706 = vrot.slane %v1485, 7
        %v1707 = vrot.slane %v1706, 2
        %v1708 = vrot.slane %v1493, 7
        %v1709 = vrot.slane %v1708, 2
        %v1710 = vrot.slane %v1492, 7
        %v1711 = vrot.slane %v1710, 2
        %v1712 = vrot.slane %v1494, 7
        %v1713 = vrot.slane %v1712, 2
        %v1714 = vrot.slane %v1502, 7
        %v1715 = vrot.slane %v1714, 2
        %v1716 = vrot.slane %v1510, 7
        %v1717 = vrot.slane %v1716, 2
        %v1718 = vrot.slane %v1509, 7
        %v1719 = vrot.slane %v1718, 2
        %v1720 = vrot.slane %v1511, 7
        %v1721 = vrot.slane %v1720, 2
        %v1722 = vrot.slane %v1519, 7
        %v1723 = vrot.slane %v1722, 2
        %v1724 = vrot.slane %v1527, 7
        %v1725 = vrot.slane %v1724, 2
        %v1726 = vrot.slane %v1526, 7
        %v1727 = vrot.slane %v1726, 2
        %v1728 = vrot.slane %v1528, 7
        %v1729 = vrot.slane %v1728, 2
        %v1730 = vrot.slane %v1536, 7
        %v1731 = vrot.slane %v1730, 2
        %v1732 = vrot.slane %v1544, 7
        %v1733 = vrot.slane %v1732, 2
        %v1734 = vrot.slane %v1543, 7
        %v1735 = vrot.slane %v1734, 2
        %v1736 = vrot.slane %v1545, 7
        %v1737 = vrot.slane %v1736, 2
        %v1802 = vmax.f32 %v1281, %v1611
        %v1803 = vmax.f32 %v1289, %v1613
        %v1804 = vmax.f32 %v1288, %v1615
        %v1805 = vmax.f32 %v1290, %v1617
        %v1806 = vmax.f32 %v1298, %v1619
        %v1807 = vmax.f32 %v1306, %v1621
        %v1808 = vmax.f32 %v1305, %v1623
        %v1809 = vmax.f32 %v1307, %v1625
        %v1810 = vmax.f32 %v1315, %v1627
        %v1811 = vmax.f32 %v1323, %v1629
        %v1812 = vmax.f32 %v1322, %v1631
        %v1813 = vmax.f32 %v1324, %v1633
        %v1814 = vmax.f32 %v1332, %v1635
        %v1815 = vmax.f32 %v1340, %v1637
        %v1816 = vmax.f32 %v1339, %v1639
        %v1817 = vmax.f32 %v1341, %v1641
        %v1818 = vmax.f32 %v1349, %v1643
        %v1819 = vmax.f32 %v1357, %v1645
        %v1820 = vmax.f32 %v1356, %v1647
        %v1821 = vmax.f32 %v1358, %v1649
        %v1822 = vmax.f32 %v1366, %v1651
        %v1823 = vmax.f32 %v1374, %v1653
        %v1824 = vmax.f32 %v1373, %v1655
        %v1825 = vmax.f32 %v1375, %v1657
        %v1826 = vmax.f32 %v1383, %v1659
        %v1827 = vmax.f32 %v1391, %v1661
        %v1828 = vmax.f32 %v1390, %v1663
        %v1829 = vmax.f32 %v1392, %v1665
        %v1830 = vmax.f32 %v1400, %v1667
        %v1831 = vmax.f32 %v1408, %v1669
        %v1832 = vmax.f32 %v1407, %v1671
        %v1833 = vmax.f32 %v1409, %v1673
        %v1834 = vmax.f32 %v1417, %v1675
        %v1835 = vmax.f32 %v1425, %v1677
        %v1836 = vmax.f32 %v1424, %v1679
        %v1837 = vmax.f32 %v1426, %v1681
        %v1838 = vmax.f32 %v1434, %v1683
        %v1839 = vmax.f32 %v1442, %v1685
        %v1840 = vmax.f32 %v1441, %v1687
        %v1841 = vmax.f32 %v1443, %v1689
        %v1842 = vmax.f32 %v1451, %v1691
        %v1843 = vmax.f32 %v1459, %v1693
        %v1844 = vmax.f32 %v1458, %v1695
        %v1845 = vmax.f32 %v1460, %v1697
        %v1846 = vmax.f32 %v1468, %v1699
        %v1847 = vmax.f32 %v1476, %v1701
        %v1848 = vmax.f32 %v1475, %v1703
        %v1849 = vmax.f32 %v1477, %v1705
        %v1850 = vmax.f32 %v1485, %v1707
        %v1851 = vmax.f32 %v1493, %v1709
        %v1852 = vmax.f32 %v1492, %v1711
        %v1853 = vmax.f32 %v1494, %v1713
        %v1854 = vmax.f32 %v1502, %v1715
        %v1855 = vmax.f32 %v1510, %v1717
        %v1856 = vmax.f32 %v1509, %v1719
        %v1857 = vmax.f32 %v1511, %v1721
        %v1858 = vmax.f32 %v1519, %v1723
        %v1859 = vmax.f32 %v1527, %v1725
        %v1860 = vmax.f32 %v1526, %v1727
        %v1861 = vmax.f32 %v1528, %v1729
        %v1862 = vmax.f32 %v1536, %v1731
        %v1863 = vmax.f32 %v1544, %v1733
        %v1864 = vmax.f32 %v1543, %v1735
        %v1865 = vmax.f32 %v1545, %v1737
        %vm1930 = vcmask 1044484
        %v1931 = vsel %vm1930, %v1802, %v1802
        %vm1932 = vcmask 1046534
        %v1933 = vsel %vm1932, %v1802, %v1931
        %v1934 = vrot.slane %v1803, 7
        %vm1935 = vcmask 1041409
        %v1936 = vsel %vm1935, %v1934, %v1933
        %vm1937 = vcmask 1043459
        %v1938 = vsel %vm1937, %v1934, %v1936
        %vm1939 = vcmask 1045509
        %v1940 = vsel %vm1939, %v1934, %v1938
        %vm1941 = vcmask 1047559
        %v1942 = vsel %vm1941, %v1934, %v1940
        %v1943 = vsel %vm1930, %v1804, %v1804
        %v1944 = vsel %vm1932, %v1804, %v1943
        %v1945 = vrot.slane %v1805, 7
        %v1946 = vsel %vm1935, %v1945, %v1944
        %v1947 = vsel %vm1937, %v1945, %v1946
        %v1948 = vsel %vm1939, %v1945, %v1947
        %v1949 = vsel %vm1941, %v1945, %v1948
        %v1950 = vsel %vm1930, %v1806, %v1806
        %v1951 = vsel %vm1932, %v1806, %v1950
        %v1952 = vrot.slane %v1807, 7
        %v1953 = vsel %vm1935, %v1952, %v1951
        %v1954 = vsel %vm1937, %v1952, %v1953
        %v1955 = vsel %vm1939, %v1952, %v1954
        %v1956 = vsel %vm1941, %v1952, %v1955
        %v1957 = vsel %vm1930, %v1808, %v1808
        %v1958 = vsel %vm1932, %v1808, %v1957
        %v1959 = vrot.slane %v1809, 7
        %v1960 = vsel %vm1935, %v1959, %v1958
        %v1961 = vsel %vm1937, %v1959, %v1960
        %v1962 = vsel %vm1939, %v1959, %v1961
        %v1963 = vsel %vm1941, %v1959, %v1962
        %v1964 = vsel %vm1930, %v1810, %v1810
        %v1965 = vsel %vm1932, %v1810, %v1964
        %v1966 = vrot.slane %v1811, 7
        %v1967 = vsel %vm1935, %v1966, %v1965
        %v1968 = vsel %vm1937, %v1966, %v1967
        %v1969 = vsel %vm1939, %v1966, %v1968
        %v1970 = vsel %vm1941, %v1966, %v1969
        %v1971 = vsel %vm1930, %v1812, %v1812
        %v1972 = vsel %vm1932, %v1812, %v1971
        %v1973 = vrot.slane %v1813, 7
        %v1974 = vsel %vm1935, %v1973, %v1972
        %v1975 = vsel %vm1937, %v1973, %v1974
        %v1976 = vsel %vm1939, %v1973, %v1975
        %v1977 = vsel %vm1941, %v1973, %v1976
        %v1978 = vsel %vm1930, %v1814, %v1814
        %v1979 = vsel %vm1932, %v1814, %v1978
        %v1980 = vrot.slane %v1815, 7
        %v1981 = vsel %vm1935, %v1980, %v1979
        %v1982 = vsel %vm1937, %v1980, %v1981
        %v1983 = vsel %vm1939, %v1980, %v1982
        %v1984 = vsel %vm1941, %v1980, %v1983
        %v1985 = vsel %vm1930, %v1816, %v1816
        %v1986 = vsel %vm1932, %v1816, %v1985
        %v1987 = vrot.slane %v1817, 7
        %v1988 = vsel %vm1935, %v1987, %v1986
        %v1989 = vsel %vm1937, %v1987, %v1988
        %v1990 = vsel %vm1939, %v1987, %v1989
        %v1991 = vsel %vm1941, %v1987, %v1990
        %v1992 = vsel %vm1930, %v1818, %v1818
        %v1993 = vsel %vm1932, %v1818, %v1992
        %v1994 = vrot.slane %v1819, 7
        %v1995 = vsel %vm1935, %v1994, %v1993
        %v1996 = vsel %vm1937, %v1994, %v1995
        %v1997 = vsel %vm1939, %v1994, %v1996
        %v1998 = vsel %vm1941, %v1994, %v1997
        %v1999 = vsel %vm1930, %v1820, %v1820
        %v2000 = vsel %vm1932, %v1820, %v1999
        %v2001 = vrot.slane %v1821, 7
        %v2002 = vsel %vm1935, %v2001, %v2000
        %v2003 = vsel %vm1937, %v2001, %v2002
        %v2004 = vsel %vm1939, %v2001, %v2003
        %v2005 = vsel %vm1941, %v2001, %v2004
        %v2006 = vsel %vm1930, %v1822, %v1822
        %v2007 = vsel %vm1932, %v1822, %v2006
        %v2008 = vrot.slane %v1823, 7
        %v2009 = vsel %vm1935, %v2008, %v2007
        %v2010 = vsel %vm1937, %v2008, %v2009
        %v2011 = vsel %vm1939, %v2008, %v2010
        %v2012 = vsel %vm1941, %v2008, %v2011
        %v2013 = vsel %vm1930, %v1824, %v1824
        %v2014 = vsel %vm1932, %v1824, %v2013
        %v2015 = vrot.slane %v1825, 7
        %v2016 = vsel %vm1935, %v2015, %v2014
        %v2017 = vsel %vm1937, %v2015, %v2016
        %v2018 = vsel %vm1939, %v2015, %v2017
        %v2019 = vsel %vm1941, %v2015, %v2018
        %v2020 = vsel %vm1930, %v1826, %v1826
        %v2021 = vsel %vm1932, %v1826, %v2020
        %v2022 = vrot.slane %v1827, 7
        %v2023 = vsel %vm1935, %v2022, %v2021
        %v2024 = vsel %vm1937, %v2022, %v2023
        %v2025 = vsel %vm1939, %v2022, %v2024
        %v2026 = vsel %vm1941, %v2022, %v2025
        %v2027 = vsel %vm1930, %v1828, %v1828
        %v2028 = vsel %vm1932, %v1828, %v2027
        %v2029 = vrot.slane %v1829, 7
        %v2030 = vsel %vm1935, %v2029, %v2028
        %v2031 = vsel %vm1937, %v2029, %v2030
        %v2032 = vsel %vm1939, %v2029, %v2031
        %v2033 = vsel %vm1941, %v2029, %v2032
        %v2034 = vsel %vm1930, %v1830, %v1830
        %v2035 = vsel %vm1932, %v1830, %v2034
        %v2036 = vrot.slane %v1831, 7
        %v2037 = vsel %vm1935, %v2036, %v2035
        %v2038 = vsel %vm1937, %v2036, %v2037
        %v2039 = vsel %vm1939, %v2036, %v2038
        %v2040 = vsel %vm1941, %v2036, %v2039
        %v2041 = vsel %vm1930, %v1832, %v1832
        %v2042 = vsel %vm1932, %v1832, %v2041
        %v2043 = vrot.slane %v1833, 7
        %v2044 = vsel %vm1935, %v2043, %v2042
        %v2045 = vsel %vm1937, %v2043, %v2044
        %v2046 = vsel %vm1939, %v2043, %v2045
        %v2047 = vsel %vm1941, %v2043, %v2046
        %v2048 = vsel %vm1930, %v1834, %v1834
        %v2049 = vsel %vm1932, %v1834, %v2048
        %v2050 = vrot.slane %v1835, 7
        %v2051 = vsel %vm1935, %v2050, %v2049
        %v2052 = vsel %vm1937, %v2050, %v2051
        %v2053 = vsel %vm1939, %v2050, %v2052
        %v2054 = vsel %vm1941, %v2050, %v2053
        %v2055 = vsel %vm1930, %v1836, %v1836
        %v2056 = vsel %vm1932, %v1836, %v2055
        %v2057 = vrot.slane %v1837, 7
        %v2058 = vsel %vm1935, %v2057, %v2056
        %v2059 = vsel %vm1937, %v2057, %v2058
        %v2060 = vsel %vm1939, %v2057, %v2059
        %v2061 = vsel %vm1941, %v2057, %v2060
        %v2062 = vsel %vm1930, %v1838, %v1838
        %v2063 = vsel %vm1932, %v1838, %v2062
        %v2064 = vrot.slane %v1839, 7
        %v2065 = vsel %vm1935, %v2064, %v2063
        %v2066 = vsel %vm1937, %v2064, %v2065
        %v2067 = vsel %vm1939, %v2064, %v2066
        %v2068 = vsel %vm1941, %v2064, %v2067
        %v2069 = vsel %vm1930, %v1840, %v1840
        %v2070 = vsel %vm1932, %v1840, %v2069
        %v2071 = vrot.slane %v1841, 7
        %v2072 = vsel %vm1935, %v2071, %v2070
        %v2073 = vsel %vm1937, %v2071, %v2072
        %v2074 = vsel %vm1939, %v2071, %v2073
        %v2075 = vsel %vm1941, %v2071, %v2074
        %v2076 = vsel %vm1930, %v1842, %v1842
        %v2077 = vsel %vm1932, %v1842, %v2076
        %v2078 = vrot.slane %v1843, 7
        %v2079 = vsel %vm1935, %v2078, %v2077
        %v2080 = vsel %vm1937, %v2078, %v2079
        %v2081 = vsel %vm1939, %v2078, %v2080
        %v2082 = vsel %vm1941, %v2078, %v2081
        %v2083 = vsel %vm1930, %v1844, %v1844
        %v2084 = vsel %vm1932, %v1844, %v2083
        %v2085 = vrot.slane %v1845, 7
        %v2086 = vsel %vm1935, %v2085, %v2084
        %v2087 = vsel %vm1937, %v2085, %v2086
        %v2088 = vsel %vm1939, %v2085, %v2087
        %v2089 = vsel %vm1941, %v2085, %v2088
        %v2090 = vsel %vm1930, %v1846, %v1846
        %v2091 = vsel %vm1932, %v1846, %v2090
        %v2092 = vrot.slane %v1847, 7
        %v2093 = vsel %vm1935, %v2092, %v2091
        %v2094 = vsel %vm1937, %v2092, %v2093
        %v2095 = vsel %vm1939, %v2092, %v2094
        %v2096 = vsel %vm1941, %v2092, %v2095
        %v2097 = vsel %vm1930, %v1848, %v1848
        %v2098 = vsel %vm1932, %v1848, %v2097
        %v2099 = vrot.slane %v1849, 7
        %v2100 = vsel %vm1935, %v2099, %v2098
        %v2101 = vsel %vm1937, %v2099, %v2100
        %v2102 = vsel %vm1939, %v2099, %v2101
        %v2103 = vsel %vm1941, %v2099, %v2102
        %v2104 = vsel %vm1930, %v1850, %v1850
        %v2105 = vsel %vm1932, %v1850, %v2104
        %v2106 = vrot.slane %v1851, 7
        %v2107 = vsel %vm1935, %v2106, %v2105
        %v2108 = vsel %vm1937, %v2106, %v2107
        %v2109 = vsel %vm1939, %v2106, %v2108
        %v2110 = vsel %vm1941, %v2106, %v2109
        %v2111 = vsel %vm1930, %v1852, %v1852
        %v2112 = vsel %vm1932, %v1852, %v2111
        %v2113 = vrot.slane %v1853, 7
        %v2114 = vsel %vm1935, %v2113, %v2112
        %v2115 = vsel %vm1937, %v2113, %v2114
        %v2116 = vsel %vm1939, %v2113, %v2115
        %v2117 = vsel %vm1941, %v2113, %v2116
        %v2118 = vsel %vm1930, %v1854, %v1854
        %v2119 = vsel %vm1932, %v1854, %v2118
        %v2120 = vrot.slane %v1855, 7
        %v2121 = vsel %vm1935, %v2120, %v2119
        %v2122 = vsel %vm1937, %v2120, %v2121
        %v2123 = vsel %vm1939, %v2120, %v2122
        %v2124 = vsel %vm1941, %v2120, %v2123
        %v2125 = vsel %vm1930, %v1856, %v1856
        %v2126 = vsel %vm1932, %v1856, %v2125
        %v2127 = vrot.slane %v1857, 7
        %v2128 = vsel %vm1935, %v2127, %v2126
        %v2129 = vsel %vm1937, %v2127, %v2128
        %v2130 = vsel %vm1939, %v2127, %v2129
        %v2131 = vsel %vm1941, %v2127, %v2130
        %v2132 = vsel %vm1930, %v1858, %v1858
        %v2133 = vsel %vm1932, %v1858, %v2132
        %v2134 = vrot.slane %v1859, 7
        %v2135 = vsel %vm1935, %v2134, %v2133
        %v2136 = vsel %vm1937, %v2134, %v2135
        %v2137 = vsel %vm1939, %v2134, %v2136
        %v2138 = vsel %vm1941, %v2134, %v2137
        %v2139 = vsel %vm1930, %v1860, %v1860
        %v2140 = vsel %vm1932, %v1860, %v2139
        %v2141 = vrot.slane %v1861, 7
        %v2142 = vsel %vm1935, %v2141, %v2140
        %v2143 = vsel %vm1937, %v2141, %v2142
        %v2144 = vsel %vm1939, %v2141, %v2143
        %v2145 = vsel %vm1941, %v2141, %v2144
        %v2146 = vsel %vm1930, %v1862, %v1862
        %v2147 = vsel %vm1932, %v1862, %v2146
        %v2148 = vrot.slane %v1863, 7
        %v2149 = vsel %vm1935, %v2148, %v2147
        %v2150 = vsel %vm1937, %v2148, %v2149
        %v2151 = vsel %vm1939, %v2148, %v2150
        %v2152 = vsel %vm1941, %v2148, %v2151
        %v2153 = vsel %vm1930, %v1864, %v1864
        %v2154 = vsel %vm1932, %v1864, %v2153
        %v2155 = vrot.slane %v1865, 7
        %v2156 = vsel %vm1935, %v2155, %v2154
        %v2157 = vsel %vm1937, %v2155, %v2156
        %v2158 = vsel %vm1939, %v2155, %v2157
        %v2159 = vsel %vm1941, %v2155, %v2158
        %v2192 = vcombine.low %v1942, %v1970
        %v2194 = vunpack.c.l.s4 1934713408
        %v2195 = vunpack.c.0.s8 %v2194
        %v2196 = vlaneseq
        %v2197 = vshrl.u32 %v2196, 7
        %v2198 = vsub.s32 %v2195, %v2197
        %v2199 = vrot.slane %v2192, %v2198
        %v2200 = vcombine.high %v2199, 0.0
        %v2201 = vcombine.low %v1998, %v2026
        %v2203 = vunpack.c.l.s4 1934713408
        %v2204 = vunpack.c.0.s8 %v2203
        %v2205 = vlaneseq
        %v2206 = vshrl.u32 %v2205, 7
        %v2207 = vsub.s32 %v2204, %v2206
        %v2208 = vrot.slane %v2201, %v2207
        %v2209 = vcombine.high %v2208, 0.0
        %v2210 = vcombine.low %v2054, %v2082
        %v2212 = vunpack.c.l.s4 1934713408
        %v2213 = vunpack.c.0.s8 %v2212
        %v2214 = vlaneseq
        %v2215 = vshrl.u32 %v2214, 7
        %v2216 = vsub.s32 %v2213, %v2215
        %v2217 = vrot.slane %v2210, %v2216
        %v2218 = vcombine.high %v2217, 0.0
        %v2219 = vcombine.low %v2110, %v2138
        %v2221 = vunpack.c.l.s4 1934713408
        %v2222 = vunpack.c.0.s8 %v2221
        %v2223 = vlaneseq
        %v2224 = vshrl.u32 %v2223, 7
        %v2225 = vsub.s32 %v2222, %v2224
        %v2226 = vrot.slane %v2219, %v2225
        %v2227 = vcombine.high %v2226, 0.0
        %v2228 = vcombine.low %v1949, %v1977
        %v2230 = vunpack.c.l.s4 1934713408
        %v2231 = vunpack.c.0.s8 %v2230
        %v2232 = vlaneseq
        %v2233 = vshrl.u32 %v2232, 7
        %v2234 = vsub.s32 %v2231, %v2233
        %v2235 = vrot.slane %v2228, %v2234
        %v2236 = vcombine.high %v2235, 0.0
        %v2237 = vcombine.low %v2005, %v2033
        %v2239 = vunpack.c.l.s4 1934713408
        %v2240 = vunpack.c.0.s8 %v2239
        %v2241 = vlaneseq
        %v2242 = vshrl.u32 %v2241, 7
        %v2243 = vsub.s32 %v2240, %v2242
        %v2244 = vrot.slane %v2237, %v2243
        %v2245 = vcombine.high %v2244, 0.0
        %v2246 = vcombine.low %v2061, %v2089
        %v2248 = vunpack.c.l.s4 1934713408
        %v2249 = vunpack.c.0.s8 %v2248
        %v2250 = vlaneseq
        %v2251 = vshrl.u32 %v2250, 7
        %v2252 = vsub.s32 %v2249, %v2251
        %v2253 = vrot.slane %v2246, %v2252
        %v2254 = vcombine.high %v2253, 0.0
        %v2255 = vcombine.low %v2117, %v2145
        %v2257 = vunpack.c.l.s4 1934713408
        %v2258 = vunpack.c.0.s8 %v2257
        %v2259 = vlaneseq
        %v2260 = vshrl.u32 %v2259, 7
        %v2261 = vsub.s32 %v2258, %v2260
        %v2262 = vrot.slane %v2255, %v2261
        %v2263 = vcombine.high %v2262, 0.0
        %v2264 = vcombine.low %v1956, %v1984
        %v2266 = vunpack.c.l.s4 1934713408
        %v2267 = vunpack.c.0.s8 %v2266
        %v2268 = vlaneseq
        %v2269 = vshrl.u32 %v2268, 7
        %v2270 = vsub.s32 %v2267, %v2269
        %v2271 = vrot.slane %v2264, %v2270
        %v2272 = vcombine.high %v2271, 0.0
        %v2273 = vcombine.low %v2012, %v2040
        %v2275 = vunpack.c.l.s4 1934713408
        %v2276 = vunpack.c.0.s8 %v2275
        %v2277 = vlaneseq
        %v2278 = vshrl.u32 %v2277, 7
        %v2279 = vsub.s32 %v2276, %v2278
        %v2280 = vrot.slane %v2273, %v2279
        %v2281 = vcombine.high %v2280, 0.0
        %v2282 = vcombine.low %v2068, %v2096
        %v2284 = vunpack.c.l.s4 1934713408
        %v2285 = vunpack.c.0.s8 %v2284
        %v2286 = vlaneseq
        %v2287 = vshrl.u32 %v2286, 7
        %v2288 = vsub.s32 %v2285, %v2287
        %v2289 = vrot.slane %v2282, %v2288
        %v2290 = vcombine.high %v2289, 0.0
        %v2291 = vcombine.low %v2124, %v2152
        %v2293 = vunpack.c.l.s4 1934713408
        %v2294 = vunpack.c.0.s8 %v2293
        %v2295 = vlaneseq
        %v2296 = vshrl.u32 %v2295, 7
        %v2297 = vsub.s32 %v2294, %v2296
        %v2298 = vrot.slane %v2291, %v2297
        %v2299 = vcombine.high %v2298, 0.0
        %v2300 = vcombine.low %v1963, %v1991
        %v2302 = vunpack.c.l.s4 1934713408
        %v2303 = vunpack.c.0.s8 %v2302
        %v2304 = vlaneseq
        %v2305 = vshrl.u32 %v2304, 7
        %v2306 = vsub.s32 %v2303, %v2305
        %v2307 = vrot.slane %v2300, %v2306
        %v2308 = vcombine.high %v2307, 0.0
        %v2309 = vcombine.low %v2019, %v2047
        %v2311 = vunpack.c.l.s4 1934713408
        %v2312 = vunpack.c.0.s8 %v2311
        %v2313 = vlaneseq
        %v2314 = vshrl.u32 %v2313, 7
        %v2315 = vsub.s32 %v2312, %v2314
        %v2316 = vrot.slane %v2309, %v2315
        %v2317 = vcombine.high %v2316, 0.0
        %v2318 = vcombine.low %v2075, %v2103
        %v2320 = vunpack.c.l.s4 1934713408
        %v2321 = vunpack.c.0.s8 %v2320
        %v2322 = vlaneseq
        %v2323 = vshrl.u32 %v2322, 7
        %v2324 = vsub.s32 %v2321, %v2323
        %v2325 = vrot.slane %v2318, %v2324
        %v2326 = vcombine.high %v2325, 0.0
        %v2327 = vcombine.low %v2131, %v2159
        %v2329 = vunpack.c.l.s4 1934713408
        %v2330 = vunpack.c.0.s8 %v2329
        %v2331 = vlaneseq
        %v2332 = vshrl.u32 %v2331, 7
        %v2333 = vsub.s32 %v2330, %v2332
        %v2334 = vrot.slane %v2327, %v2333
        %v2335 = vcombine.high %v2334, 0.0
        %v2340 = vcombine.low %v2199, %v2208
        %v2341 = vcombine.low %v2217, %v2226
        %v2343 = vunpack.c.l.s4 1983009808
        %v2344 = vunpack.c.0.s8 %v2343
        %v2345 = vlaneseq
        %v2346 = vshrl.u32 %v2345, 7
        %v2347 = vsub.s32 %v2344, %v2346
        %v2348 = vrot.slane %v2340, %v2347
        %v2350 = vunpack.c.l.s4 1983009808
        %v2351 = vunpack.c.0.s8 %v2350
        %v2352 = vlaneseq
        %v2353 = vshrl.u32 %v2352, 7
        %v2354 = vsub.s32 %v2351, %v2353
        %v2355 = vrot.slane %v2341, %v2354
        %v2356 = vcombine.low %v2348, %v2355
        %v2362 = vcombine.low %v2200, %v2209
        %v2363 = vcombine.low %v2218, %v2227
        %v2365 = vunpack.c.l.s4 1983009808
        %v2366 = vunpack.c.0.s8 %v2365
        %v2367 = vlaneseq
        %v2368 = vshrl.u32 %v2367, 7
        %v2369 = vsub.s32 %v2366, %v2368
        %v2370 = vrot.slane %v2362, %v2369
        %v2372 = vunpack.c.l.s4 1983009808
        %v2373 = vunpack.c.0.s8 %v2372
        %v2374 = vlaneseq
        %v2375 = vshrl.u32 %v2374, 7
        %v2376 = vsub.s32 %v2373, %v2375
        %v2377 = vrot.slane %v2363, %v2376
        %v2378 = vcombine.low %v2370, %v2377
        %2379 = vrot.lane.b32.xlu0 %v2378, 64
        %v2380 = vpop.permute.xlu0 %2379
        %v2386 = vcombine.low %v2235, %v2244
        %v2387 = vcombine.low %v2253, %v2262
        %v2389 = vunpack.c.l.s4 1983009808
        %v2390 = vunpack.c.0.s8 %v2389
        %v2391 = vlaneseq
        %v2392 = vshrl.u32 %v2391, 7
        %v2393 = vsub.s32 %v2390, %v2392
        %v2394 = vrot.slane %v2386, %v2393
        %v2396 = vunpack.c.l.s4 1983009808
        %v2397 = vunpack.c.0.s8 %v2396
        %v2398 = vlaneseq
        %v2399 = vshrl.u32 %v2398, 7
        %v2400 = vsub.s32 %v2397, %v2399
        %v2401 = vrot.slane %v2387, %v2400
        %v2402 = vcombine.low %v2394, %v2401
        %v2408 = vcombine.low %v2236, %v2245
        %v2409 = vcombine.low %v2254, %v2263
        %v2411 = vunpack.c.l.s4 1983009808
        %v2412 = vunpack.c.0.s8 %v2411
        %v2413 = vlaneseq
        %v2414 = vshrl.u32 %v2413, 7
        %v2415 = vsub.s32 %v2412, %v2414
        %v2416 = vrot.slane %v2408, %v2415
        %v2418 = vunpack.c.l.s4 1983009808
        %v2419 = vunpack.c.0.s8 %v2418
        %v2420 = vlaneseq
        %v2421 = vshrl.u32 %v2420, 7
        %v2422 = vsub.s32 %v2419, %v2421
        %v2423 = vrot.slane %v2409, %v2422
        %v2424 = vcombine.low %v2416, %v2423
        %2425 = vrot.lane.b32.xlu0 %v2424, 64
        %v2426 = vpop.permute.xlu0 %2425
        %v2432 = vcombine.low %v2271, %v2280
        %v2433 = vcombine.low %v2289, %v2298
        %v2435 = vunpack.c.l.s4 1983009808
        %v2436 = vunpack.c.0.s8 %v2435
        %v2437 = vlaneseq
        %v2438 = vshrl.u32 %v2437, 7
        %v2439 = vsub.s32 %v2436, %v2438
        %v2440 = vrot.slane %v2432, %v2439
        %v2442 = vunpack.c.l.s4 1983009808
        %v2443 = vunpack.c.0.s8 %v2442
        %v2444 = vlaneseq
        %v2445 = vshrl.u32 %v2444, 7
        %v2446 = vsub.s32 %v2443, %v2445
        %v2447 = vrot.slane %v2433, %v2446
        %v2448 = vcombine.low %v2440, %v2447
        %v2454 = vcombine.low %v2272, %v2281
        %v2455 = vcombine.low %v2290, %v2299
        %v2457 = vunpack.c.l.s4 1983009808
        %v2458 = vunpack.c.0.s8 %v2457
        %v2459 = vlaneseq
        %v2460 = vshrl.u32 %v2459, 7
        %v2461 = vsub.s32 %v2458, %v2460
        %v2462 = vrot.slane %v2454, %v2461
        %v2464 = vunpack.c.l.s4 1983009808
        %v2465 = vunpack.c.0.s8 %v2464
        %v2466 = vlaneseq
        %v2467 = vshrl.u32 %v2466, 7
        %v2468 = vsub.s32 %v2465, %v2467
        %v2469 = vrot.slane %v2455, %v2468
        %v2470 = vcombine.low %v2462, %v2469
        %2471 = vrot.lane.b32.xlu0 %v2470, 64
        %v2472 = vpop.permute.xlu0 %2471
        %v2478 = vcombine.low %v2307, %v2316
        %v2479 = vcombine.low %v2325, %v2334
        %v2481 = vunpack.c.l.s4 1983009808
        %v2482 = vunpack.c.0.s8 %v2481
        %v2483 = vlaneseq
        %v2484 = vshrl.u32 %v2483, 7
        %v2485 = vsub.s32 %v2482, %v2484
        %v2486 = vrot.slane %v2478, %v2485
        %v2488 = vunpack.c.l.s4 1983009808
        %v2489 = vunpack.c.0.s8 %v2488
        %v2490 = vlaneseq
        %v2491 = vshrl.u32 %v2490, 7
        %v2492 = vsub.s32 %v2489, %v2491
        %v2493 = vrot.slane %v2479, %v2492
        %v2494 = vcombine.low %v2486, %v2493
        %v2500 = vcombine.low %v2308, %v2317
        %v2501 = vcombine.low %v2326, %v2335
        %v2503 = vunpack.c.l.s4 1983009808
        %v2504 = vunpack.c.0.s8 %v2503
        %v2505 = vlaneseq
        %v2506 = vshrl.u32 %v2505, 7
        %v2507 = vsub.s32 %v2504, %v2506
        %v2508 = vrot.slane %v2500, %v2507
        %v2510 = vunpack.c.l.s4 1983009808
        %v2511 = vunpack.c.0.s8 %v2510
        %v2512 = vlaneseq
        %v2513 = vshrl.u32 %v2512, 7
        %v2514 = vsub.s32 %v2511, %v2513
        %v2515 = vrot.slane %v2501, %v2514
        %v2516 = vcombine.low %v2508, %v2515
        %2517 = vrot.lane.b32.xlu0 %v2516, 64
        %v2518 = vpop.permute.xlu0 %2517
        %v2520 = vsel %vm554, %v2356, %v2380
        %v2521 = vsel %vm554, %v2402, %v2426
        %v2522 = vsel %vm554, %v2448, %v2472
        %v2523 = vsel %vm554, %v2494, %v2518
        %v2524 = vpack.c.bf16 %v2520, %v2520
        %v2525 = vpack.c.bf16 %v2521, %v2521
        %v2526 = vpack.c.bf16 %v2522, %v2522
        %v2527 = vpack.c.bf16 %v2523, %v2523
        %v2532 = vunpack.c.l.b16 %v2524
        %v2533 = vunpack.c.l.b16 %v2525
        %v2534 = vunpack.c.l.b16 %v2526
        %v2535 = vunpack.c.l.b16 %v2527
        %v2536 = vpack.c.b16 %v2533, %v2532
        %v2537 = vpack.c.b16 %v2535, %v2534
        %2540 = vst [vmem:[%s212] sm:$0xff] %v2536
        %2541 = vst [vmem:[%s212 + $0x8] sm:$0xff] %v2537
        %p2542 = scmp.lt.s32.totalorder %s19, 1
        %s2543 = scalar_select %p2542, %s19, 1
        %p2544 = scmp.lt.s32.totalorder %s20, 0
        %s2545 = scalar_select %p2544, %s20, 0
        %s2546 = smul.addr %s2545, 4
        %s2547 = smul.addr %s2543, 4
        %s2548 = sadd.s32 %s2546, %s2547
        %s2549 = smul.addr %s2548, 4
        %s2550 = scalar_lea.vmem %s3, %s2549
        // Predicated region
        $region37: #{itm_model_forward.4} parent=31 // pred_check
          %p2551 = pneg %p117
        $region38: #{itm_model_forward.4} parent=31 // pred_check_branch
          %2553 = sbr.rel (%p2551) target = $region40
        $region39: #{itm_model_forward.4} parent=31 // pred_region
          _
        $region40: #{itm_model_forward.4} parent=31 // pred_fallthru
          _
      $region32: #{itm_model_forward.4} parent=5 // pred_fallthru
        _
      %p2554 = scmp.le.s32.totalorder 2, %s10
      // Predicated region
      $region41: #{itm_model_forward.4} parent=5 // pred_check
        %p2555 = pneg %p2554
      $region42: #{itm_model_forward.4} parent=5 // pred_check_branch
        %2557 = sbr.rel (%p2555) target = $region44
      $region43: #{itm_model_forward.4} parent=5 // pred_region
        %s2558 = ssub.s32 %s10, 2
        // Predicated region
        $region45: #{itm_model_forward.4} parent=43 // pred_check
          %p2559 = pneg %p123
        $region46: #{itm_model_forward.4} parent=43 // pred_check_branch
          %2561 = sbr.rel (%p2559) target = $region48
        $region47: #{itm_model_forward.4} parent=43 // pred_region
          %p2562 = scmp.lt.s32.totalorder %s21, 1
          %s2563 = scalar_select %p2562, %s21, 1
          %p2564 = scmp.lt.s32.totalorder %s22, 0
          %s2565 = scalar_select %p2564, %s22, 0
          %s2566 = smul.addr %s2565, 4
          %s2567 = smul.addr %s2563, 4
          %s2568 = sadd.s32 %s2566, %s2567
          %s2569 = smul.addr %s2568, 4
          %s2570 = scalar_lea.vmem %s3, %s2569
        $region48: #{itm_model_forward.4} parent=43 // pred_fallthru
          _
      $region44: #{itm_model_forward.4} parent=5 // pred_fallthru
        _
    $region6: #{itm_model_forward.4} parent=1 // loop_footer
      %s14 = sadd.s32 1, %s10
    $region7: #{itm_model_forward.4} parent=1 // loop_footer_branch
      %9 = sbr.rel target = $region3
    $region8: #{itm_model_forward.4} parent=1 // loop_exit
      _
    %2571 = vsyncpa [#allocation4], 1
    %s2572 = scalar_lea.sflag [#allocation4], 1
    %2573 = vsyncpa %s2572, 1

// kernel: itm_model_forward.7
$region0: #{itm_model_forward.7}
  #allocation0 [shape = 'u32[]', space=smem, size = 0x4, offset = 0x4, fixed_abs, tag = 'smem constant byte address 0x4 - core index']
  #allocation1 [shape = 'u32[144,128]{1,0:T(1,128)}', space=vmem, size = 0x12000, scoped, tag = 'internal scratch']
  %s0 = inlined_call_operand.vmem [shape: bf16[2,512], index: 0, kind: input, shape index: {}]
  %s1 = inlined_call_operand.vmem [shape: bf16[2,768], index: 1, kind: input, shape index: {}]
  %s2 = inlined_call_operand.vmem [shape: bf16[2,768], index: 2, kind: input, shape index: {}]
  %s3 = inlined_call_operand.vmem [shape: bf16[512,128], index: 3, kind: input, shape index: {}]
  %s4 = inlined_call_operand.vmem [shape: f32[1,128], index: 4, kind: input, shape index: {}]
  %s5 = inlined_call_operand.vmem [shape: bf16[768,128], index: 5, kind: input, shape index: {}]
  %s6 = inlined_call_operand.vmem [shape: f32[1,128], index: 6, kind: input, shape index: {}]
  %s7 = inlined_call_operand.vmem [shape: bf16[768,128], index: 7, kind: input, shape index: {}]
  %s8 = inlined_call_operand.vmem [shape: f32[1,128], index: 8, kind: input, shape index: {}]
  %s9 = inlined_call_operand.vmem [shape: bf16[128,2], index: 9, kind: input, shape index: {}]
  %s10 = inlined_call_operand.vmem [shape: bf16[128,2], index: 10, kind: input, shape index: {}]
  %s11 = inlined_call_operand.vmem [shape: bf16[128,2], index: 11, kind: input, shape index: {}]
  %s12 = inlined_call_operand.vmem [shape: f32[1,2], index: 12, kind: input, shape index: {}]
  %s13 = inlined_call_operand.hbm [shape: f32[2,2], index: 13, kind: output, shape index: {}]
  %s14 = sld [smem:[#allocation0]]
  $region62: #{itm_model_forward.7} parent=0
    _
  %s16 = ssub.s32 1, %s14
  %s17 = scalar_select 0, %s16, %s14
  $region1: #{itm_model_forward.7} parent=0
    #allocation2 [shape = 'u8[1024]{0}', space=vmem, size = 0x400, scoped, tag = 'output window, operand 0, single buffered']
    #allocation3 [shape = 's32[1]{0}', space=sflag, size = 0x4, scoped, tag = 'scoped memory for itm_model_forward.7']
    %18 = vsyncpa [#allocation3], 0
    // Predicated region
    $region2: #{itm_model_forward.7} parent=1 // pred_check
      _
    $region3: #{itm_model_forward.7} parent=1 // pred_check_branch
      %20 = sbr.rel (0) target = $region5
    $region4: #{itm_model_forward.7} parent=1 // pred_region
      _
    $region5: #{itm_model_forward.7} parent=1 // pred_fallthru
      _
    // Predicated region
    $region6: #{itm_model_forward.7} parent=1 // pred_check
      _
    $region7: #{itm_model_forward.7} parent=1 // pred_check_branch
      %22 = sbr.rel (0) target = $region9
    $region8: #{itm_model_forward.7} parent=1 // pred_region
      _
    $region9: #{itm_model_forward.7} parent=1 // pred_fallthru
      _
    // Predicated region
    $region10: #{itm_model_forward.7} parent=1 // pred_check
      _
    $region11: #{itm_model_forward.7} parent=1 // pred_check_branch
      %24 = sbr.rel (0) target = $region13
    $region12: #{itm_model_forward.7} parent=1 // pred_region
      _
    $region13: #{itm_model_forward.7} parent=1 // pred_fallthru
      _
    // Predicated region
    $region14: #{itm_model_forward.7} parent=1 // pred_check
      _
    $region15: #{itm_model_forward.7} parent=1 // pred_check_branch
      %26 = sbr.rel (0) target = $region17
    $region16: #{itm_model_forward.7} parent=1 // pred_region
      _
    $region17: #{itm_model_forward.7} parent=1 // pred_fallthru
      _
    // Predicated region
    $region18: #{itm_model_forward.7} parent=1 // pred_check
      _
    $region19: #{itm_model_forward.7} parent=1 // pred_check_branch
      %28 = sbr.rel (0) target = $region21
    $region20: #{itm_model_forward.7} parent=1 // pred_region
      _
    $region21: #{itm_model_forward.7} parent=1 // pred_fallthru
      _
    // Predicated region
    $region22: #{itm_model_forward.7} parent=1 // pred_check
      _
    $region23: #{itm_model_forward.7} parent=1 // pred_check_branch
      %30 = sbr.rel (0) target = $region25
    $region24: #{itm_model_forward.7} parent=1 // pred_region
      _
    $region25: #{itm_model_forward.7} parent=1 // pred_fallthru
      _
    // Predicated region
    $region26: #{itm_model_forward.7} parent=1 // pred_check
      _
    $region27: #{itm_model_forward.7} parent=1 // pred_check_branch
      %32 = sbr.rel (0) target = $region29
    $region28: #{itm_model_forward.7} parent=1 // pred_region
      _
    $region29: #{itm_model_forward.7} parent=1 // pred_fallthru
      _
    // Predicated region
    $region30: #{itm_model_forward.7} parent=1 // pred_check
      _
    $region31: #{itm_model_forward.7} parent=1 // pred_check_branch
      %34 = sbr.rel (0) target = $region33
    $region32: #{itm_model_forward.7} parent=1 // pred_region
      _
    $region33: #{itm_model_forward.7} parent=1 // pred_fallthru
      _
    // Predicated region
    $region34: #{itm_model_forward.7} parent=1 // pred_check
      _
    $region35: #{itm_model_forward.7} parent=1 // pred_check_branch
      %36 = sbr.rel (0) target = $region37
    $region36: #{itm_model_forward.7} parent=1 // pred_region
      _
    $region37: #{itm_model_forward.7} parent=1 // pred_fallthru
      _
    // Predicated region
    $region38: #{itm_model_forward.7} parent=1 // pred_check
      _
    $region39: #{itm_model_forward.7} parent=1 // pred_check_branch
      %38 = sbr.rel (0) target = $region41
    $region40: #{itm_model_forward.7} parent=1 // pred_region
      _
    $region41: #{itm_model_forward.7} parent=1 // pred_fallthru
      _
    // Predicated region
    $region42: #{itm_model_forward.7} parent=1 // pred_check
      _
    $region43: #{itm_model_forward.7} parent=1 // pred_check_branch
      %40 = sbr.rel (0) target = $region45
    $region44: #{itm_model_forward.7} parent=1 // pred_region
      _
    $region45: #{itm_model_forward.7} parent=1 // pred_fallthru
      _
    // Predicated region
    $region46: #{itm_model_forward.7} parent=1 // pred_check
      _
    $region47: #{itm_model_forward.7} parent=1 // pred_check_branch
      %42 = sbr.rel (0) target = $region49
    $region48: #{itm_model_forward.7} parent=1 // pred_region
      _
    $region49: #{itm_model_forward.7} parent=1 // pred_fallthru
      _
    // Predicated region
    $region50: #{itm_model_forward.7} parent=1 // pred_check
      _
    $region51: #{itm_model_forward.7} parent=1 // pred_check_branch
      %44 = sbr.rel (0) target = $region53
    $region52: #{itm_model_forward.7} parent=1 // pred_region
      _
    $region53: #{itm_model_forward.7} parent=1 // pred_fallthru
      _
    %v46 = vld [vmem:[%s0] sm:$0xf]
    %v47 = vld [vmem:[%s3] sm:$0xf]
    %v48 = vld [vmem:[%s3 + $0x4] sm:$0xf]
    %v49 = vld [vmem:[%s3 + $0x8] sm:$0xf]
    %v50 = vld [vmem:[%s3 + $0xc] sm:$0xf]
    %v51 = vld [vmem:[%s3 + $0x10] sm:$0xf]
    %v52 = vld [vmem:[%s3 + $0x14] sm:$0xf]
    %v53 = vld [vmem:[%s3 + $0x18] sm:$0xf]
    %v54 = vld [vmem:[%s3 + $0x1c] sm:$0xf]
    %v55 = vld [vmem:[%s3 + $0x20] sm:$0xf]
    %v56 = vld [vmem:[%s3 + $0x24] sm:$0xf]
    %v57 = vld [vmem:[%s3 + $0x28] sm:$0xf]
    %v58 = vld [vmem:[%s3 + $0x2c] sm:$0xf]
    %v59 = vld [vmem:[%s3 + $0x30] sm:$0xf]
    %v60 = vld [vmem:[%s3 + $0x34] sm:$0xf]
    %v61 = vld [vmem:[%s3 + $0x38] sm:$0xf]
    %v62 = vld [vmem:[%s3 + $0x3c] sm:$0xf]
    %v63 = vld [vmem:[%s3 + $0x40] sm:$0xf]
    %v64 = vld [vmem:[%s3 + $0x44] sm:$0xf]
    %v65 = vld [vmem:[%s3 + $0x48] sm:$0xf]
    %v66 = vld [vmem:[%s3 + $0x4c] sm:$0xf]
    %v67 = vld [vmem:[%s3 + $0x50] sm:$0xf]
    %v68 = vld [vmem:[%s3 + $0x54] sm:$0xf]
    %v69 = vld [vmem:[%s3 + $0x58] sm:$0xf]
    %v70 = vld [vmem:[%s3 + $0x5c] sm:$0xf]
    %v71 = vld [vmem:[%s3 + $0x60] sm:$0xf]
    %v72 = vld [vmem:[%s3 + $0x64] sm:$0xf]
    %v73 = vld [vmem:[%s3 + $0x68] sm:$0xf]
    %v74 = vld [vmem:[%s3 + $0x6c] sm:$0xf]
    %v75 = vld [vmem:[%s3 + $0x70] sm:$0xf]
    %v76 = vld [vmem:[%s3 + $0x74] sm:$0xf]
    %v77 = vld [vmem:[%s3 + $0x78] sm:$0xf]
    %v78 = vld [vmem:[%s3 + $0x7c] sm:$0xf]
    %v79 = vld [vmem:[%s3 + $0x80] sm:$0xf]
    %v80 = vld [vmem:[%s3 + $0x84] sm:$0xf]
    %v81 = vld [vmem:[%s3 + $0x88] sm:$0xf]
    %v82 = vld [vmem:[%s3 + $0x8c] sm:$0xf]
    %v83 = vld [vmem:[%s3 + $0x90] sm:$0xf]
    %v84 = vld [vmem:[%s3 + $0x94] sm:$0xf]
    %v85 = vld [vmem:[%s3 + $0x98] sm:$0xf]
    %v86 = vld [vmem:[%s3 + $0x9c] sm:$0xf]
    %v87 = vld [vmem:[%s3 + $0xa0] sm:$0xf]
    %v88 = vld [vmem:[%s3 + $0xa4] sm:$0xf]
    %v89 = vld [vmem:[%s3 + $0xa8] sm:$0xf]
    %v90 = vld [vmem:[%s3 + $0xac] sm:$0xf]
    %v91 = vld [vmem:[%s3 + $0xb0] sm:$0xf]
    %v92 = vld [vmem:[%s3 + $0xb4] sm:$0xf]
    %v93 = vld [vmem:[%s3 + $0xb8] sm:$0xf]
    %v94 = vld [vmem:[%s3 + $0xbc] sm:$0xf]
    %v95 = vld [vmem:[%s3 + $0xc0] sm:$0xf]
    %v96 = vld [vmem:[%s3 + $0xc4] sm:$0xf]
    %v97 = vld [vmem:[%s3 + $0xc8] sm:$0xf]
    %v98 = vld [vmem:[%s3 + $0xcc] sm:$0xf]
    %v99 = vld [vmem:[%s3 + $0xd0] sm:$0xf]
    %v100 = vld [vmem:[%s3 + $0xd4] sm:$0xf]
    %v101 = vld [vmem:[%s3 + $0xd8] sm:$0xf]
    %v102 = vld [vmem:[%s3 + $0xdc] sm:$0xf]
    %v103 = vld [vmem:[%s3 + $0xe0] sm:$0xf]
    %v104 = vld [vmem:[%s3 + $0xe4] sm:$0xf]
    %v105 = vld [vmem:[%s3 + $0xe8] sm:$0xf]
    %v106 = vld [vmem:[%s3 + $0xec] sm:$0xf]
    %v107 = vld [vmem:[%s3 + $0xf0] sm:$0xf]
    %v108 = vld [vmem:[%s3 + $0xf4] sm:$0xf]
    %v109 = vld [vmem:[%s3 + $0xf8] sm:$0xf]
    %v110 = vld [vmem:[%s3 + $0xfc] sm:$0xf]
    %v111 = vld [vmem:[%s4] sm:$0x1]
    %v113 = vlaneseq
    %v114 = vshrl.u32 %v113, 7
    %v115 = vsub.s32 0, %v114
    %v116 = vrot.slane %v111, %v115
    %v120 = vunpack.c.l.s4 1966171168
    %v121 = vunpack.c.0.s8 %v120
    %v122 = vlaneseq
    %v123 = vshrl.u32 %v122, 7
    %v124 = vsub.s32 %v121, %v123
    %v125 = vrot.slane %v46, %v124
    %v126 = vcombine.high %v125, %v125
    %v128 = vunpack.c.l.s4 1966171168
    %v129 = vunpack.c.0.s8 %v128
    %v130 = vlaneseq
    %v131 = vshrl.u32 %v130, 7
    %v132 = vsub.s32 %v129, %v131
    %v133 = vrot.slane %v125, %v132
    %v135 = vunpack.c.l.s4 1966171168
    %v136 = vunpack.c.0.s8 %v135
    %v137 = vlaneseq
    %v138 = vshrl.u32 %v137, 7
    %v139 = vsub.s32 %v136, %v138
    %v140 = vrot.slane %v126, %v139
    %v141 = vcombine.high %v133, %v133
    %v142 = vcombine.high %v140, %v140
    %v211 = vunpack.c.l.b16 %v47
    %v212 = vunpack.c.l.b16 %v48
    %v213 = vunpack.c.l.b16 %v49
    %v214 = vunpack.c.l.b16 %v50
    %v215 = vunpack.c.l.b16 %v51
    %v216 = vunpack.c.l.b16 %v52
    %v217 = vunpack.c.l.b16 %v53
    %v218 = vunpack.c.l.b16 %v54
    %v219 = vunpack.c.l.b16 %v55
    %v220 = vunpack.c.l.b16 %v56
    %v221 = vunpack.c.l.b16 %v57
    %v222 = vunpack.c.l.b16 %v58
    %v223 = vunpack.c.l.b16 %v59
    %v224 = vunpack.c.l.b16 %v60
    %v225 = vunpack.c.l.b16 %v61
    %v226 = vunpack.c.l.b16 %v62
    %v227 = vunpack.c.l.b16 %v63
    %v228 = vunpack.c.l.b16 %v64
    %v229 = vunpack.c.l.b16 %v65
    %v230 = vunpack.c.l.b16 %v66
    %v231 = vunpack.c.l.b16 %v67
    %v232 = vunpack.c.l.b16 %v68
    %v233 = vunpack.c.l.b16 %v69
    %v234 = vunpack.c.l.b16 %v70
    %v235 = vunpack.c.l.b16 %v71
    %v236 = vunpack.c.l.b16 %v72
    %v237 = vunpack.c.l.b16 %v73
    %v238 = vunpack.c.l.b16 %v74
    %v239 = vunpack.c.l.b16 %v75
    %v240 = vunpack.c.l.b16 %v76
    %v241 = vunpack.c.l.b16 %v77
    %v242 = vunpack.c.l.b16 %v78
    %v243 = vunpack.c.l.b16 %v79
    %v244 = vunpack.c.l.b16 %v80
    %v245 = vunpack.c.l.b16 %v81
    %v246 = vunpack.c.l.b16 %v82
    %v247 = vunpack.c.l.b16 %v83
    %v248 = vunpack.c.l.b16 %v84
    %v249 = vunpack.c.l.b16 %v85
    %v250 = vunpack.c.l.b16 %v86
    %v251 = vunpack.c.l.b16 %v87
    %v252 = vunpack.c.l.b16 %v88
    %v253 = vunpack.c.l.b16 %v89
    %v254 = vunpack.c.l.b16 %v90
    %v255 = vunpack.c.l.b16 %v91
    %v256 = vunpack.c.l.b16 %v92
    %v257 = vunpack.c.l.b16 %v93
    %v258 = vunpack.c.l.b16 %v94
    %v259 = vunpack.c.l.b16 %v95
    %v260 = vunpack.c.l.b16 %v96
    %v261 = vunpack.c.l.b16 %v97
    %v262 = vunpack.c.l.b16 %v98
    %v263 = vunpack.c.l.b16 %v99
    %v264 = vunpack.c.l.b16 %v100
    %v265 = vunpack.c.l.b16 %v101
    %v266 = vunpack.c.l.b16 %v102
    %v267 = vunpack.c.l.b16 %v103
    %v268 = vunpack.c.l.b16 %v104
    %v269 = vunpack.c.l.b16 %v105
    %v270 = vunpack.c.l.b16 %v106
    %v271 = vunpack.c.l.b16 %v107
    %v272 = vunpack.c.l.b16 %v108
    %v273 = vunpack.c.l.b16 %v109
    %v274 = vunpack.c.l.b16 %v110
    %v275 = vpack.c.b16 %v212, %v211
    %v276 = vpack.c.b16 %v214, %v213
    %v277 = vpack.c.b16 %v216, %v215
    %v278 = vpack.c.b16 %v218, %v217
    %v279 = vpack.c.b16 %v220, %v219
    %v280 = vpack.c.b16 %v222, %v221
    %v281 = vpack.c.b16 %v224, %v223
    %v282 = vpack.c.b16 %v226, %v225
    %v283 = vpack.c.b16 %v228, %v227
    %v284 = vpack.c.b16 %v230, %v229
    %v285 = vpack.c.b16 %v232, %v231
    %v286 = vpack.c.b16 %v234, %v233
    %v287 = vpack.c.b16 %v236, %v235
    %v288 = vpack.c.b16 %v238, %v237
    %v289 = vpack.c.b16 %v240, %v239
    %v290 = vpack.c.b16 %v242, %v241
    %v291 = vpack.c.b16 %v244, %v243
    %v292 = vpack.c.b16 %v246, %v245
    %v293 = vpack.c.b16 %v248, %v247
    %v294 = vpack.c.b16 %v250, %v249
    %v295 = vpack.c.b16 %v252, %v251
    %v296 = vpack.c.b16 %v254, %v253
    %v297 = vpack.c.b16 %v256, %v255
    %v298 = vpack.c.b16 %v258, %v257
    %v299 = vpack.c.b16 %v260, %v259
    %v300 = vpack.c.b16 %v262, %v261
    %v301 = vpack.c.b16 %v264, %v263
    %v302 = vpack.c.b16 %v266, %v265
    %v303 = vpack.c.b16 %v268, %v267
    %v304 = vpack.c.b16 %v270, %v269
    %v305 = vpack.c.b16 %v272, %v271
    %v306 = vpack.c.b16 %v274, %v273
    %339 = vmatprep.subr.bf16.mxu0 0
    %340 = vmatpush1.bf16.msra.mxu0 %v282
    %341 = vmatprep.subr.bf16.mxu0 0
    %342 = vmatpush1.bf16.msra.mxu0 %v281
    %343 = vmatprep.subr.bf16.mxu0 0
    %344 = vmatpush1.bf16.msra.mxu0 %v280
    %345 = vmatprep.subr.bf16.mxu0 0
    %346 = vmatpush1.bf16.msra.mxu0 %v279
    %347 = vmatprep.subr.bf16.mxu0 0
    %348 = vmatpush1.bf16.msra.mxu0 %v278
    %349 = vmatprep.subr.bf16.mxu0 0
    %350 = vmatpush1.bf16.msra.mxu0 %v277
    %351 = vmatprep.subr.bf16.mxu0 0
    %352 = vmatpush1.bf16.msra.mxu0 %v276
    %353 = vmatprep.subr.bf16.mxu0 0
    %354 = vmatpush1.bf16.msra.mxu0 %v275
    %355 = vmatprep.subr.bf16.mxu0 0
    %356 = vmatpush2.bf16.msra.mxu0 %v290
    %357 = vmatprep.subr.bf16.mxu0 0
    %358 = vmatpush2.bf16.msra.mxu0 %v289
    %359 = vmatprep.subr.bf16.mxu0 0
    %360 = vmatpush2.bf16.msra.mxu0 %v288
    %361 = vmatprep.subr.bf16.mxu0 0
    %362 = vmatpush2.bf16.msra.mxu0 %v287
    %363 = vmatprep.subr.bf16.mxu0 0
    %364 = vmatpush2.bf16.msra.mxu0 %v286
    %365 = vmatprep.subr.bf16.mxu0 0
    %366 = vmatpush2.bf16.msra.mxu0 %v285
    %367 = vmatprep.subr.bf16.mxu0 0
    %368 = vmatpush2.bf16.msra.mxu0 %v284
    %369 = vmatprep.subr.bf16.mxu0 0
    %370 = vmatpush2.bf16.msra.mxu0 %v283
    %371 = vmatprep.mubr.bf16.mxu0 %v140
    %372 = vmatmul.mubr.bf16.gmra.mxu0 %v133
    %v373 = vpop.f32.mrf.mxu0
    %v374 = vadd.f32 %v116, %v373
    %v375 = vpop.f32.mrf.mxu0
    %v376 = vpop.f32.mrf.mxu0
    %v377 = vpop.f32.mrf.mxu0
    %378 = vdwg.mxu0
    %379 = vmatprep.subr.bf16.mxu0 0
    %380 = vmatpush1.bf16.msra.mxu0 %v298
    %381 = vmatprep.subr.bf16.mxu0 0
    %382 = vmatpush1.bf16.msra.mxu0 %v297
    %383 = vmatprep.subr.bf16.mxu0 0
    %384 = vmatpush1.bf16.msra.mxu0 %v296
    %385 = vmatprep.subr.bf16.mxu0 0
    %386 = vmatpush1.bf16.msra.mxu0 %v295
    %387 = vmatprep.subr.bf16.mxu0 0
    %388 = vmatpush1.bf16.msra.mxu0 %v294
    %389 = vmatprep.subr.bf16.mxu0 0
    %390 = vmatpush1.bf16.msra.mxu0 %v293
    %391 = vmatprep.subr.bf16.mxu0 0
    %392 = vmatpush1.bf16.msra.mxu0 %v292
    %393 = vmatprep.subr.bf16.mxu0 0
    %394 = vmatpush1.bf16.msra.mxu0 %v291
    %395 = vmatprep.subr.bf16.mxu0 0
    %396 = vmatpush2.bf16.msra.mxu0 %v306
    %397 = vmatprep.subr.bf16.mxu0 0
    %398 = vmatpush2.bf16.msra.mxu0 %v305
    %399 = vmatprep.subr.bf16.mxu0 0
    %400 = vmatpush2.bf16.msra.mxu0 %v304
    %401 = vmatprep.subr.bf16.mxu0 0
    %402 = vmatpush2.bf16.msra.mxu0 %v303
    %403 = vmatprep.subr.bf16.mxu0 0
    %404 = vmatpush2.bf16.msra.mxu0 %v302
    %405 = vmatprep.subr.bf16.mxu0 0
    %406 = vmatpush2.bf16.msra.mxu0 %v301
    %407 = vmatprep.subr.bf16.mxu0 0
    %408 = vmatpush2.bf16.msra.mxu0 %v300
    %409 = vmatprep.subr.bf16.mxu0 0
    %410 = vmatpush2.bf16.msra.mxu0 %v299
    %411 = vmatprep.mubr.bf16.mxu0 %v142
    %412 = vmatmul.mubr.bf16.gmra.mxu0 %v141
    %v413 = vpop.f32.mrf.mxu0
    %v414 = vadd.f32 %v374, %v413
    %v415 = vpop.f32.mrf.mxu0
    %v416 = vpop.f32.mrf.mxu0
    %v417 = vpop.f32.mrf.mxu0
    %418 = vdwg.mxu0
    %v419 = vld [vmem:[%s1] sm:$0x3f]
    %v420 = vld [vmem:[%s5] sm:$0xf]
    %v421 = vld [vmem:[%s5 + $0x4] sm:$0xf]
    %v422 = vld [vmem:[%s5 + $0x8] sm:$0xf]
    %v423 = vld [vmem:[%s5 + $0xc] sm:$0xf]
    %v424 = vld [vmem:[%s5 + $0x10] sm:$0xf]
    %v425 = vld [vmem:[%s5 + $0x14] sm:$0xf]
    %v426 = vld [vmem:[%s5 + $0x18] sm:$0xf]
    %v427 = vld [vmem:[%s5 + $0x1c] sm:$0xf]
    %v428 = vld [vmem:[%s5 + $0x20] sm:$0xf]
    %v429 = vld [vmem:[%s5 + $0x24] sm:$0xf]
    %v430 = vld [vmem:[%s5 + $0x28] sm:$0xf]
    %v431 = vld [vmem:[%s5 + $0x2c] sm:$0xf]
    %v432 = vld [vmem:[%s5 + $0x30] sm:$0xf]
    %v433 = vld [vmem:[%s5 + $0x34] sm:$0xf]
    %v434 = vld [vmem:[%s5 + $0x38] sm:$0xf]
    %v435 = vld [vmem:[%s5 + $0x3c] sm:$0xf]
    %v436 = vld [vmem:[%s5 + $0x40] sm:$0xf]
    %v437 = vld [vmem:[%s5 + $0x44] sm:$0xf]
    %v438 = vld [vmem:[%s5 + $0x48] sm:$0xf]
    %v439 = vld [vmem:[%s5 + $0x4c] sm:$0xf]
    %v440 = vld [vmem:[%s5 + $0x50] sm:$0xf]
    %v441 = vld [vmem:[%s5 + $0x54] sm:$0xf]
    %v442 = vld [vmem:[%s5 + $0x58] sm:$0xf]
    %v443 = vld [vmem:[%s5 + $0x5c] sm:$0xf]
    %v444 = vld [vmem:[%s5 + $0x60] sm:$0xf]
    %v445 = vld [vmem:[%s5 + $0x64] sm:$0xf]
    %v446 = vld [vmem:[%s5 + $0x68] sm:$0xf]
    %v447 = vld [vmem:[%s5 + $0x6c] sm:$0xf]
    %v448 = vld [vmem:[%s5 + $0x70] sm:$0xf]
    %v449 = vld [vmem:[%s5 + $0x74] sm:$0xf]
    %v450 = vld [vmem:[%s5 + $0x78] sm:$0xf]
    %v451 = vld [vmem:[%s5 + $0x7c] sm:$0xf]
    %v452 = vld [vmem:[%s5 + $0x80] sm:$0xf]
    %v453 = vld [vmem:[%s5 + $0x84] sm:$0xf]
    %v454 = vld [vmem:[%s5 + $0x88] sm:$0xf]
    %v455 = vld [vmem:[%s5 + $0x8c] sm:$0xf]
    %v456 = vld [vmem:[%s5 + $0x90] sm:$0xf]
    %v457 = vld [vmem:[%s5 + $0x94] sm:$0xf]
    %v458 = vld [vmem:[%s5 + $0x98] sm:$0xf]
    %v459 = vld [vmem:[%s5 + $0x9c] sm:$0xf]
    %v460 = vld [vmem:[%s5 + $0xa0] sm:$0xf]
    %v461 = vld [vmem:[%s5 + $0xa4] sm:$0xf]
    %v462 = vld [vmem:[%s5 + $0xa8] sm:$0xf]
    %v463 = vld [vmem:[%s5 + $0xac] sm:$0xf]
    %v464 = vld [vmem:[%s5 + $0xb0] sm:$0xf]
    %v465 = vld [vmem:[%s5 + $0xb4] sm:$0xf]
    %v466 = vld [vmem:[%s5 + $0xb8] sm:$0xf]
    %v467 = vld [vmem:[%s5 + $0xbc] sm:$0xf]
    %v468 = vld [vmem:[%s5 + $0xc0] sm:$0xf]
    %v469 = vld [vmem:[%s5 + $0xc4] sm:$0xf]
    %v470 = vld [vmem:[%s5 + $0xc8] sm:$0xf]
    %v471 = vld [vmem:[%s5 + $0xcc] sm:$0xf]
    %v472 = vld [vmem:[%s5 + $0xd0] sm:$0xf]
    %v473 = vld [vmem:[%s5 + $0xd4] sm:$0xf]
    %v474 = vld [vmem:[%s5 + $0xd8] sm:$0xf]
    %v475 = vld [vmem:[%s5 + $0xdc] sm:$0xf]
    %v476 = vld [vmem:[%s5 + $0xe0] sm:$0xf]
    %v477 = vld [vmem:[%s5 + $0xe4] sm:$0xf]
    %v478 = vld [vmem:[%s5 + $0xe8] sm:$0xf]
    %v479 = vld [vmem:[%s5 + $0xec] sm:$0xf]
    %v480 = vld [vmem:[%s5 + $0xf0] sm:$0xf]
    %v481 = vld [vmem:[%s5 + $0xf4] sm:$0xf]
    %v482 = vld [vmem:[%s5 + $0xf8] sm:$0xf]
    %v483 = vld [vmem:[%s5 + $0xfc] sm:$0xf]
    %v484 = vld [vmem:[%s5 + $0x100] sm:$0xf]
    %v485 = vld [vmem:[%s5 + $0x104] sm:$0xf]
    %v486 = vld [vmem:[%s5 + $0x108] sm:$0xf]
    %v487 = vld [vmem:[%s5 + $0x10c] sm:$0xf]
    %v488 = vld [vmem:[%s5 + $0x110] sm:$0xf]
    %v489 = vld [vmem:[%s5 + $0x114] sm:$0xf]
    %v490 = vld [vmem:[%s5 + $0x118] sm:$0xf]
    %v491 = vld [vmem:[%s5 + $0x11c] sm:$0xf]
    %v492 = vld [vmem:[%s5 + $0x120] sm:$0xf]
    %v493 = vld [vmem:[%s5 + $0x124] sm:$0xf]
    %v494 = vld [vmem:[%s5 + $0x128] sm:$0xf]
    %v495 = vld [vmem:[%s5 + $0x12c] sm:$0xf]
    %v496 = vld [vmem:[%s5 + $0x130] sm:$0xf]
    %v497 = vld [vmem:[%s5 + $0x134] sm:$0xf]
    %v498 = vld [vmem:[%s5 + $0x138] sm:$0xf]
    %v499 = vld [vmem:[%s5 + $0x13c] sm:$0xf]
    %v500 = vld [vmem:[%s5 + $0x140] sm:$0xf]
    %v501 = vld [vmem:[%s5 + $0x144] sm:$0xf]
    %v502 = vld [vmem:[%s5 + $0x148] sm:$0xf]
    %v503 = vld [vmem:[%s5 + $0x14c] sm:$0xf]
    %v504 = vld [vmem:[%s5 + $0x150] sm:$0xf]
    %v505 = vld [vmem:[%s5 + $0x154] sm:$0xf]
    %v506 = vld [vmem:[%s5 + $0x158] sm:$0xf]
    %v507 = vld [vmem:[%s5 + $0x15c] sm:$0xf]
    %v508 = vld [vmem:[%s5 + $0x160] sm:$0xf]
    %v509 = vld [vmem:[%s5 + $0x164] sm:$0xf]
    %v510 = vld [vmem:[%s5 + $0x168] sm:$0xf]
    %v511 = vld [vmem:[%s5 + $0x16c] sm:$0xf]
    %v512 = vld [vmem:[%s5 + $0x170] sm:$0xf]
    %v513 = vld [vmem:[%s5 + $0x174] sm:$0xf]
    %v514 = vld [vmem:[%s5 + $0x178] sm:$0xf]
    %v515 = vld [vmem:[%s5 + $0x17c] sm:$0xf]
    %v516 = vld [vmem:[%s6] sm:$0x1]
    %v518 = vlaneseq
    %v519 = vshrl.u32 %v518, 7
    %v520 = vsub.s32 0, %v519
    %v521 = vrot.slane %v516, %v520
    %v524 = vcombine.high %v419, %v419
    %v526 = vunpack.c.l.s4 1966171168
    %v527 = vunpack.c.0.s8 %v526
    %v528 = vlaneseq
    %v529 = vshrl.u32 %v528, 7
    %v530 = vsub.s32 %v527, %v529
    %v531 = vrot.slane %v419, %v530
    %v533 = vunpack.c.l.s4 1966171168
    %v534 = vunpack.c.0.s8 %v533
    %v535 = vlaneseq
    %v536 = vshrl.u32 %v535, 7
    %v537 = vsub.s32 %v534, %v536
    %v538 = vrot.slane %v524, %v537
    %v539 = vcombine.high %v531, %v531
    %v540 = vcombine.high %v538, %v538
    %v542 = vunpack.c.l.s4 1966171168
    %v543 = vunpack.c.0.s8 %v542
    %v544 = vlaneseq
    %v545 = vshrl.u32 %v544, 7
    %v546 = vsub.s32 %v543, %v545
    %v547 = vrot.slane %v531, %v546
    %v549 = vunpack.c.l.s4 1966171168
    %v550 = vunpack.c.0.s8 %v549
    %v551 = vlaneseq
    %v552 = vshrl.u32 %v551, 7
    %v553 = vsub.s32 %v550, %v552
    %v554 = vrot.slane %v538, %v553
    %v556 = vunpack.c.l.s4 1966171168
    %v557 = vunpack.c.0.s8 %v556
    %v558 = vlaneseq
    %v559 = vshrl.u32 %v558, 7
    %v560 = vsub.s32 %v557, %v559
    %v561 = vrot.slane %v539, %v560
    %v563 = vunpack.c.l.s4 1966171168
    %v564 = vunpack.c.0.s8 %v563
    %v565 = vlaneseq
    %v566 = vshrl.u32 %v565, 7
    %v567 = vsub.s32 %v564, %v566
    %v568 = vrot.slane %v540, %v567
    %v569 = vcombine.high %v547, %v547
    %v570 = vcombine.high %v561, %v561
    %v673 = vunpack.c.l.b16 %v420
    %v674 = vunpack.c.l.b16 %v421
    %v675 = vunpack.c.l.b16 %v422
    %v676 = vunpack.c.l.b16 %v423
    %v677 = vunpack.c.l.b16 %v424
    %v678 = vunpack.c.l.b16 %v425
    %v679 = vunpack.c.l.b16 %v426
    %v680 = vunpack.c.l.b16 %v427
    %v681 = vunpack.c.l.b16 %v428
    %v682 = vunpack.c.l.b16 %v429
    %v683 = vunpack.c.l.b16 %v430
    %v684 = vunpack.c.l.b16 %v431
    %v685 = vunpack.c.l.b16 %v432
    %v686 = vunpack.c.l.b16 %v433
    %v687 = vunpack.c.l.b16 %v434
    %v688 = vunpack.c.l.b16 %v435
    %v689 = vunpack.c.l.b16 %v436
    %v690 = vunpack.c.l.b16 %v437
    %v691 = vunpack.c.l.b16 %v438
    %v692 = vunpack.c.l.b16 %v439
    %v693 = vunpack.c.l.b16 %v440
    %v694 = vunpack.c.l.b16 %v441
    %v695 = vunpack.c.l.b16 %v442
    %v696 = vunpack.c.l.b16 %v443
    %v697 = vunpack.c.l.b16 %v444
    %v698 = vunpack.c.l.b16 %v445
    %v699 = vunpack.c.l.b16 %v446
    %v700 = vunpack.c.l.b16 %v447
    %v701 = vunpack.c.l.b16 %v448
    %v702 = vunpack.c.l.b16 %v449
    %v703 = vunpack.c.l.b16 %v450
    %v704 = vunpack.c.l.b16 %v451
    %v705 = vunpack.c.l.b16 %v452
    %v706 = vunpack.c.l.b16 %v453
    %v707 = vunpack.c.l.b16 %v454
    %v708 = vunpack.c.l.b16 %v455
    %v709 = vunpack.c.l.b16 %v456
    %v710 = vunpack.c.l.b16 %v457
    %v711 = vunpack.c.l.b16 %v458
    %v712 = vunpack.c.l.b16 %v459
    %v713 = vunpack.c.l.b16 %v460
    %v714 = vunpack.c.l.b16 %v461
    %v715 = vunpack.c.l.b16 %v462
    %v716 = vunpack.c.l.b16 %v463
    %v717 = vunpack.c.l.b16 %v464
    %v718 = vunpack.c.l.b16 %v465
    %v719 = vunpack.c.l.b16 %v466
    %v720 = vunpack.c.l.b16 %v467
    %v721 = vunpack.c.l.b16 %v468
    %v722 = vunpack.c.l.b16 %v469
    %v723 = vunpack.c.l.b16 %v470
    %v724 = vunpack.c.l.b16 %v471
    %v725 = vunpack.c.l.b16 %v472
    %v726 = vunpack.c.l.b16 %v473
    %v727 = vunpack.c.l.b16 %v474
    %v728 = vunpack.c.l.b16 %v475
    %v729 = vunpack.c.l.b16 %v476
    %v730 = vunpack.c.l.b16 %v477
    %v731 = vunpack.c.l.b16 %v478
    %v732 = vunpack.c.l.b16 %v479
    %v733 = vunpack.c.l.b16 %v480
    %v734 = vunpack.c.l.b16 %v481
    %v735 = vunpack.c.l.b16 %v482
    %v736 = vunpack.c.l.b16 %v483
    %v737 = vunpack.c.l.b16 %v484
    %v738 = vunpack.c.l.b16 %v485
    %v739 = vunpack.c.l.b16 %v486
    %v740 = vunpack.c.l.b16 %v487
    %v741 = vunpack.c.l.b16 %v488
    %v742 = vunpack.c.l.b16 %v489
    %v743 = vunpack.c.l.b16 %v490
    %v744 = vunpack.c.l.b16 %v491
    %v745 = vunpack.c.l.b16 %v492
    %v746 = vunpack.c.l.b16 %v493
    %v747 = vunpack.c.l.b16 %v494
    %v748 = vunpack.c.l.b16 %v495
    %v749 = vunpack.c.l.b16 %v496
    %v750 = vunpack.c.l.b16 %v497
    %v751 = vunpack.c.l.b16 %v498
    %v752 = vunpack.c.l.b16 %v499
    %v753 = vunpack.c.l.b16 %v500
    %v754 = vunpack.c.l.b16 %v501
    %v755 = vunpack.c.l.b16 %v502
    %v756 = vunpack.c.l.b16 %v503
    %v757 = vunpack.c.l.b16 %v504
    %v758 = vunpack.c.l.b16 %v505
    %v759 = vunpack.c.l.b16 %v506
    %v760 = vunpack.c.l.b16 %v507
    %v761 = vunpack.c.l.b16 %v508
    %v762 = vunpack.c.l.b16 %v509
    %v763 = vunpack.c.l.b16 %v510
    %v764 = vunpack.c.l.b16 %v511
    %v765 = vunpack.c.l.b16 %v512
    %v766 = vunpack.c.l.b16 %v513
    %v767 = vunpack.c.l.b16 %v514
    %v768 = vunpack.c.l.b16 %v515
    %v769 = vpack.c.b16 %v674, %v673
    %v770 = vpack.c.b16 %v676, %v675
    %v771 = vpack.c.b16 %v678, %v677
    %v772 = vpack.c.b16 %v680, %v679
    %v773 = vpack.c.b16 %v682, %v681
    %v774 = vpack.c.b16 %v684, %v683
    %v775 = vpack.c.b16 %v686, %v685
    %v776 = vpack.c.b16 %v688, %v687
    %v777 = vpack.c.b16 %v690, %v689
    %v778 = vpack.c.b16 %v692, %v691
    %v779 = vpack.c.b16 %v694, %v693
    %v780 = vpack.c.b16 %v696, %v695
    %v781 = vpack.c.b16 %v698, %v697
    %v782 = vpack.c.b16 %v700, %v699
    %v783 = vpack.c.b16 %v702, %v701
    %v784 = vpack.c.b16 %v704, %v703
    %v785 = vpack.c.b16 %v706, %v705
    %v786 = vpack.c.b16 %v708, %v707
    %v787 = vpack.c.b16 %v710, %v709
    %v788 = vpack.c.b16 %v712, %v711
    %v789 = vpack.c.b16 %v714, %v713
    %v790 = vpack.c.b16 %v716, %v715
    %v791 = vpack.c.b16 %v718, %v717
    %v792 = vpack.c.b16 %v720, %v719
    %v793 = vpack.c.b16 %v722, %v721
    %v794 = vpack.c.b16 %v724, %v723
    %v795 = vpack.c.b16 %v726, %v725
    %v796 = vpack.c.b16 %v728, %v727
    %v797 = vpack.c.b16 %v730, %v729
    %v798 = vpack.c.b16 %v732, %v731
    %v799 = vpack.c.b16 %v734, %v733
    %v800 = vpack.c.b16 %v736, %v735
    %v801 = vpack.c.b16 %v738, %v737
    %v802 = vpack.c.b16 %v740, %v739
    %v803 = vpack.c.b16 %v742, %v741
    %v804 = vpack.c.b16 %v744, %v743
    %v805 = vpack.c.b16 %v746, %v745
    %v806 = vpack.c.b16 %v748, %v747
    %v807 = vpack.c.b16 %v750, %v749
    %v808 = vpack.c.b16 %v752, %v751
    %v809 = vpack.c.b16 %v754, %v753
    %v810 = vpack.c.b16 %v756, %v755
    %v811 = vpack.c.b16 %v758, %v757
    %v812 = vpack.c.b16 %v760, %v759
    %v813 = vpack.c.b16 %v762, %v761
    %v814 = vpack.c.b16 %v764, %v763
    %v815 = vpack.c.b16 %v766, %v765
    %v816 = vpack.c.b16 %v768, %v767
    %865 = vmatprep.subr.bf16.mxu0 0
    %866 = vmatpush1.bf16.msra.mxu0 %v776
    %867 = vmatprep.subr.bf16.mxu0 0
    %868 = vmatpush1.bf16.msra.mxu0 %v775
    %869 = vmatprep.subr.bf16.mxu0 0
    %870 = vmatpush1.bf16.msra.mxu0 %v774
    %871 = vmatprep.subr.bf16.mxu0 0
    %872 = vmatpush1.bf16.msra.mxu0 %v773
    %873 = vmatprep.subr.bf16.mxu0 0
    %874 = vmatpush1.bf16.msra.mxu0 %v772
    %875 = vmatprep.subr.bf16.mxu0 0
    %876 = vmatpush1.bf16.msra.mxu0 %v771
    %877 = vmatprep.subr.bf16.mxu0 0
    %878 = vmatpush1.bf16.msra.mxu0 %v770
    %879 = vmatprep.subr.bf16.mxu0 0
    %880 = vmatpush1.bf16.msra.mxu0 %v769
    %881 = vmatprep.subr.bf16.mxu0 0
    %882 = vmatpush2.bf16.msra.mxu0 %v784
    %883 = vmatprep.subr.bf16.mxu0 0
    %884 = vmatpush2.bf16.msra.mxu0 %v783
    %885 = vmatprep.subr.bf16.mxu0 0
    %886 = vmatpush2.bf16.msra.mxu0 %v782
    %887 = vmatprep.subr.bf16.mxu0 0
    %888 = vmatpush2.bf16.msra.mxu0 %v781
    %889 = vmatprep.subr.bf16.mxu0 0
    %890 = vmatpush2.bf16.msra.mxu0 %v780
    %891 = vmatprep.subr.bf16.mxu0 0
    %892 = vmatpush2.bf16.msra.mxu0 %v779
    %893 = vmatprep.subr.bf16.mxu0 0
    %894 = vmatpush2.bf16.msra.mxu0 %v778
    %895 = vmatprep.subr.bf16.mxu0 0
    %896 = vmatpush2.bf16.msra.mxu0 %v777
    %897 = vmatprep.mubr.bf16.mxu0 %v561
    %898 = vmatmul.mubr.bf16.gmra.mxu0 %v547
    %v899 = vpop.f32.mrf.mxu0
    %v900 = vadd.f32 %v521, %v899
    %v901 = vpop.f32.mrf.mxu0
    %v902 = vpop.f32.mrf.mxu0
    %v903 = vpop.f32.mrf.mxu0
    %904 = vdwg.mxu0
    %905 = vmatprep.subr.bf16.mxu0 0
    %906 = vmatpush1.bf16.msra.mxu0 %v792
    %907 = vmatprep.subr.bf16.mxu0 0
    %908 = vmatpush1.bf16.msra.mxu0 %v791
    %909 = vmatprep.subr.bf16.mxu0 0
    %910 = vmatpush1.bf16.msra.mxu0 %v790
    %911 = vmatprep.subr.bf16.mxu0 0
    %912 = vmatpush1.bf16.msra.mxu0 %v789
    %913 = vmatprep.subr.bf16.mxu0 0
    %914 = vmatpush1.bf16.msra.mxu0 %v788
    %915 = vmatprep.subr.bf16.mxu0 0
    %916 = vmatpush1.bf16.msra.mxu0 %v787
    %917 = vmatprep.subr.bf16.mxu0 0
    %918 = vmatpush1.bf16.msra.mxu0 %v786
    %919 = vmatprep.subr.bf16.mxu0 0
    %920 = vmatpush1.bf16.msra.mxu0 %v785
    %921 = vmatprep.subr.bf16.mxu0 0
    %922 = vmatpush2.bf16.msra.mxu0 %v800
    %923 = vmatprep.subr.bf16.mxu0 0
    %924 = vmatpush2.bf16.msra.mxu0 %v799
    %925 = vmatprep.subr.bf16.mxu0 0
    %926 = vmatpush2.bf16.msra.mxu0 %v798
    %927 = vmatprep.subr.bf16.mxu0 0
    %928 = vmatpush2.bf16.msra.mxu0 %v797
    %929 = vmatprep.subr.bf16.mxu0 0
    %930 = vmatpush2.bf16.msra.mxu0 %v796
    %931 = vmatprep.subr.bf16.mxu0 0
    %932 = vmatpush2.bf16.msra.mxu0 %v795
    %933 = vmatprep.subr.bf16.mxu0 0
    %934 = vmatpush2.bf16.msra.mxu0 %v794
    %935 = vmatprep.subr.bf16.mxu0 0
    %936 = vmatpush2.bf16.msra.mxu0 %v793
    %937 = vmatprep.mubr.bf16.mxu0 %v570
    %938 = vmatmul.mubr.bf16.gmra.mxu0 %v569
    %v939 = vpop.f32.mrf.mxu0
    %v940 = vadd.f32 %v900, %v939
    %v941 = vpop.f32.mrf.mxu0
    %v942 = vpop.f32.mrf.mxu0
    %v943 = vpop.f32.mrf.mxu0
    %944 = vdwg.mxu0
    %945 = vmatprep.subr.bf16.mxu0 0
    %946 = vmatpush1.bf16.msra.mxu0 %v808
    %947 = vmatprep.subr.bf16.mxu0 0
    %948 = vmatpush1.bf16.msra.mxu0 %v807
    %949 = vmatprep.subr.bf16.mxu0 0
    %950 = vmatpush1.bf16.msra.mxu0 %v806
    %951 = vmatprep.subr.bf16.mxu0 0
    %952 = vmatpush1.bf16.msra.mxu0 %v805
    %953 = vmatprep.subr.bf16.mxu0 0
    %954 = vmatpush1.bf16.msra.mxu0 %v804
    %955 = vmatprep.subr.bf16.mxu0 0
    %956 = vmatpush1.bf16.msra.mxu0 %v803
    %957 = vmatprep.subr.bf16.mxu0 0
    %958 = vmatpush1.bf16.msra.mxu0 %v802
    %959 = vmatprep.subr.bf16.mxu0 0
    %960 = vmatpush1.bf16.msra.mxu0 %v801
    %961 = vmatprep.subr.bf16.mxu0 0
    %962 = vmatpush2.bf16.msra.mxu0 %v816
    %963 = vmatprep.subr.bf16.mxu0 0
    %964 = vmatpush2.bf16.msra.mxu0 %v815
    %965 = vmatprep.subr.bf16.mxu0 0
    %966 = vmatpush2.bf16.msra.mxu0 %v814
    %967 = vmatprep.subr.bf16.mxu0 0
    %968 = vmatpush2.bf16.msra.mxu0 %v813
    %969 = vmatprep.subr.bf16.mxu0 0
    %970 = vmatpush2.bf16.msra.mxu0 %v812
    %971 = vmatprep.subr.bf16.mxu0 0
    %972 = vmatpush2.bf16.msra.mxu0 %v811
    %973 = vmatprep.subr.bf16.mxu0 0
    %974 = vmatpush2.bf16.msra.mxu0 %v810
    %975 = vmatprep.subr.bf16.mxu0 0
    %976 = vmatpush2.bf16.msra.mxu0 %v809
    %977 = vmatprep.mubr.bf16.mxu0 %v568
    %978 = vmatmul.mubr.bf16.gmra.mxu0 %v554
    %v979 = vpop.f32.mrf.mxu0
    %v980 = vadd.f32 %v940, %v979
    %v981 = vpop.f32.mrf.mxu0
    %v982 = vpop.f32.mrf.mxu0
    %v983 = vpop.f32.mrf.mxu0
    %984 = vdwg.mxu0
    %v985 = vld [vmem:[%s2] sm:$0x3f]
    %v986 = vld [vmem:[%s7] sm:$0xf]
    %v987 = vld [vmem:[%s7 + $0x4] sm:$0xf]
    %v988 = vld [vmem:[%s7 + $0x8] sm:$0xf]
    %v989 = vld [vmem:[%s7 + $0xc] sm:$0xf]
    %v990 = vld [vmem:[%s7 + $0x10] sm:$0xf]
    %v991 = vld [vmem:[%s7 + $0x14] sm:$0xf]
    %v992 = vld [vmem:[%s7 + $0x18] sm:$0xf]
    %v993 = vld [vmem:[%s7 + $0x1c] sm:$0xf]
    %v994 = vld [vmem:[%s7 + $0x20] sm:$0xf]
    %v995 = vld [vmem:[%s7 + $0x24] sm:$0xf]
    %v996 = vld [vmem:[%s7 + $0x28] sm:$0xf]
    %v997 = vld [vmem:[%s7 + $0x2c] sm:$0xf]
    %v998 = vld [vmem:[%s7 + $0x30] sm:$0xf]
    %v999 = vld [vmem:[%s7 + $0x34] sm:$0xf]
    %v1000 = vld [vmem:[%s7 + $0x38] sm:$0xf]
    %v1001 = vld [vmem:[%s7 + $0x3c] sm:$0xf]
    %v1002 = vld [vmem:[%s7 + $0x40] sm:$0xf]
    %v1003 = vld [vmem:[%s7 + $0x44] sm:$0xf]
    %v1004 = vld [vmem:[%s7 + $0x48] sm:$0xf]
    %v1005 = vld [vmem:[%s7 + $0x4c] sm:$0xf]
    %v1006 = vld [vmem:[%s7 + $0x50] sm:$0xf]
    %v1007 = vld [vmem:[%s7 + $0x54] sm:$0xf]
    %v1008 = vld [vmem:[%s7 + $0x58] sm:$0xf]
    %v1009 = vld [vmem:[%s7 + $0x5c] sm:$0xf]
    %v1010 = vld [vmem:[%s7 + $0x60] sm:$0xf]
    %v1011 = vld [vmem:[%s7 + $0x64] sm:$0xf]
    %v1012 = vld [vmem:[%s7 + $0x68] sm:$0xf]
    %v1013 = vld [vmem:[%s7 + $0x6c] sm:$0xf]
    %v1014 = vld [vmem:[%s7 + $0x70] sm:$0xf]
    %v1015 = vld [vmem:[%s7 + $0x74] sm:$0xf]
    %v1016 = vld [vmem:[%s7 + $0x78] sm:$0xf]
    %v1017 = vld [vmem:[%s7 + $0x7c] sm:$0xf]
    %v1018 = vld [vmem:[%s7 + $0x80] sm:$0xf]
    %v1019 = vld [vmem:[%s7 + $0x84] sm:$0xf]
    %v1020 = vld [vmem:[%s7 + $0x88] sm:$0xf]
    %v1021 = vld [vmem:[%s7 + $0x8c] sm:$0xf]
    %v1022 = vld [vmem:[%s7 + $0x90] sm:$0xf]
    %v1023 = vld [vmem:[%s7 + $0x94] sm:$0xf]
    %v1024 = vld [vmem:[%s7 + $0x98] sm:$0xf]
    %v1025 = vld [vmem:[%s7 + $0x9c] sm:$0xf]
    %v1026 = vld [vmem:[%s7 + $0xa0] sm:$0xf]
    %v1027 = vld [vmem:[%s7 + $0xa4] sm:$0xf]
    %v1028 = vld [vmem:[%s7 + $0xa8] sm:$0xf]
    %v1029 = vld [vmem:[%s7 + $0xac] sm:$0xf]
    %v1030 = vld [vmem:[%s7 + $0xb0] sm:$0xf]
    %v1031 = vld [vmem:[%s7 + $0xb4] sm:$0xf]
    %v1032 = vld [vmem:[%s7 + $0xb8] sm:$0xf]
    %v1033 = vld [vmem:[%s7 + $0xbc] sm:$0xf]
    %v1034 = vld [vmem:[%s7 + $0xc0] sm:$0xf]
    %v1035 = vld [vmem:[%s7 + $0xc4] sm:$0xf]
    %v1036 = vld [vmem:[%s7 + $0xc8] sm:$0xf]
    %v1037 = vld [vmem:[%s7 + $0xcc] sm:$0xf]
    %v1038 = vld [vmem:[%s7 + $0xd0] sm:$0xf]
    %v1039 = vld [vmem:[%s7 + $0xd4] sm:$0xf]
    %v1040 = vld [vmem:[%s7 + $0xd8] sm:$0xf]
    %v1041 = vld [vmem:[%s7 + $0xdc] sm:$0xf]
    %v1042 = vld [vmem:[%s7 + $0xe0] sm:$0xf]
    %v1043 = vld [vmem:[%s7 + $0xe4] sm:$0xf]
    %v1044 = vld [vmem:[%s7 + $0xe8] sm:$0xf]
    %v1045 = vld [vmem:[%s7 + $0xec] sm:$0xf]
    %v1046 = vld [vmem:[%s7 + $0xf0] sm:$0xf]
    %v1047 = vld [vmem:[%s7 + $0xf4] sm:$0xf]
    %v1048 = vld [vmem:[%s7 + $0xf8] sm:$0xf]
    %v1049 = vld [vmem:[%s7 + $0xfc] sm:$0xf]
    %v1050 = vld [vmem:[%s7 + $0x100] sm:$0xf]
    %v1051 = vld [vmem:[%s7 + $0x104] sm:$0xf]
    %v1052 = vld [vmem:[%s7 + $0x108] sm:$0xf]
    %v1053 = vld [vmem:[%s7 + $0x10c] sm:$0xf]
    %v1054 = vld [vmem:[%s7 + $0x110] sm:$0xf]
    %v1055 = vld [vmem:[%s7 + $0x114] sm:$0xf]
    %v1056 = vld [vmem:[%s7 + $0x118] sm:$0xf]
    %v1057 = vld [vmem:[%s7 + $0x11c] sm:$0xf]
    %v1058 = vld [vmem:[%s7 + $0x120] sm:$0xf]
    %v1059 = vld [vmem:[%s7 + $0x124] sm:$0xf]
    %v1060 = vld [vmem:[%s7 + $0x128] sm:$0xf]
    %v1061 = vld [vmem:[%s7 + $0x12c] sm:$0xf]
    %v1062 = vld [vmem:[%s7 + $0x130] sm:$0xf]
    %v1063 = vld [vmem:[%s7 + $0x134] sm:$0xf]
    %v1064 = vld [vmem:[%s7 + $0x138] sm:$0xf]
    %v1065 = vld [vmem:[%s7 + $0x13c] sm:$0xf]
    %v1066 = vld [vmem:[%s7 + $0x140] sm:$0xf]
    %v1067 = vld [vmem:[%s7 + $0x144] sm:$0xf]
    %v1068 = vld [vmem:[%s7 + $0x148] sm:$0xf]
    %v1069 = vld [vmem:[%s7 + $0x14c] sm:$0xf]
    %v1070 = vld [vmem:[%s7 + $0x150] sm:$0xf]
    %v1071 = vld [vmem:[%s7 + $0x154] sm:$0xf]
    %v1072 = vld [vmem:[%s7 + $0x158] sm:$0xf]
    %v1073 = vld [vmem:[%s7 + $0x15c] sm:$0xf]
    %v1074 = vld [vmem:[%s7 + $0x160] sm:$0xf]
    %v1075 = vld [vmem:[%s7 + $0x164] sm:$0xf]
    %v1076 = vld [vmem:[%s7 + $0x168] sm:$0xf]
    %v1077 = vld [vmem:[%s7 + $0x16c] sm:$0xf]
    %v1078 = vld [vmem:[%s7 + $0x170] sm:$0xf]
    %v1079 = vld [vmem:[%s7 + $0x174] sm:$0xf]
    %v1080 = vld [vmem:[%s7 + $0x178] sm:$0xf]
    %v1081 = vld [vmem:[%s7 + $0x17c] sm:$0xf]
    %v1082 = vld [vmem:[%s8] sm:$0x1]
    %v1084 = vlaneseq
    %v1085 = vshrl.u32 %v1084, 7
    %v1086 = vsub.s32 0, %v1085
    %v1087 = vrot.slane %v1082, %v1086
    %v1090 = vcombine.high %v985, %v985
    %v1092 = vunpack.c.l.s4 1966171168
    %v1093 = vunpack.c.0.s8 %v1092
    %v1094 = vlaneseq
    %v1095 = vshrl.u32 %v1094, 7
    %v1096 = vsub.s32 %v1093, %v1095
    %v1097 = vrot.slane %v985, %v1096
    %v1099 = vunpack.c.l.s4 1966171168
    %v1100 = vunpack.c.0.s8 %v1099
    %v1101 = vlaneseq
    %v1102 = vshrl.u32 %v1101, 7
    %v1103 = vsub.s32 %v1100, %v1102
    %v1104 = vrot.slane %v1090, %v1103
    %v1105 = vcombine.high %v1097, %v1097
    %v1106 = vcombine.high %v1104, %v1104
    %v1108 = vunpack.c.l.s4 1966171168
    %v1109 = vunpack.c.0.s8 %v1108
    %v1110 = vlaneseq
    %v1111 = vshrl.u32 %v1110, 7
    %v1112 = vsub.s32 %v1109, %v1111
    %v1113 = vrot.slane %v1097, %v1112
    %v1115 = vunpack.c.l.s4 1966171168
    %v1116 = vunpack.c.0.s8 %v1115
    %v1117 = vlaneseq
    %v1118 = vshrl.u32 %v1117, 7
    %v1119 = vsub.s32 %v1116, %v1118
    %v1120 = vrot.slane %v1104, %v1119
    %v1122 = vunpack.c.l.s4 1966171168
    %v1123 = vunpack.c.0.s8 %v1122
    %v1124 = vlaneseq
    %v1125 = vshrl.u32 %v1124, 7
    %v1126 = vsub.s32 %v1123, %v1125
    %v1127 = vrot.slane %v1105, %v1126
    %v1129 = vunpack.c.l.s4 1966171168
    %v1130 = vunpack.c.0.s8 %v1129
    %v1131 = vlaneseq
    %v1132 = vshrl.u32 %v1131, 7
    %v1133 = vsub.s32 %v1130, %v1132
    %v1134 = vrot.slane %v1106, %v1133
    %v1135 = vcombine.high %v1113, %v1113
    %v1136 = vcombine.high %v1127, %v1127
    %v1239 = vunpack.c.l.b16 %v986
    %v1240 = vunpack.c.l.b16 %v987
    %v1241 = vunpack.c.l.b16 %v988
    %v1242 = vunpack.c.l.b16 %v989
    %v1243 = vunpack.c.l.b16 %v990
    %v1244 = vunpack.c.l.b16 %v991
    %v1245 = vunpack.c.l.b16 %v992
    %v1246 = vunpack.c.l.b16 %v993
    %v1247 = vunpack.c.l.b16 %v994
    %v1248 = vunpack.c.l.b16 %v995
    %v1249 = vunpack.c.l.b16 %v996
    %v1250 = vunpack.c.l.b16 %v997
    %v1251 = vunpack.c.l.b16 %v998
    %v1252 = vunpack.c.l.b16 %v999
    %v1253 = vunpack.c.l.b16 %v1000
    %v1254 = vunpack.c.l.b16 %v1001
    %v1255 = vunpack.c.l.b16 %v1002
    %v1256 = vunpack.c.l.b16 %v1003
    %v1257 = vunpack.c.l.b16 %v1004
    %v1258 = vunpack.c.l.b16 %v1005
    %v1259 = vunpack.c.l.b16 %v1006
    %v1260 = vunpack.c.l.b16 %v1007
    %v1261 = vunpack.c.l.b16 %v1008
    %v1262 = vunpack.c.l.b16 %v1009
    %v1263 = vunpack.c.l.b16 %v1010
    %v1264 = vunpack.c.l.b16 %v1011
    %v1265 = vunpack.c.l.b16 %v1012
    %v1266 = vunpack.c.l.b16 %v1013
    %v1267 = vunpack.c.l.b16 %v1014
    %v1268 = vunpack.c.l.b16 %v1015
    %v1269 = vunpack.c.l.b16 %v1016
    %v1270 = vunpack.c.l.b16 %v1017
    %v1271 = vunpack.c.l.b16 %v1018
    %v1272 = vunpack.c.l.b16 %v1019
    %v1273 = vunpack.c.l.b16 %v1020
    %v1274 = vunpack.c.l.b16 %v1021
    %v1275 = vunpack.c.l.b16 %v1022
    %v1276 = vunpack.c.l.b16 %v1023
    %v1277 = vunpack.c.l.b16 %v1024
    %v1278 = vunpack.c.l.b16 %v1025
    %v1279 = vunpack.c.l.b16 %v1026
    %v1280 = vunpack.c.l.b16 %v1027
    %v1281 = vunpack.c.l.b16 %v1028
    %v1282 = vunpack.c.l.b16 %v1029
    %v1283 = vunpack.c.l.b16 %v1030
    %v1284 = vunpack.c.l.b16 %v1031
    %v1285 = vunpack.c.l.b16 %v1032
    %v1286 = vunpack.c.l.b16 %v1033
    %v1287 = vunpack.c.l.b16 %v1034
    %v1288 = vunpack.c.l.b16 %v1035
    %v1289 = vunpack.c.l.b16 %v1036
    %v1290 = vunpack.c.l.b16 %v1037
    %v1291 = vunpack.c.l.b16 %v1038
    %v1292 = vunpack.c.l.b16 %v1039
    %v1293 = vunpack.c.l.b16 %v1040
    %v1294 = vunpack.c.l.b16 %v1041
    %v1295 = vunpack.c.l.b16 %v1042
    %v1296 = vunpack.c.l.b16 %v1043
    %v1297 = vunpack.c.l.b16 %v1044
    %v1298 = vunpack.c.l.b16 %v1045
    %v1299 = vunpack.c.l.b16 %v1046
    %v1300 = vunpack.c.l.b16 %v1047
    %v1301 = vunpack.c.l.b16 %v1048
    %v1302 = vunpack.c.l.b16 %v1049
    %v1303 = vunpack.c.l.b16 %v1050
    %v1304 = vunpack.c.l.b16 %v1051
    %v1305 = vunpack.c.l.b16 %v1052
    %v1306 = vunpack.c.l.b16 %v1053
    %v1307 = vunpack.c.l.b16 %v1054
    %v1308 = vunpack.c.l.b16 %v1055
    %v1309 = vunpack.c.l.b16 %v1056
    %v1310 = vunpack.c.l.b16 %v1057
    %v1311 = vunpack.c.l.b16 %v1058
    %v1312 = vunpack.c.l.b16 %v1059
    %v1313 = vunpack.c.l.b16 %v1060
    %v1314 = vunpack.c.l.b16 %v1061
    %v1315 = vunpack.c.l.b16 %v1062
    %v1316 = vunpack.c.l.b16 %v1063
    %v1317 = vunpack.c.l.b16 %v1064
    %v1318 = vunpack.c.l.b16 %v1065
    %v1319 = vunpack.c.l.b16 %v1066
    %v1320 = vunpack.c.l.b16 %v1067
    %v1321 = vunpack.c.l.b16 %v1068
    %v1322 = vunpack.c.l.b16 %v1069
    %v1323 = vunpack.c.l.b16 %v1070
    %v1324 = vunpack.c.l.b16 %v1071
    %v1325 = vunpack.c.l.b16 %v1072
    %v1326 = vunpack.c.l.b16 %v1073
    %v1327 = vunpack.c.l.b16 %v1074
    %v1328 = vunpack.c.l.b16 %v1075
    %v1329 = vunpack.c.l.b16 %v1076
    %v1330 = vunpack.c.l.b16 %v1077
    %v1331 = vunpack.c.l.b16 %v1078
    %v1332 = vunpack.c.l.b16 %v1079
    %v1333 = vunpack.c.l.b16 %v1080
    %v1334 = vunpack.c.l.b16 %v1081
    %v1335 = vpack.c.b16 %v1240, %v1239
    %v1336 = vpack.c.b16 %v1242, %v1241
    %v1337 = vpack.c.b16 %v1244, %v1243
    %v1338 = vpack.c.b16 %v1246, %v1245
    %v1339 = vpack.c.b16 %v1248, %v1247
    %v1340 = vpack.c.b16 %v1250, %v1249
    %v1341 = vpack.c.b16 %v1252, %v1251
    %v1342 = vpack.c.b16 %v1254, %v1253
    %v1343 = vpack.c.b16 %v1256, %v1255
    %v1344 = vpack.c.b16 %v1258, %v1257
    %v1345 = vpack.c.b16 %v1260, %v1259
    %v1346 = vpack.c.b16 %v1262, %v1261
    %v1347 = vpack.c.b16 %v1264, %v1263
    %v1348 = vpack.c.b16 %v1266, %v1265
    %v1349 = vpack.c.b16 %v1268, %v1267
    %v1350 = vpack.c.b16 %v1270, %v1269
    %v1351 = vpack.c.b16 %v1272, %v1271
    %v1352 = vpack.c.b16 %v1274, %v1273
    %v1353 = vpack.c.b16 %v1276, %v1275
    %v1354 = vpack.c.b16 %v1278, %v1277
    %v1355 = vpack.c.b16 %v1280, %v1279
    %v1356 = vpack.c.b16 %v1282, %v1281
    %v1357 = vpack.c.b16 %v1284, %v1283
    %v1358 = vpack.c.b16 %v1286, %v1285
    %v1359 = vpack.c.b16 %v1288, %v1287
    %v1360 = vpack.c.b16 %v1290, %v1289
    %v1361 = vpack.c.b16 %v1292, %v1291
    %v1362 = vpack.c.b16 %v1294, %v1293
    %v1363 = vpack.c.b16 %v1296, %v1295
    %v1364 = vpack.c.b16 %v1298, %v1297
    %v1365 = vpack.c.b16 %v1300, %v1299
    %v1366 = vpack.c.b16 %v1302, %v1301
    %v1367 = vpack.c.b16 %v1304, %v1303
    %v1368 = vpack.c.b16 %v1306, %v1305
    %v1369 = vpack.c.b16 %v1308, %v1307
    %v1370 = vpack.c.b16 %v1310, %v1309
    %v1371 = vpack.c.b16 %v1312, %v1311
    %v1372 = vpack.c.b16 %v1314, %v1313
    %v1373 = vpack.c.b16 %v1316, %v1315
    %v1374 = vpack.c.b16 %v1318, %v1317
    %v1375 = vpack.c.b16 %v1320, %v1319
    %v1376 = vpack.c.b16 %v1322, %v1321
    %v1377 = vpack.c.b16 %v1324, %v1323
    %v1378 = vpack.c.b16 %v1326, %v1325
    %v1379 = vpack.c.b16 %v1328, %v1327
    %v1380 = vpack.c.b16 %v1330, %v1329
    %v1381 = vpack.c.b16 %v1332, %v1331
    %v1382 = vpack.c.b16 %v1334, %v1333
    %1431 = vmatprep.subr.bf16.mxu0 0
    %1432 = vmatpush1.bf16.msra.mxu0 %v1342
    %1433 = vmatprep.subr.bf16.mxu0 0
    %1434 = vmatpush1.bf16.msra.mxu0 %v1341
    %1435 = vmatprep.subr.bf16.mxu0 0
    %1436 = vmatpush1.bf16.msra.mxu0 %v1340
    %1437 = vmatprep.subr.bf16.mxu0 0
    %1438 = vmatpush1.bf16.msra.mxu0 %v1339
    %1439 = vmatprep.subr.bf16.mxu0 0
    %1440 = vmatpush1.bf16.msra.mxu0 %v1338
    %1441 = vmatprep.subr.bf16.mxu0 0
    %1442 = vmatpush1.bf16.msra.mxu0 %v1337
    %1443 = vmatprep.subr.bf16.mxu0 0
    %1444 = vmatpush1.bf16.msra.mxu0 %v1336
    %1445 = vmatprep.subr.bf16.mxu0 0
    %1446 = vmatpush1.bf16.msra.mxu0 %v1335
    %1447 = vmatprep.subr.bf16.mxu0 0
    %1448 = vmatpush2.bf16.msra.mxu0 %v1350
    %1449 = vmatprep.subr.bf16.mxu0 0
    %1450 = vmatpush2.bf16.msra.mxu0 %v1349
    %1451 = vmatprep.subr.bf16.mxu0 0
    %1452 = vmatpush2.bf16.msra.mxu0 %v1348
    %1453 = vmatprep.subr.bf16.mxu0 0
    %1454 = vmatpush2.bf16.msra.mxu0 %v1347
    %1455 = vmatprep.subr.bf16.mxu0 0
    %1456 = vmatpush2.bf16.msra.mxu0 %v1346
    %1457 = vmatprep.subr.bf16.mxu0 0
    %1458 = vmatpush2.bf16.msra.mxu0 %v1345
    %1459 = vmatprep.subr.bf16.mxu0 0
    %1460 = vmatpush2.bf16.msra.mxu0 %v1344
    %1461 = vmatprep.subr.bf16.mxu0 0
    %1462 = vmatpush2.bf16.msra.mxu0 %v1343
    %1463 = vmatprep.mubr.bf16.mxu0 %v1127
    %1464 = vmatmul.mubr.bf16.gmra.mxu0 %v1113
    %v1465 = vpop.f32.mrf.mxu0
    %v1466 = vadd.f32 %v1087, %v1465
    %v1467 = vpop.f32.mrf.mxu0
    %v1468 = vpop.f32.mrf.mxu0
    %v1469 = vpop.f32.mrf.mxu0
    %1470 = vdwg.mxu0
    %1471 = vmatprep.subr.bf16.mxu0 0
    %1472 = vmatpush1.bf16.msra.mxu0 %v1358
    %1473 = vmatprep.subr.bf16.mxu0 0
    %1474 = vmatpush1.bf16.msra.mxu0 %v1357
    %1475 = vmatprep.subr.bf16.mxu0 0
    %1476 = vmatpush1.bf16.msra.mxu0 %v1356
    %1477 = vmatprep.subr.bf16.mxu0 0
    %1478 = vmatpush1.bf16.msra.mxu0 %v1355
    %1479 = vmatprep.subr.bf16.mxu0 0
    %1480 = vmatpush1.bf16.msra.mxu0 %v1354
    %1481 = vmatprep.subr.bf16.mxu0 0
    %1482 = vmatpush1.bf16.msra.mxu0 %v1353
    %1483 = vmatprep.subr.bf16.mxu0 0
    %1484 = vmatpush1.bf16.msra.mxu0 %v1352
    %1485 = vmatprep.subr.bf16.mxu0 0
    %1486 = vmatpush1.bf16.msra.mxu0 %v1351
    %1487 = vmatprep.subr.bf16.mxu0 0
    %1488 = vmatpush2.bf16.msra.mxu0 %v1366
    %1489 = vmatprep.subr.bf16.mxu0 0
    %1490 = vmatpush2.bf16.msra.mxu0 %v1365
    %1491 = vmatprep.subr.bf16.mxu0 0
    %1492 = vmatpush2.bf16.msra.mxu0 %v1364
    %1493 = vmatprep.subr.bf16.mxu0 0
    %1494 = vmatpush2.bf16.msra.mxu0 %v1363
    %1495 = vmatprep.subr.bf16.mxu0 0
    %1496 = vmatpush2.bf16.msra.mxu0 %v1362
    %1497 = vmatprep.subr.bf16.mxu0 0
    %1498 = vmatpush2.bf16.msra.mxu0 %v1361
    %1499 = vmatprep.subr.bf16.mxu0 0
    %1500 = vmatpush2.bf16.msra.mxu0 %v1360
    %1501 = vmatprep.subr.bf16.mxu0 0
    %1502 = vmatpush2.bf16.msra.mxu0 %v1359
    %1503 = vmatprep.mubr.bf16.mxu0 %v1136
    %1504 = vmatmul.mubr.bf16.gmra.mxu0 %v1135
    %v1505 = vpop.f32.mrf.mxu0
    %v1506 = vadd.f32 %v1466, %v1505
    %v1507 = vpop.f32.mrf.mxu0
    %v1508 = vpop.f32.mrf.mxu0
    %v1509 = vpop.f32.mrf.mxu0
    %1510 = vdwg.mxu0
    %1511 = vmatprep.subr.bf16.mxu0 0
    %1512 = vmatpush1.bf16.msra.mxu0 %v1374
    %1513 = vmatprep.subr.bf16.mxu0 0
    %1514 = vmatpush1.bf16.msra.mxu0 %v1373
    %1515 = vmatprep.subr.bf16.mxu0 0
    %1516 = vmatpush1.bf16.msra.mxu0 %v1372
    %1517 = vmatprep.subr.bf16.mxu0 0
    %1518 = vmatpush1.bf16.msra.mxu0 %v1371
    %1519 = vmatprep.subr.bf16.mxu0 0
    %1520 = vmatpush1.bf16.msra.mxu0 %v1370
    %1521 = vmatprep.subr.bf16.mxu0 0
    %1522 = vmatpush1.bf16.msra.mxu0 %v1369
    %1523 = vmatprep.subr.bf16.mxu0 0
    %1524 = vmatpush1.bf16.msra.mxu0 %v1368
    %1525 = vmatprep.subr.bf16.mxu0 0
    %1526 = vmatpush1.bf16.msra.mxu0 %v1367
    %1527 = vmatprep.subr.bf16.mxu0 0
    %1528 = vmatpush2.bf16.msra.mxu0 %v1382
    %1529 = vmatprep.subr.bf16.mxu0 0
    %1530 = vmatpush2.bf16.msra.mxu0 %v1381
    %1531 = vmatprep.subr.bf16.mxu0 0
    %1532 = vmatpush2.bf16.msra.mxu0 %v1380
    %1533 = vmatprep.subr.bf16.mxu0 0
    %1534 = vmatpush2.bf16.msra.mxu0 %v1379
    %1535 = vmatprep.subr.bf16.mxu0 0
    %1536 = vmatpush2.bf16.msra.mxu0 %v1378
    %1537 = vmatprep.subr.bf16.mxu0 0
    %1538 = vmatpush2.bf16.msra.mxu0 %v1377
    %1539 = vmatprep.subr.bf16.mxu0 0
    %1540 = vmatpush2.bf16.msra.mxu0 %v1376
    %1541 = vmatprep.subr.bf16.mxu0 0
    %1542 = vmatpush2.bf16.msra.mxu0 %v1375
    %1543 = vmatprep.mubr.bf16.mxu0 %v1134
    %1544 = vmatmul.mubr.bf16.gmra.mxu0 %v1120
    %v1545 = vpop.f32.mrf.mxu0
    %v1546 = vadd.f32 %v1506, %v1545
    %v1547 = vpop.f32.mrf.mxu0
    %v1548 = vpop.f32.mrf.mxu0
    %v1549 = vpop.f32.mrf.mxu0
    %1550 = vdwg.mxu0
    %v1551 = vpack.c.bf16 %v414, %v414
    %v1552 = vld [vmem:[%s9] sm:$0xf]
    %v1553 = vld [vmem:[%s9 + $0x4] sm:$0xf]
    %v1554 = vld [vmem:[%s9 + $0x8] sm:$0xf]
    %v1555 = vld [vmem:[%s9 + $0xc] sm:$0xf]
    %v1556 = vld [vmem:[%s9 + $0x10] sm:$0xf]
    %v1557 = vld [vmem:[%s9 + $0x14] sm:$0xf]
    %v1558 = vld [vmem:[%s9 + $0x18] sm:$0xf]
    %v1559 = vld [vmem:[%s9 + $0x1c] sm:$0xf]
    %v1560 = vld [vmem:[%s9 + $0x20] sm:$0xf]
    %v1561 = vld [vmem:[%s9 + $0x24] sm:$0xf]
    %v1562 = vld [vmem:[%s9 + $0x28] sm:$0xf]
    %v1563 = vld [vmem:[%s9 + $0x2c] sm:$0xf]
    %v1564 = vld [vmem:[%s9 + $0x30] sm:$0xf]
    %v1565 = vld [vmem:[%s9 + $0x34] sm:$0xf]
    %v1566 = vld [vmem:[%s9 + $0x38] sm:$0xf]
    %v1567 = vld [vmem:[%s9 + $0x3c] sm:$0xf]
    %v1568 = vpack.c.bf16 %v980, %v980
    %v1569 = vld [vmem:[%s10] sm:$0xf]
    %v1570 = vld [vmem:[%s10 + $0x4] sm:$0xf]
    %v1571 = vld [vmem:[%s10 + $0x8] sm:$0xf]
    %v1572 = vld [vmem:[%s10 + $0xc] sm:$0xf]
    %v1573 = vld [vmem:[%s10 + $0x10] sm:$0xf]
    %v1574 = vld [vmem:[%s10 + $0x14] sm:$0xf]
    %v1575 = vld [vmem:[%s10 + $0x18] sm:$0xf]
    %v1576 = vld [vmem:[%s10 + $0x1c] sm:$0xf]
    %v1577 = vld [vmem:[%s10 + $0x20] sm:$0xf]
    %v1578 = vld [vmem:[%s10 + $0x24] sm:$0xf]
    %v1579 = vld [vmem:[%s10 + $0x28] sm:$0xf]
    %v1580 = vld [vmem:[%s10 + $0x2c] sm:$0xf]
    %v1581 = vld [vmem:[%s10 + $0x30] sm:$0xf]
    %v1582 = vld [vmem:[%s10 + $0x34] sm:$0xf]
    %v1583 = vld [vmem:[%s10 + $0x38] sm:$0xf]
    %v1584 = vld [vmem:[%s10 + $0x3c] sm:$0xf]
    %v1601 = vunpack.c.l.b16 %v1569
    %v1602 = vunpack.c.l.b16 %v1570
    %v1603 = vunpack.c.l.b16 %v1571
    %v1604 = vunpack.c.l.b16 %v1572
    %v1605 = vunpack.c.l.b16 %v1573
    %v1606 = vunpack.c.l.b16 %v1574
    %v1607 = vunpack.c.l.b16 %v1575
    %v1608 = vunpack.c.l.b16 %v1576
    %v1609 = vunpack.c.l.b16 %v1577
    %v1610 = vunpack.c.l.b16 %v1578
    %v1611 = vunpack.c.l.b16 %v1579
    %v1612 = vunpack.c.l.b16 %v1580
    %v1613 = vunpack.c.l.b16 %v1581
    %v1614 = vunpack.c.l.b16 %v1582
    %v1615 = vunpack.c.l.b16 %v1583
    %v1616 = vunpack.c.l.b16 %v1584
    %v1617 = vpack.c.b16 %v1602, %v1601
    %v1618 = vpack.c.b16 %v1604, %v1603
    %v1619 = vpack.c.b16 %v1606, %v1605
    %v1620 = vpack.c.b16 %v1608, %v1607
    %v1621 = vpack.c.b16 %v1610, %v1609
    %v1622 = vpack.c.b16 %v1612, %v1611
    %v1623 = vpack.c.b16 %v1614, %v1613
    %v1624 = vpack.c.b16 %v1616, %v1615
    %1633 = vmatprep.subr.bf16.mxu0 0
    %1634 = vmatpush1.bf16.msra.mxu0 %v1624
    %1635 = vmatprep.subr.bf16.mxu0 0
    %1636 = vmatpush1.bf16.msra.mxu0 %v1623
    %1637 = vmatprep.subr.bf16.mxu0 0
    %1638 = vmatpush1.bf16.msra.mxu0 %v1622
    %1639 = vmatprep.subr.bf16.mxu0 0
    %1640 = vmatpush1.bf16.msra.mxu0 %v1621
    %1641 = vmatprep.subr.bf16.mxu0 0
    %1642 = vmatpush1.bf16.msra.mxu0 %v1620
    %1643 = vmatprep.subr.bf16.mxu0 0
    %1644 = vmatpush1.bf16.msra.mxu0 %v1619
    %1645 = vmatprep.subr.bf16.mxu0 0
    %1646 = vmatpush1.bf16.msra.mxu0 %v1618
    %1647 = vmatprep.subr.bf16.mxu0 0
    %1648 = vmatpush1.bf16.msra.mxu0 %v1617
    %1649 = vmatprep.subr.bf16.mxu0 0
    %1650 = vmatpush2.bf16.msra.mxu0 0
    %1651 = vmatprep.subr.bf16.mxu0 0
    %1652 = vmatpush2.bf16.msra.mxu0 0
    %1653 = vmatprep.subr.bf16.mxu0 0
    %1654 = vmatpush2.bf16.msra.mxu0 0
    %1655 = vmatprep.subr.bf16.mxu0 0
    %1656 = vmatpush2.bf16.msra.mxu0 0
    %1657 = vmatprep.subr.bf16.mxu0 0
    %1658 = vmatpush2.bf16.msra.mxu0 0
    %1659 = vmatprep.subr.bf16.mxu0 0
    %1660 = vmatpush2.bf16.msra.mxu0 0
    %1661 = vmatprep.subr.bf16.mxu0 0
    %1662 = vmatpush2.bf16.msra.mxu0 0
    %1663 = vmatprep.subr.bf16.mxu0 0
    %1664 = vmatpush2.bf16.msra.mxu0 0
    %1665 = vmatprep.mubr.bf16.mxu0 0
    %1666 = vmatmul.mubr.bf16.gmra.mxu0 %v1568
    %v1667 = vpop.f32.mrf.mxu0
    %v1668 = vadd.f32 0.0, %v1667
    %v1669 = vpop.f32.mrf.mxu0
    %v1670 = vpop.f32.mrf.mxu0
    %v1671 = vpop.f32.mrf.mxu0
    %1672 = vdwg.mxu0
    %v1689 = vunpack.c.l.b16 %v1552
    %v1690 = vunpack.c.l.b16 %v1553
    %v1691 = vunpack.c.l.b16 %v1554
    %v1692 = vunpack.c.l.b16 %v1555
    %v1693 = vunpack.c.l.b16 %v1556
    %v1694 = vunpack.c.l.b16 %v1557
    %v1695 = vunpack.c.l.b16 %v1558
    %v1696 = vunpack.c.l.b16 %v1559
    %v1697 = vunpack.c.l.b16 %v1560
    %v1698 = vunpack.c.l.b16 %v1561
    %v1699 = vunpack.c.l.b16 %v1562
    %v1700 = vunpack.c.l.b16 %v1563
    %v1701 = vunpack.c.l.b16 %v1564
    %v1702 = vunpack.c.l.b16 %v1565
    %v1703 = vunpack.c.l.b16 %v1566
    %v1704 = vunpack.c.l.b16 %v1567
    %v1705 = vpack.c.b16 %v1690, %v1689
    %v1706 = vpack.c.b16 %v1692, %v1691
    %v1707 = vpack.c.b16 %v1694, %v1693
    %v1708 = vpack.c.b16 %v1696, %v1695
    %v1709 = vpack.c.b16 %v1698, %v1697
    %v1710 = vpack.c.b16 %v1700, %v1699
    %v1711 = vpack.c.b16 %v1702, %v1701
    %v1712 = vpack.c.b16 %v1704, %v1703
    %1721 = vmatprep.subr.bf16.mxu0 0
    %1722 = vmatpush1.bf16.msra.mxu0 %v1712
    %1723 = vmatprep.subr.bf16.mxu0 0
    %1724 = vmatpush1.bf16.msra.mxu0 %v1711
    %1725 = vmatprep.subr.bf16.mxu0 0
    %1726 = vmatpush1.bf16.msra.mxu0 %v1710
    %1727 = vmatprep.subr.bf16.mxu0 0
    %1728 = vmatpush1.bf16.msra.mxu0 %v1709
    %1729 = vmatprep.subr.bf16.mxu0 0
    %1730 = vmatpush1.bf16.msra.mxu0 %v1708
    %1731 = vmatprep.subr.bf16.mxu0 0
    %1732 = vmatpush1.bf16.msra.mxu0 %v1707
    %1733 = vmatprep.subr.bf16.mxu0 0
    %1734 = vmatpush1.bf16.msra.mxu0 %v1706
    %1735 = vmatprep.subr.bf16.mxu0 0
    %1736 = vmatpush1.bf16.msra.mxu0 %v1705
    %1737 = vmatprep.subr.bf16.mxu0 0
    %1738 = vmatpush2.bf16.msra.mxu0 0
    %1739 = vmatprep.subr.bf16.mxu0 0
    %1740 = vmatpush2.bf16.msra.mxu0 0
    %1741 = vmatprep.subr.bf16.mxu0 0
    %1742 = vmatpush2.bf16.msra.mxu0 0
    %1743 = vmatprep.subr.bf16.mxu0 0
    %1744 = vmatpush2.bf16.msra.mxu0 0
    %1745 = vmatprep.subr.bf16.mxu0 0
    %1746 = vmatpush2.bf16.msra.mxu0 0
    %1747 = vmatprep.subr.bf16.mxu0 0
    %1748 = vmatpush2.bf16.msra.mxu0 0
    %1749 = vmatprep.subr.bf16.mxu0 0
    %1750 = vmatpush2.bf16.msra.mxu0 0
    %1751 = vmatprep.subr.bf16.mxu0 0
    %1752 = vmatpush2.bf16.msra.mxu0 0
    %1753 = vmatprep.mubr.bf16.mxu0 0
    %1754 = vmatmul.mubr.bf16.gmra.mxu0 %v1551
    %v1755 = vpop.f32.mrf.mxu0
    %v1756 = vadd.f32 %v1668, %v1755
    %v1757 = vpop.f32.mrf.mxu0
    %v1758 = vpop.f32.mrf.mxu0
    %v1759 = vpop.f32.mrf.mxu0
    %1760 = vdwg.mxu0
    %v1761 = vpack.c.bf16 %v1546, %v1546
    %v1762 = vld [vmem:[%s11] sm:$0xf]
    %v1763 = vld [vmem:[%s11 + $0x4] sm:$0xf]
    %v1764 = vld [vmem:[%s11 + $0x8] sm:$0xf]
    %v1765 = vld [vmem:[%s11 + $0xc] sm:$0xf]
    %v1766 = vld [vmem:[%s11 + $0x10] sm:$0xf]
    %v1767 = vld [vmem:[%s11 + $0x14] sm:$0xf]
    %v1768 = vld [vmem:[%s11 + $0x18] sm:$0xf]
    %v1769 = vld [vmem:[%s11 + $0x1c] sm:$0xf]
    %v1770 = vld [vmem:[%s11 + $0x20] sm:$0xf]
    %v1771 = vld [vmem:[%s11 + $0x24] sm:$0xf]
    %v1772 = vld [vmem:[%s11 + $0x28] sm:$0xf]
    %v1773 = vld [vmem:[%s11 + $0x2c] sm:$0xf]
    %v1774 = vld [vmem:[%s11 + $0x30] sm:$0xf]
    %v1775 = vld [vmem:[%s11 + $0x34] sm:$0xf]
    %v1776 = vld [vmem:[%s11 + $0x38] sm:$0xf]
    %v1777 = vld [vmem:[%s11 + $0x3c] sm:$0xf]
    %v1794 = vunpack.c.l.b16 %v1762
    %v1795 = vunpack.c.l.b16 %v1763
    %v1796 = vunpack.c.l.b16 %v1764
    %v1797 = vunpack.c.l.b16 %v1765
    %v1798 = vunpack.c.l.b16 %v1766
    %v1799 = vunpack.c.l.b16 %v1767
    %v1800 = vunpack.c.l.b16 %v1768
    %v1801 = vunpack.c.l.b16 %v1769
    %v1802 = vunpack.c.l.b16 %v1770
    %v1803 = vunpack.c.l.b16 %v1771
    %v1804 = vunpack.c.l.b16 %v1772
    %v1805 = vunpack.c.l.b16 %v1773
    %v1806 = vunpack.c.l.b16 %v1774
    %v1807 = vunpack.c.l.b16 %v1775
    %v1808 = vunpack.c.l.b16 %v1776
    %v1809 = vunpack.c.l.b16 %v1777
    %v1810 = vpack.c.b16 %v1795, %v1794
    %v1811 = vpack.c.b16 %v1797, %v1796
    %v1812 = vpack.c.b16 %v1799, %v1798
    %v1813 = vpack.c.b16 %v1801, %v1800
    %v1814 = vpack.c.b16 %v1803, %v1802
    %v1815 = vpack.c.b16 %v1805, %v1804
    %v1816 = vpack.c.b16 %v1807, %v1806
    %v1817 = vpack.c.b16 %v1809, %v1808
    %1826 = vmatprep.subr.bf16.mxu0 0
    %1827 = vmatpush1.bf16.msra.mxu0 %v1817
    %1828 = vmatprep.subr.bf16.mxu0 0
    %1829 = vmatpush1.bf16.msra.mxu0 %v1816
    %1830 = vmatprep.subr.bf16.mxu0 0
    %1831 = vmatpush1.bf16.msra.mxu0 %v1815
    %1832 = vmatprep.subr.bf16.mxu0 0
    %1833 = vmatpush1.bf16.msra.mxu0 %v1814
    %1834 = vmatprep.subr.bf16.mxu0 0
    %1835 = vmatpush1.bf16.msra.mxu0 %v1813
    %1836 = vmatprep.subr.bf16.mxu0 0
    %1837 = vmatpush1.bf16.msra.mxu0 %v1812
    %1838 = vmatprep.subr.bf16.mxu0 0
    %1839 = vmatpush1.bf16.msra.mxu0 %v1811
    %1840 = vmatprep.subr.bf16.mxu0 0
    %1841 = vmatpush1.bf16.msra.mxu0 %v1810
    %1842 = vmatprep.subr.bf16.mxu0 0
    %1843 = vmatpush2.bf16.msra.mxu0 0
    %1844 = vmatprep.subr.bf16.mxu0 0
    %1845 = vmatpush2.bf16.msra.mxu0 0
    %1846 = vmatprep.subr.bf16.mxu0 0
    %1847 = vmatpush2.bf16.msra.mxu0 0
    %1848 = vmatprep.subr.bf16.mxu0 0
    %1849 = vmatpush2.bf16.msra.mxu0 0
    %1850 = vmatprep.subr.bf16.mxu0 0
    %1851 = vmatpush2.bf16.msra.mxu0 0
    %1852 = vmatprep.subr.bf16.mxu0 0
    %1853 = vmatpush2.bf16.msra.mxu0 0
    %1854 = vmatprep.subr.bf16.mxu0 0
    %1855 = vmatpush2.bf16.msra.mxu0 0
    %1856 = vmatprep.subr.bf16.mxu0 0
    %1857 = vmatpush2.bf16.msra.mxu0 0
    %1858 = vmatprep.mubr.bf16.mxu0 0
    %1859 = vmatmul.mubr.bf16.gmra.mxu0 %v1761
    %v1860 = vpop.f32.mrf.mxu0
    %v1861 = vadd.f32 0.0, %v1860
    %v1862 = vpop.f32.mrf.mxu0
    %v1863 = vpop.f32.mrf.mxu0
    %v1864 = vpop.f32.mrf.mxu0
    %1865 = vdwg.mxu0
    %v1866 = vadd.f32 %v1756, %v1861
    %v1867 = vld [vmem:[%s12] sm:$0x1]
    %v1869 = vlaneseq
    %v1870 = vshrl.u32 %v1869, 7
    %v1871 = vsub.s32 0, %v1870
    %v1872 = vrot.slane %v1867, %v1871
    %v1874 = vadd.f32 %v1866, %v1872
    %vm1875 = vcmask 9216
    %1876 = vst.msk [vmem:[#allocation2] sm:$0x3] %vm1875, %v1874
    // Predicated region
    $region54: #{itm_model_forward.7} parent=1 // pred_check
      _
    $region55: #{itm_model_forward.7} parent=1 // pred_check_branch
      %1878 = sbr.rel (0) target = $region57
    $region56: #{itm_model_forward.7} parent=1 // pred_region
      %s1880 = ssub.s32 32, 32
      %1881 = vsyncadd [#allocation3], %s1880
      %s1883 = sshll.u32 [#allocation2], 4
      %s1884 = int_to_ptr.vmem [resolvable:$true] %s1883
      %1886 = dma.vmem_to_hbm [thread:$0]  %s1884, 32, %s13, [#allocation3]
    $region57: #{itm_model_forward.7} parent=1 // pred_fallthru
      _
    // Predicated region
    $region58: #{itm_model_forward.7} parent=1 // pred_check
      _
    $region59: #{itm_model_forward.7} parent=1 // pred_check_branch
      %1888 = sbr.rel (0) target = $region61
    $region60: #{itm_model_forward.7} parent=1 // pred_region
      %1889 = dma.done [#allocation3], 32
    $region61: #{itm_model_forward.7} parent=1 // pred_fallthru
      _
    %1890 = vsyncpa [#allocation3], 1

</llo_original>
